<compile_context>
chip_gen: v7x
topology: tpu7x:2x2x1
jax: 0.10.0
libtpu: 0.0.40
codegen_flags: <defaults>
</compile_context>

<pallas_src>
import math
import functools

import jax
import jax.numpy as jnp
from jax.experimental import pallas as pl

EPS = 1e-6

# ----------------------------------------------------------------------------
# model configuration (small, consistent with the module's __init__)
# ----------------------------------------------------------------------------
IMG, IN_CH, BATCH = 32, 3, 2
STAGE_CHS = (16, 24, 32)                      # encoder.feature_info num_chs
D_MODEL = 32
NUM_QUERIES_ARG = 8
NUM_CLASSES = [40]
EX_TOKENS = 0
SCALE_SKIP = 0
T_TEMP = 4.0
N_DEC_LAYERS = 2
D_FF = 64

PRE_CLS_NUM = math.ceil(sum(NUM_CLASSES) / NUM_QUERIES_ARG)             # 5
PART_NUM_QUERIES = [math.ceil(nc / PRE_CLS_NUM) for nc in NUM_CLASSES]  # [8]
NUM_QUERIES = sum(PART_NUM_QUERIES) + EX_TOKENS                         # 8

GRIDS = (IMG // 4, IMG // 8, IMG // 16)       # spatial size per scale: 8, 4, 2


# ----------------------------------------------------------------------------
# in-kernel helpers
# ----------------------------------------------------------------------------

def _rmsn(x, g):
    # RMSNorm over the last dim (f32 math)
    ms = jnp.mean(x * x, axis=-1, keepdims=True)
    return x * jax.lax.rsqrt(ms + EPS) * g


def _bdot(a, b):
    # bf16 MXU inputs, f32 accumulation
    return jnp.dot(a.astype(jnp.bfloat16), b.astype(jnp.bfloat16),
                   preferred_element_type=jnp.float32)


# ----------------------------------------------------------------------------
# Pallas kernels
# ----------------------------------------------------------------------------

def _stem_stage0_kernel(x_ref, sw_ref, sb_ref, g_ref, w_ref, b_ref, o_ref):
    # patch-embed linear + fused RMSNorm+Linear (stage 0), whole batch flattened
    y = _bdot(x_ref[...], sw_ref[...]) + sb_ref[...]
    o_ref[...] = _bdot(_rmsn(y, g_ref[...]), w_ref[...]) + b_ref[...]


def _rmsnorm_linear_kernel(x_ref, g_ref, w_ref, b_ref, o_ref):
    # fused RMSNorm + Linear, whole batch flattened to 2D, single step
    o_ref[...] = _bdot(_rmsn(x_ref[...], g_ref[...]), w_ref[...]) + b_ref[...]


def _decode_kernel(tok0_ref, tok1_ref, tok2_ref,
                   pos0_ref, pos1_ref, pos2_ref, qemb_ref,
                   ft0_g, ft0_w, ft0_b, ft1_g, ft1_w, ft1_b, ft2_g, ft2_w, ft2_b,
                   wq_ref, wkv_ref, wo_ref, w1_ref, b1_ref, w2_ref, b2_ref,
                   fg_ref, clsw_ref, clsb_ref, o_ref,
                   *, n_layers, num_q, d_model, temp):
    # Fused decode path: feats_trans + N cross-attention decoder layers + head.
    # Everything stays resident in VMEM; single grid step for the whole batch.
    B = tok0_ref.shape[0]
    D = d_model
    P = clsw_ref.shape[-1]
    scale = 1.0 / math.sqrt(D)

    tok_refs = (tok0_ref, tok1_ref, tok2_ref)
    ft_refs = ((ft0_g, ft0_w, ft0_b), (ft1_g, ft1_w, ft1_b), (ft2_g, ft2_w, ft2_b))
    pos_vals = (pos0_ref[...], pos1_ref[...], pos2_ref[...])

    # ---- feats_trans: RMSNorm + Linear per scale -> per-batch memory chunks.
    # The multi-scale memory is kept chunked; the attention softmax is combined
    # across chunks flash-style so no in-kernel concatenation is required.
    mem = []
    for b in range(B):
        chunks = []
        for tref, (g_r, w_r, b_r) in zip(tok_refs, ft_refs):
            t = tref[b]                                        # (S_c, C_c)
            chunks.append(_bdot(_rmsn(t, g_r[...]), w_r[...]) + b_r[...])
        mem.append(chunks)

    # ---- decoder layers (stacked weights, static unrolled loop)
    xq = [qemb_ref[...] for _ in range(B)]                     # (Q, D) each
    outs = []                                                  # outs[l][b]
    for l in range(n_layers):
        wq_l = wq_ref[l]                                       # (D, D)
        wkv_l = wkv_ref[l]                                     # (D, 2D) fused K|V
        wo_l = wo_ref[l]
        w1_l = w1_ref[l]
        b1_l = b1_ref[l]
        w2_l = w2_ref[l]
        b2_l = b2_ref[l]
        wk_l = wkv_l[:, :D]
        # batch-invariant positional projection, hoisted: computed once / layer
        pk = [_bdot(p, wk_l) for p in pos_vals]

        layer_out = []
        for b in range(B):
            q_in = xq[b]
            qq = _bdot(q_in, wq_l)                             # (Q, D)
            s_list, v_list = [], []
            for m_c, pk_c in zip(mem[b], pk):
                kv = _bdot(m_c, wkv_l)                         # (S_c, 2D), one pass
                kk = kv[:, :D] + pk_c                          # (m+pos) @ Wk
                vv = kv[:, D:]
                s = jax.lax.dot_general(
                    qq, kk, (((1,), (1,)), ((), ())),
                    preferred_element_type=jnp.float32) * scale
                s_list.append(s)                               # (Q, S_c)
                v_list.append(vv)
            # softmax over the union of all key chunks
            m_row = s_list[0].max(axis=-1, keepdims=True)
            for s in s_list[1:]:
                m_row = jnp.maximum(m_row, s.max(axis=-1, keepdims=True))
            den = None
            num = None
            for s, vv in zip(s_list, v_list):
                e = jnp.exp(s - m_row)
                dpart = jnp.sum(e, axis=-1, keepdims=True)
                npart = _bdot(e, vv)
                den = dpart if den is None else den + dpart
                num = npart if num is None else num + npart
            ctx = num * pl.reciprocal(den, approx=True)        # (Q, D)
            x = q_in + _bdot(ctx, wo_l)
            h = jnp.maximum(_bdot(x, w1_l) + b1_l, 0.0)
            x = x + _bdot(h, w2_l) + b2_l
            layer_out.append(x)
        xq = layer_out
        outs.append(layer_out)

    # ---- head: final RMSNorm, temperature softmax over decoder layers,
    #      weighted sum, GroupLinear (per-query weights), sigmoid.
    fg = fg_ref[...]                                           # (1, D)
    row_idx = jax.lax.broadcasted_iota(jnp.int32, (num_q, P), 0)
    for b in range(B):
        xs = [_rmsn(outs[l][b], fg) for l in range(n_layers)]  # (Q, D) each
        zmax = xs[0] * temp
        for xn in xs[1:]:
            zmax = jnp.maximum(zmax, xn * temp)
        den = None
        num = None
        for xn in xs:
            e = jnp.exp(xn * temp - zmax)
            den = e if den is None else den + e
            num = xn * e if num is None else num + xn * e
        agg = num * pl.reciprocal(den, approx=True)            # (Q, D)
        # GroupLinear: out[q, :] = agg[q, :] @ W[q] + b[q], via masked sum of
        # tiny per-group matmuls (keeps everything 2D / MXU-friendly).
        logits = clsb_ref[...]                                 # (Q, P)
        for qi in range(num_q):
            full = _bdot(agg, clsw_ref[qi])                    # (Q, P)
            logits = logits + jnp.where(row_idx == qi, full, 0.0)
        o_ref[b] = jax.nn.sigmoid(logits)                      # (Q, P)


# ----------------------------------------------------------------------------
# Pallas wrappers (gridless, whole-array blocks in VMEM)
# ----------------------------------------------------------------------------

def stem_stage0(x2d, params):
    n = x2d.shape[0]
    return pl.pallas_call(
        _stem_stage0_kernel,
        out_shape=jax.ShapeDtypeStruct((n, STAGE_CHS[0]), jnp.float32),
    )(x2d, params['stem_w'].astype(jnp.bfloat16), params['stem_b'],
      params['s0_g'], params['s0_w'].astype(jnp.bfloat16), params['s0_b'])


def rmsnorm_linear(x2d, g, w, bias):
    n = x2d.shape[0]
    d = w.shape[1]
    return pl.pallas_call(
        _rmsnorm_linear_kernel,
        out_shape=jax.ShapeDtypeStruct((n, d), jnp.float32),
    )(x2d, g, w.astype(jnp.bfloat16), bias)


def decode_fused(tok0, tok1, tok2, params):
    b = tok0.shape[0]
    bf = lambda a: a.astype(jnp.bfloat16)
    pos = [sine_pos_encoding(g, g, D_MODEL).reshape(g * g, D_MODEL) for g in GRIDS]
    kern = functools.partial(_decode_kernel, n_layers=N_DEC_LAYERS,
                             num_q=NUM_QUERIES, d_model=D_MODEL, temp=T_TEMP)
    return pl.pallas_call(
        kern,
        out_shape=jax.ShapeDtypeStruct((b, NUM_QUERIES, PRE_CLS_NUM), jnp.float32),
    )(tok0, tok1, tok2, pos[0], pos[1], pos[2], params['query_embed'],
      params['ft0_g'], bf(params['ft0_w']), params['ft0_b'],
      params['ft1_g'], bf(params['ft1_w']), params['ft1_b'],
      params['ft2_g'], bf(params['ft2_w']), params['ft2_b'],
      bf(params['dec_wq']), bf(params['dec_wkv']), bf(params['dec_wo']),
      bf(params['dec_w1']), params['dec_b1'],
      bf(params['dec_w2']), params['dec_b2'],
      params['final_g'], bf(params['cls_w']), params['cls_b'])


# ----------------------------------------------------------------------------
# Glue: positional encoding, patch merging, parameters
# ----------------------------------------------------------------------------

def sine_pos_encoding(H, W, d_model, temperature=10000.0):
    # DETR-style 'sine' positional encoding (normalized), returns (H, W, d_model)
    npf = d_model // 2
    y = jnp.arange(1, H + 1, dtype=jnp.float32)[:, None] * jnp.ones((1, W), jnp.float32)
    x = jnp.arange(1, W + 1, dtype=jnp.float32)[None, :] * jnp.ones((H, 1), jnp.float32)
    scale = 2.0 * math.pi
    y = y / (y[-1:, :] + EPS) * scale
    x = x / (x[:, -1:] + EPS) * scale
    dim_t = jnp.arange(npf, dtype=jnp.float32)
    dim_t = temperature ** (2.0 * jnp.floor(dim_t / 2.0) / npf)
    px = x[:, :, None] / dim_t
    py = y[:, :, None] / dim_t
    px = jnp.stack([jnp.sin(px[:, :, 0::2]), jnp.cos(px[:, :, 1::2])], axis=3).reshape(H, W, -1)
    py = jnp.stack([jnp.sin(py[:, :, 0::2]), jnp.cos(py[:, :, 1::2])], axis=3).reshape(H, W, -1)
    return jnp.concatenate([py, px], axis=-1)


def patch_merge(x, p):
    # (B, H, W, C) -> (B, H//p, W//p, p*p*C)
    B, H, W, C = x.shape
    x = x.reshape(B, H // p, p, W // p, p, C)
    x = x.transpose(0, 1, 3, 2, 4, 5).reshape(B, H // p, W // p, p * p * C)
    return x


def init_params(key):
    ks = jax.random.split(key, 24)
    dense = lambda k, fi, fo: jax.random.normal(k, (fi, fo), jnp.float32) * 0.02
    p = {}
    # encoder (stand-in): stem 4x4 patch-embed + 3 patch-merge stages
    p['stem_w'] = dense(ks[0], IN_CH * 16, STAGE_CHS[0])
    p['stem_b'] = jnp.zeros((1, STAGE_CHS[0]), jnp.float32)
    p['s0_g'] = jnp.ones((1, STAGE_CHS[0]), jnp.float32)
    p['s0_w'] = dense(ks[1], STAGE_CHS[0], STAGE_CHS[0])
    p['s0_b'] = jnp.zeros((1, STAGE_CHS[0]), jnp.float32)
    p['s1_g'] = jnp.ones((1, STAGE_CHS[0] * 4), jnp.float32)
    p['s1_w'] = dense(ks[2], STAGE_CHS[0] * 4, STAGE_CHS[1])
    p['s1_b'] = jnp.zeros((1, STAGE_CHS[1]), jnp.float32)
    p['s2_g'] = jnp.ones((1, STAGE_CHS[1] * 4), jnp.float32)
    p['s2_w'] = dense(ks[3], STAGE_CHS[1] * 4, STAGE_CHS[2])
    p['s2_b'] = jnp.zeros((1, STAGE_CHS[2]), jnp.float32)
    # feats_trans: RMSNorm(num_chs) + Linear(num_chs, d_model) per scale
    for i, c in enumerate(STAGE_CHS):
        p[f'ft{i}_g'] = jnp.ones((1, c), jnp.float32)
        p[f'ft{i}_w'] = dense(ks[4 + i], c, D_MODEL)
        p[f'ft{i}_b'] = jnp.zeros((1, D_MODEL), jnp.float32)
    # query embedding
    p['query_embed'] = jax.random.normal(ks[7], (NUM_QUERIES, D_MODEL), jnp.float32)
    # decoder layers, stacked along the layer axis (fused Wk|Wv)
    wq, wk, wv, wo, w1, w2 = [], [], [], [], [], []
    for l in range(N_DEC_LAYERS):
        base = 8 + 6 * l
        wq.append(dense(ks[base + 0], D_MODEL, D_MODEL))
        wk.append(dense(ks[base + 1], D_MODEL, D_MODEL))
        wv.append(dense(ks[base + 2], D_MODEL, D_MODEL))
        wo.append(dense(ks[base + 3], D_MODEL, D_MODEL))
        w1.append(dense(ks[base + 4], D_MODEL, D_FF))
        w2.append(dense(ks[base + 5], D_FF, D_MODEL))
    p['dec_wq'] = jnp.stack(wq)                                            # (N, D, D)
    p['dec_wkv'] = jnp.concatenate([jnp.stack(wk), jnp.stack(wv)], axis=-1)  # (N, D, 2D)
    p['dec_wo'] = jnp.stack(wo)                                            # (N, D, D)
    p['dec_w1'] = jnp.stack(w1)                                            # (N, D, Dff)
    p['dec_b1'] = jnp.zeros((N_DEC_LAYERS, 1, D_FF), jnp.float32)
    p['dec_w2'] = jnp.stack(w2)                                            # (N, Dff, D)
    p['dec_b2'] = jnp.zeros((N_DEC_LAYERS, 1, D_MODEL), jnp.float32)
    # final_norm + GroupLinear(d_model, pre_cls_num, group=num_queries)
    p['final_g'] = jnp.ones((1, D_MODEL), jnp.float32)
    p['cls_w'] = jax.random.normal(ks[20], (NUM_QUERIES, D_MODEL, PRE_CLS_NUM),
                                   jnp.float32) * 0.02
    p['cls_b'] = jnp.zeros((NUM_QUERIES, PRE_CLS_NUM), jnp.float32)
    return p


# ----------------------------------------------------------------------------
# Forward pass
# ----------------------------------------------------------------------------

def forward(params, x_nchw):
    x = jnp.transpose(x_nchw, (0, 2, 3, 1)).astype(jnp.float32)   # NCHW -> NHWC
    b = x.shape[0]
    g0, g1, g2 = GRIDS

    # ---------------- encode ----------------
    # TODO(synk): the CAFormer-sparse encoder stages are not specified in the
    # reference; a patch-merge + fused (RMSNorm+Linear) stand-in producing the
    # documented feature_info channel widths is used instead.
    t = patch_merge(x, 4).reshape(b * g0 * g0, IN_CH * 16)        # (B*64, 48)
    tok0f = stem_stage0(t, params)                                # (B*64, 16)
    f0 = tok0f.reshape(b, g0, g0, STAGE_CHS[0])

    t1 = patch_merge(f0, 2).reshape(b * g1 * g1, STAGE_CHS[0] * 4)
    tok1f = rmsnorm_linear(t1, params['s1_g'], params['s1_w'], params['s1_b'])
    f1 = tok1f.reshape(b, g1, g1, STAGE_CHS[1])

    t2 = patch_merge(f1, 2).reshape(b * g2 * g2, STAGE_CHS[1] * 4)
    tok2f = rmsnorm_linear(t2, params['s2_g'], params['s2_w'], params['s2_b'])

    # TODO(synk): exact per-stage sparse auxiliary loss formula is internal to
    # the unspecified encoder stages; mean-square is used as a stand-in.
    feat_loss = (jnp.mean(tok0f * tok0f) + jnp.mean(tok1f * tok1f)
                 + jnp.mean(tok2f * tok2f))

    # ---------------- fused decode + head (single pallas_call) ----------------
    # TODO(synk): MSDecoder internals are unspecified; a 2-layer single-head
    # cross-attention + FFN decoder returning all intermediate layer outputs
    # ('b (n q) c') is used as a stand-in.
    tok0 = tok0f.reshape(b, g0 * g0, STAGE_CHS[0])
    tok1 = tok1f.reshape(b, g1 * g1, STAGE_CHS[1])
    tok2 = tok2f.reshape(b, g2 * g2, STAGE_CHS[2])
    pred_bqp = decode_fused(tok0, tok1, tok2, params)             # (B, Q, P)
    pred = pred_bqp.reshape(b, NUM_QUERIES * PRE_CLS_NUM)[:, :NUM_CLASSES[0]]
    return pred, feat_loss[None]


# ----------------------------------------------------------------------------

if __name__ == "__main__":
    key = jax.random.PRNGKey(0)
    pkey, xkey = jax.random.split(key)
    params = init_params(pkey)
    x = jax.random.normal(xkey, (BATCH, IN_CH, IMG, IMG), jnp.float32)  # NCHW input

    fwd = jax.jit(forward)
    pred, feat_loss = fwd(params, x)
    jax.block_until_ready((pred, feat_loss))

    assert pred.shape == (BATCH, NUM_CLASSES[0]), pred.shape
    assert feat_loss.shape == (1,), feat_loss.shape
    assert bool(jnp.all(jnp.isfinite(pred))) and bool(jnp.all((pred >= 0) & (pred <= 1)))
    print("KERNEL_OK")
</pallas_src>

<mosaic_0001>
module attributes {stable_mosaic.version = 11 : i64} {
  func.func @_stem_stage0_kernel(%arg0: memref<128x48xf32, #tpu.memory_space<vmem>>, %arg1: memref<48x16xbf16, #tpu.memory_space<vmem>>, %arg2: memref<1x16xf32, #tpu.memory_space<vmem>>, %arg3: memref<1x16xf32, #tpu.memory_space<vmem>>, %arg4: memref<16x16xbf16, #tpu.memory_space<vmem>>, %arg5: memref<1x16xf32, #tpu.memory_space<vmem>>, %arg6: memref<128x16xf32, #tpu.memory_space<vmem>>) attributes {dimension_semantics = [], scalar_prefetch = 0 : i64, scratch_operands = 0 : i64, tpu.core_type = #tpu.core_type<tc>} {
    %c0 = arith.constant 0 : index
    %c0_0 = arith.constant 0 : index
    %0 = vector.load %arg0[%c0, %c0_0] : memref<128x48xf32, #tpu.memory_space<vmem>>, vector<128x48xf32>
    %c0_1 = arith.constant 0 : index
    %c0_2 = arith.constant 0 : index
    %1 = vector.load %arg1[%c0_1, %c0_2] : memref<48x16xbf16, #tpu.memory_space<vmem>>, vector<48x16xbf16>
    %2 = arith.truncf %0 : vector<128x48xf32> to vector<128x48xbf16>
    %cst = arith.constant dense<0.000000e+00> : vector<128x16xf32>
    %3 = tpu.matmul %2, %1, %cst {dimension_numbers = #tpu.dot_dimension_numbers<[1], [0], [0], [1], [0, 0, 1, 1], [], []>} : vector<128x48xbf16>, vector<48x16xbf16>, vector<128x16xf32> -> vector<128x16xf32>
    %c0_3 = arith.constant 0 : index
    %c0_4 = arith.constant 0 : index
    %4 = vector.load %arg2[%c0_3, %c0_4] : memref<1x16xf32, #tpu.memory_space<vmem>>, vector<1x16xf32>
    %5 = vector.broadcast %4 : vector<1x16xf32> to vector<128x16xf32>
    %6 = arith.addf %3, %5 : vector<128x16xf32>
    %c0_5 = arith.constant 0 : index
    %c0_6 = arith.constant 0 : index
    %7 = vector.load %arg3[%c0_5, %c0_6] : memref<1x16xf32, #tpu.memory_space<vmem>>, vector<1x16xf32>
    %8 = arith.mulf %6, %6 : vector<128x16xf32>
    %cst_7 = arith.constant dense<0.000000e+00> : vector<128xf32>
    %9 = vector.multi_reduction <add>, %8, %cst_7 [1] : vector<128x16xf32> to vector<128xf32>
    %10 = vector.shape_cast %9 : vector<128xf32> to vector<128x1xf32>
    %cst_8 = arith.constant 1.600000e+01 : f32
    %11 = vector.broadcast %cst_8 : f32 to vector<128x1xf32>
    %12 = arith.divf %10, %11 : vector<128x1xf32>
    %cst_9 = arith.constant 9.99999997E-7 : f32
    %13 = vector.broadcast %cst_9 : f32 to vector<128x1xf32>
    %14 = arith.addf %12, %13 : vector<128x1xf32>
    %15 = math.rsqrt %14 : vector<128x1xf32>
    %16 = vector.broadcast %15 : vector<128x1xf32> to vector<128x16xf32>
    %17 = arith.mulf %6, %16 : vector<128x16xf32>
    %18 = vector.broadcast %7 : vector<1x16xf32> to vector<128x16xf32>
    %19 = arith.mulf %17, %18 : vector<128x16xf32>
    %c0_10 = arith.constant 0 : index
    %c0_11 = arith.constant 0 : index
    %20 = vector.load %arg4[%c0_10, %c0_11] : memref<16x16xbf16, #tpu.memory_space<vmem>>, vector<16x16xbf16>
    %21 = arith.truncf %19 : vector<128x16xf32> to vector<128x16xbf16>
    %cst_12 = arith.constant dense<0.000000e+00> : vector<128x16xf32>
    %22 = tpu.matmul %21, %20, %cst_12 {dimension_numbers = #tpu.dot_dimension_numbers<[1], [0], [0], [1], [0, 0, 1, 1], [], []>} : vector<128x16xbf16>, vector<16x16xbf16>, vector<128x16xf32> -> vector<128x16xf32>
    %c0_13 = arith.constant 0 : index
    %c0_14 = arith.constant 0 : index
    %23 = vector.load %arg5[%c0_13, %c0_14] : memref<1x16xf32, #tpu.memory_space<vmem>>, vector<1x16xf32>
    %24 = vector.broadcast %23 : vector<1x16xf32> to vector<128x16xf32>
    %25 = arith.addf %22, %24 : vector<128x16xf32>
    %c0_15 = arith.constant 0 : index
    %c0_16 = arith.constant 0 : index
    %26 = vector.load %arg6[%c0_15, %c0_16] : memref<128x16xf32, #tpu.memory_space<vmem>>, vector<128x16xf32>
    tpu.vector_store %arg6[%c0_15, %c0_16], %25 {strides = array<i32>} : memref<128x16xf32, #tpu.memory_space<vmem>>, vector<128x16xf32>,
    return
  }
}

module attributes {stable_mosaic.version = 11 : i64} {
  func.func @_rmsnorm_linear_kernel(%arg0: memref<32x64xf32, #tpu.memory_space<vmem>>, %arg1: memref<1x64xf32, #tpu.memory_space<vmem>>, %arg2: memref<64x24xbf16, #tpu.memory_space<vmem>>, %arg3: memref<1x24xf32, #tpu.memory_space<vmem>>, %arg4: memref<32x24xf32, #tpu.memory_space<vmem>>) attributes {dimension_semantics = [], scalar_prefetch = 0 : i64, scratch_operands = 0 : i64, tpu.core_type = #tpu.core_type<tc>} {
    %c0 = arith.constant 0 : index
    %c0_0 = arith.constant 0 : index
    %0 = vector.load %arg0[%c0, %c0_0] : memref<32x64xf32, #tpu.memory_space<vmem>>, vector<32x64xf32>
    %c0_1 = arith.constant 0 : index
    %c0_2 = arith.constant 0 : index
    %1 = vector.load %arg1[%c0_1, %c0_2] : memref<1x64xf32, #tpu.memory_space<vmem>>, vector<1x64xf32>
    %2 = arith.mulf %0, %0 : vector<32x64xf32>
    %cst = arith.constant dense<0.000000e+00> : vector<32xf32>
    %3 = vector.multi_reduction <add>, %2, %cst [1] : vector<32x64xf32> to vector<32xf32>
    %4 = vector.shape_cast %3 : vector<32xf32> to vector<32x1xf32>
    %cst_3 = arith.constant 6.400000e+01 : f32
    %5 = vector.broadcast %cst_3 : f32 to vector<32x1xf32>
    %6 = arith.divf %4, %5 : vector<32x1xf32>
    %cst_4 = arith.constant 9.99999997E-7 : f32
    %7 = vector.broadcast %cst_4 : f32 to vector<32x1xf32>
    %8 = arith.addf %6, %7 : vector<32x1xf32>
    %9 = math.rsqrt %8 : vector<32x1xf32>
    %10 = vector.broadcast %9 : vector<32x1xf32> to vector<32x64xf32>
    %11 = arith.mulf %0, %10 : vector<32x64xf32>
    %12 = vector.broadcast %1 : vector<1x64xf32> to vector<32x64xf32>
    %13 = arith.mulf %11, %12 : vector<32x64xf32>
    %c0_5 = arith.constant 0 : index
    %c0_6 = arith.constant 0 : index
    %14 = vector.load %arg2[%c0_5, %c0_6] : memref<64x24xbf16, #tpu.memory_space<vmem>>, vector<64x24xbf16>
    %15 = arith.truncf %13 : vector<32x64xf32> to vector<32x64xbf16>
    %cst_7 = arith.constant dense<0.000000e+00> : vector<32x24xf32>
    %16 = tpu.matmul %15, %14, %cst_7 {dimension_numbers = #tpu.dot_dimension_numbers<[1], [0], [0], [1], [0, 0, 1, 1], [], []>} : vector<32x64xbf16>, vector<64x24xbf16>, vector<32x24xf32> -> vector<32x24xf32>
    %c0_8 = arith.constant 0 : index
    %c0_9 = arith.constant 0 : index
    %17 = vector.load %arg3[%c0_8, %c0_9] : memref<1x24xf32, #tpu.memory_space<vmem>>, vector<1x24xf32>
    %18 = vector.broadcast %17 : vector<1x24xf32> to vector<32x24xf32>
    %19 = arith.addf %16, %18 : vector<32x24xf32>
    %c0_10 = arith.constant 0 : index
    %c0_11 = arith.constant 0 : index
    %20 = vector.load %arg4[%c0_10, %c0_11] : memref<32x24xf32, #tpu.memory_space<vmem>>, vector<32x24xf32>
    tpu.vector_store %arg4[%c0_10, %c0_11], %19 {strides = array<i32>} : memref<32x24xf32, #tpu.memory_space<vmem>>, vector<32x24xf32>,
    return
  }
}

module attributes {stable_mosaic.version = 11 : i64} {
  func.func @_rmsnorm_linear_kernel(%arg0: memref<8x96xf32, #tpu.memory_space<vmem>>, %arg1: memref<1x96xf32, #tpu.memory_space<vmem>>, %arg2: memref<96x32xbf16, #tpu.memory_space<vmem>>, %arg3: memref<1x32xf32, #tpu.memory_space<vmem>>, %arg4: memref<8x32xf32, #tpu.memory_space<vmem>>) attributes {dimension_semantics = [], scalar_prefetch = 0 : i64, scratch_operands = 0 : i64, tpu.core_type = #tpu.core_type<tc>} {
    %c0 = arith.constant 0 : index
    %c0_0 = arith.constant 0 : index
    %0 = vector.load %arg0[%c0, %c0_0] : memref<8x96xf32, #tpu.memory_space<vmem>>, vector<8x96xf32>
    %c0_1 = arith.constant 0 : index
    %c0_2 = arith.constant 0 : index
    %1 = vector.load %arg1[%c0_1, %c0_2] : memref<1x96xf32, #tpu.memory_space<vmem>>, vector<1x96xf32>
    %2 = arith.mulf %0, %0 : vector<8x96xf32>
    %cst = arith.constant dense<0.000000e+00> : vector<8xf32>
    %3 = vector.multi_reduction <add>, %2, %cst [1] : vector<8x96xf32> to vector<8xf32>
    %4 = vector.shape_cast %3 : vector<8xf32> to vector<8x1xf32>
    %cst_3 = arith.constant 9.600000e+01 : f32
    %5 = vector.broadcast %cst_3 : f32 to vector<8x1xf32>
    %6 = arith.divf %4, %5 : vector<8x1xf32>
    %cst_4 = arith.constant 9.99999997E-7 : f32
    %7 = vector.broadcast %cst_4 : f32 to vector<8x1xf32>
    %8 = arith.addf %6, %7 : vector<8x1xf32>
    %9 = math.rsqrt %8 : vector<8x1xf32>
    %10 = vector.broadcast %9 : vector<8x1xf32> to vector<8x96xf32>
    %11 = arith.mulf %0, %10 : vector<8x96xf32>
    %12 = vector.broadcast %1 : vector<1x96xf32> to vector<8x96xf32>
    %13 = arith.mulf %11, %12 : vector<8x96xf32>
    %c0_5 = arith.constant 0 : index
    %c0_6 = arith.constant 0 : index
    %14 = vector.load %arg2[%c0_5, %c0_6] : memref<96x32xbf16, #tpu.memory_space<vmem>>, vector<96x32xbf16>
    %15 = arith.truncf %13 : vector<8x96xf32> to vector<8x96xbf16>
    %cst_7 = arith.constant dense<0.000000e+00> : vector<8x32xf32>
    %16 = tpu.matmul %15, %14, %cst_7 {dimension_numbers = #tpu.dot_dimension_numbers<[1], [0], [0], [1], [0, 0, 1, 1], [], []>} : vector<8x96xbf16>, vector<96x32xbf16>, vector<8x32xf32> -> vector<8x32xf32>
    %c0_8 = arith.constant 0 : index
    %c0_9 = arith.constant 0 : index
    %17 = vector.load %arg3[%c0_8, %c0_9] : memref<1x32xf32, #tpu.memory_space<vmem>>, vector<1x32xf32>
    %18 = vector.broadcast %17 : vector<1x32xf32> to vector<8x32xf32>
    %19 = arith.addf %16, %18 : vector<8x32xf32>
    %c0_10 = arith.constant 0 : index
    %c0_11 = arith.constant 0 : index
    %20 = vector.load %arg4[%c0_10, %c0_11] : memref<8x32xf32, #tpu.memory_space<vmem>>, vector<8x32xf32>
    tpu.vector_store %arg4[%c0_10, %c0_11], %19 {strides = array<i32>} : memref<8x32xf32, #tpu.memory_space<vmem>>, vector<8x32xf32>,
    return
  }
}

module attributes {stable_mosaic.version = 11 : i64} {
  func.func @_decode_kernel(%arg0: memref<2x64x16xf32, #tpu.memory_space<vmem>>, %arg1: memref<2x16x24xf32, #tpu.memory_space<vmem>>, %arg2: memref<2x4x32xf32, #tpu.memory_space<vmem>>, %arg3: memref<64x32xf32, #tpu.memory_space<vmem>>, %arg4: memref<16x32xf32, #tpu.memory_space<vmem>>, %arg5: memref<4x32xf32, #tpu.memory_space<vmem>>, %arg6: memref<8x32xf32, #tpu.memory_space<vmem>>, %arg7: memref<1x16xf32, #tpu.memory_space<vmem>>, %arg8: memref<16x32xbf16, #tpu.memory_space<vmem>>, %arg9: memref<1x32xf32, #tpu.memory_space<vmem>>, %arg10: memref<1x24xf32, #tpu.memory_space<vmem>>, %arg11: memref<24x32xbf16, #tpu.memory_space<vmem>>, %arg12: memref<1x32xf32, #tpu.memory_space<vmem>>, %arg13: memref<1x32xf32, #tpu.memory_space<vmem>>, %arg14: memref<32x32xbf16, #tpu.memory_space<vmem>>, %arg15: memref<1x32xf32, #tpu.memory_space<vmem>>, %arg16: memref<2x32x32xbf16, #tpu.memory_space<vmem>>, %arg17: memref<2x32x64xbf16, #tpu.memory_space<vmem>>, %arg18: memref<2x32x32xbf16, #tpu.memory_space<vmem>>, %arg19: memref<2x32x64xbf16, #tpu.memory_space<vmem>>, %arg20: memref<2x1x64xf32, #tpu.memory_space<vmem>>, %arg21: memref<2x64x32xbf16, #tpu.memory_space<vmem>>, %arg22: memref<2x1x32xf32, #tpu.memory_space<vmem>>, %arg23: memref<1x32xf32, #tpu.memory_space<vmem>>, %arg24: memref<8x32x5xbf16, #tpu.memory_space<vmem>>, %arg25: memref<8x5xf32, #tpu.memory_space<vmem>>, %arg26: memref<2x8x5xf32, #tpu.memory_space<vmem>>) attributes {dimension_semantics = [], scalar_prefetch = 0 : i64, scratch_operands = 0 : i64, tpu.core_type = #tpu.core_type<tc>} {
    %c0 = arith.constant 0 : index
    %c0_0 = arith.constant 0 : index
    %0 = vector.load %arg3[%c0, %c0_0] : memref<64x32xf32, #tpu.memory_space<vmem>>, vector<64x32xf32>
    %c0_1 = arith.constant 0 : index
    %c0_2 = arith.constant 0 : index
    %1 = vector.load %arg4[%c0_1, %c0_2] : memref<16x32xf32, #tpu.memory_space<vmem>>, vector<16x32xf32>
    %c0_3 = arith.constant 0 : index
    %c0_4 = arith.constant 0 : index
    %2 = vector.load %arg5[%c0_3, %c0_4] : memref<4x32xf32, #tpu.memory_space<vmem>>, vector<4x32xf32>
    %c0_5 = arith.constant 0 : index
    %c0_6 = arith.constant 0 : index
    %c0_7 = arith.constant 0 : index
    %3 = vector.load %arg0[%c0_5, %c0_6, %c0_7] : memref<2x64x16xf32, #tpu.memory_space<vmem>>, vector<1x64x16xf32>
    %4 = vector.shape_cast %3 : vector<1x64x16xf32> to vector<64x16xf32>
    %c0_8 = arith.constant 0 : index
    %c0_9 = arith.constant 0 : index
    %5 = vector.load %arg7[%c0_8, %c0_9] : memref<1x16xf32, #tpu.memory_space<vmem>>, vector<1x16xf32>
    %6 = arith.mulf %4, %4 : vector<64x16xf32>
    %cst = arith.constant dense<0.000000e+00> : vector<64xf32>
    %7 = vector.multi_reduction <add>, %6, %cst [1] : vector<64x16xf32> to vector<64xf32>
    %8 = vector.shape_cast %7 : vector<64xf32> to vector<64x1xf32>
    %cst_10 = arith.constant 1.600000e+01 : f32
    %9 = vector.broadcast %cst_10 : f32 to vector<64x1xf32>
    %10 = arith.divf %8, %9 : vector<64x1xf32>
    %cst_11 = arith.constant 9.99999997E-7 : f32
    %11 = vector.broadcast %cst_11 : f32 to vector<64x1xf32>
    %12 = arith.addf %10, %11 : vector<64x1xf32>
    %13 = math.rsqrt %12 : vector<64x1xf32>
    %14 = vector.broadcast %13 : vector<64x1xf32> to vector<64x16xf32>
    %15 = arith.mulf %4, %14 : vector<64x16xf32>
    %16 = vector.broadcast %5 : vector<1x16xf32> to vector<64x16xf32>
    %17 = arith.mulf %15, %16 : vector<64x16xf32>
    %c0_12 = arith.constant 0 : index
    %c0_13 = arith.constant 0 : index
    %18 = vector.load %arg8[%c0_12, %c0_13] : memref<16x32xbf16, #tpu.memory_space<vmem>>, vector<16x32xbf16>
    %19 = arith.truncf %17 : vector<64x16xf32> to vector<64x16xbf16>
    %cst_14 = arith.constant dense<0.000000e+00> : vector<64x32xf32>
    %20 = tpu.matmul %19, %18, %cst_14 {dimension_numbers = #tpu.dot_dimension_numbers<[1], [0], [0], [1], [0, 0, 1, 1], [], []>} : vector<64x16xbf16>, vector<16x32xbf16>, vector<64x32xf32> -> vector<64x32xf32>
    %c0_15 = arith.constant 0 : index
    %c0_16 = arith.constant 0 : index
    %21 = vector.load %arg9[%c0_15, %c0_16] : memref<1x32xf32, #tpu.memory_space<vmem>>, vector<1x32xf32>
    %22 = vector.broadcast %21 : vector<1x32xf32> to vector<64x32xf32>
    %23 = arith.addf %20, %22 : vector<64x32xf32>
    %c0_17 = arith.constant 0 : index
    %c0_18 = arith.constant 0 : index
    %c0_19 = arith.constant 0 : index
    %24 = vector.load %arg1[%c0_17, %c0_18, %c0_19] : memref<2x16x24xf32, #tpu.memory_space<vmem>>, vector<1x16x24xf32>
    %25 = vector.shape_cast %24 : vector<1x16x24xf32> to vector<16x24xf32>
    %c0_20 = arith.constant 0 : index
    %c0_21 = arith.constant 0 : index
    %26 = vector.load %arg10[%c0_20, %c0_21] : memref<1x24xf32, #tpu.memory_space<vmem>>, vector<1x24xf32>
    %27 = arith.mulf %25, %25 : vector<16x24xf32>
    %cst_22 = arith.constant dense<0.000000e+00> : vector<16xf32>
    %28 = vector.multi_reduction <add>, %27, %cst_22 [1] : vector<16x24xf32> to vector<16xf32>
    %29 = vector.shape_cast %28 : vector<16xf32> to vector<16x1xf32>
    %cst_23 = arith.constant 2.400000e+01 : f32
    %30 = vector.broadcast %cst_23 : f32 to vector<16x1xf32>
    %31 = arith.divf %29, %30 : vector<16x1xf32>
    %cst_24 = arith.constant 9.99999997E-7 : f32
    %32 = vector.broadcast %cst_24 : f32 to vector<16x1xf32>
    %33 = arith.addf %31, %32 : vector<16x1xf32>
    %34 = math.rsqrt %33 : vector<16x1xf32>
    %35 = vector.broadcast %34 : vector<16x1xf32> to vector<16x24xf32>
    %36 = arith.mulf %25, %35 : vector<16x24xf32>
    %37 = vector.broadcast %26 : vector<1x24xf32> to vector<16x24xf32>
    %38 = arith.mulf %36, %37 : vector<16x24xf32>
    %c0_25 = arith.constant 0 : index
    %c0_26 = arith.constant 0 : index
    %39 = vector.load %arg11[%c0_25, %c0_26] : memref<24x32xbf16, #tpu.memory_space<vmem>>, vector<24x32xbf16>
    %40 = arith.truncf %38 : vector<16x24xf32> to vector<16x24xbf16>
    %cst_27 = arith.constant dense<0.000000e+00> : vector<16x32xf32>
    %41 = tpu.matmul %40, %39, %cst_27 {dimension_numbers = #tpu.dot_dimension_numbers<[1], [0], [0], [1], [0, 0, 1, 1], [], []>} : vector<16x24xbf16>, vector<24x32xbf16>, vector<16x32xf32> -> vector<16x32xf32>
    %c0_28 = arith.constant 0 : index
    %c0_29 = arith.constant 0 : index
    %42 = vector.load %arg12[%c0_28, %c0_29] : memref<1x32xf32, #tpu.memory_space<vmem>>, vector<1x32xf32>
    %43 = vector.broadcast %42 : vector<1x32xf32> to vector<16x32xf32>
    %44 = arith.addf %41, %43 : vector<16x32xf32>
    %c0_30 = arith.constant 0 : index
    %c0_31 = arith.constant 0 : index
    %c0_32 = arith.constant 0 : index
    %45 = vector.load %arg2[%c0_30, %c0_31, %c0_32] : memref<2x4x32xf32, #tpu.memory_space<vmem>>, vector<1x4x32xf32>
    %46 = vector.shape_cast %45 : vector<1x4x32xf32> to vector<4x32xf32>
    %c0_33 = arith.constant 0 : index
    %c0_34 = arith.constant 0 : index
    %47 = vector.load %arg13[%c0_33, %c0_34] : memref<1x32xf32, #tpu.memory_space<vmem>>, vector<1x32xf32>
    %48 = arith.mulf %46, %46 : vector<4x32xf32>
    %cst_35 = arith.constant dense<0.000000e+00> : vector<4xf32>
    %49 = vector.multi_reduction <add>, %48, %cst_35 [1] : vector<4x32xf32> to vector<4xf32>
    %50 = vector.shape_cast %49 : vector<4xf32> to vector<4x1xf32>
    %cst_36 = arith.constant 3.200000e+01 : f32
    %51 = vector.broadcast %cst_36 : f32 to vector<4x1xf32>
    %52 = arith.divf %50, %51 : vector<4x1xf32>
    %cst_37 = arith.constant 9.99999997E-7 : f32
    %53 = vector.broadcast %cst_37 : f32 to vector<4x1xf32>
    %54 = arith.addf %52, %53 : vector<4x1xf32>
    %55 = math.rsqrt %54 : vector<4x1xf32>
    %56 = vector.broadcast %55 : vector<4x1xf32> to vector<4x32xf32>
    %57 = arith.mulf %46, %56 : vector<4x32xf32>
    %58 = vector.broadcast %47 : vector<1x32xf32> to vector<4x32xf32>
    %59 = arith.mulf %57, %58 : vector<4x32xf32>
    %c0_38 = arith.constant 0 : index
    %c0_39 = arith.constant 0 : index
    %60 = vector.load %arg14[%c0_38, %c0_39] : memref<32x32xbf16, #tpu.memory_space<vmem>>, vector<32x32xbf16>
    %61 = arith.truncf %59 : vector<4x32xf32> to vector<4x32xbf16>
    %cst_40 = arith.constant dense<0.000000e+00> : vector<4x32xf32>
    %62 = tpu.matmul %61, %60, %cst_40 {dimension_numbers = #tpu.dot_dimension_numbers<[1], [0], [0], [1], [0, 0, 1, 1], [], []>} : vector<4x32xbf16>, vector<32x32xbf16>, vector<4x32xf32> -> vector<4x32xf32>
    %c0_41 = arith.constant 0 : index
    %c0_42 = arith.constant 0 : index
    %63 = vector.load %arg15[%c0_41, %c0_42] : memref<1x32xf32, #tpu.memory_space<vmem>>, vector<1x32xf32>
    %64 = vector.broadcast %63 : vector<1x32xf32> to vector<4x32xf32>
    %65 = arith.addf %62, %64 : vector<4x32xf32>
    %c1 = arith.constant 1 : index
    %c0_43 = arith.constant 0 : index
    %c0_44 = arith.constant 0 : index
    %66 = vector.load %arg0[%c1, %c0_43, %c0_44] : memref<2x64x16xf32, #tpu.memory_space<vmem>>, vector<1x64x16xf32>
    %67 = vector.shape_cast %66 : vector<1x64x16xf32> to vector<64x16xf32>
    %c0_45 = arith.constant 0 : index
    %c0_46 = arith.constant 0 : index
    %68 = vector.load %arg7[%c0_45, %c0_46] : memref<1x16xf32, #tpu.memory_space<vmem>>, vector<1x16xf32>
    %69 = arith.mulf %67, %67 : vector<64x16xf32>
    %cst_47 = arith.constant dense<0.000000e+00> : vector<64xf32>
    %70 = vector.multi_reduction <add>, %69, %cst_47 [1] : vector<64x16xf32> to vector<64xf32>
    %71 = vector.shape_cast %70 : vector<64xf32> to vector<64x1xf32>
    %cst_48 = arith.constant 1.600000e+01 : f32
    %72 = vector.broadcast %cst_48 : f32 to vector<64x1xf32>
    %73 = arith.divf %71, %72 : vector<64x1xf32>
    %cst_49 = arith.constant 9.99999997E-7 : f32
    %74 = vector.broadcast %cst_49 : f32 to vector<64x1xf32>
    %75 = arith.addf %73, %74 : vector<64x1xf32>
    %76 = math.rsqrt %75 : vector<64x1xf32>
    %77 = vector.broadcast %76 : vector<64x1xf32> to vector<64x16xf32>
    %78 = arith.mulf %67, %77 : vector<64x16xf32>
    %79 = vector.broadcast %68 : vector<1x16xf32> to vector<64x16xf32>
    %80 = arith.mulf %78, %79 : vector<64x16xf32>
    %c0_50 = arith.constant 0 : index
    %c0_51 = arith.constant 0 : index
    %81 = vector.load %arg8[%c0_50, %c0_51] : memref<16x32xbf16, #tpu.memory_space<vmem>>, vector<16x32xbf16>
    %82 = arith.truncf %80 : vector<64x16xf32> to vector<64x16xbf16>
    %cst_52 = arith.constant dense<0.000000e+00> : vector<64x32xf32>
    %83 = tpu.matmul %82, %81, %cst_52 {dimension_numbers = #tpu.dot_dimension_numbers<[1], [0], [0], [1], [0, 0, 1, 1], [], []>} : vector<64x16xbf16>, vector<16x32xbf16>, vector<64x32xf32> -> vector<64x32xf32>
    %c0_53 = arith.constant 0 : index
    %c0_54 = arith.constant 0 : index
    %84 = vector.load %arg9[%c0_53, %c0_54] : memref<1x32xf32, #tpu.memory_space<vmem>>, vector<1x32xf32>
    %85 = vector.broadcast %84 : vector<1x32xf32> to vector<64x32xf32>
    %86 = arith.addf %83, %85 : vector<64x32xf32>
    %c1_55 = arith.constant 1 : index
    %c0_56 = arith.constant 0 : index
    %c0_57 = arith.constant 0 : index
    %87 = vector.load %arg1[%c1_55, %c0_56, %c0_57] : memref<2x16x24xf32, #tpu.memory_space<vmem>>, vector<1x16x24xf32>
    %88 = vector.shape_cast %87 : vector<1x16x24xf32> to vector<16x24xf32>
    %c0_58 = arith.constant 0 : index
    %c0_59 = arith.constant 0 : index
    %89 = vector.load %arg10[%c0_58, %c0_59] : memref<1x24xf32, #tpu.memory_space<vmem>>, vector<1x24xf32>
    %90 = arith.mulf %88, %88 : vector<16x24xf32>
    %cst_60 = arith.constant dense<0.000000e+00> : vector<16xf32>
    %91 = vector.multi_reduction <add>, %90, %cst_60 [1] : vector<16x24xf32> to vector<16xf32>
    %92 = vector.shape_cast %91 : vector<16xf32> to vector<16x1xf32>
    %cst_61 = arith.constant 2.400000e+01 : f32
    %93 = vector.broadcast %cst_61 : f32 to vector<16x1xf32>
    %94 = arith.divf %92, %93 : vector<16x1xf32>
    %cst_62 = arith.constant 9.99999997E-7 : f32
    %95 = vector.broadcast %cst_62 : f32 to vector<16x1xf32>
    %96 = arith.addf %94, %95 : vector<16x1xf32>
    %97 = math.rsqrt %96 : vector<16x1xf32>
    %98 = vector.broadcast %97 : vector<16x1xf32> to vector<16x24xf32>
    %99 = arith.mulf %88, %98 : vector<16x24xf32>
    %100 = vector.broadcast %89 : vector<1x24xf32> to vector<16x24xf32>
    %101 = arith.mulf %99, %100 : vector<16x24xf32>
    %c0_63 = arith.constant 0 : index
    %c0_64 = arith.constant 0 : index
    %102 = vector.load %arg11[%c0_63, %c0_64] : memref<24x32xbf16, #tpu.memory_space<vmem>>, vector<24x32xbf16>
    %103 = arith.truncf %101 : vector<16x24xf32> to vector<16x24xbf16>
    %cst_65 = arith.constant dense<0.000000e+00> : vector<16x32xf32>
    %104 = tpu.matmul %103, %102, %cst_65 {dimension_numbers = #tpu.dot_dimension_numbers<[1], [0], [0], [1], [0, 0, 1, 1], [], []>} : vector<16x24xbf16>, vector<24x32xbf16>, vector<16x32xf32> -> vector<16x32xf32>
    %c0_66 = arith.constant 0 : index
    %c0_67 = arith.constant 0 : index
    %105 = vector.load %arg12[%c0_66, %c0_67] : memref<1x32xf32, #tpu.memory_space<vmem>>, vector<1x32xf32>
    %106 = vector.broadcast %105 : vector<1x32xf32> to vector<16x32xf32>
    %107 = arith.addf %104, %106 : vector<16x32xf32>
    %c1_68 = arith.constant 1 : index
    %c0_69 = arith.constant 0 : index
    %c0_70 = arith.constant 0 : index
    %108 = vector.load %arg2[%c1_68, %c0_69, %c0_70] : memref<2x4x32xf32, #tpu.memory_space<vmem>>, vector<1x4x32xf32>
    %109 = vector.shape_cast %108 : vector<1x4x32xf32> to vector<4x32xf32>
    %c0_71 = arith.constant 0 : index
    %c0_72 = arith.constant 0 : index
    %110 = vector.load %arg13[%c0_71, %c0_72] : memref<1x32xf32, #tpu.memory_space<vmem>>, vector<1x32xf32>
    %111 = arith.mulf %109, %109 : vector<4x32xf32>
    %cst_73 = arith.constant dense<0.000000e+00> : vector<4xf32>
    %112 = vector.multi_reduction <add>, %111, %cst_73 [1] : vector<4x32xf32> to vector<4xf32>
    %113 = vector.shape_cast %112 : vector<4xf32> to vector<4x1xf32>
    %cst_74 = arith.constant 3.200000e+01 : f32
    %114 = vector.broadcast %cst_74 : f32 to vector<4x1xf32>
    %115 = arith.divf %113, %114 : vector<4x1xf32>
    %cst_75 = arith.constant 9.99999997E-7 : f32
    %116 = vector.broadcast %cst_75 : f32 to vector<4x1xf32>
    %117 = arith.addf %115, %116 : vector<4x1xf32>
    %118 = math.rsqrt %117 : vector<4x1xf32>
    %119 = vector.broadcast %118 : vector<4x1xf32> to vector<4x32xf32>
    %120 = arith.mulf %109, %119 : vector<4x32xf32>
    %121 = vector.broadcast %110 : vector<1x32xf32> to vector<4x32xf32>
    %122 = arith.mulf %120, %121 : vector<4x32xf32>
    %c0_76 = arith.constant 0 : index
    %c0_77 = arith.constant 0 : index
    %123 = vector.load %arg14[%c0_76, %c0_77] : memref<32x32xbf16, #tpu.memory_space<vmem>>, vector<32x32xbf16>
    %124 = arith.truncf %122 : vector<4x32xf32> to vector<4x32xbf16>
    %cst_78 = arith.constant dense<0.000000e+00> : vector<4x32xf32>
    %125 = tpu.matmul %124, %123, %cst_78 {dimension_numbers = #tpu.dot_dimension_numbers<[1], [0], [0], [1], [0, 0, 1, 1], [], []>} : vector<4x32xbf16>, vector<32x32xbf16>, vector<4x32xf32> -> vector<4x32xf32>
    %c0_79 = arith.constant 0 : index
    %c0_80 = arith.constant 0 : index
    %126 = vector.load %arg15[%c0_79, %c0_80] : memref<1x32xf32, #tpu.memory_space<vmem>>, vector<1x32xf32>
    %127 = vector.broadcast %126 : vector<1x32xf32> to vector<4x32xf32>
    %128 = arith.addf %125, %127 : vector<4x32xf32>
    %c0_81 = arith.constant 0 : index
    %c0_82 = arith.constant 0 : index
    %129 = vector.load %arg6[%c0_81, %c0_82] : memref<8x32xf32, #tpu.memory_space<vmem>>, vector<8x32xf32>
    %c0_83 = arith.constant 0 : index
    %c0_84 = arith.constant 0 : index
    %130 = vector.load %arg6[%c0_83, %c0_84] : memref<8x32xf32, #tpu.memory_space<vmem>>, vector<8x32xf32>
    %c0_85 = arith.constant 0 : index
    %c0_86 = arith.constant 0 : index
    %c0_87 = arith.constant 0 : index
    %131 = vector.load %arg16[%c0_85, %c0_86, %c0_87] : memref<2x32x32xbf16, #tpu.memory_space<vmem>>, vector<1x32x32xbf16>
    %132 = vector.shape_cast %131 : vector<1x32x32xbf16> to vector<32x32xbf16>
    %c0_88 = arith.constant 0 : index
    %c0_89 = arith.constant 0 : index
    %c0_90 = arith.constant 0 : index
    %133 = vector.load %arg17[%c0_88, %c0_89, %c0_90] : memref<2x32x64xbf16, #tpu.memory_space<vmem>>, vector<1x32x64xbf16>
    %134 = vector.shape_cast %133 : vector<1x32x64xbf16> to vector<32x64xbf16>
    %c0_91 = arith.constant 0 : index
    %c0_92 = arith.constant 0 : index
    %c0_93 = arith.constant 0 : index
    %135 = vector.load %arg18[%c0_91, %c0_92, %c0_93] : memref<2x32x32xbf16, #tpu.memory_space<vmem>>, vector<1x32x32xbf16>
    %136 = vector.shape_cast %135 : vector<1x32x32xbf16> to vector<32x32xbf16>
    %c0_94 = arith.constant 0 : index
    %c0_95 = arith.constant 0 : index
    %c0_96 = arith.constant 0 : index
    %137 = vector.load %arg19[%c0_94, %c0_95, %c0_96] : memref<2x32x64xbf16, #tpu.memory_space<vmem>>, vector<1x32x64xbf16>
    %138 = vector.shape_cast %137 : vector<1x32x64xbf16> to vector<32x64xbf16>
    %c0_97 = arith.constant 0 : index
    %c0_98 = arith.constant 0 : index
    %c0_99 = arith.constant 0 : index
    %139 = vector.load %arg20[%c0_97, %c0_98, %c0_99] : memref<2x1x64xf32, #tpu.memory_space<vmem>>, vector<1x1x64xf32>
    %140 = vector.shape_cast %139 : vector<1x1x64xf32> to vector<1x64xf32>
    %c0_100 = arith.constant 0 : index
    %c0_101 = arith.constant 0 : index
    %c0_102 = arith.constant 0 : index
    %141 = vector.load %arg21[%c0_100, %c0_101, %c0_102] : memref<2x64x32xbf16, #tpu.memory_space<vmem>>, vector<1x64x32xbf16>
    %142 = vector.shape_cast %141 : vector<1x64x32xbf16> to vector<64x32xbf16>
    %c0_103 = arith.constant 0 : index
    %c0_104 = arith.constant 0 : index
    %c0_105 = arith.constant 0 : index
    %143 = vector.load %arg22[%c0_103, %c0_104, %c0_105] : memref<2x1x32xf32, #tpu.memory_space<vmem>>, vector<1x1x32xf32>
    %144 = vector.shape_cast %143 : vector<1x1x32xf32> to vector<1x32xf32>
    %145 = vector.extract_strided_slice %134 {offsets = [0, 0], sizes = [32, 32], strides = [1, 1]} : vector<32x64xbf16> to vector<32x32xbf16>
    %146 = arith.truncf %0 : vector<64x32xf32> to vector<64x32xbf16>
    %cst_106 = arith.constant dense<0.000000e+00> : vector<64x32xf32>
    %147 = tpu.matmul %146, %145, %cst_106 {dimension_numbers = #tpu.dot_dimension_numbers<[1], [0], [0], [1], [0, 0, 1, 1], [], []>} : vector<64x32xbf16>, vector<32x32xbf16>, vector<64x32xf32> -> vector<64x32xf32>
    %148 = arith.truncf %1 : vector<16x32xf32> to vector<16x32xbf16>
    %cst_107 = arith.constant dense<0.000000e+00> : vector<16x32xf32>
    %149 = tpu.matmul %148, %145, %cst_107 {dimension_numbers = #tpu.dot_dimension_numbers<[1], [0], [0], [1], [0, 0, 1, 1], [], []>} : vector<16x32xbf16>, vector<32x32xbf16>, vector<16x32xf32> -> vector<16x32xf32>
    %150 = arith.truncf %2 : vector<4x32xf32> to vector<4x32xbf16>
    %cst_108 = arith.constant dense<0.000000e+00> : vector<4x32xf32>
    %151 = tpu.matmul %150, %145, %cst_108 {dimension_numbers = #tpu.dot_dimension_numbers<[1], [0], [0], [1], [0, 0, 1, 1], [], []>} : vector<4x32xbf16>, vector<32x32xbf16>, vector<4x32xf32> -> vector<4x32xf32>
    %152 = arith.truncf %129 : vector<8x32xf32> to vector<8x32xbf16>
    %cst_109 = arith.constant dense<0.000000e+00> : vector<8x32xf32>
    %153 = tpu.matmul %152, %132, %cst_109 {dimension_numbers = #tpu.dot_dimension_numbers<[1], [0], [0], [1], [0, 0, 1, 1], [], []>} : vector<8x32xbf16>, vector<32x32xbf16>, vector<8x32xf32> -> vector<8x32xf32>
    %154 = arith.truncf %23 : vector<64x32xf32> to vector<64x32xbf16>
    %cst_110 = arith.constant dense<0.000000e+00> : vector<64x64xf32>
    %155 = tpu.matmul %154, %134, %cst_110 {dimension_numbers = #tpu.dot_dimension_numbers<[1], [0], [0], [1], [0, 0, 1, 1], [], []>} : vector<64x32xbf16>, vector<32x64xbf16>, vector<64x64xf32> -> vector<64x64xf32>
    %156 = vector.extract_strided_slice %155 {offsets = [0, 0], sizes = [64, 32], strides = [1, 1]} : vector<64x64xf32> to vector<64x32xf32>
    %157 = arith.addf %156, %147 : vector<64x32xf32>
    %158 = vector.extract_strided_slice %155 {offsets = [0, 32], sizes = [64, 32], strides = [1, 1]} : vector<64x64xf32> to vector<64x32xf32>
    %cst_111 = arith.constant dense<0.000000e+00> : vector<8x64xf32>
    %159 = tpu.matmul %153, %157, %cst_111 {dimension_numbers = #tpu.dot_dimension_numbers<[1], [1], [0], [0], [0, 0, 1, 0], [], []>} : vector<8x32xf32>, vector<64x32xf32>, vector<8x64xf32> -> vector<8x64xf32>
    %cst_112 = arith.constant 0.176776692 : f32
    %160 = vector.broadcast %cst_112 : f32 to vector<8x64xf32>
    %161 = arith.mulf %159, %160 : vector<8x64xf32>
    %162 = arith.truncf %44 : vector<16x32xf32> to vector<16x32xbf16>
    %cst_113 = arith.constant dense<0.000000e+00> : vector<16x64xf32>
    %163 = tpu.matmul %162, %134, %cst_113 {dimension_numbers = #tpu.dot_dimension_numbers<[1], [0], [0], [1], [0, 0, 1, 1], [], []>} : vector<16x32xbf16>, vector<32x64xbf16>, vector<16x64xf32> -> vector<16x64xf32>
    %164 = vector.extract_strided_slice %163 {offsets = [0, 0], sizes = [16, 32], strides = [1, 1]} : vector<16x64xf32> to vector<16x32xf32>
    %165 = arith.addf %164, %149 : vector<16x32xf32>
    %166 = vector.extract_strided_slice %163 {offsets = [0, 32], sizes = [16, 32], strides = [1, 1]} : vector<16x64xf32> to vector<16x32xf32>
    %cst_114 = arith.constant dense<0.000000e+00> : vector<8x16xf32>
    %167 = tpu.matmul %153, %165, %cst_114 {dimension_numbers = #tpu.dot_dimension_numbers<[1], [1], [0], [0], [0, 0, 1, 0], [], []>} : vector<8x32xf32>, vector<16x32xf32>, vector<8x16xf32> -> vector<8x16xf32>
    %cst_115 = arith.constant 0.176776692 : f32
    %168 = vector.broadcast %cst_115 : f32 to vector<8x16xf32>
    %169 = arith.mulf %167, %168 : vector<8x16xf32>
    %170 = arith.truncf %65 : vector<4x32xf32> to vector<4x32xbf16>
    %cst_116 = arith.constant dense<0.000000e+00> : vector<4x64xf32>
    %171 = tpu.matmul %170, %134, %cst_116 {dimension_numbers = #tpu.dot_dimension_numbers<[1], [0], [0], [1], [0, 0, 1, 1], [], []>} : vector<4x32xbf16>, vector<32x64xbf16>, vector<4x64xf32> -> vector<4x64xf32>
    %172 = vector.extract_strided_slice %171 {offsets = [0, 0], sizes = [4, 32], strides = [1, 1]} : vector<4x64xf32> to vector<4x32xf32>
    %173 = arith.addf %172, %151 : vector<4x32xf32>
    %174 = vector.extract_strided_slice %171 {offsets = [0, 32], sizes = [4, 32], strides = [1, 1]} : vector<4x64xf32> to vector<4x32xf32>
    %cst_117 = arith.constant dense<0.000000e+00> : vector<8x4xf32>
    %175 = tpu.matmul %153, %173, %cst_117 {dimension_numbers = #tpu.dot_dimension_numbers<[1], [1], [0], [0], [0, 0, 1, 0], [], []>} : vector<8x32xf32>, vector<4x32xf32>, vector<8x4xf32> -> vector<8x4xf32>
    %cst_118 = arith.constant 0.176776692 : f32
    %176 = vector.broadcast %cst_118 : f32 to vector<8x4xf32>
    %177 = arith.mulf %175, %176 : vector<8x4xf32>
    %cst_119 = arith.constant dense<0xFF800000> : vector<8xf32>
    %178 = vector.multi_reduction <maximumf>, %161, %cst_119 [1] : vector<8x64xf32> to vector<8xf32>
    %179 = vector.shape_cast %178 : vector<8xf32> to vector<8x1xf32>
    %cst_120 = arith.constant dense<0xFF800000> : vector<8xf32>
    %180 = vector.multi_reduction <maximumf>, %169, %cst_120 [1] : vector<8x16xf32> to vector<8xf32>
    %181 = vector.shape_cast %180 : vector<8xf32> to vector<8x1xf32>
    %182 = arith.maximumf %179, %181 : vector<8x1xf32>
    %cst_121 = arith.constant dense<0xFF800000> : vector<8xf32>
    %183 = vector.multi_reduction <maximumf>, %177, %cst_121 [1] : vector<8x4xf32> to vector<8xf32>
    %184 = vector.shape_cast %183 : vector<8xf32> to vector<8x1xf32>
    %185 = arith.maximumf %182, %184 : vector<8x1xf32>
    %186 = vector.broadcast %185 : vector<8x1xf32> to vector<8x64xf32>
    %187 = arith.subf %161, %186 : vector<8x64xf32>
    %188 = math.exp %187 : vector<8x64xf32>
    %cst_122 = arith.constant dense<0.000000e+00> : vector<8xf32>
    %189 = vector.multi_reduction <add>, %188, %cst_122 [1] : vector<8x64xf32> to vector<8xf32>
    %190 = vector.shape_cast %189 : vector<8xf32> to vector<8x1xf32>
    %191 = arith.truncf %188 : vector<8x64xf32> to vector<8x64xbf16>
    %192 = arith.truncf %158 : vector<64x32xf32> to vector<64x32xbf16>
    %cst_123 = arith.constant dense<0.000000e+00> : vector<8x32xf32>
    %193 = tpu.matmul %191, %192, %cst_123 {dimension_numbers = #tpu.dot_dimension_numbers<[1], [0], [0], [1], [0, 0, 1, 1], [], []>} : vector<8x64xbf16>, vector<64x32xbf16>, vector<8x32xf32> -> vector<8x32xf32>
    %194 = vector.broadcast %185 : vector<8x1xf32> to vector<8x16xf32>
    %195 = arith.subf %169, %194 : vector<8x16xf32>
    %196 = math.exp %195 : vector<8x16xf32>
    %cst_124 = arith.constant dense<0.000000e+00> : vector<8xf32>
    %197 = vector.multi_reduction <add>, %196, %cst_124 [1] : vector<8x16xf32> to vector<8xf32>
    %198 = vector.shape_cast %197 : vector<8xf32> to vector<8x1xf32>
    %199 = arith.truncf %196 : vector<8x16xf32> to vector<8x16xbf16>
    %200 = arith.truncf %166 : vector<16x32xf32> to vector<16x32xbf16>
    %cst_125 = arith.constant dense<0.000000e+00> : vector<8x32xf32>
    %201 = tpu.matmul %199, %200, %cst_125 {dimension_numbers = #tpu.dot_dimension_numbers<[1], [0], [0], [1], [0, 0, 1, 1], [], []>} : vector<8x16xbf16>, vector<16x32xbf16>, vector<8x32xf32> -> vector<8x32xf32>
    %202 = arith.addf %190, %198 : vector<8x1xf32>
    %203 = arith.addf %193, %201 : vector<8x32xf32>
    %204 = vector.broadcast %185 : vector<8x1xf32> to vector<8x4xf32>
    %205 = arith.subf %177, %204 : vector<8x4xf32>
    %206 = math.exp %205 : vector<8x4xf32>
    %cst_126 = arith.constant dense<0.000000e+00> : vector<8xf32>
    %207 = vector.multi_reduction <add>, %206, %cst_126 [1] : vector<8x4xf32> to vector<8xf32>
    %208 = vector.shape_cast %207 : vector<8xf32> to vector<8x1xf32>
    %209 = arith.truncf %206 : vector<8x4xf32> to vector<8x4xbf16>
    %210 = arith.truncf %174 : vector<4x32xf32> to vector<4x32xbf16>
    %cst_127 = arith.constant dense<0.000000e+00> : vector<8x32xf32>
    %211 = tpu.matmul %209, %210, %cst_127 {dimension_numbers = #tpu.dot_dimension_numbers<[1], [0], [0], [1], [0, 0, 1, 1], [], []>} : vector<8x4xbf16>, vector<4x32xbf16>, vector<8x32xf32> -> vector<8x32xf32>
    %212 = arith.addf %202, %208 : vector<8x1xf32>
    %213 = arith.addf %203, %211 : vector<8x32xf32>
    %214 = tpu.reciprocal %212 {approx = true} : vector<8x1xf32> -> vector<8x1xf32>
    %215 = vector.broadcast %214 : vector<8x1xf32> to vector<8x32xf32>
    %216 = arith.mulf %213, %215 : vector<8x32xf32>
    %217 = arith.truncf %216 : vector<8x32xf32> to vector<8x32xbf16>
    %cst_128 = arith.constant dense<0.000000e+00> : vector<8x32xf32>
    %218 = tpu.matmul %217, %136, %cst_128 {dimension_numbers = #tpu.dot_dimension_numbers<[1], [0], [0], [1], [0, 0, 1, 1], [], []>} : vector<8x32xbf16>, vector<32x32xbf16>, vector<8x32xf32> -> vector<8x32xf32>
    %219 = arith.addf %129, %218 : vector<8x32xf32>
    %220 = arith.truncf %219 : vector<8x32xf32> to vector<8x32xbf16>
    %cst_129 = arith.constant dense<0.000000e+00> : vector<8x64xf32>
    %221 = tpu.matmul %220, %138, %cst_129 {dimension_numbers = #tpu.dot_dimension_numbers<[1], [0], [0], [1], [0, 0, 1, 1], [], []>} : vector<8x32xbf16>, vector<32x64xbf16>, vector<8x64xf32> -> vector<8x64xf32>
    %222 = vector.broadcast %140 : vector<1x64xf32> to vector<8x64xf32>
    %223 = arith.addf %221, %222 : vector<8x64xf32>
    %cst_130 = arith.constant 0.000000e+00 : f32
    %224 = vector.broadcast %cst_130 : f32 to vector<8x64xf32>
    %225 = arith.maximumf %223, %224 : vector<8x64xf32>
    %226 = arith.truncf %225 : vector<8x64xf32> to vector<8x64xbf16>
    %cst_131 = arith.constant dense<0.000000e+00> : vector<8x32xf32>
    %227 = tpu.matmul %226, %142, %cst_131 {dimension_numbers = #tpu.dot_dimension_numbers<[1], [0], [0], [1], [0, 0, 1, 1], [], []>} : vector<8x64xbf16>, vector<64x32xbf16>, vector<8x32xf32> -> vector<8x32xf32>
    %228 = arith.addf %219, %227 : vector<8x32xf32>
    %229 = vector.broadcast %144 : vector<1x32xf32> to vector<8x32xf32>
    %230 = arith.addf %228, %229 : vector<8x32xf32>
    %231 = arith.truncf %130 : vector<8x32xf32> to vector<8x32xbf16>
    %cst_132 = arith.constant dense<0.000000e+00> : vector<8x32xf32>
    %232 = tpu.matmul %231, %132, %cst_132 {dimension_numbers = #tpu.dot_dimension_numbers<[1], [0], [0], [1], [0, 0, 1, 1], [], []>} : vector<8x32xbf16>, vector<32x32xbf16>, vector<8x32xf32> -> vector<8x32xf32>
    %233 = arith.truncf %86 : vector<64x32xf32> to vector<64x32xbf16>
    %cst_133 = arith.constant dense<0.000000e+00> : vector<64x64xf32>
    %234 = tpu.matmul %233, %134, %cst_133 {dimension_numbers = #tpu.dot_dimension_numbers<[1], [0], [0], [1], [0, 0, 1, 1], [], []>} : vector<64x32xbf16>, vector<32x64xbf16>, vector<64x64xf32> -> vector<64x64xf32>
    %235 = vector.extract_strided_slice %234 {offsets = [0, 0], sizes = [64, 32], strides = [1, 1]} : vector<64x64xf32> to vector<64x32xf32>
    %236 = arith.addf %235, %147 : vector<64x32xf32>
    %237 = vector.extract_strided_slice %234 {offsets = [0, 32], sizes = [64, 32], strides = [1, 1]} : vector<64x64xf32> to vector<64x32xf32>
    %cst_134 = arith.constant dense<0.000000e+00> : vector<8x64xf32>
    %238 = tpu.matmul %232, %236, %cst_134 {dimension_numbers = #tpu.dot_dimension_numbers<[1], [1], [0], [0], [0, 0, 1, 0], [], []>} : vector<8x32xf32>, vector<64x32xf32>, vector<8x64xf32> -> vector<8x64xf32>
    %cst_135 = arith.constant 0.176776692 : f32
    %239 = vector.broadcast %cst_135 : f32 to vector<8x64xf32>
    %240 = arith.mulf %238, %239 : vector<8x64xf32>
    %241 = arith.truncf %107 : vector<16x32xf32> to vector<16x32xbf16>
    %cst_136 = arith.constant dense<0.000000e+00> : vector<16x64xf32>
    %242 = tpu.matmul %241, %134, %cst_136 {dimension_numbers = #tpu.dot_dimension_numbers<[1], [0], [0], [1], [0, 0, 1, 1], [], []>} : vector<16x32xbf16>, vector<32x64xbf16>, vector<16x64xf32> -> vector<16x64xf32>
    %243 = vector.extract_strided_slice %242 {offsets = [0, 0], sizes = [16, 32], strides = [1, 1]} : vector<16x64xf32> to vector<16x32xf32>
    %244 = arith.addf %243, %149 : vector<16x32xf32>
    %245 = vector.extract_strided_slice %242 {offsets = [0, 32], sizes = [16, 32], strides = [1, 1]} : vector<16x64xf32> to vector<16x32xf32>
    %cst_137 = arith.constant dense<0.000000e+00> : vector<8x16xf32>
    %246 = tpu.matmul %232, %244, %cst_137 {dimension_numbers = #tpu.dot_dimension_numbers<[1], [1], [0], [0], [0, 0, 1, 0], [], []>} : vector<8x32xf32>, vector<16x32xf32>, vector<8x16xf32> -> vector<8x16xf32>
    %cst_138 = arith.constant 0.176776692 : f32
    %247 = vector.broadcast %cst_138 : f32 to vector<8x16xf32>
    %248 = arith.mulf %246, %247 : vector<8x16xf32>
    %249 = arith.truncf %128 : vector<4x32xf32> to vector<4x32xbf16>
    %cst_139 = arith.constant dense<0.000000e+00> : vector<4x64xf32>
    %250 = tpu.matmul %249, %134, %cst_139 {dimension_numbers = #tpu.dot_dimension_numbers<[1], [0], [0], [1], [0, 0, 1, 1], [], []>} : vector<4x32xbf16>, vector<32x64xbf16>, vector<4x64xf32> -> vector<4x64xf32>
    %251 = vector.extract_strided_slice %250 {offsets = [0, 0], sizes = [4, 32], strides = [1, 1]} : vector<4x64xf32> to vector<4x32xf32>
    %252 = arith.addf %251, %151 : vector<4x32xf32>
    %253 = vector.extract_strided_slice %250 {offsets = [0, 32], sizes = [4, 32], strides = [1, 1]} : vector<4x64xf32> to vector<4x32xf32>
    %cst_140 = arith.constant dense<0.000000e+00> : vector<8x4xf32>
    %254 = tpu.matmul %232, %252, %cst_140 {dimension_numbers = #tpu.dot_dimension_numbers<[1], [1], [0], [0], [0, 0, 1, 0], [], []>} : vector<8x32xf32>, vector<4x32xf32>, vector<8x4xf32> -> vector<8x4xf32>
    %cst_141 = arith.constant 0.176776692 : f32
    %255 = vector.broadcast %cst_141 : f32 to vector<8x4xf32>
    %256 = arith.mulf %254, %255 : vector<8x4xf32>
    %cst_142 = arith.constant dense<0xFF800000> : vector<8xf32>
    %257 = vector.multi_reduction <maximumf>, %240, %cst_142 [1] : vector<8x64xf32> to vector<8xf32>
    %258 = vector.shape_cast %257 : vector<8xf32> to vector<8x1xf32>
    %cst_143 = arith.constant dense<0xFF800000> : vector<8xf32>
    %259 = vector.multi_reduction <maximumf>, %248, %cst_143 [1] : vector<8x16xf32> to vector<8xf32>
    %260 = vector.shape_cast %259 : vector<8xf32> to vector<8x1xf32>
    %261 = arith.maximumf %258, %260 : vector<8x1xf32>
    %cst_144 = arith.constant dense<0xFF800000> : vector<8xf32>
    %262 = vector.multi_reduction <maximumf>, %256, %cst_144 [1] : vector<8x4xf32> to vector<8xf32>
    %263 = vector.shape_cast %262 : vector<8xf32> to vector<8x1xf32>
    %264 = arith.maximumf %261, %263 : vector<8x1xf32>
    %265 = vector.broadcast %264 : vector<8x1xf32> to vector<8x64xf32>
    %266 = arith.subf %240, %265 : vector<8x64xf32>
    %267 = math.exp %266 : vector<8x64xf32>
    %cst_145 = arith.constant dense<0.000000e+00> : vector<8xf32>
    %268 = vector.multi_reduction <add>, %267, %cst_145 [1] : vector<8x64xf32> to vector<8xf32>
    %269 = vector.shape_cast %268 : vector<8xf32> to vector<8x1xf32>
    %270 = arith.truncf %267 : vector<8x64xf32> to vector<8x64xbf16>
    %271 = arith.truncf %237 : vector<64x32xf32> to vector<64x32xbf16>
    %cst_146 = arith.constant dense<0.000000e+00> : vector<8x32xf32>
    %272 = tpu.matmul %270, %271, %cst_146 {dimension_numbers = #tpu.dot_dimension_numbers<[1], [0], [0], [1], [0, 0, 1, 1], [], []>} : vector<8x64xbf16>, vector<64x32xbf16>, vector<8x32xf32> -> vector<8x32xf32>
    %273 = vector.broadcast %264 : vector<8x1xf32> to vector<8x16xf32>
    %274 = arith.subf %248, %273 : vector<8x16xf32>
    %275 = math.exp %274 : vector<8x16xf32>
    %cst_147 = arith.constant dense<0.000000e+00> : vector<8xf32>
    %276 = vector.multi_reduction <add>, %275, %cst_147 [1] : vector<8x16xf32> to vector<8xf32>
    %277 = vector.shape_cast %276 : vector<8xf32> to vector<8x1xf32>
    %278 = arith.truncf %275 : vector<8x16xf32> to vector<8x16xbf16>
    %279 = arith.truncf %245 : vector<16x32xf32> to vector<16x32xbf16>
    %cst_148 = arith.constant dense<0.000000e+00> : vector<8x32xf32>
    %280 = tpu.matmul %278, %279, %cst_148 {dimension_numbers = #tpu.dot_dimension_numbers<[1], [0], [0], [1], [0, 0, 1, 1], [], []>} : vector<8x16xbf16>, vector<16x32xbf16>, vector<8x32xf32> -> vector<8x32xf32>
    %281 = arith.addf %269, %277 : vector<8x1xf32>
    %282 = arith.addf %272, %280 : vector<8x32xf32>
    %283 = vector.broadcast %264 : vector<8x1xf32> to vector<8x4xf32>
    %284 = arith.subf %256, %283 : vector<8x4xf32>
    %285 = math.exp %284 : vector<8x4xf32>
    %cst_149 = arith.constant dense<0.000000e+00> : vector<8xf32>
    %286 = vector.multi_reduction <add>, %285, %cst_149 [1] : vector<8x4xf32> to vector<8xf32>
    %287 = vector.shape_cast %286 : vector<8xf32> to vector<8x1xf32>
    %288 = arith.truncf %285 : vector<8x4xf32> to vector<8x4xbf16>
    %289 = arith.truncf %253 : vector<4x32xf32> to vector<4x32xbf16>
    %cst_150 = arith.constant dense<0.000000e+00> : vector<8x32xf32>
    %290 = tpu.matmul %288, %289, %cst_150 {dimension_numbers = #tpu.dot_dimension_numbers<[1], [0], [0], [1], [0, 0, 1, 1], [], []>} : vector<8x4xbf16>, vector<4x32xbf16>, vector<8x32xf32> -> vector<8x32xf32>
    %291 = arith.addf %281, %287 : vector<8x1xf32>
    %292 = arith.addf %282, %290 : vector<8x32xf32>
    %293 = tpu.reciprocal %291 {approx = true} : vector<8x1xf32> -> vector<8x1xf32>
    %294 = vector.broadcast %293 : vector<8x1xf32> to vector<8x32xf32>
    %295 = arith.mulf %292, %294 : vector<8x32xf32>
    %296 = arith.truncf %295 : vector<8x32xf32> to vector<8x32xbf16>
    %cst_151 = arith.constant dense<0.000000e+00> : vector<8x32xf32>
    %297 = tpu.matmul %296, %136, %cst_151 {dimension_numbers = #tpu.dot_dimension_numbers<[1], [0], [0], [1], [0, 0, 1, 1], [], []>} : vector<8x32xbf16>, vector<32x32xbf16>, vector<8x32xf32> -> vector<8x32xf32>
    %298 = arith.addf %130, %297 : vector<8x32xf32>
    %299 = arith.truncf %298 : vector<8x32xf32> to vector<8x32xbf16>
    %cst_152 = arith.constant dense<0.000000e+00> : vector<8x64xf32>
    %300 = tpu.matmul %299, %138, %cst_152 {dimension_numbers = #tpu.dot_dimension_numbers<[1], [0], [0], [1], [0, 0, 1, 1], [], []>} : vector<8x32xbf16>, vector<32x64xbf16>, vector<8x64xf32> -> vector<8x64xf32>
    %301 = vector.broadcast %140 : vector<1x64xf32> to vector<8x64xf32>
    %302 = arith.addf %300, %301 : vector<8x64xf32>
    %cst_153 = arith.constant 0.000000e+00 : f32
    %303 = vector.broadcast %cst_153 : f32 to vector<8x64xf32>
    %304 = arith.maximumf %302, %303 : vector<8x64xf32>
    %305 = arith.truncf %304 : vector<8x64xf32> to vector<8x64xbf16>
    %cst_154 = arith.constant dense<0.000000e+00> : vector<8x32xf32>
    %306 = tpu.matmul %305, %142, %cst_154 {dimension_numbers = #tpu.dot_dimension_numbers<[1], [0], [0], [1], [0, 0, 1, 1], [], []>} : vector<8x64xbf16>, vector<64x32xbf16>, vector<8x32xf32> -> vector<8x32xf32>
    %307 = arith.addf %298, %306 : vector<8x32xf32>
    %308 = vector.broadcast %144 : vector<1x32xf32> to vector<8x32xf32>
    %309 = arith.addf %307, %308 : vector<8x32xf32>
    %c1_155 = arith.constant 1 : index
    %c0_156 = arith.constant 0 : index
    %c0_157 = arith.constant 0 : index
    %310 = vector.load %arg16[%c1_155, %c0_156, %c0_157] : memref<2x32x32xbf16, #tpu.memory_space<vmem>>, vector<1x32x32xbf16>
    %311 = vector.shape_cast %310 : vector<1x32x32xbf16> to vector<32x32xbf16>
    %c1_158 = arith.constant 1 : index
    %c0_159 = arith.constant 0 : index
    %c0_160 = arith.constant 0 : index
    %312 = vector.load %arg17[%c1_158, %c0_159, %c0_160] : memref<2x32x64xbf16, #tpu.memory_space<vmem>>, vector<1x32x64xbf16>
    %313 = vector.shape_cast %312 : vector<1x32x64xbf16> to vector<32x64xbf16>
    %c1_161 = arith.constant 1 : index
    %c0_162 = arith.constant 0 : index
    %c0_163 = arith.constant 0 : index
    %314 = vector.load %arg18[%c1_161, %c0_162, %c0_163] : memref<2x32x32xbf16, #tpu.memory_space<vmem>>, vector<1x32x32xbf16>
    %315 = vector.shape_cast %314 : vector<1x32x32xbf16> to vector<32x32xbf16>
    %c1_164 = arith.constant 1 : index
    %c0_165 = arith.constant 0 : index
    %c0_166 = arith.constant 0 : index
    %316 = vector.load %arg19[%c1_164, %c0_165, %c0_166] : memref<2x32x64xbf16, #tpu.memory_space<vmem>>, vector<1x32x64xbf16>
    %317 = vector.shape_cast %316 : vector<1x32x64xbf16> to vector<32x64xbf16>
    %c1_167 = arith.constant 1 : index
    %c0_168 = arith.constant 0 : index
    %c0_169 = arith.constant 0 : index
    %318 = vector.load %arg20[%c1_167, %c0_168, %c0_169] : memref<2x1x64xf32, #tpu.memory_space<vmem>>, vector<1x1x64xf32>
    %319 = vector.shape_cast %318 : vector<1x1x64xf32> to vector<1x64xf32>
    %c1_170 = arith.constant 1 : index
    %c0_171 = arith.constant 0 : index
    %c0_172 = arith.constant 0 : index
    %320 = vector.load %arg21[%c1_170, %c0_171, %c0_172] : memref<2x64x32xbf16, #tpu.memory_space<vmem>>, vector<1x64x32xbf16>
    %321 = vector.shape_cast %320 : vector<1x64x32xbf16> to vector<64x32xbf16>
    %c1_173 = arith.constant 1 : index
    %c0_174 = arith.constant 0 : index
    %c0_175 = arith.constant 0 : index
    %322 = vector.load %arg22[%c1_173, %c0_174, %c0_175] : memref<2x1x32xf32, #tpu.memory_space<vmem>>, vector<1x1x32xf32>
    %323 = vector.shape_cast %322 : vector<1x1x32xf32> to vector<1x32xf32>
    %324 = vector.extract_strided_slice %313 {offsets = [0, 0], sizes = [32, 32], strides = [1, 1]} : vector<32x64xbf16> to vector<32x32xbf16>
    %325 = arith.truncf %0 : vector<64x32xf32> to vector<64x32xbf16>
    %cst_176 = arith.constant dense<0.000000e+00> : vector<64x32xf32>
    %326 = tpu.matmul %325, %324, %cst_176 {dimension_numbers = #tpu.dot_dimension_numbers<[1], [0], [0], [1], [0, 0, 1, 1], [], []>} : vector<64x32xbf16>, vector<32x32xbf16>, vector<64x32xf32> -> vector<64x32xf32>
    %327 = arith.truncf %1 : vector<16x32xf32> to vector<16x32xbf16>
    %cst_177 = arith.constant dense<0.000000e+00> : vector<16x32xf32>
    %328 = tpu.matmul %327, %324, %cst_177 {dimension_numbers = #tpu.dot_dimension_numbers<[1], [0], [0], [1], [0, 0, 1, 1], [], []>} : vector<16x32xbf16>, vector<32x32xbf16>, vector<16x32xf32> -> vector<16x32xf32>
    %329 = arith.truncf %2 : vector<4x32xf32> to vector<4x32xbf16>
    %cst_178 = arith.constant dense<0.000000e+00> : vector<4x32xf32>
    %330 = tpu.matmul %329, %324, %cst_178 {dimension_numbers = #tpu.dot_dimension_numbers<[1], [0], [0], [1], [0, 0, 1, 1], [], []>} : vector<4x32xbf16>, vector<32x32xbf16>, vector<4x32xf32> -> vector<4x32xf32>
    %331 = arith.truncf %230 : vector<8x32xf32> to vector<8x32xbf16>
    %cst_179 = arith.constant dense<0.000000e+00> : vector<8x32xf32>
    %332 = tpu.matmul %331, %311, %cst_179 {dimension_numbers = #tpu.dot_dimension_numbers<[1], [0], [0], [1], [0, 0, 1, 1], [], []>} : vector<8x32xbf16>, vector<32x32xbf16>, vector<8x32xf32> -> vector<8x32xf32>
    %333 = arith.truncf %23 : vector<64x32xf32> to vector<64x32xbf16>
    %cst_180 = arith.constant dense<0.000000e+00> : vector<64x64xf32>
    %334 = tpu.matmul %333, %313, %cst_180 {dimension_numbers = #tpu.dot_dimension_numbers<[1], [0], [0], [1], [0, 0, 1, 1], [], []>} : vector<64x32xbf16>, vector<32x64xbf16>, vector<64x64xf32> -> vector<64x64xf32>
    %335 = vector.extract_strided_slice %334 {offsets = [0, 0], sizes = [64, 32], strides = [1, 1]} : vector<64x64xf32> to vector<64x32xf32>
    %336 = arith.addf %335, %326 : vector<64x32xf32>
    %337 = vector.extract_strided_slice %334 {offsets = [0, 32], sizes = [64, 32], strides = [1, 1]} : vector<64x64xf32> to vector<64x32xf32>
    %cst_181 = arith.constant dense<0.000000e+00> : vector<8x64xf32>
    %338 = tpu.matmul %332, %336, %cst_181 {dimension_numbers = #tpu.dot_dimension_numbers<[1], [1], [0], [0], [0, 0, 1, 0], [], []>} : vector<8x32xf32>, vector<64x32xf32>, vector<8x64xf32> -> vector<8x64xf32>
    %cst_182 = arith.constant 0.176776692 : f32
    %339 = vector.broadcast %cst_182 : f32 to vector<8x64xf32>
    %340 = arith.mulf %338, %339 : vector<8x64xf32>
    %341 = arith.truncf %44 : vector<16x32xf32> to vector<16x32xbf16>
    %cst_183 = arith.constant dense<0.000000e+00> : vector<16x64xf32>
    %342 = tpu.matmul %341, %313, %cst_183 {dimension_numbers = #tpu.dot_dimension_numbers<[1], [0], [0], [1], [0, 0, 1, 1], [], []>} : vector<16x32xbf16>, vector<32x64xbf16>, vector<16x64xf32> -> vector<16x64xf32>
    %343 = vector.extract_strided_slice %342 {offsets = [0, 0], sizes = [16, 32], strides = [1, 1]} : vector<16x64xf32> to vector<16x32xf32>
    %344 = arith.addf %343, %328 : vector<16x32xf32>
    %345 = vector.extract_strided_slice %342 {offsets = [0, 32], sizes = [16, 32], strides = [1, 1]} : vector<16x64xf32> to vector<16x32xf32>
    %cst_184 = arith.constant dense<0.000000e+00> : vector<8x16xf32>
    %346 = tpu.matmul %332, %344, %cst_184 {dimension_numbers = #tpu.dot_dimension_numbers<[1], [1], [0], [0], [0, 0, 1, 0], [], []>} : vector<8x32xf32>, vector<16x32xf32>, vector<8x16xf32> -> vector<8x16xf32>
    %cst_185 = arith.constant 0.176776692 : f32
    %347 = vector.broadcast %cst_185 : f32 to vector<8x16xf32>
    %348 = arith.mulf %346, %347 : vector<8x16xf32>
    %349 = arith.truncf %65 : vector<4x32xf32> to vector<4x32xbf16>
    %cst_186 = arith.constant dense<0.000000e+00> : vector<4x64xf32>
    %350 = tpu.matmul %349, %313, %cst_186 {dimension_numbers = #tpu.dot_dimension_numbers<[1], [0], [0], [1], [0, 0, 1, 1], [], []>} : vector<4x32xbf16>, vector<32x64xbf16>, vector<4x64xf32> -> vector<4x64xf32>
    %351 = vector.extract_strided_slice %350 {offsets = [0, 0], sizes = [4, 32], strides = [1, 1]} : vector<4x64xf32> to vector<4x32xf32>
    %352 = arith.addf %351, %330 : vector<4x32xf32>
    %353 = vector.extract_strided_slice %350 {offsets = [0, 32], sizes = [4, 32], strides = [1, 1]} : vector<4x64xf32> to vector<4x32xf32>
    %cst_187 = arith.constant dense<0.000000e+00> : vector<8x4xf32>
    %354 = tpu.matmul %332, %352, %cst_187 {dimension_numbers = #tpu.dot_dimension_numbers<[1], [1], [0], [0], [0, 0, 1, 0], [], []>} : vector<8x32xf32>, vector<4x32xf32>, vector<8x4xf32> -> vector<8x4xf32>
    %cst_188 = arith.constant 0.176776692 : f32
    %355 = vector.broadcast %cst_188 : f32 to vector<8x4xf32>
    %356 = arith.mulf %354, %355 : vector<8x4xf32>
    %cst_189 = arith.constant dense<0xFF800000> : vector<8xf32>
    %357 = vector.multi_reduction <maximumf>, %340, %cst_189 [1] : vector<8x64xf32> to vector<8xf32>
    %358 = vector.shape_cast %357 : vector<8xf32> to vector<8x1xf32>
    %cst_190 = arith.constant dense<0xFF800000> : vector<8xf32>
    %359 = vector.multi_reduction <maximumf>, %348, %cst_190 [1] : vector<8x16xf32> to vector<8xf32>
    %360 = vector.shape_cast %359 : vector<8xf32> to vector<8x1xf32>
    %361 = arith.maximumf %358, %360 : vector<8x1xf32>
    %cst_191 = arith.constant dense<0xFF800000> : vector<8xf32>
    %362 = vector.multi_reduction <maximumf>, %356, %cst_191 [1] : vector<8x4xf32> to vector<8xf32>
    %363 = vector.shape_cast %362 : vector<8xf32> to vector<8x1xf32>
    %364 = arith.maximumf %361, %363 : vector<8x1xf32>
    %365 = vector.broadcast %364 : vector<8x1xf32> to vector<8x64xf32>
    %366 = arith.subf %340, %365 : vector<8x64xf32>
    %367 = math.exp %366 : vector<8x64xf32>
    %cst_192 = arith.constant dense<0.000000e+00> : vector<8xf32>
    %368 = vector.multi_reduction <add>, %367, %cst_192 [1] : vector<8x64xf32> to vector<8xf32>
    %369 = vector.shape_cast %368 : vector<8xf32> to vector<8x1xf32>
    %370 = arith.truncf %367 : vector<8x64xf32> to vector<8x64xbf16>
    %371 = arith.truncf %337 : vector<64x32xf32> to vector<64x32xbf16>
    %cst_193 = arith.constant dense<0.000000e+00> : vector<8x32xf32>
    %372 = tpu.matmul %370, %371, %cst_193 {dimension_numbers = #tpu.dot_dimension_numbers<[1], [0], [0], [1], [0, 0, 1, 1], [], []>} : vector<8x64xbf16>, vector<64x32xbf16>, vector<8x32xf32> -> vector<8x32xf32>
    %373 = vector.broadcast %364 : vector<8x1xf32> to vector<8x16xf32>
    %374 = arith.subf %348, %373 : vector<8x16xf32>
    %375 = math.exp %374 : vector<8x16xf32>
    %cst_194 = arith.constant dense<0.000000e+00> : vector<8xf32>
    %376 = vector.multi_reduction <add>, %375, %cst_194 [1] : vector<8x16xf32> to vector<8xf32>
    %377 = vector.shape_cast %376 : vector<8xf32> to vector<8x1xf32>
    %378 = arith.truncf %375 : vector<8x16xf32> to vector<8x16xbf16>
    %379 = arith.truncf %345 : vector<16x32xf32> to vector<16x32xbf16>
    %cst_195 = arith.constant dense<0.000000e+00> : vector<8x32xf32>
    %380 = tpu.matmul %378, %379, %cst_195 {dimension_numbers = #tpu.dot_dimension_numbers<[1], [0], [0], [1], [0, 0, 1, 1], [], []>} : vector<8x16xbf16>, vector<16x32xbf16>, vector<8x32xf32> -> vector<8x32xf32>
    %381 = arith.addf %369, %377 : vector<8x1xf32>
    %382 = arith.addf %372, %380 : vector<8x32xf32>
    %383 = vector.broadcast %364 : vector<8x1xf32> to vector<8x4xf32>
    %384 = arith.subf %356, %383 : vector<8x4xf32>
    %385 = math.exp %384 : vector<8x4xf32>
    %cst_196 = arith.constant dense<0.000000e+00> : vector<8xf32>
    %386 = vector.multi_reduction <add>, %385, %cst_196 [1] : vector<8x4xf32> to vector<8xf32>
    %387 = vector.shape_cast %386 : vector<8xf32> to vector<8x1xf32>
    %388 = arith.truncf %385 : vector<8x4xf32> to vector<8x4xbf16>
    %389 = arith.truncf %353 : vector<4x32xf32> to vector<4x32xbf16>
    %cst_197 = arith.constant dense<0.000000e+00> : vector<8x32xf32>
    %390 = tpu.matmul %388, %389, %cst_197 {dimension_numbers = #tpu.dot_dimension_numbers<[1], [0], [0], [1], [0, 0, 1, 1], [], []>} : vector<8x4xbf16>, vector<4x32xbf16>, vector<8x32xf32> -> vector<8x32xf32>
    %391 = arith.addf %381, %387 : vector<8x1xf32>
    %392 = arith.addf %382, %390 : vector<8x32xf32>
    %393 = tpu.reciprocal %391 {approx = true} : vector<8x1xf32> -> vector<8x1xf32>
    %394 = vector.broadcast %393 : vector<8x1xf32> to vector<8x32xf32>
    %395 = arith.mulf %392, %394 : vector<8x32xf32>
    %396 = arith.truncf %395 : vector<8x32xf32> to vector<8x32xbf16>
    %cst_198 = arith.constant dense<0.000000e+00> : vector<8x32xf32>
    %397 = tpu.matmul %396, %315, %cst_198 {dimension_numbers = #tpu.dot_dimension_numbers<[1], [0], [0], [1], [0, 0, 1, 1], [], []>} : vector<8x32xbf16>, vector<32x32xbf16>, vector<8x32xf32> -> vector<8x32xf32>
    %398 = arith.addf %230, %397 : vector<8x32xf32>
    %399 = arith.truncf %398 : vector<8x32xf32> to vector<8x32xbf16>
    %cst_199 = arith.constant dense<0.000000e+00> : vector<8x64xf32>
    %400 = tpu.matmul %399, %317, %cst_199 {dimension_numbers = #tpu.dot_dimension_numbers<[1], [0], [0], [1], [0, 0, 1, 1], [], []>} : vector<8x32xbf16>, vector<32x64xbf16>, vector<8x64xf32> -> vector<8x64xf32>
    %401 = vector.broadcast %319 : vector<1x64xf32> to vector<8x64xf32>
    %402 = arith.addf %400, %401 : vector<8x64xf32>
    %cst_200 = arith.constant 0.000000e+00 : f32
    %403 = vector.broadcast %cst_200 : f32 to vector<8x64xf32>
    %404 = arith.maximumf %402, %403 : vector<8x64xf32>
    %405 = arith.truncf %404 : vector<8x64xf32> to vector<8x64xbf16>
    %cst_201 = arith.constant dense<0.000000e+00> : vector<8x32xf32>
    %406 = tpu.matmul %405, %321, %cst_201 {dimension_numbers = #tpu.dot_dimension_numbers<[1], [0], [0], [1], [0, 0, 1, 1], [], []>} : vector<8x64xbf16>, vector<64x32xbf16>, vector<8x32xf32> -> vector<8x32xf32>
    %407 = arith.addf %398, %406 : vector<8x32xf32>
    %408 = vector.broadcast %323 : vector<1x32xf32> to vector<8x32xf32>
    %409 = arith.addf %407, %408 : vector<8x32xf32>
    %410 = arith.truncf %309 : vector<8x32xf32> to vector<8x32xbf16>
    %cst_202 = arith.constant dense<0.000000e+00> : vector<8x32xf32>
    %411 = tpu.matmul %410, %311, %cst_202 {dimension_numbers = #tpu.dot_dimension_numbers<[1], [0], [0], [1], [0, 0, 1, 1], [], []>} : vector<8x32xbf16>, vector<32x32xbf16>, vector<8x32xf32> -> vector<8x32xf32>
    %412 = arith.truncf %86 : vector<64x32xf32> to vector<64x32xbf16>
    %cst_203 = arith.constant dense<0.000000e+00> : vector<64x64xf32>
    %413 = tpu.matmul %412, %313, %cst_203 {dimension_numbers = #tpu.dot_dimension_numbers<[1], [0], [0], [1], [0, 0, 1, 1], [], []>} : vector<64x32xbf16>, vector<32x64xbf16>, vector<64x64xf32> -> vector<64x64xf32>
    %414 = vector.extract_strided_slice %413 {offsets = [0, 0], sizes = [64, 32], strides = [1, 1]} : vector<64x64xf32> to vector<64x32xf32>
    %415 = arith.addf %414, %326 : vector<64x32xf32>
    %416 = vector.extract_strided_slice %413 {offsets = [0, 32], sizes = [64, 32], strides = [1, 1]} : vector<64x64xf32> to vector<64x32xf32>
    %cst_204 = arith.constant dense<0.000000e+00> : vector<8x64xf32>
    %417 = tpu.matmul %411, %415, %cst_204 {dimension_numbers = #tpu.dot_dimension_numbers<[1], [1], [0], [0], [0, 0, 1, 0], [], []>} : vector<8x32xf32>, vector<64x32xf32>, vector<8x64xf32> -> vector<8x64xf32>
    %cst_205 = arith.constant 0.176776692 : f32
    %418 = vector.broadcast %cst_205 : f32 to vector<8x64xf32>
    %419 = arith.mulf %417, %418 : vector<8x64xf32>
    %420 = arith.truncf %107 : vector<16x32xf32> to vector<16x32xbf16>
    %cst_206 = arith.constant dense<0.000000e+00> : vector<16x64xf32>
    %421 = tpu.matmul %420, %313, %cst_206 {dimension_numbers = #tpu.dot_dimension_numbers<[1], [0], [0], [1], [0, 0, 1, 1], [], []>} : vector<16x32xbf16>, vector<32x64xbf16>, vector<16x64xf32> -> vector<16x64xf32>
    %422 = vector.extract_strided_slice %421 {offsets = [0, 0], sizes = [16, 32], strides = [1, 1]} : vector<16x64xf32> to vector<16x32xf32>
    %423 = arith.addf %422, %328 : vector<16x32xf32>
    %424 = vector.extract_strided_slice %421 {offsets = [0, 32], sizes = [16, 32], strides = [1, 1]} : vector<16x64xf32> to vector<16x32xf32>
    %cst_207 = arith.constant dense<0.000000e+00> : vector<8x16xf32>
    %425 = tpu.matmul %411, %423, %cst_207 {dimension_numbers = #tpu.dot_dimension_numbers<[1], [1], [0], [0], [0, 0, 1, 0], [], []>} : vector<8x32xf32>, vector<16x32xf32>, vector<8x16xf32> -> vector<8x16xf32>
    %cst_208 = arith.constant 0.176776692 : f32
    %426 = vector.broadcast %cst_208 : f32 to vector<8x16xf32>
    %427 = arith.mulf %425, %426 : vector<8x16xf32>
    %428 = arith.truncf %128 : vector<4x32xf32> to vector<4x32xbf16>
    %cst_209 = arith.constant dense<0.000000e+00> : vector<4x64xf32>
    %429 = tpu.matmul %428, %313, %cst_209 {dimension_numbers = #tpu.dot_dimension_numbers<[1], [0], [0], [1], [0, 0, 1, 1], [], []>} : vector<4x32xbf16>, vector<32x64xbf16>, vector<4x64xf32> -> vector<4x64xf32>
    %430 = vector.extract_strided_slice %429 {offsets = [0, 0], sizes = [4, 32], strides = [1, 1]} : vector<4x64xf32> to vector<4x32xf32>
    %431 = arith.addf %430, %330 : vector<4x32xf32>
    %432 = vector.extract_strided_slice %429 {offsets = [0, 32], sizes = [4, 32], strides = [1, 1]} : vector<4x64xf32> to vector<4x32xf32>
    %cst_210 = arith.constant dense<0.000000e+00> : vector<8x4xf32>
    %433 = tpu.matmul %411, %431, %cst_210 {dimension_numbers = #tpu.dot_dimension_numbers<[1], [1], [0], [0], [0, 0, 1, 0], [], []>} : vector<8x32xf32>, vector<4x32xf32>, vector<8x4xf32> -> vector<8x4xf32>
    %cst_211 = arith.constant 0.176776692 : f32
    %434 = vector.broadcast %cst_211 : f32 to vector<8x4xf32>
    %435 = arith.mulf %433, %434 : vector<8x4xf32>
    %cst_212 = arith.constant dense<0xFF800000> : vector<8xf32>
    %436 = vector.multi_reduction <maximumf>, %419, %cst_212 [1] : vector<8x64xf32> to vector<8xf32>
    %437 = vector.shape_cast %436 : vector<8xf32> to vector<8x1xf32>
    %cst_213 = arith.constant dense<0xFF800000> : vector<8xf32>
    %438 = vector.multi_reduction <maximumf>, %427, %cst_213 [1] : vector<8x16xf32> to vector<8xf32>
    %439 = vector.shape_cast %438 : vector<8xf32> to vector<8x1xf32>
    %440 = arith.maximumf %437, %439 : vector<8x1xf32>
    %cst_214 = arith.constant dense<0xFF800000> : vector<8xf32>
    %441 = vector.multi_reduction <maximumf>, %435, %cst_214 [1] : vector<8x4xf32> to vector<8xf32>
    %442 = vector.shape_cast %441 : vector<8xf32> to vector<8x1xf32>
    %443 = arith.maximumf %440, %442 : vector<8x1xf32>
    %444 = vector.broadcast %443 : vector<8x1xf32> to vector<8x64xf32>
    %445 = arith.subf %419, %444 : vector<8x64xf32>
    %446 = math.exp %445 : vector<8x64xf32>
    %cst_215 = arith.constant dense<0.000000e+00> : vector<8xf32>
    %447 = vector.multi_reduction <add>, %446, %cst_215 [1] : vector<8x64xf32> to vector<8xf32>
    %448 = vector.shape_cast %447 : vector<8xf32> to vector<8x1xf32>
    %449 = arith.truncf %446 : vector<8x64xf32> to vector<8x64xbf16>
    %450 = arith.truncf %416 : vector<64x32xf32> to vector<64x32xbf16>
    %cst_216 = arith.constant dense<0.000000e+00> : vector<8x32xf32>
    %451 = tpu.matmul %449, %450, %cst_216 {dimension_numbers = #tpu.dot_dimension_numbers<[1], [0], [0], [1], [0, 0, 1, 1], [], []>} : vector<8x64xbf16>, vector<64x32xbf16>, vector<8x32xf32> -> vector<8x32xf32>
    %452 = vector.broadcast %443 : vector<8x1xf32> to vector<8x16xf32>
    %453 = arith.subf %427, %452 : vector<8x16xf32>
    %454 = math.exp %453 : vector<8x16xf32>
    %cst_217 = arith.constant dense<0.000000e+00> : vector<8xf32>
    %455 = vector.multi_reduction <add>, %454, %cst_217 [1] : vector<8x16xf32> to vector<8xf32>
    %456 = vector.shape_cast %455 : vector<8xf32> to vector<8x1xf32>
    %457 = arith.truncf %454 : vector<8x16xf32> to vector<8x16xbf16>
    %458 = arith.truncf %424 : vector<16x32xf32> to vector<16x32xbf16>
    %cst_218 = arith.constant dense<0.000000e+00> : vector<8x32xf32>
    %459 = tpu.matmul %457, %458, %cst_218 {dimension_numbers = #tpu.dot_dimension_numbers<[1], [0], [0], [1], [0, 0, 1, 1], [], []>} : vector<8x16xbf16>, vector<16x32xbf16>, vector<8x32xf32> -> vector<8x32xf32>
    %460 = arith.addf %448, %456 : vector<8x1xf32>
    %461 = arith.addf %451, %459 : vector<8x32xf32>
    %462 = vector.broadcast %443 : vector<8x1xf32> to vector<8x4xf32>
    %463 = arith.subf %435, %462 : vector<8x4xf32>
    %464 = math.exp %463 : vector<8x4xf32>
    %cst_219 = arith.constant dense<0.000000e+00> : vector<8xf32>
    %465 = vector.multi_reduction <add>, %464, %cst_219 [1] : vector<8x4xf32> to vector<8xf32>
    %466 = vector.shape_cast %465 : vector<8xf32> to vector<8x1xf32>
    %467 = arith.truncf %464 : vector<8x4xf32> to vector<8x4xbf16>
    %468 = arith.truncf %432 : vector<4x32xf32> to vector<4x32xbf16>
    %cst_220 = arith.constant dense<0.000000e+00> : vector<8x32xf32>
    %469 = tpu.matmul %467, %468, %cst_220 {dimension_numbers = #tpu.dot_dimension_numbers<[1], [0], [0], [1], [0, 0, 1, 1], [], []>} : vector<8x4xbf16>, vector<4x32xbf16>, vector<8x32xf32> -> vector<8x32xf32>
    %470 = arith.addf %460, %466 : vector<8x1xf32>
    %471 = arith.addf %461, %469 : vector<8x32xf32>
    %472 = tpu.reciprocal %470 {approx = true} : vector<8x1xf32> -> vector<8x1xf32>
    %473 = vector.broadcast %472 : vector<8x1xf32> to vector<8x32xf32>
    %474 = arith.mulf %471, %473 : vector<8x32xf32>
    %475 = arith.truncf %474 : vector<8x32xf32> to vector<8x32xbf16>
    %cst_221 = arith.constant dense<0.000000e+00> : vector<8x32xf32>
    %476 = tpu.matmul %475, %315, %cst_221 {dimension_numbers = #tpu.dot_dimension_numbers<[1], [0], [0], [1], [0, 0, 1, 1], [], []>} : vector<8x32xbf16>, vector<32x32xbf16>, vector<8x32xf32> -> vector<8x32xf32>
    %477 = arith.addf %309, %476 : vector<8x32xf32>
    %478 = arith.truncf %477 : vector<8x32xf32> to vector<8x32xbf16>
    %cst_222 = arith.constant dense<0.000000e+00> : vector<8x64xf32>
    %479 = tpu.matmul %478, %317, %cst_222 {dimension_numbers = #tpu.dot_dimension_numbers<[1], [0], [0], [1], [0, 0, 1, 1], [], []>} : vector<8x32xbf16>, vector<32x64xbf16>, vector<8x64xf32> -> vector<8x64xf32>
    %480 = vector.broadcast %319 : vector<1x64xf32> to vector<8x64xf32>
    %481 = arith.addf %479, %480 : vector<8x64xf32>
    %cst_223 = arith.constant 0.000000e+00 : f32
    %482 = vector.broadcast %cst_223 : f32 to vector<8x64xf32>
    %483 = arith.maximumf %481, %482 : vector<8x64xf32>
    %484 = arith.truncf %483 : vector<8x64xf32> to vector<8x64xbf16>
    %cst_224 = arith.constant dense<0.000000e+00> : vector<8x32xf32>
    %485 = tpu.matmul %484, %321, %cst_224 {dimension_numbers = #tpu.dot_dimension_numbers<[1], [0], [0], [1], [0, 0, 1, 1], [], []>} : vector<8x64xbf16>, vector<64x32xbf16>, vector<8x32xf32> -> vector<8x32xf32>
    %486 = arith.addf %477, %485 : vector<8x32xf32>
    %487 = vector.broadcast %323 : vector<1x32xf32> to vector<8x32xf32>
    %488 = arith.addf %486, %487 : vector<8x32xf32>
    %c0_225 = arith.constant 0 : index
    %c0_226 = arith.constant 0 : index
    %489 = vector.load %arg23[%c0_225, %c0_226] : memref<1x32xf32, #tpu.memory_space<vmem>>, vector<1x32xf32>
    %490 = tpu.iota {dimensions = array<i32: 0>} : vector<8x5xi32>
    %491 = arith.mulf %230, %230 : vector<8x32xf32>
    %cst_227 = arith.constant dense<0.000000e+00> : vector<8xf32>
    %492 = vector.multi_reduction <add>, %491, %cst_227 [1] : vector<8x32xf32> to vector<8xf32>
    %493 = vector.shape_cast %492 : vector<8xf32> to vector<8x1xf32>
    %cst_228 = arith.constant 3.200000e+01 : f32
    %494 = vector.broadcast %cst_228 : f32 to vector<8x1xf32>
    %495 = arith.divf %493, %494 : vector<8x1xf32>
    %cst_229 = arith.constant 9.99999997E-7 : f32
    %496 = vector.broadcast %cst_229 : f32 to vector<8x1xf32>
    %497 = arith.addf %495, %496 : vector<8x1xf32>
    %498 = math.rsqrt %497 : vector<8x1xf32>
    %499 = vector.broadcast %498 : vector<8x1xf32> to vector<8x32xf32>
    %500 = arith.mulf %230, %499 : vector<8x32xf32>
    %501 = vector.broadcast %489 : vector<1x32xf32> to vector<8x32xf32>
    %502 = arith.mulf %500, %501 : vector<8x32xf32>
    %503 = arith.mulf %409, %409 : vector<8x32xf32>
    %cst_230 = arith.constant dense<0.000000e+00> : vector<8xf32>
    %504 = vector.multi_reduction <add>, %503, %cst_230 [1] : vector<8x32xf32> to vector<8xf32>
    %505 = vector.shape_cast %504 : vector<8xf32> to vector<8x1xf32>
    %cst_231 = arith.constant 3.200000e+01 : f32
    %506 = vector.broadcast %cst_231 : f32 to vector<8x1xf32>
    %507 = arith.divf %505, %506 : vector<8x1xf32>
    %cst_232 = arith.constant 9.99999997E-7 : f32
    %508 = vector.broadcast %cst_232 : f32 to vector<8x1xf32>
    %509 = arith.addf %507, %508 : vector<8x1xf32>
    %510 = math.rsqrt %509 : vector<8x1xf32>
    %511 = vector.broadcast %510 : vector<8x1xf32> to vector<8x32xf32>
    %512 = arith.mulf %409, %511 : vector<8x32xf32>
    %513 = vector.broadcast %489 : vector<1x32xf32> to vector<8x32xf32>
    %514 = arith.mulf %512, %513 : vector<8x32xf32>
    %cst_233 = arith.constant 4.000000e+00 : f32
    %515 = vector.broadcast %cst_233 : f32 to vector<8x32xf32>
    %516 = arith.mulf %502, %515 : vector<8x32xf32>
    %cst_234 = arith.constant 4.000000e+00 : f32
    %517 = vector.broadcast %cst_234 : f32 to vector<8x32xf32>
    %518 = arith.mulf %514, %517 : vector<8x32xf32>
    %519 = arith.maximumf %516, %518 : vector<8x32xf32>
    %cst_235 = arith.constant 4.000000e+00 : f32
    %520 = vector.broadcast %cst_235 : f32 to vector<8x32xf32>
    %521 = arith.mulf %502, %520 : vector<8x32xf32>
    %522 = arith.subf %521, %519 : vector<8x32xf32>
    %523 = math.exp %522 : vector<8x32xf32>
    %524 = arith.mulf %502, %523 : vector<8x32xf32>
    %cst_236 = arith.constant 4.000000e+00 : f32
    %525 = vector.broadcast %cst_236 : f32 to vector<8x32xf32>
    %526 = arith.mulf %514, %525 : vector<8x32xf32>
    %527 = arith.subf %526, %519 : vector<8x32xf32>
    %528 = math.exp %527 : vector<8x32xf32>
    %529 = arith.addf %523, %528 : vector<8x32xf32>
    %530 = arith.mulf %514, %528 : vector<8x32xf32>
    %531 = arith.addf %524, %530 : vector<8x32xf32>
    %532 = tpu.reciprocal %529 {approx = true} : vector<8x32xf32> -> vector<8x32xf32>
    %533 = arith.mulf %531, %532 : vector<8x32xf32>
    %c0_237 = arith.constant 0 : index
    %c0_238 = arith.constant 0 : index
    %534 = vector.load %arg25[%c0_237, %c0_238] : memref<8x5xf32, #tpu.memory_space<vmem>>, vector<8x5xf32>
    %c0_239 = arith.constant 0 : index
    %c0_240 = arith.constant 0 : index
    %c0_241 = arith.constant 0 : index
    %535 = vector.load %arg24[%c0_239, %c0_240, %c0_241] : memref<8x32x5xbf16, #tpu.memory_space<vmem>>, vector<1x32x5xbf16>
    %536 = vector.shape_cast %535 : vector<1x32x5xbf16> to vector<32x5xbf16>
    %537 = arith.truncf %533 : vector<8x32xf32> to vector<8x32xbf16>
    %cst_242 = arith.constant dense<0.000000e+00> : vector<8x5xf32>
    %538 = tpu.matmul %537, %536, %cst_242 {dimension_numbers = #tpu.dot_dimension_numbers<[1], [0], [0], [1], [0, 0, 1, 1], [], []>} : vector<8x32xbf16>, vector<32x5xbf16>, vector<8x5xf32> -> vector<8x5xf32>
    %c0_i32 = arith.constant 0 : i32
    %539 = vector.broadcast %c0_i32 : i32 to vector<8x5xi32>
    %540 = arith.cmpi eq, %490, %539 : vector<8x5xi32>
    %cst_243 = arith.constant 0.000000e+00 : f32
    %541 = vector.broadcast %cst_243 : f32 to vector<8x5xf32>
    %542 = arith.select %540, %538, %541 : vector<8x5xi1>, vector<8x5xf32>
    %543 = arith.addf %534, %542 : vector<8x5xf32>
    %c1_244 = arith.constant 1 : index
    %c0_245 = arith.constant 0 : index
    %c0_246 = arith.constant 0 : index
    %544 = vector.load %arg24[%c1_244, %c0_245, %c0_246] : memref<8x32x5xbf16, #tpu.memory_space<vmem>>, vector<1x32x5xbf16>
    %545 = vector.shape_cast %544 : vector<1x32x5xbf16> to vector<32x5xbf16>
    %546 = arith.truncf %533 : vector<8x32xf32> to vector<8x32xbf16>
    %cst_247 = arith.constant dense<0.000000e+00> : vector<8x5xf32>
    %547 = tpu.matmul %546, %545, %cst_247 {dimension_numbers = #tpu.dot_dimension_numbers<[1], [0], [0], [1], [0, 0, 1, 1], [], []>} : vector<8x32xbf16>, vector<32x5xbf16>, vector<8x5xf32> -> vector<8x5xf32>
    %c1_i32 = arith.constant 1 : i32
    %548 = vector.broadcast %c1_i32 : i32 to vector<8x5xi32>
    %549 = arith.cmpi eq, %490, %548 : vector<8x5xi32>
    %cst_248 = arith.constant 0.000000e+00 : f32
    %550 = vector.broadcast %cst_248 : f32 to vector<8x5xf32>
    %551 = arith.select %549, %547, %550 : vector<8x5xi1>, vector<8x5xf32>
    %552 = arith.addf %543, %551 : vector<8x5xf32>
    %c2 = arith.constant 2 : index
    %c0_249 = arith.constant 0 : index
    %c0_250 = arith.constant 0 : index
    %553 = vector.load %arg24[%c2, %c0_249, %c0_250] : memref<8x32x5xbf16, #tpu.memory_space<vmem>>, vector<1x32x5xbf16>
    %554 = vector.shape_cast %553 : vector<1x32x5xbf16> to vector<32x5xbf16>
    %555 = arith.truncf %533 : vector<8x32xf32> to vector<8x32xbf16>
    %cst_251 = arith.constant dense<0.000000e+00> : vector<8x5xf32>
    %556 = tpu.matmul %555, %554, %cst_251 {dimension_numbers = #tpu.dot_dimension_numbers<[1], [0], [0], [1], [0, 0, 1, 1], [], []>} : vector<8x32xbf16>, vector<32x5xbf16>, vector<8x5xf32> -> vector<8x5xf32>
    %c2_i32 = arith.constant 2 : i32
    %557 = vector.broadcast %c2_i32 : i32 to vector<8x5xi32>
    %558 = arith.cmpi eq, %490, %557 : vector<8x5xi32>
    %cst_252 = arith.constant 0.000000e+00 : f32
    %559 = vector.broadcast %cst_252 : f32 to vector<8x5xf32>
    %560 = arith.select %558, %556, %559 : vector<8x5xi1>, vector<8x5xf32>
    %561 = arith.addf %552, %560 : vector<8x5xf32>
    %c3 = arith.constant 3 : index
    %c0_253 = arith.constant 0 : index
    %c0_254 = arith.constant 0 : index
    %562 = vector.load %arg24[%c3, %c0_253, %c0_254] : memref<8x32x5xbf16, #tpu.memory_space<vmem>>, vector<1x32x5xbf16>
    %563 = vector.shape_cast %562 : vector<1x32x5xbf16> to vector<32x5xbf16>
    %564 = arith.truncf %533 : vector<8x32xf32> to vector<8x32xbf16>
    %cst_255 = arith.constant dense<0.000000e+00> : vector<8x5xf32>
    %565 = tpu.matmul %564, %563, %cst_255 {dimension_numbers = #tpu.dot_dimension_numbers<[1], [0], [0], [1], [0, 0, 1, 1], [], []>} : vector<8x32xbf16>, vector<32x5xbf16>, vector<8x5xf32> -> vector<8x5xf32>
    %c3_i32 = arith.constant 3 : i32
    %566 = vector.broadcast %c3_i32 : i32 to vector<8x5xi32>
    %567 = arith.cmpi eq, %490, %566 : vector<8x5xi32>
    %cst_256 = arith.constant 0.000000e+00 : f32
    %568 = vector.broadcast %cst_256 : f32 to vector<8x5xf32>
    %569 = arith.select %567, %565, %568 : vector<8x5xi1>, vector<8x5xf32>
    %570 = arith.addf %561, %569 : vector<8x5xf32>
    %c4 = arith.constant 4 : index
    %c0_257 = arith.constant 0 : index
    %c0_258 = arith.constant 0 : index
    %571 = vector.load %arg24[%c4, %c0_257, %c0_258] : memref<8x32x5xbf16, #tpu.memory_space<vmem>>, vector<1x32x5xbf16>
    %572 = vector.shape_cast %571 : vector<1x32x5xbf16> to vector<32x5xbf16>
    %573 = arith.truncf %533 : vector<8x32xf32> to vector<8x32xbf16>
    %cst_259 = arith.constant dense<0.000000e+00> : vector<8x5xf32>
    %574 = tpu.matmul %573, %572, %cst_259 {dimension_numbers = #tpu.dot_dimension_numbers<[1], [0], [0], [1], [0, 0, 1, 1], [], []>} : vector<8x32xbf16>, vector<32x5xbf16>, vector<8x5xf32> -> vector<8x5xf32>
    %c4_i32 = arith.constant 4 : i32
    %575 = vector.broadcast %c4_i32 : i32 to vector<8x5xi32>
    %576 = arith.cmpi eq, %490, %575 : vector<8x5xi32>
    %cst_260 = arith.constant 0.000000e+00 : f32
    %577 = vector.broadcast %cst_260 : f32 to vector<8x5xf32>
    %578 = arith.select %576, %574, %577 : vector<8x5xi1>, vector<8x5xf32>
    %579 = arith.addf %570, %578 : vector<8x5xf32>
    %c5 = arith.constant 5 : index
    %c0_261 = arith.constant 0 : index
    %c0_262 = arith.constant 0 : index
    %580 = vector.load %arg24[%c5, %c0_261, %c0_262] : memref<8x32x5xbf16, #tpu.memory_space<vmem>>, vector<1x32x5xbf16>
    %581 = vector.shape_cast %580 : vector<1x32x5xbf16> to vector<32x5xbf16>
    %582 = arith.truncf %533 : vector<8x32xf32> to vector<8x32xbf16>
    %cst_263 = arith.constant dense<0.000000e+00> : vector<8x5xf32>
    %583 = tpu.matmul %582, %581, %cst_263 {dimension_numbers = #tpu.dot_dimension_numbers<[1], [0], [0], [1], [0, 0, 1, 1], [], []>} : vector<8x32xbf16>, vector<32x5xbf16>, vector<8x5xf32> -> vector<8x5xf32>
    %c5_i32 = arith.constant 5 : i32
    %584 = vector.broadcast %c5_i32 : i32 to vector<8x5xi32>
    %585 = arith.cmpi eq, %490, %584 : vector<8x5xi32>
    %cst_264 = arith.constant 0.000000e+00 : f32
    %586 = vector.broadcast %cst_264 : f32 to vector<8x5xf32>
    %587 = arith.select %585, %583, %586 : vector<8x5xi1>, vector<8x5xf32>
    %588 = arith.addf %579, %587 : vector<8x5xf32>
    %c6 = arith.constant 6 : index
    %c0_265 = arith.constant 0 : index
    %c0_266 = arith.constant 0 : index
    %589 = vector.load %arg24[%c6, %c0_265, %c0_266] : memref<8x32x5xbf16, #tpu.memory_space<vmem>>, vector<1x32x5xbf16>
    %590 = vector.shape_cast %589 : vector<1x32x5xbf16> to vector<32x5xbf16>
    %591 = arith.truncf %533 : vector<8x32xf32> to vector<8x32xbf16>
    %cst_267 = arith.constant dense<0.000000e+00> : vector<8x5xf32>
    %592 = tpu.matmul %591, %590, %cst_267 {dimension_numbers = #tpu.dot_dimension_numbers<[1], [0], [0], [1], [0, 0, 1, 1], [], []>} : vector<8x32xbf16>, vector<32x5xbf16>, vector<8x5xf32> -> vector<8x5xf32>
    %c6_i32 = arith.constant 6 : i32
    %593 = vector.broadcast %c6_i32 : i32 to vector<8x5xi32>
    %594 = arith.cmpi eq, %490, %593 : vector<8x5xi32>
    %cst_268 = arith.constant 0.000000e+00 : f32
    %595 = vector.broadcast %cst_268 : f32 to vector<8x5xf32>
    %596 = arith.select %594, %592, %595 : vector<8x5xi1>, vector<8x5xf32>
    %597 = arith.addf %588, %596 : vector<8x5xf32>
    %c7 = arith.constant 7 : index
    %c0_269 = arith.constant 0 : index
    %c0_270 = arith.constant 0 : index
    %598 = vector.load %arg24[%c7, %c0_269, %c0_270] : memref<8x32x5xbf16, #tpu.memory_space<vmem>>, vector<1x32x5xbf16>
    %599 = vector.shape_cast %598 : vector<1x32x5xbf16> to vector<32x5xbf16>
    %600 = arith.truncf %533 : vector<8x32xf32> to vector<8x32xbf16>
    %cst_271 = arith.constant dense<0.000000e+00> : vector<8x5xf32>
    %601 = tpu.matmul %600, %599, %cst_271 {dimension_numbers = #tpu.dot_dimension_numbers<[1], [0], [0], [1], [0, 0, 1, 1], [], []>} : vector<8x32xbf16>, vector<32x5xbf16>, vector<8x5xf32> -> vector<8x5xf32>
    %c7_i32 = arith.constant 7 : i32
    %602 = vector.broadcast %c7_i32 : i32 to vector<8x5xi32>
    %603 = arith.cmpi eq, %490, %602 : vector<8x5xi32>
    %cst_272 = arith.constant 0.000000e+00 : f32
    %604 = vector.broadcast %cst_272 : f32 to vector<8x5xf32>
    %605 = arith.select %603, %601, %604 : vector<8x5xi1>, vector<8x5xf32>
    %606 = arith.addf %597, %605 : vector<8x5xf32>
    %607 = arith.negf %606 : vector<8x5xf32>
    %608 = math.exp %607 : vector<8x5xf32>
    %cst_273 = arith.constant 1.000000e+00 : f32
    %609 = vector.broadcast %cst_273 : f32 to vector<8x5xf32>
    %610 = arith.addf %609, %608 : vector<8x5xf32>
    %611 = arith.divf %609, %610 : vector<8x5xf32>
    %c0_274 = arith.constant 0 : index
    %c0_275 = arith.constant 0 : index
    %c0_276 = arith.constant 0 : index
    %612 = vector.load %arg26[%c0_274, %c0_275, %c0_276] : memref<2x8x5xf32, #tpu.memory_space<vmem>>, vector<1x8x5xf32>
    %613 = vector.shape_cast %612 : vector<1x8x5xf32> to vector<8x5xf32>
    %614 = vector.shape_cast %611 : vector<8x5xf32> to vector<1x8x5xf32>
    tpu.vector_store %arg26[%c0_274, %c0_275, %c0_276], %614 {strides = array<i32>} : memref<2x8x5xf32, #tpu.memory_space<vmem>>, vector<1x8x5xf32>,
    %615 = arith.mulf %309, %309 : vector<8x32xf32>
    %cst_277 = arith.constant dense<0.000000e+00> : vector<8xf32>
    %616 = vector.multi_reduction <add>, %615, %cst_277 [1] : vector<8x32xf32> to vector<8xf32>
    %617 = vector.shape_cast %616 : vector<8xf32> to vector<8x1xf32>
    %cst_278 = arith.constant 3.200000e+01 : f32
    %618 = vector.broadcast %cst_278 : f32 to vector<8x1xf32>
    %619 = arith.divf %617, %618 : vector<8x1xf32>
    %cst_279 = arith.constant 9.99999997E-7 : f32
    %620 = vector.broadcast %cst_279 : f32 to vector<8x1xf32>
    %621 = arith.addf %619, %620 : vector<8x1xf32>
    %622 = math.rsqrt %621 : vector<8x1xf32>
    %623 = vector.broadcast %622 : vector<8x1xf32> to vector<8x32xf32>
    %624 = arith.mulf %309, %623 : vector<8x32xf32>
    %625 = vector.broadcast %489 : vector<1x32xf32> to vector<8x32xf32>
    %626 = arith.mulf %624, %625 : vector<8x32xf32>
    %627 = arith.mulf %488, %488 : vector<8x32xf32>
    %cst_280 = arith.constant dense<0.000000e+00> : vector<8xf32>
    %628 = vector.multi_reduction <add>, %627, %cst_280 [1] : vector<8x32xf32> to vector<8xf32>
    %629 = vector.shape_cast %628 : vector<8xf32> to vector<8x1xf32>
    %cst_281 = arith.constant 3.200000e+01 : f32
    %630 = vector.broadcast %cst_281 : f32 to vector<8x1xf32>
    %631 = arith.divf %629, %630 : vector<8x1xf32>
    %cst_282 = arith.constant 9.99999997E-7 : f32
    %632 = vector.broadcast %cst_282 : f32 to vector<8x1xf32>
    %633 = arith.addf %631, %632 : vector<8x1xf32>
    %634 = math.rsqrt %633 : vector<8x1xf32>
    %635 = vector.broadcast %634 : vector<8x1xf32> to vector<8x32xf32>
    %636 = arith.mulf %488, %635 : vector<8x32xf32>
    %637 = vector.broadcast %489 : vector<1x32xf32> to vector<8x32xf32>
    %638 = arith.mulf %636, %637 : vector<8x32xf32>
    %cst_283 = arith.constant 4.000000e+00 : f32
    %639 = vector.broadcast %cst_283 : f32 to vector<8x32xf32>
    %640 = arith.mulf %626, %639 : vector<8x32xf32>
    %cst_284 = arith.constant 4.000000e+00 : f32
    %641 = vector.broadcast %cst_284 : f32 to vector<8x32xf32>
    %642 = arith.mulf %638, %641 : vector<8x32xf32>
    %643 = arith.maximumf %640, %642 : vector<8x32xf32>
    %cst_285 = arith.constant 4.000000e+00 : f32
    %644 = vector.broadcast %cst_285 : f32 to vector<8x32xf32>
    %645 = arith.mulf %626, %644 : vector<8x32xf32>
    %646 = arith.subf %645, %643 : vector<8x32xf32>
    %647 = math.exp %646 : vector<8x32xf32>
    %648 = arith.mulf %626, %647 : vector<8x32xf32>
    %cst_286 = arith.constant 4.000000e+00 : f32
    %649 = vector.broadcast %cst_286 : f32 to vector<8x32xf32>
    %650 = arith.mulf %638, %649 : vector<8x32xf32>
    %651 = arith.subf %650, %643 : vector<8x32xf32>
    %652 = math.exp %651 : vector<8x32xf32>
    %653 = arith.addf %647, %652 : vector<8x32xf32>
    %654 = arith.mulf %638, %652 : vector<8x32xf32>
    %655 = arith.addf %648, %654 : vector<8x32xf32>
    %656 = tpu.reciprocal %653 {approx = true} : vector<8x32xf32> -> vector<8x32xf32>
    %657 = arith.mulf %655, %656 : vector<8x32xf32>
    %c0_287 = arith.constant 0 : index
    %c0_288 = arith.constant 0 : index
    %658 = vector.load %arg25[%c0_287, %c0_288] : memref<8x5xf32, #tpu.memory_space<vmem>>, vector<8x5xf32>
    %c0_289 = arith.constant 0 : index
    %c0_290 = arith.constant 0 : index
    %c0_291 = arith.constant 0 : index
    %659 = vector.load %arg24[%c0_289, %c0_290, %c0_291] : memref<8x32x5xbf16, #tpu.memory_space<vmem>>, vector<1x32x5xbf16>
    %660 = vector.shape_cast %659 : vector<1x32x5xbf16> to vector<32x5xbf16>
    %661 = arith.truncf %657 : vector<8x32xf32> to vector<8x32xbf16>
    %cst_292 = arith.constant dense<0.000000e+00> : vector<8x5xf32>
    %662 = tpu.matmul %661, %660, %cst_292 {dimension_numbers = #tpu.dot_dimension_numbers<[1], [0], [0], [1], [0, 0, 1, 1], [], []>} : vector<8x32xbf16>, vector<32x5xbf16>, vector<8x5xf32> -> vector<8x5xf32>
    %c0_i32_293 = arith.constant 0 : i32
    %663 = vector.broadcast %c0_i32_293 : i32 to vector<8x5xi32>
    %664 = arith.cmpi eq, %490, %663 : vector<8x5xi32>
    %cst_294 = arith.constant 0.000000e+00 : f32
    %665 = vector.broadcast %cst_294 : f32 to vector<8x5xf32>
    %666 = arith.select %664, %662, %665 : vector<8x5xi1>, vector<8x5xf32>
    %667 = arith.addf %658, %666 : vector<8x5xf32>
    %c1_295 = arith.constant 1 : index
    %c0_296 = arith.constant 0 : index
    %c0_297 = arith.constant 0 : index
    %668 = vector.load %arg24[%c1_295, %c0_296, %c0_297] : memref<8x32x5xbf16, #tpu.memory_space<vmem>>, vector<1x32x5xbf16>
    %669 = vector.shape_cast %668 : vector<1x32x5xbf16> to vector<32x5xbf16>
    %670 = arith.truncf %657 : vector<8x32xf32> to vector<8x32xbf16>
    %cst_298 = arith.constant dense<0.000000e+00> : vector<8x5xf32>
    %671 = tpu.matmul %670, %669, %cst_298 {dimension_numbers = #tpu.dot_dimension_numbers<[1], [0], [0], [1], [0, 0, 1, 1], [], []>} : vector<8x32xbf16>, vector<32x5xbf16>, vector<8x5xf32> -> vector<8x5xf32>
    %c1_i32_299 = arith.constant 1 : i32
    %672 = vector.broadcast %c1_i32_299 : i32 to vector<8x5xi32>
    %673 = arith.cmpi eq, %490, %672 : vector<8x5xi32>
    %cst_300 = arith.constant 0.000000e+00 : f32
    %674 = vector.broadcast %cst_300 : f32 to vector<8x5xf32>
    %675 = arith.select %673, %671, %674 : vector<8x5xi1>, vector<8x5xf32>
    %676 = arith.addf %667, %675 : vector<8x5xf32>
    %c2_301 = arith.constant 2 : index
    %c0_302 = arith.constant 0 : index
    %c0_303 = arith.constant 0 : index
    %677 = vector.load %arg24[%c2_301, %c0_302, %c0_303] : memref<8x32x5xbf16, #tpu.memory_space<vmem>>, vector<1x32x5xbf16>
    %678 = vector.shape_cast %677 : vector<1x32x5xbf16> to vector<32x5xbf16>
    %679 = arith.truncf %657 : vector<8x32xf32> to vector<8x32xbf16>
    %cst_304 = arith.constant dense<0.000000e+00> : vector<8x5xf32>
    %680 = tpu.matmul %679, %678, %cst_304 {dimension_numbers = #tpu.dot_dimension_numbers<[1], [0], [0], [1], [0, 0, 1, 1], [], []>} : vector<8x32xbf16>, vector<32x5xbf16>, vector<8x5xf32> -> vector<8x5xf32>
    %c2_i32_305 = arith.constant 2 : i32
    %681 = vector.broadcast %c2_i32_305 : i32 to vector<8x5xi32>
    %682 = arith.cmpi eq, %490, %681 : vector<8x5xi32>
    %cst_306 = arith.constant 0.000000e+00 : f32
    %683 = vector.broadcast %cst_306 : f32 to vector<8x5xf32>
    %684 = arith.select %682, %680, %683 : vector<8x5xi1>, vector<8x5xf32>
    %685 = arith.addf %676, %684 : vector<8x5xf32>
    %c3_307 = arith.constant 3 : index
    %c0_308 = arith.constant 0 : index
    %c0_309 = arith.constant 0 : index
    %686 = vector.load %arg24[%c3_307, %c0_308, %c0_309] : memref<8x32x5xbf16, #tpu.memory_space<vmem>>, vector<1x32x5xbf16>
    %687 = vector.shape_cast %686 : vector<1x32x5xbf16> to vector<32x5xbf16>
    %688 = arith.truncf %657 : vector<8x32xf32> to vector<8x32xbf16>
    %cst_310 = arith.constant dense<0.000000e+00> : vector<8x5xf32>
    %689 = tpu.matmul %688, %687, %cst_310 {dimension_numbers = #tpu.dot_dimension_numbers<[1], [0], [0], [1], [0, 0, 1, 1], [], []>} : vector<8x32xbf16>, vector<32x5xbf16>, vector<8x5xf32> -> vector<8x5xf32>
    %c3_i32_311 = arith.constant 3 : i32
    %690 = vector.broadcast %c3_i32_311 : i32 to vector<8x5xi32>
    %691 = arith.cmpi eq, %490, %690 : vector<8x5xi32>
    %cst_312 = arith.constant 0.000000e+00 : f32
    %692 = vector.broadcast %cst_312 : f32 to vector<8x5xf32>
    %693 = arith.select %691, %689, %692 : vector<8x5xi1>, vector<8x5xf32>
    %694 = arith.addf %685, %693 : vector<8x5xf32>
    %c4_313 = arith.constant 4 : index
    %c0_314 = arith.constant 0 : index
    %c0_315 = arith.constant 0 : index
    %695 = vector.load %arg24[%c4_313, %c0_314, %c0_315] : memref<8x32x5xbf16, #tpu.memory_space<vmem>>, vector<1x32x5xbf16>
    %696 = vector.shape_cast %695 : vector<1x32x5xbf16> to vector<32x5xbf16>
    %697 = arith.truncf %657 : vector<8x32xf32> to vector<8x32xbf16>
    %cst_316 = arith.constant dense<0.000000e+00> : vector<8x5xf32>
    %698 = tpu.matmul %697, %696, %cst_316 {dimension_numbers = #tpu.dot_dimension_numbers<[1], [0], [0], [1], [0, 0, 1, 1], [], []>} : vector<8x32xbf16>, vector<32x5xbf16>, vector<8x5xf32> -> vector<8x5xf32>
    %c4_i32_317 = arith.constant 4 : i32
    %699 = vector.broadcast %c4_i32_317 : i32 to vector<8x5xi32>
    %700 = arith.cmpi eq, %490, %699 : vector<8x5xi32>
    %cst_318 = arith.constant 0.000000e+00 : f32
    %701 = vector.broadcast %cst_318 : f32 to vector<8x5xf32>
    %702 = arith.select %700, %698, %701 : vector<8x5xi1>, vector<8x5xf32>
    %703 = arith.addf %694, %702 : vector<8x5xf32>
    %c5_319 = arith.constant 5 : index
    %c0_320 = arith.constant 0 : index
    %c0_321 = arith.constant 0 : index
    %704 = vector.load %arg24[%c5_319, %c0_320, %c0_321] : memref<8x32x5xbf16, #tpu.memory_space<vmem>>, vector<1x32x5xbf16>
    %705 = vector.shape_cast %704 : vector<1x32x5xbf16> to vector<32x5xbf16>
    %706 = arith.truncf %657 : vector<8x32xf32> to vector<8x32xbf16>
    %cst_322 = arith.constant dense<0.000000e+00> : vector<8x5xf32>
    %707 = tpu.matmul %706, %705, %cst_322 {dimension_numbers = #tpu.dot_dimension_numbers<[1], [0], [0], [1], [0, 0, 1, 1], [], []>} : vector<8x32xbf16>, vector<32x5xbf16>, vector<8x5xf32> -> vector<8x5xf32>
    %c5_i32_323 = arith.constant 5 : i32
    %708 = vector.broadcast %c5_i32_323 : i32 to vector<8x5xi32>
    %709 = arith.cmpi eq, %490, %708 : vector<8x5xi32>
    %cst_324 = arith.constant 0.000000e+00 : f32
    %710 = vector.broadcast %cst_324 : f32 to vector<8x5xf32>
    %711 = arith.select %709, %707, %710 : vector<8x5xi1>, vector<8x5xf32>
    %712 = arith.addf %703, %711 : vector<8x5xf32>
    %c6_325 = arith.constant 6 : index
    %c0_326 = arith.constant 0 : index
    %c0_327 = arith.constant 0 : index
    %713 = vector.load %arg24[%c6_325, %c0_326, %c0_327] : memref<8x32x5xbf16, #tpu.memory_space<vmem>>, vector<1x32x5xbf16>
    %714 = vector.shape_cast %713 : vector<1x32x5xbf16> to vector<32x5xbf16>
    %715 = arith.truncf %657 : vector<8x32xf32> to vector<8x32xbf16>
    %cst_328 = arith.constant dense<0.000000e+00> : vector<8x5xf32>
    %716 = tpu.matmul %715, %714, %cst_328 {dimension_numbers = #tpu.dot_dimension_numbers<[1], [0], [0], [1], [0, 0, 1, 1], [], []>} : vector<8x32xbf16>, vector<32x5xbf16>, vector<8x5xf32> -> vector<8x5xf32>
    %c6_i32_329 = arith.constant 6 : i32
    %717 = vector.broadcast %c6_i32_329 : i32 to vector<8x5xi32>
    %718 = arith.cmpi eq, %490, %717 : vector<8x5xi32>
    %cst_330 = arith.constant 0.000000e+00 : f32
    %719 = vector.broadcast %cst_330 : f32 to vector<8x5xf32>
    %720 = arith.select %718, %716, %719 : vector<8x5xi1>, vector<8x5xf32>
    %721 = arith.addf %712, %720 : vector<8x5xf32>
    %c7_331 = arith.constant 7 : index
    %c0_332 = arith.constant 0 : index
    %c0_333 = arith.constant 0 : index
    %722 = vector.load %arg24[%c7_331, %c0_332, %c0_333] : memref<8x32x5xbf16, #tpu.memory_space<vmem>>, vector<1x32x5xbf16>
    %723 = vector.shape_cast %722 : vector<1x32x5xbf16> to vector<32x5xbf16>
    %724 = arith.truncf %657 : vector<8x32xf32> to vector<8x32xbf16>
    %cst_334 = arith.constant dense<0.000000e+00> : vector<8x5xf32>
    %725 = tpu.matmul %724, %723, %cst_334 {dimension_numbers = #tpu.dot_dimension_numbers<[1], [0], [0], [1], [0, 0, 1, 1], [], []>} : vector<8x32xbf16>, vector<32x5xbf16>, vector<8x5xf32> -> vector<8x5xf32>
    %c7_i32_335 = arith.constant 7 : i32
    %726 = vector.broadcast %c7_i32_335 : i32 to vector<8x5xi32>
    %727 = arith.cmpi eq, %490, %726 : vector<8x5xi32>
    %cst_336 = arith.constant 0.000000e+00 : f32
    %728 = vector.broadcast %cst_336 : f32 to vector<8x5xf32>
    %729 = arith.select %727, %725, %728 : vector<8x5xi1>, vector<8x5xf32>
    %730 = arith.addf %721, %729 : vector<8x5xf32>
    %731 = arith.negf %730 : vector<8x5xf32>
    %732 = math.exp %731 : vector<8x5xf32>
    %cst_337 = arith.constant 1.000000e+00 : f32
    %733 = vector.broadcast %cst_337 : f32 to vector<8x5xf32>
    %734 = arith.addf %733, %732 : vector<8x5xf32>
    %735 = arith.divf %733, %734 : vector<8x5xf32>
    %c1_338 = arith.constant 1 : index
    %c0_339 = arith.constant 0 : index
    %c0_340 = arith.constant 0 : index
    %736 = vector.load %arg26[%c1_338, %c0_339, %c0_340] : memref<2x8x5xf32, #tpu.memory_space<vmem>>, vector<1x8x5xf32>
    %737 = vector.shape_cast %736 : vector<1x8x5xf32> to vector<8x5xf32>
    %738 = vector.shape_cast %735 : vector<8x5xf32> to vector<1x8x5xf32>
    tpu.vector_store %arg26[%c1_338, %c0_339, %c0_340], %738 {strides = array<i32>} : memref<2x8x5xf32, #tpu.memory_space<vmem>>, vector<1x8x5xf32>,
    return
  }
}

</mosaic_0001>

<llo_original>
// kernel: forward.4
$region0: #{forward.4}
  #allocation0 [shape = 'u32[]', space=smem, size = 0x4, offset = 0x4, fixed_abs, tag = 'smem constant byte address 0x4 - core index']
  #allocation1 [shape = 'u32[144,128]{1,0:T(1,128)}', space=vmem, size = 0x12000, scoped, tag = 'internal scratch']
  %s0 = inlined_call_operand.vmem [shape: f32[128,48], index: 0, kind: input, shape index: {}]
  %s1 = inlined_call_operand.vmem [shape: bf16[48,16], index: 1, kind: input, shape index: {}]
  %s2 = inlined_call_operand.vmem [shape: f32[1,16], index: 2, kind: input, shape index: {}]
  %s3 = inlined_call_operand.vmem [shape: f32[1,16], index: 3, kind: input, shape index: {}]
  %s4 = inlined_call_operand.vmem [shape: bf16[16,16], index: 4, kind: input, shape index: {}]
  %s5 = inlined_call_operand.vmem [shape: f32[1,16], index: 5, kind: input, shape index: {}]
  %s6 = inlined_call_operand.vmem [shape: f32[128,16], index: 6, kind: output, shape index: {}]
  %s7 = sld [smem:[#allocation0]]
  $region34: #{forward.4} parent=0
    _
  %s9 = ssub.s32 1, %s7
  %s10 = scalar_select 0, %s9, %s7
  // Predicated region
  $region2: #{forward.4} parent=0 // pred_check
    _
  $region3: #{forward.4} parent=0 // pred_check_branch
    %12 = sbr.rel (0) target = $region5
  $region4: #{forward.4} parent=0 // pred_region
    _
  $region5: #{forward.4} parent=0 // pred_fallthru
    _
  // Predicated region
  $region6: #{forward.4} parent=0 // pred_check
    _
  $region7: #{forward.4} parent=0 // pred_check_branch
    %14 = sbr.rel (0) target = $region9
  $region8: #{forward.4} parent=0 // pred_region
    _
  $region9: #{forward.4} parent=0 // pred_fallthru
    _
  // Predicated region
  $region10: #{forward.4} parent=0 // pred_check
    _
  $region11: #{forward.4} parent=0 // pred_check_branch
    %16 = sbr.rel (0) target = $region13
  $region12: #{forward.4} parent=0 // pred_region
    _
  $region13: #{forward.4} parent=0 // pred_fallthru
    _
  // Predicated region
  $region14: #{forward.4} parent=0 // pred_check
    _
  $region15: #{forward.4} parent=0 // pred_check_branch
    %18 = sbr.rel (0) target = $region17
  $region16: #{forward.4} parent=0 // pred_region
    _
  $region17: #{forward.4} parent=0 // pred_fallthru
    _
  // Predicated region
  $region18: #{forward.4} parent=0 // pred_check
    _
  $region19: #{forward.4} parent=0 // pred_check_branch
    %20 = sbr.rel (0) target = $region21
  $region20: #{forward.4} parent=0 // pred_region
    _
  $region21: #{forward.4} parent=0 // pred_fallthru
    _
  // Predicated region
  $region22: #{forward.4} parent=0 // pred_check
    _
  $region23: #{forward.4} parent=0 // pred_check_branch
    %22 = sbr.rel (0) target = $region25
  $region24: #{forward.4} parent=0 // pred_region
    _
  $region25: #{forward.4} parent=0 // pred_fallthru
    _
  %v24 = vld [vmem:[%s0] sm:$0xff]
  %v25 = vld [vmem:[%s0 + $0x8] sm:$0xff]
  %v26 = vld [vmem:[%s0 + $0x10] sm:$0xff]
  %v27 = vld [vmem:[%s0 + $0x18] sm:$0xff]
  %v28 = vld [vmem:[%s0 + $0x20] sm:$0xff]
  %v29 = vld [vmem:[%s0 + $0x28] sm:$0xff]
  %v30 = vld [vmem:[%s0 + $0x30] sm:$0xff]
  %v31 = vld [vmem:[%s0 + $0x38] sm:$0xff]
  %v32 = vld [vmem:[%s0 + $0x40] sm:$0xff]
  %v33 = vld [vmem:[%s0 + $0x48] sm:$0xff]
  %v34 = vld [vmem:[%s0 + $0x50] sm:$0xff]
  %v35 = vld [vmem:[%s0 + $0x58] sm:$0xff]
  %v36 = vld [vmem:[%s0 + $0x60] sm:$0xff]
  %v37 = vld [vmem:[%s0 + $0x68] sm:$0xff]
  %v38 = vld [vmem:[%s0 + $0x70] sm:$0xff]
  %v39 = vld [vmem:[%s0 + $0x78] sm:$0xff]
  %v40 = vld [vmem:[%s1] sm:$0xf]
  %v41 = vld [vmem:[%s1 + $0x4] sm:$0xf]
  %v42 = vld [vmem:[%s1 + $0x8] sm:$0xf]
  %v43 = vld [vmem:[%s1 + $0xc] sm:$0xf]
  %v44 = vld [vmem:[%s1 + $0x10] sm:$0xf]
  %v45 = vld [vmem:[%s1 + $0x14] sm:$0xf]
  %v46 = vpack.c.bf16 %v25, %v24
  %v47 = vpack.c.bf16 %v27, %v26
  %v48 = vpack.c.bf16 %v29, %v28
  %v49 = vpack.c.bf16 %v31, %v30
  %v50 = vpack.c.bf16 %v33, %v32
  %v51 = vpack.c.bf16 %v35, %v34
  %v52 = vpack.c.bf16 %v37, %v36
  %v53 = vpack.c.bf16 %v39, %v38
  %v54 = vld [vmem:[%s2] sm:$0x1]
  %v56 = vlaneseq
  %v57 = vshrl.u32 %v56, 7
  %v58 = vsub.s32 0, %v57
  %v59 = vrot.slane %v54, %v58
  %v67 = vunpack.c.l.b16 %v40
  %v68 = vunpack.c.l.b16 %v41
  %v69 = vunpack.c.l.b16 %v42
  %v70 = vunpack.c.l.b16 %v43
  %v71 = vunpack.c.l.b16 %v44
  %v72 = vunpack.c.l.b16 %v45
  %v73 = vpack.c.b16 %v68, %v67
  %v74 = vpack.c.b16 %v70, %v69
  %v75 = vpack.c.b16 %v72, %v71
  %vm79 = vcmask 392192
  %v81 = vsel %vm79, %v46, 0
  %v84 = vsel %vm79, %v47, 0
  %v87 = vsel %vm79, %v48, 0
  %v90 = vsel %vm79, %v49, 0
  %v93 = vsel %vm79, %v50, 0
  %v96 = vsel %vm79, %v51, 0
  %v99 = vsel %vm79, %v52, 0
  %v102 = vsel %vm79, %v53, 0
  %104 = vmatprep.subr.bf16.mxu0 0
  %105 = vmatpush1.bf16.msra.mxu0 %v73
  %106 = vmatprep.subr.bf16.mxu0 0
  %107 = vmatpush1.bf16.msra.mxu0 %v74
  %108 = vmatprep.subr.bf16.mxu0 0
  %109 = vmatpush1.bf16.msra.mxu0 %v75
  %110 = vmatprep.subr.bf16.mxu0 0
  %111 = vmatpush1.bf16.msra.mxu0 0
  %112 = vmatprep.subr.bf16.mxu0 0
  %113 = vmatpush1.bf16.msra.mxu0 0
  %114 = vmatprep.subr.bf16.mxu0 0
  %115 = vmatpush1.bf16.msra.mxu0 0
  %116 = vmatprep.subr.bf16.mxu0 0
  %117 = vmatpush1.bf16.msra.mxu0 0
  %118 = vmatprep.subr.bf16.mxu0 0
  %119 = vmatpush1.bf16.msra.mxu0 0
  %120 = vmatprep.subr.bf16.mxu0 0
  %121 = vmatpush1.bf16.msra.mxu0 0
  %122 = vmatprep.subr.bf16.mxu0 0
  %123 = vmatpush1.bf16.msra.mxu0 0
  %124 = vmatprep.subr.bf16.mxu0 0
  %125 = vmatpush1.bf16.msra.mxu0 0
  %126 = vmatprep.subr.bf16.mxu0 0
  %127 = vmatpush1.bf16.msra.mxu0 0
  %128 = vmatprep.subr.bf16.mxu0 0
  %129 = vmatpush1.bf16.msra.mxu0 0
  %130 = vmatprep.subr.bf16.mxu0 0
  %131 = vmatpush1.bf16.msra.mxu0 0
  %132 = vmatprep.subr.bf16.mxu0 0
  %133 = vmatpush1.bf16.msra.mxu0 0
  %134 = vmatprep.subr.bf16.mxu0 0
  %135 = vmatpush1.bf16.msra.mxu0 0
  %136 = vmatprep.mubr.bf16.mxu0 0
  %137 = vmatmul.mubr.bf16.gmra.mrb[0].mxu0 %v81
  %v138 = vpop.f32.mrb[0].mxu0
  %v139 = vadd.f32 %v59, %v138
  %v140 = vpop.f32.mrb[0].mxu0
  %v141 = vpop.f32.mrb[0].mxu0
  %v142 = vadd.f32 %v59, %v141
  %v143 = vpop.f32.mrb[0].mxu0
  %144 = vmatprep.mubr.bf16.mxu0 0
  %145 = vmatmul.mubr.bf16.gmra.mrb[0].mxu0 %v84
  %v146 = vpop.f32.mrb[0].mxu0
  %v147 = vadd.f32 %v59, %v146
  %v148 = vpop.f32.mrb[0].mxu0
  %v149 = vpop.f32.mrb[0].mxu0
  %v150 = vadd.f32 %v59, %v149
  %v151 = vpop.f32.mrb[0].mxu0
  %152 = vmatprep.mubr.bf16.mxu0 0
  %153 = vmatmul.mubr.bf16.gmra.mrb[0].mxu0 %v87
  %v154 = vpop.f32.mrb[0].mxu0
  %v155 = vadd.f32 %v59, %v154
  %v156 = vpop.f32.mrb[0].mxu0
  %v157 = vpop.f32.mrb[0].mxu0
  %v158 = vadd.f32 %v59, %v157
  %v159 = vpop.f32.mrb[0].mxu0
  %160 = vmatprep.mubr.bf16.mxu0 0
  %161 = vmatmul.mubr.bf16.gmra.mrb[0].mxu0 %v90
  %v162 = vpop.f32.mrb[0].mxu0
  %v163 = vadd.f32 %v59, %v162
  %v164 = vpop.f32.mrb[0].mxu0
  %v165 = vpop.f32.mrb[0].mxu0
  %v166 = vadd.f32 %v59, %v165
  %v167 = vpop.f32.mrb[0].mxu0
  %168 = vmatprep.mubr.bf16.mxu0 0
  %169 = vmatmul.mubr.bf16.gmra.mrb[0].mxu0 %v93
  %v170 = vpop.f32.mrb[0].mxu0
  %v171 = vadd.f32 %v59, %v170
  %v172 = vpop.f32.mrb[0].mxu0
  %v173 = vpop.f32.mrb[0].mxu0
  %v174 = vadd.f32 %v59, %v173
  %v175 = vpop.f32.mrb[0].mxu0
  %176 = vmatprep.mubr.bf16.mxu0 0
  %177 = vmatmul.mubr.bf16.gmra.mrb[0].mxu0 %v96
  %v178 = vpop.f32.mrb[0].mxu0
  %v179 = vadd.f32 %v59, %v178
  %v180 = vpop.f32.mrb[0].mxu0
  %v181 = vpop.f32.mrb[0].mxu0
  %v182 = vadd.f32 %v59, %v181
  %v183 = vpop.f32.mrb[0].mxu0
  %184 = vmatprep.mubr.bf16.mxu0 0
  %185 = vmatmul.mubr.bf16.gmra.mrb[0].mxu0 %v99
  %v186 = vpop.f32.mrb[0].mxu0
  %v187 = vadd.f32 %v59, %v186
  %v188 = vpop.f32.mrb[0].mxu0
  %v189 = vpop.f32.mrb[0].mxu0
  %v190 = vadd.f32 %v59, %v189
  %v191 = vpop.f32.mrb[0].mxu0
  %192 = vmatprep.mubr.bf16.mxu0 0
  %193 = vmatmul.mubr.bf16.gmra.mrb[0].mxu0 %v102
  %v194 = vpop.f32.mrb[0].mxu0
  %v195 = vadd.f32 %v59, %v194
  %v196 = vpop.f32.mrb[0].mxu0
  %v197 = vpop.f32.mrb[0].mxu0
  %v198 = vadd.f32 %v59, %v197
  %v199 = vpop.f32.mrb[0].mxu0
  %200 = vdwg.mxu0
  %v201 = vld [vmem:[%s3] sm:$0x1]
  %v202 = vmul.f32 %v139, %v139
  %v203 = vmul.f32 %v142, %v142
  %v204 = vmul.f32 %v147, %v147
  %v205 = vmul.f32 %v150, %v150
  %v206 = vmul.f32 %v155, %v155
  %v207 = vmul.f32 %v158, %v158
  %v208 = vmul.f32 %v163, %v163
  %v209 = vmul.f32 %v166, %v166
  %v210 = vmul.f32 %v171, %v171
  %v211 = vmul.f32 %v174, %v174
  %v212 = vmul.f32 %v179, %v179
  %v213 = vmul.f32 %v182, %v182
  %v214 = vmul.f32 %v187, %v187
  %v215 = vmul.f32 %v190, %v190
  %v216 = vmul.f32 %v195, %v195
  %v217 = vmul.f32 %v198, %v198
  %vm218 = vcmask 130048
  %v219 = vsel %vm218, %v202, 0.0
  %220 = vadd.xlane.f32.xlu0 %v219
  %v221 = vpop.xlane.xlu0 %220
  %v222 = vsel %vm218, %v203, 0.0
  %223 = vadd.xlane.f32.xlu0 %v222
  %v224 = vpop.xlane.xlu0 %223
  %v225 = vsel %vm218, %v204, 0.0
  %226 = vadd.xlane.f32.xlu0 %v225
  %v227 = vpop.xlane.xlu0 %226
  %v228 = vsel %vm218, %v205, 0.0
  %229 = vadd.xlane.f32.xlu0 %v228
  %v230 = vpop.xlane.xlu0 %229
  %v231 = vsel %vm218, %v206, 0.0
  %232 = vadd.xlane.f32.xlu0 %v231
  %v233 = vpop.xlane.xlu0 %232
  %v234 = vsel %vm218, %v207, 0.0
  %235 = vadd.xlane.f32.xlu0 %v234
  %v236 = vpop.xlane.xlu0 %235
  %v237 = vsel %vm218, %v208, 0.0
  %238 = vadd.xlane.f32.xlu0 %v237
  %v239 = vpop.xlane.xlu0 %238
  %v240 = vsel %vm218, %v209, 0.0
  %241 = vadd.xlane.f32.xlu0 %v240
  %v242 = vpop.xlane.xlu0 %241
  %v243 = vsel %vm218, %v210, 0.0
  %244 = vadd.xlane.f32.xlu0 %v243
  %v245 = vpop.xlane.xlu0 %244
  %v246 = vsel %vm218, %v211, 0.0
  %247 = vadd.xlane.f32.xlu0 %v246
  %v248 = vpop.xlane.xlu0 %247
  %v249 = vsel %vm218, %v212, 0.0
  %250 = vadd.xlane.f32.xlu0 %v249
  %v251 = vpop.xlane.xlu0 %250
  %v252 = vsel %vm218, %v213, 0.0
  %253 = vadd.xlane.f32.xlu0 %v252
  %v254 = vpop.xlane.xlu0 %253
  %v255 = vsel %vm218, %v214, 0.0
  %256 = vadd.xlane.f32.xlu0 %v255
  %v257 = vpop.xlane.xlu0 %256
  %v258 = vsel %vm218, %v215, 0.0
  %259 = vadd.xlane.f32.xlu0 %v258
  %v260 = vpop.xlane.xlu0 %259
  %v261 = vsel %vm218, %v216, 0.0
  %262 = vadd.xlane.f32.xlu0 %v261
  %v263 = vpop.xlane.xlu0 %262
  %v264 = vsel %vm218, %v217, 0.0
  %265 = vadd.xlane.f32.xlu0 %v264
  %v266 = vpop.xlane.xlu0 %265
  %v267 = vrcp.pop 16.0
  %v268 = vmul.f32 %v221, %v267
  %v269 = vmul.f32 %v224, %v267
  %v270 = vmul.f32 %v227, %v267
  %v271 = vmul.f32 %v230, %v267
  %v272 = vmul.f32 %v233, %v267
  %v273 = vmul.f32 %v236, %v267
  %v274 = vmul.f32 %v239, %v267
  %v275 = vmul.f32 %v242, %v267
  %v276 = vmul.f32 %v245, %v267
  %v277 = vmul.f32 %v248, %v267
  %v278 = vmul.f32 %v251, %v267
  %v279 = vmul.f32 %v254, %v267
  %v280 = vmul.f32 %v257, %v267
  %v281 = vmul.f32 %v260, %v267
  %v282 = vmul.f32 %v263, %v267
  %v283 = vmul.f32 %v266, %v267
  %v284 = vadd.f32 %v268, 1e-06
  %v285 = vadd.f32 %v269, 1e-06
  %v286 = vadd.f32 %v270, 1e-06
  %v287 = vadd.f32 %v271, 1e-06
  %v288 = vadd.f32 %v272, 1e-06
  %v289 = vadd.f32 %v273, 1e-06
  %v290 = vadd.f32 %v274, 1e-06
  %v291 = vadd.f32 %v275, 1e-06
  %v292 = vadd.f32 %v276, 1e-06
  %v293 = vadd.f32 %v277, 1e-06
  %v294 = vadd.f32 %v278, 1e-06
  %v295 = vadd.f32 %v279, 1e-06
  %v296 = vadd.f32 %v280, 1e-06
  %v297 = vadd.f32 %v281, 1e-06
  %v298 = vadd.f32 %v282, 1e-06
  %v299 = vadd.f32 %v283, 1e-06
  %v300 = vrsqrt.pop %v284
  %v301 = vrsqrt.pop %v285
  %v302 = vrsqrt.pop %v286
  %v303 = vrsqrt.pop %v287
  %v304 = vrsqrt.pop %v288
  %v305 = vrsqrt.pop %v289
  %v306 = vrsqrt.pop %v290
  %v307 = vrsqrt.pop %v291
  %v308 = vrsqrt.pop %v292
  %v309 = vrsqrt.pop %v293
  %v310 = vrsqrt.pop %v294
  %v311 = vrsqrt.pop %v295
  %v312 = vrsqrt.pop %v296
  %v313 = vrsqrt.pop %v297
  %v314 = vrsqrt.pop %v298
  %v315 = vrsqrt.pop %v299
  %v316 = vmul.f32 %v139, %v300
  %v317 = vmul.f32 %v142, %v301
  %v318 = vmul.f32 %v147, %v302
  %v319 = vmul.f32 %v150, %v303
  %v320 = vmul.f32 %v155, %v304
  %v321 = vmul.f32 %v158, %v305
  %v322 = vmul.f32 %v163, %v306
  %v323 = vmul.f32 %v166, %v307
  %v324 = vmul.f32 %v171, %v308
  %v325 = vmul.f32 %v174, %v309
  %v326 = vmul.f32 %v179, %v310
  %v327 = vmul.f32 %v182, %v311
  %v328 = vmul.f32 %v187, %v312
  %v329 = vmul.f32 %v190, %v313
  %v330 = vmul.f32 %v195, %v314
  %v331 = vmul.f32 %v198, %v315
  %v333 = vlaneseq
  %v334 = vshrl.u32 %v333, 7
  %v335 = vsub.s32 0, %v334
  %v336 = vrot.slane %v201, %v335
  %v338 = vmul.f32 %v316, %v336
  %v339 = vmul.f32 %v317, %v336
  %v340 = vmul.f32 %v318, %v336
  %v341 = vmul.f32 %v319, %v336
  %v342 = vmul.f32 %v320, %v336
  %v343 = vmul.f32 %v321, %v336
  %v344 = vmul.f32 %v322, %v336
  %v345 = vmul.f32 %v323, %v336
  %v346 = vmul.f32 %v324, %v336
  %v347 = vmul.f32 %v325, %v336
  %v348 = vmul.f32 %v326, %v336
  %v349 = vmul.f32 %v327, %v336
  %v350 = vmul.f32 %v328, %v336
  %v351 = vmul.f32 %v329, %v336
  %v352 = vmul.f32 %v330, %v336
  %v353 = vmul.f32 %v331, %v336
  %v354 = vld [vmem:[%s4] sm:$0xf]
  %v355 = vld [vmem:[%s4 + $0x4] sm:$0xf]
  %v356 = vpack.c.bf16 %v339, %v338
  %v357 = vpack.c.bf16 %v341, %v340
  %v358 = vpack.c.bf16 %v343, %v342
  %v359 = vpack.c.bf16 %v345, %v344
  %v360 = vpack.c.bf16 %v347, %v346
  %v361 = vpack.c.bf16 %v349, %v348
  %v362 = vpack.c.bf16 %v351, %v350
  %v363 = vpack.c.bf16 %v353, %v352
  %v364 = vld [vmem:[%s5] sm:$0x1]
  %v366 = vlaneseq
  %v367 = vshrl.u32 %v366, 7
  %v368 = vsub.s32 0, %v367
  %v369 = vrot.slane %v364, %v368
  %v373 = vunpack.c.l.b16 %v354
  %v374 = vunpack.c.l.b16 %v355
  %v375 = vpack.c.b16 %v374, %v373
  %v378 = vsel %vm218, %v356, 0
  %v381 = vsel %vm218, %v357, 0
  %v384 = vsel %vm218, %v358, 0
  %v387 = vsel %vm218, %v359, 0
  %v390 = vsel %vm218, %v360, 0
  %v393 = vsel %vm218, %v361, 0
  %v396 = vsel %vm218, %v362, 0
  %v399 = vsel %vm218, %v363, 0
  %401 = vmatprep.subr.bf16.mxu0 0
  %402 = vmatpush1.bf16.msra.mxu0 %v375
  %403 = vmatprep.subr.bf16.mxu0 0
  %404 = vmatpush1.bf16.msra.mxu0 0
  %405 = vmatprep.subr.bf16.mxu0 0
  %406 = vmatpush1.bf16.msra.mxu0 0
  %407 = vmatprep.subr.bf16.mxu0 0
  %408 = vmatpush1.bf16.msra.mxu0 0
  %409 = vmatprep.subr.bf16.mxu0 0
  %410 = vmatpush1.bf16.msra.mxu0 0
  %411 = vmatprep.subr.bf16.mxu0 0
  %412 = vmatpush1.bf16.msra.mxu0 0
  %413 = vmatprep.subr.bf16.mxu0 0
  %414 = vmatpush1.bf16.msra.mxu0 0
  %415 = vmatprep.subr.bf16.mxu0 0
  %416 = vmatpush1.bf16.msra.mxu0 0
  %417 = vmatprep.subr.bf16.mxu0 0
  %418 = vmatpush1.bf16.msra.mxu0 0
  %419 = vmatprep.subr.bf16.mxu0 0
  %420 = vmatpush1.bf16.msra.mxu0 0
  %421 = vmatprep.subr.bf16.mxu0 0
  %422 = vmatpush1.bf16.msra.mxu0 0
  %423 = vmatprep.subr.bf16.mxu0 0
  %424 = vmatpush1.bf16.msra.mxu0 0
  %425 = vmatprep.subr.bf16.mxu0 0
  %426 = vmatpush1.bf16.msra.mxu0 0
  %427 = vmatprep.subr.bf16.mxu0 0
  %428 = vmatpush1.bf16.msra.mxu0 0
  %429 = vmatprep.subr.bf16.mxu0 0
  %430 = vmatpush1.bf16.msra.mxu0 0
  %431 = vmatprep.subr.bf16.mxu0 0
  %432 = vmatpush1.bf16.msra.mxu0 0
  %433 = vmatprep.mubr.bf16.mxu0 0
  %434 = vmatmul.mubr.bf16.gmra.mrb[0].mxu0 %v378
  %v435 = vpop.f32.mrb[0].mxu0
  %v436 = vadd.f32 %v369, %v435
  %v437 = vpop.f32.mrb[0].mxu0
  %v438 = vpop.f32.mrb[0].mxu0
  %v439 = vadd.f32 %v369, %v438
  %v440 = vpop.f32.mrb[0].mxu0
  %441 = vmatprep.mubr.bf16.mxu0 0
  %442 = vmatmul.mubr.bf16.gmra.mrb[0].mxu0 %v381
  %v443 = vpop.f32.mrb[0].mxu0
  %v444 = vadd.f32 %v369, %v443
  %v445 = vpop.f32.mrb[0].mxu0
  %v446 = vpop.f32.mrb[0].mxu0
  %v447 = vadd.f32 %v369, %v446
  %v448 = vpop.f32.mrb[0].mxu0
  %449 = vmatprep.mubr.bf16.mxu0 0
  %450 = vmatmul.mubr.bf16.gmra.mrb[0].mxu0 %v384
  %v451 = vpop.f32.mrb[0].mxu0
  %v452 = vadd.f32 %v369, %v451
  %v453 = vpop.f32.mrb[0].mxu0
  %v454 = vpop.f32.mrb[0].mxu0
  %v455 = vadd.f32 %v369, %v454
  %v456 = vpop.f32.mrb[0].mxu0
  %457 = vmatprep.mubr.bf16.mxu0 0
  %458 = vmatmul.mubr.bf16.gmra.mrb[0].mxu0 %v387
  %v459 = vpop.f32.mrb[0].mxu0
  %v460 = vadd.f32 %v369, %v459
  %v461 = vpop.f32.mrb[0].mxu0
  %v462 = vpop.f32.mrb[0].mxu0
  %v463 = vadd.f32 %v369, %v462
  %v464 = vpop.f32.mrb[0].mxu0
  %465 = vmatprep.mubr.bf16.mxu0 0
  %466 = vmatmul.mubr.bf16.gmra.mrb[0].mxu0 %v390
  %v467 = vpop.f32.mrb[0].mxu0
  %v468 = vadd.f32 %v369, %v467
  %v469 = vpop.f32.mrb[0].mxu0
  %v470 = vpop.f32.mrb[0].mxu0
  %v471 = vadd.f32 %v369, %v470
  %v472 = vpop.f32.mrb[0].mxu0
  %473 = vmatprep.mubr.bf16.mxu0 0
  %474 = vmatmul.mubr.bf16.gmra.mrb[0].mxu0 %v393
  %v475 = vpop.f32.mrb[0].mxu0
  %v476 = vadd.f32 %v369, %v475
  %v477 = vpop.f32.mrb[0].mxu0
  %v478 = vpop.f32.mrb[0].mxu0
  %v479 = vadd.f32 %v369, %v478
  %v480 = vpop.f32.mrb[0].mxu0
  %481 = vmatprep.mubr.bf16.mxu0 0
  %482 = vmatmul.mubr.bf16.gmra.mrb[0].mxu0 %v396
  %v483 = vpop.f32.mrb[0].mxu0
  %v484 = vadd.f32 %v369, %v483
  %v485 = vpop.f32.mrb[0].mxu0
  %v486 = vpop.f32.mrb[0].mxu0
  %v487 = vadd.f32 %v369, %v486
  %v488 = vpop.f32.mrb[0].mxu0
  %489 = vmatprep.mubr.bf16.mxu0 0
  %490 = vmatmul.mubr.bf16.gmra.mrb[0].mxu0 %v399
  %v491 = vpop.f32.mrb[0].mxu0
  %v492 = vadd.f32 %v369, %v491
  %v493 = vpop.f32.mrb[0].mxu0
  %v494 = vpop.f32.mrb[0].mxu0
  %v495 = vadd.f32 %v369, %v494
  %v496 = vpop.f32.mrb[0].mxu0
  %497 = vdwg.mxu0
  %498 = vst.msk [vmem:[%s6] sm:$0xff] %vm218, %v436
  %499 = vst.msk [vmem:[%s6 + $0x8] sm:$0xff] %vm218, %v439
  %500 = vst.msk [vmem:[%s6 + $0x10] sm:$0xff] %vm218, %v444
  %501 = vst.msk [vmem:[%s6 + $0x18] sm:$0xff] %vm218, %v447
  %502 = vst.msk [vmem:[%s6 + $0x20] sm:$0xff] %vm218, %v452
  %503 = vst.msk [vmem:[%s6 + $0x28] sm:$0xff] %vm218, %v455
  %504 = vst.msk [vmem:[%s6 + $0x30] sm:$0xff] %vm218, %v460
  %505 = vst.msk [vmem:[%s6 + $0x38] sm:$0xff] %vm218, %v463
  %506 = vst.msk [vmem:[%s6 + $0x40] sm:$0xff] %vm218, %v468
  %507 = vst.msk [vmem:[%s6 + $0x48] sm:$0xff] %vm218, %v471
  %508 = vst.msk [vmem:[%s6 + $0x50] sm:$0xff] %vm218, %v476
  %509 = vst.msk [vmem:[%s6 + $0x58] sm:$0xff] %vm218, %v479
  %510 = vst.msk [vmem:[%s6 + $0x60] sm:$0xff] %vm218, %v484
  %511 = vst.msk [vmem:[%s6 + $0x68] sm:$0xff] %vm218, %v487
  %512 = vst.msk [vmem:[%s6 + $0x70] sm:$0xff] %vm218, %v492
  %513 = vst.msk [vmem:[%s6 + $0x78] sm:$0xff] %vm218, %v495
  // Predicated region
  $region26: #{forward.4} parent=0 // pred_check
    _
  $region27: #{forward.4} parent=0 // pred_check_branch
    %515 = sbr.rel (0) target = $region29
  $region28: #{forward.4} parent=0 // pred_region
    _
  $region29: #{forward.4} parent=0 // pred_fallthru
    _
  // Predicated region
  $region30: #{forward.4} parent=0 // pred_check
    _
  $region31: #{forward.4} parent=0 // pred_check_branch
    %517 = sbr.rel (0) target = $region33
  $region32: #{forward.4} parent=0 // pred_region
    _
  $region33: #{forward.4} parent=0 // pred_fallthru
    _

// kernel: forward.5
$region0: #{forward.5}
  #allocation0 [shape = 'u32[]', space=smem, size = 0x4, offset = 0x4, fixed_abs, tag = 'smem constant byte address 0x4 - core index']
  #allocation1 [shape = 'u32[144,128]{1,0:T(1,128)}', space=vmem, size = 0x12000, scoped, tag = 'internal scratch']
  %s0 = inlined_call_operand.vmem [shape: f32[32,64], index: 0, kind: input, shape index: {}]
  %s1 = inlined_call_operand.vmem [shape: f32[1,64], index: 1, kind: input, shape index: {}]
  %s2 = inlined_call_operand.vmem [shape: bf16[64,24], index: 2, kind: input, shape index: {}]
  %s3 = inlined_call_operand.vmem [shape: f32[1,24], index: 3, kind: input, shape index: {}]
  %s4 = inlined_call_operand.vmem [shape: f32[32,24], index: 4, kind: output, shape index: {}]
  %s5 = sld [smem:[#allocation0]]
  $region26: #{forward.5} parent=0
    _
  %s7 = ssub.s32 1, %s5
  %s8 = scalar_select 0, %s7, %s5
  // Predicated region
  $region2: #{forward.5} parent=0 // pred_check
    _
  $region3: #{forward.5} parent=0 // pred_check_branch
    %10 = sbr.rel (0) target = $region5
  $region4: #{forward.5} parent=0 // pred_region
    _
  $region5: #{forward.5} parent=0 // pred_fallthru
    _
  // Predicated region
  $region6: #{forward.5} parent=0 // pred_check
    _
  $region7: #{forward.5} parent=0 // pred_check_branch
    %12 = sbr.rel (0) target = $region9
  $region8: #{forward.5} parent=0 // pred_region
    _
  $region9: #{forward.5} parent=0 // pred_fallthru
    _
  // Predicated region
  $region10: #{forward.5} parent=0 // pred_check
    _
  $region11: #{forward.5} parent=0 // pred_check_branch
    %14 = sbr.rel (0) target = $region13
  $region12: #{forward.5} parent=0 // pred_region
    _
  $region13: #{forward.5} parent=0 // pred_fallthru
    _
  // Predicated region
  $region14: #{forward.5} parent=0 // pred_check
    _
  $region15: #{forward.5} parent=0 // pred_check_branch
    %16 = sbr.rel (0) target = $region17
  $region16: #{forward.5} parent=0 // pred_region
    _
  $region17: #{forward.5} parent=0 // pred_fallthru
    _
  %v18 = vld [vmem:[%s0] sm:$0xff]
  %v19 = vld [vmem:[%s0 + $0x8] sm:$0xff]
  %v20 = vld [vmem:[%s0 + $0x10] sm:$0xff]
  %v21 = vld [vmem:[%s0 + $0x18] sm:$0xff]
  %v22 = vld [vmem:[%s1] sm:$0x1]
  %v23 = vmul.f32 %v18, %v18
  %v24 = vmul.f32 %v19, %v19
  %v25 = vmul.f32 %v20, %v20
  %v26 = vmul.f32 %v21, %v21
  %vm27 = vcmask 523264
  %v28 = vsel %vm27, %v23, 0.0
  %29 = vadd.xlane.f32.xlu0 %v28
  %v30 = vpop.xlane.xlu0 %29
  %v31 = vsel %vm27, %v24, 0.0
  %32 = vadd.xlane.f32.xlu0 %v31
  %v33 = vpop.xlane.xlu0 %32
  %v34 = vsel %vm27, %v25, 0.0
  %35 = vadd.xlane.f32.xlu0 %v34
  %v36 = vpop.xlane.xlu0 %35
  %v37 = vsel %vm27, %v26, 0.0
  %38 = vadd.xlane.f32.xlu0 %v37
  %v39 = vpop.xlane.xlu0 %38
  %v40 = vrcp.pop 64.0
  %v41 = vmul.f32 %v30, %v40
  %v42 = vmul.f32 %v33, %v40
  %v43 = vmul.f32 %v36, %v40
  %v44 = vmul.f32 %v39, %v40
  %v45 = vadd.f32 %v41, 1e-06
  %v46 = vadd.f32 %v42, 1e-06
  %v47 = vadd.f32 %v43, 1e-06
  %v48 = vadd.f32 %v44, 1e-06
  %v49 = vrsqrt.pop %v45
  %v50 = vrsqrt.pop %v46
  %v51 = vrsqrt.pop %v47
  %v52 = vrsqrt.pop %v48
  %v53 = vmul.f32 %v18, %v49
  %v54 = vmul.f32 %v19, %v50
  %v55 = vmul.f32 %v20, %v51
  %v56 = vmul.f32 %v21, %v52
  %v58 = vlaneseq
  %v59 = vshrl.u32 %v58, 7
  %v60 = vsub.s32 0, %v59
  %v61 = vrot.slane %v22, %v60
  %v63 = vmul.f32 %v53, %v61
  %v64 = vmul.f32 %v54, %v61
  %v65 = vmul.f32 %v55, %v61
  %v66 = vmul.f32 %v56, %v61
  %v67 = vld [vmem:[%s2] sm:$0xf]
  %v68 = vld [vmem:[%s2 + $0x4] sm:$0xf]
  %v69 = vld [vmem:[%s2 + $0x8] sm:$0xf]
  %v70 = vld [vmem:[%s2 + $0xc] sm:$0xf]
  %v71 = vld [vmem:[%s2 + $0x10] sm:$0xf]
  %v72 = vld [vmem:[%s2 + $0x14] sm:$0xf]
  %v73 = vld [vmem:[%s2 + $0x18] sm:$0xf]
  %v74 = vld [vmem:[%s2 + $0x1c] sm:$0xf]
  %v75 = vpack.c.bf16 %v64, %v63
  %v76 = vpack.c.bf16 %v66, %v65
  %v77 = vld [vmem:[%s3] sm:$0x1]
  %v79 = vlaneseq
  %v80 = vshrl.u32 %v79, 7
  %v81 = vsub.s32 0, %v80
  %v82 = vrot.slane %v77, %v81
  %v92 = vunpack.c.l.b16 %v67
  %v93 = vunpack.c.l.b16 %v68
  %v94 = vunpack.c.l.b16 %v69
  %v95 = vunpack.c.l.b16 %v70
  %v96 = vunpack.c.l.b16 %v71
  %v97 = vunpack.c.l.b16 %v72
  %v98 = vunpack.c.l.b16 %v73
  %v99 = vunpack.c.l.b16 %v74
  %v100 = vpack.c.b16 %v93, %v92
  %v101 = vpack.c.b16 %v95, %v94
  %v102 = vpack.c.b16 %v97, %v96
  %v103 = vpack.c.b16 %v99, %v98
  %v109 = vsel %vm27, %v75, 0
  %v112 = vsel %vm27, %v76, 0
  %114 = vmatprep.subr.bf16.mxu0 0
  %115 = vmatpush1.bf16.msra.mxu0 %v100
  %116 = vmatprep.subr.bf16.mxu0 0
  %117 = vmatpush1.bf16.msra.mxu0 %v101
  %118 = vmatprep.subr.bf16.mxu0 0
  %119 = vmatpush1.bf16.msra.mxu0 %v102
  %120 = vmatprep.subr.bf16.mxu0 0
  %121 = vmatpush1.bf16.msra.mxu0 %v103
  %122 = vmatprep.subr.bf16.mxu0 0
  %123 = vmatpush1.bf16.msra.mxu0 0
  %124 = vmatprep.subr.bf16.mxu0 0
  %125 = vmatpush1.bf16.msra.mxu0 0
  %126 = vmatprep.subr.bf16.mxu0 0
  %127 = vmatpush1.bf16.msra.mxu0 0
  %128 = vmatprep.subr.bf16.mxu0 0
  %129 = vmatpush1.bf16.msra.mxu0 0
  %130 = vmatprep.subr.bf16.mxu0 0
  %131 = vmatpush1.bf16.msra.mxu0 0
  %132 = vmatprep.subr.bf16.mxu0 0
  %133 = vmatpush1.bf16.msra.mxu0 0
  %134 = vmatprep.subr.bf16.mxu0 0
  %135 = vmatpush1.bf16.msra.mxu0 0
  %136 = vmatprep.subr.bf16.mxu0 0
  %137 = vmatpush1.bf16.msra.mxu0 0
  %138 = vmatprep.subr.bf16.mxu0 0
  %139 = vmatpush1.bf16.msra.mxu0 0
  %140 = vmatprep.subr.bf16.mxu0 0
  %141 = vmatpush1.bf16.msra.mxu0 0
  %142 = vmatprep.subr.bf16.mxu0 0
  %143 = vmatpush1.bf16.msra.mxu0 0
  %144 = vmatprep.subr.bf16.mxu0 0
  %145 = vmatpush1.bf16.msra.mxu0 0
  %146 = vmatprep.mubr.bf16.mxu0 0
  %147 = vmatmul.mubr.bf16.gmra.mrb[0].mxu0 %v109
  %v148 = vpop.f32.mrb[0].mxu0
  %v149 = vadd.f32 %v82, %v148
  %v150 = vpop.f32.mrb[0].mxu0
  %v151 = vpop.f32.mrb[0].mxu0
  %v152 = vadd.f32 %v82, %v151
  %v153 = vpop.f32.mrb[0].mxu0
  %154 = vmatprep.mubr.bf16.mxu0 0
  %155 = vmatmul.mubr.bf16.gmra.mrb[0].mxu0 %v112
  %v156 = vpop.f32.mrb[0].mxu0
  %v157 = vadd.f32 %v82, %v156
  %v158 = vpop.f32.mrb[0].mxu0
  %v159 = vpop.f32.mrb[0].mxu0
  %v160 = vadd.f32 %v82, %v159
  %v161 = vpop.f32.mrb[0].mxu0
  %162 = vdwg.mxu0
  %vm163 = vcmask 195584
  %164 = vst.msk [vmem:[%s4] sm:$0xff] %vm163, %v149
  %165 = vst.msk [vmem:[%s4 + $0x8] sm:$0xff] %vm163, %v152
  %166 = vst.msk [vmem:[%s4 + $0x10] sm:$0xff] %vm163, %v157
  %167 = vst.msk [vmem:[%s4 + $0x18] sm:$0xff] %vm163, %v160
  // Predicated region
  $region18: #{forward.5} parent=0 // pred_check
    _
  $region19: #{forward.5} parent=0 // pred_check_branch
    %169 = sbr.rel (0) target = $region21
  $region20: #{forward.5} parent=0 // pred_region
    _
  $region21: #{forward.5} parent=0 // pred_fallthru
    _
  // Predicated region
  $region22: #{forward.5} parent=0 // pred_check
    _
  $region23: #{forward.5} parent=0 // pred_check_branch
    %171 = sbr.rel (0) target = $region25
  $region24: #{forward.5} parent=0 // pred_region
    _
  $region25: #{forward.5} parent=0 // pred_fallthru
    _

// kernel: forward.6
$region0: #{forward.6}
  #allocation0 [shape = 'u32[]', space=smem, size = 0x4, offset = 0x4, fixed_abs, tag = 'smem constant byte address 0x4 - core index']
  #allocation1 [shape = 'u32[144,128]{1,0:T(1,128)}', space=vmem, size = 0x12000, scoped, tag = 'internal scratch']
  %s0 = inlined_call_operand.vmem [shape: f32[8,96], index: 0, kind: input, shape index: {}]
  %s1 = inlined_call_operand.vmem [shape: f32[1,96], index: 1, kind: input, shape index: {}]
  %s2 = inlined_call_operand.vmem [shape: bf16[96,32], index: 2, kind: input, shape index: {}]
  %s3 = inlined_call_operand.vmem [shape: f32[1,32], index: 3, kind: input, shape index: {}]
  %s4 = inlined_call_operand.vmem [shape: f32[8,32], index: 4, kind: output, shape index: {}]
  %s5 = sld [smem:[#allocation0]]
  $region26: #{forward.6} parent=0
    _
  %s7 = ssub.s32 1, %s5
  %s8 = scalar_select 0, %s7, %s5
  // Predicated region
  $region2: #{forward.6} parent=0 // pred_check
    _
  $region3: #{forward.6} parent=0 // pred_check_branch
    %10 = sbr.rel (0) target = $region5
  $region4: #{forward.6} parent=0 // pred_region
    _
  $region5: #{forward.6} parent=0 // pred_fallthru
    _
  // Predicated region
  $region6: #{forward.6} parent=0 // pred_check
    _
  $region7: #{forward.6} parent=0 // pred_check_branch
    %12 = sbr.rel (0) target = $region9
  $region8: #{forward.6} parent=0 // pred_region
    _
  $region9: #{forward.6} parent=0 // pred_fallthru
    _
  // Predicated region
  $region10: #{forward.6} parent=0 // pred_check
    _
  $region11: #{forward.6} parent=0 // pred_check_branch
    %14 = sbr.rel (0) target = $region13
  $region12: #{forward.6} parent=0 // pred_region
    _
  $region13: #{forward.6} parent=0 // pred_fallthru
    _
  // Predicated region
  $region14: #{forward.6} parent=0 // pred_check
    _
  $region15: #{forward.6} parent=0 // pred_check_branch
    %16 = sbr.rel (0) target = $region17
  $region16: #{forward.6} parent=0 // pred_region
    _
  $region17: #{forward.6} parent=0 // pred_fallthru
    _
  %v18 = vld [vmem:[%s0] sm:$0xff]
  %v19 = vld [vmem:[%s1] sm:$0x1]
  %v20 = vmul.f32 %v18, %v18
  %vm21 = vcmask 785408
  %v22 = vsel %vm21, %v20, 0.0
  %23 = vadd.xlane.f32.xlu0 %v22
  %v24 = vpop.xlane.xlu0 %23
  %v25 = vrcp.pop 96.0
  %v26 = vmul.f32 %v24, %v25
  %v27 = vadd.f32 %v26, 1e-06
  %v28 = vrsqrt.pop %v27
  %v29 = vmul.f32 %v18, %v28
  %v31 = vlaneseq
  %v32 = vshrl.u32 %v31, 7
  %v33 = vsub.s32 0, %v32
  %v34 = vrot.slane %v19, %v33
  %v36 = vmul.f32 %v29, %v34
  %v37 = vld [vmem:[%s2] sm:$0xf]
  %v38 = vld [vmem:[%s2 + $0x4] sm:$0xf]
  %v39 = vld [vmem:[%s2 + $0x8] sm:$0xf]
  %v40 = vld [vmem:[%s2 + $0xc] sm:$0xf]
  %v41 = vld [vmem:[%s2 + $0x10] sm:$0xf]
  %v42 = vld [vmem:[%s2 + $0x14] sm:$0xf]
  %v43 = vld [vmem:[%s2 + $0x18] sm:$0xf]
  %v44 = vld [vmem:[%s2 + $0x1c] sm:$0xf]
  %v45 = vld [vmem:[%s2 + $0x20] sm:$0xf]
  %v46 = vld [vmem:[%s2 + $0x24] sm:$0xf]
  %v47 = vld [vmem:[%s2 + $0x28] sm:$0xf]
  %v48 = vld [vmem:[%s2 + $0x2c] sm:$0xf]
  %v49 = vpack.c.bf16 %v36, %v36
  %v50 = vld [vmem:[%s3] sm:$0x1]
  %v52 = vlaneseq
  %v53 = vshrl.u32 %v52, 7
  %v54 = vsub.s32 0, %v53
  %v55 = vrot.slane %v50, %v54
  %v69 = vunpack.c.l.b16 %v37
  %v70 = vunpack.c.l.b16 %v38
  %v71 = vunpack.c.l.b16 %v39
  %v72 = vunpack.c.l.b16 %v40
  %v73 = vunpack.c.l.b16 %v41
  %v74 = vunpack.c.l.b16 %v42
  %v75 = vunpack.c.l.b16 %v43
  %v76 = vunpack.c.l.b16 %v44
  %v77 = vunpack.c.l.b16 %v45
  %v78 = vunpack.c.l.b16 %v46
  %v79 = vunpack.c.l.b16 %v47
  %v80 = vunpack.c.l.b16 %v48
  %v81 = vpack.c.b16 %v70, %v69
  %v82 = vpack.c.b16 %v72, %v71
  %v83 = vpack.c.b16 %v74, %v73
  %v84 = vpack.c.b16 %v76, %v75
  %v85 = vpack.c.b16 %v78, %v77
  %v86 = vpack.c.b16 %v80, %v79
  %v94 = vsel %vm21, %v49, 0
  %96 = vmatprep.subr.bf16.mxu0 0
  %97 = vmatpush1.bf16.msra.mxu0 %v81
  %98 = vmatprep.subr.bf16.mxu0 0
  %99 = vmatpush1.bf16.msra.mxu0 %v82
  %100 = vmatprep.subr.bf16.mxu0 0
  %101 = vmatpush1.bf16.msra.mxu0 %v83
  %102 = vmatprep.subr.bf16.mxu0 0
  %103 = vmatpush1.bf16.msra.mxu0 %v84
  %104 = vmatprep.subr.bf16.mxu0 0
  %105 = vmatpush1.bf16.msra.mxu0 %v85
  %106 = vmatprep.subr.bf16.mxu0 0
  %107 = vmatpush1.bf16.msra.mxu0 %v86
  %108 = vmatprep.subr.bf16.mxu0 0
  %109 = vmatpush1.bf16.msra.mxu0 0
  %110 = vmatprep.subr.bf16.mxu0 0
  %111 = vmatpush1.bf16.msra.mxu0 0
  %112 = vmatprep.subr.bf16.mxu0 0
  %113 = vmatpush1.bf16.msra.mxu0 0
  %114 = vmatprep.subr.bf16.mxu0 0
  %115 = vmatpush1.bf16.msra.mxu0 0
  %116 = vmatprep.subr.bf16.mxu0 0
  %117 = vmatpush1.bf16.msra.mxu0 0
  %118 = vmatprep.subr.bf16.mxu0 0
  %119 = vmatpush1.bf16.msra.mxu0 0
  %120 = vmatprep.subr.bf16.mxu0 0
  %121 = vmatpush1.bf16.msra.mxu0 0
  %122 = vmatprep.subr.bf16.mxu0 0
  %123 = vmatpush1.bf16.msra.mxu0 0
  %124 = vmatprep.subr.bf16.mxu0 0
  %125 = vmatpush1.bf16.msra.mxu0 0
  %126 = vmatprep.subr.bf16.mxu0 0
  %127 = vmatpush1.bf16.msra.mxu0 0
  %128 = vmatprep.mubr.bf16.mxu0 0
  %129 = vmatmul.mubr.bf16.gmra.mrb[0].mxu0 %v94
  %v130 = vpop.f32.mrb[0].mxu0
  %v131 = vadd.f32 %v55, %v130
  %v132 = vpop.f32.mrb[0].mxu0
  %v133 = vpop.f32.mrb[0].mxu0
  %v134 = vpop.f32.mrb[0].mxu0
  %135 = vdwg.mxu0
  %vm136 = vcmask 261120
  %137 = vst.msk [vmem:[%s4] sm:$0xff] %vm136, %v131
  // Predicated region
  $region18: #{forward.6} parent=0 // pred_check
    _
  $region19: #{forward.6} parent=0 // pred_check_branch
    %139 = sbr.rel (0) target = $region21
  $region20: #{forward.6} parent=0 // pred_region
    _
  $region21: #{forward.6} parent=0 // pred_fallthru
    _
  // Predicated region
  $region22: #{forward.6} parent=0 // pred_check
    _
  $region23: #{forward.6} parent=0 // pred_check_branch
    %141 = sbr.rel (0) target = $region25
  $region24: #{forward.6} parent=0 // pred_region
    _
  $region25: #{forward.6} parent=0 // pred_fallthru
    _

// kernel: forward.7
$region0: #{forward.7}
  #allocation0 [shape = 'u32[]', space=smem, size = 0x4, offset = 0x4, fixed_abs, tag = 'smem constant byte address 0x4 - core index']
  #allocation1 [shape = 'u32[144,128]{1,0:T(1,128)}', space=vmem, size = 0x12000, scoped, tag = 'internal scratch']
  %s0 = inlined_call_operand.vmem [shape: f32[2,64,16], index: 0, kind: input, shape index: {}]
  %s1 = inlined_call_operand.vmem [shape: f32[2,16,24], index: 1, kind: input, shape index: {}]
  %s2 = inlined_call_operand.vmem [shape: f32[2,4,32], index: 2, kind: input, shape index: {}]
  %s3 = inlined_call_operand.vmem [shape: f32[64,32], index: 3, kind: input, shape index: {}]
  %s4 = inlined_call_operand.vmem [shape: f32[16,32], index: 4, kind: input, shape index: {}]
  %s5 = inlined_call_operand.vmem [shape: f32[4,32], index: 5, kind: input, shape index: {}]
  %s6 = inlined_call_operand.vmem [shape: f32[8,32], index: 6, kind: input, shape index: {}]
  %s7 = inlined_call_operand.vmem [shape: f32[1,16], index: 7, kind: input, shape index: {}]
  %s8 = inlined_call_operand.vmem [shape: bf16[16,32], index: 8, kind: input, shape index: {}]
  %s9 = inlined_call_operand.vmem [shape: f32[1,32], index: 9, kind: input, shape index: {}]
  %s10 = inlined_call_operand.vmem [shape: f32[1,24], index: 10, kind: input, shape index: {}]
  %s11 = inlined_call_operand.vmem [shape: bf16[24,32], index: 11, kind: input, shape index: {}]
  %s12 = inlined_call_operand.vmem [shape: f32[1,32], index: 12, kind: input, shape index: {}]
  %s13 = inlined_call_operand.vmem [shape: f32[1,32], index: 13, kind: input, shape index: {}]
  %s14 = inlined_call_operand.vmem [shape: bf16[32,32], index: 14, kind: input, shape index: {}]
  %s15 = inlined_call_operand.vmem [shape: f32[1,32], index: 15, kind: input, shape index: {}]
  %s16 = inlined_call_operand.vmem [shape: bf16[2,32,32], index: 16, kind: input, shape index: {}]
  %s17 = inlined_call_operand.vmem [shape: bf16[2,32,64], index: 17, kind: input, shape index: {}]
  %s18 = inlined_call_operand.vmem [shape: bf16[2,32,32], index: 18, kind: input, shape index: {}]
  %s19 = inlined_call_operand.vmem [shape: bf16[2,32,64], index: 19, kind: input, shape index: {}]
  %s20 = inlined_call_operand.vmem [shape: f32[2,1,64], index: 20, kind: input, shape index: {}]
  %s21 = inlined_call_operand.vmem [shape: bf16[2,64,32], index: 21, kind: input, shape index: {}]
  %s22 = inlined_call_operand.vmem [shape: f32[2,1,32], index: 22, kind: input, shape index: {}]
  %s23 = inlined_call_operand.vmem [shape: f32[1,32], index: 23, kind: input, shape index: {}]
  %s24 = inlined_call_operand.vmem [shape: bf16[8,32,5], index: 24, kind: input, shape index: {}]
  %s25 = inlined_call_operand.vmem [shape: f32[8,5], index: 25, kind: input, shape index: {}]
  %s26 = inlined_call_operand.vmem [shape: f32[2,8,5], index: 26, kind: output, shape index: {}]
  %s27 = sld [smem:[#allocation0]]
  $region114: #{forward.7} parent=0
    _
  %s29 = ssub.s32 1, %s27
  %s30 = scalar_select 0, %s29, %s27
  // Predicated region
  $region2: #{forward.7} parent=0 // pred_check
    _
  $region3: #{forward.7} parent=0 // pred_check_branch
    %32 = sbr.rel (0) target = $region5
  $region4: #{forward.7} parent=0 // pred_region
    _
  $region5: #{forward.7} parent=0 // pred_fallthru
    _
  // Predicated region
  $region6: #{forward.7} parent=0 // pred_check
    _
  $region7: #{forward.7} parent=0 // pred_check_branch
    %34 = sbr.rel (0) target = $region9
  $region8: #{forward.7} parent=0 // pred_region
    _
  $region9: #{forward.7} parent=0 // pred_fallthru
    _
  // Predicated region
  $region10: #{forward.7} parent=0 // pred_check
    _
  $region11: #{forward.7} parent=0 // pred_check_branch
    %36 = sbr.rel (0) target = $region13
  $region12: #{forward.7} parent=0 // pred_region
    _
  $region13: #{forward.7} parent=0 // pred_fallthru
    _
  // Predicated region
  $region14: #{forward.7} parent=0 // pred_check
    _
  $region15: #{forward.7} parent=0 // pred_check_branch
    %38 = sbr.rel (0) target = $region17
  $region16: #{forward.7} parent=0 // pred_region
    _
  $region17: #{forward.7} parent=0 // pred_fallthru
    _
  // Predicated region
  $region18: #{forward.7} parent=0 // pred_check
    _
  $region19: #{forward.7} parent=0 // pred_check_branch
    %40 = sbr.rel (0) target = $region21
  $region20: #{forward.7} parent=0 // pred_region
    _
  $region21: #{forward.7} parent=0 // pred_fallthru
    _
  // Predicated region
  $region22: #{forward.7} parent=0 // pred_check
    _
  $region23: #{forward.7} parent=0 // pred_check_branch
    %42 = sbr.rel (0) target = $region25
  $region24: #{forward.7} parent=0 // pred_region
    _
  $region25: #{forward.7} parent=0 // pred_fallthru
    _
  // Predicated region
  $region26: #{forward.7} parent=0 // pred_check
    _
  $region27: #{forward.7} parent=0 // pred_check_branch
    %44 = sbr.rel (0) target = $region29
  $region28: #{forward.7} parent=0 // pred_region
    _
  $region29: #{forward.7} parent=0 // pred_fallthru
    _
  // Predicated region
  $region30: #{forward.7} parent=0 // pred_check
    _
  $region31: #{forward.7} parent=0 // pred_check_branch
    %46 = sbr.rel (0) target = $region33
  $region32: #{forward.7} parent=0 // pred_region
    _
  $region33: #{forward.7} parent=0 // pred_fallthru
    _
  // Predicated region
  $region34: #{forward.7} parent=0 // pred_check
    _
  $region35: #{forward.7} parent=0 // pred_check_branch
    %48 = sbr.rel (0) target = $region37
  $region36: #{forward.7} parent=0 // pred_region
    _
  $region37: #{forward.7} parent=0 // pred_fallthru
    _
  // Predicated region
  $region38: #{forward.7} parent=0 // pred_check
    _
  $region39: #{forward.7} parent=0 // pred_check_branch
    %50 = sbr.rel (0) target = $region41
  $region40: #{forward.7} parent=0 // pred_region
    _
  $region41: #{forward.7} parent=0 // pred_fallthru
    _
  // Predicated region
  $region42: #{forward.7} parent=0 // pred_check
    _
  $region43: #{forward.7} parent=0 // pred_check_branch
    %52 = sbr.rel (0) target = $region45
  $region44: #{forward.7} parent=0 // pred_region
    _
  $region45: #{forward.7} parent=0 // pred_fallthru
    _
  // Predicated region
  $region46: #{forward.7} parent=0 // pred_check
    _
  $region47: #{forward.7} parent=0 // pred_check_branch
    %54 = sbr.rel (0) target = $region49
  $region48: #{forward.7} parent=0 // pred_region
    _
  $region49: #{forward.7} parent=0 // pred_fallthru
    _
  // Predicated region
  $region50: #{forward.7} parent=0 // pred_check
    _
  $region51: #{forward.7} parent=0 // pred_check_branch
    %56 = sbr.rel (0) target = $region53
  $region52: #{forward.7} parent=0 // pred_region
    _
  $region53: #{forward.7} parent=0 // pred_fallthru
    _
  // Predicated region
  $region54: #{forward.7} parent=0 // pred_check
    _
  $region55: #{forward.7} parent=0 // pred_check_branch
    %58 = sbr.rel (0) target = $region57
  $region56: #{forward.7} parent=0 // pred_region
    _
  $region57: #{forward.7} parent=0 // pred_fallthru
    _
  // Predicated region
  $region58: #{forward.7} parent=0 // pred_check
    _
  $region59: #{forward.7} parent=0 // pred_check_branch
    %60 = sbr.rel (0) target = $region61
  $region60: #{forward.7} parent=0 // pred_region
    _
  $region61: #{forward.7} parent=0 // pred_fallthru
    _
  // Predicated region
  $region62: #{forward.7} parent=0 // pred_check
    _
  $region63: #{forward.7} parent=0 // pred_check_branch
    %62 = sbr.rel (0) target = $region65
  $region64: #{forward.7} parent=0 // pred_region
    _
  $region65: #{forward.7} parent=0 // pred_fallthru
    _
  // Predicated region
  $region66: #{forward.7} parent=0 // pred_check
    _
  $region67: #{forward.7} parent=0 // pred_check_branch
    %64 = sbr.rel (0) target = $region69
  $region68: #{forward.7} parent=0 // pred_region
    _
  $region69: #{forward.7} parent=0 // pred_fallthru
    _
  // Predicated region
  $region70: #{forward.7} parent=0 // pred_check
    _
  $region71: #{forward.7} parent=0 // pred_check_branch
    %66 = sbr.rel (0) target = $region73
  $region72: #{forward.7} parent=0 // pred_region
    _
  $region73: #{forward.7} parent=0 // pred_fallthru
    _
  // Predicated region
  $region74: #{forward.7} parent=0 // pred_check
    _
  $region75: #{forward.7} parent=0 // pred_check_branch
    %68 = sbr.rel (0) target = $region77
  $region76: #{forward.7} parent=0 // pred_region
    _
  $region77: #{forward.7} parent=0 // pred_fallthru
    _
  // Predicated region
  $region78: #{forward.7} parent=0 // pred_check
    _
  $region79: #{forward.7} parent=0 // pred_check_branch
    %70 = sbr.rel (0) target = $region81
  $region80: #{forward.7} parent=0 // pred_region
    _
  $region81: #{forward.7} parent=0 // pred_fallthru
    _
  // Predicated region
  $region82: #{forward.7} parent=0 // pred_check
    _
  $region83: #{forward.7} parent=0 // pred_check_branch
    %72 = sbr.rel (0) target = $region85
  $region84: #{forward.7} parent=0 // pred_region
    _
  $region85: #{forward.7} parent=0 // pred_fallthru
    _
  // Predicated region
  $region86: #{forward.7} parent=0 // pred_check
    _
  $region87: #{forward.7} parent=0 // pred_check_branch
    %74 = sbr.rel (0) target = $region89
  $region88: #{forward.7} parent=0 // pred_region
    _
  $region89: #{forward.7} parent=0 // pred_fallthru
    _
  // Predicated region
  $region90: #{forward.7} parent=0 // pred_check
    _
  $region91: #{forward.7} parent=0 // pred_check_branch
    %76 = sbr.rel (0) target = $region93
  $region92: #{forward.7} parent=0 // pred_region
    _
  $region93: #{forward.7} parent=0 // pred_fallthru
    _
  // Predicated region
  $region94: #{forward.7} parent=0 // pred_check
    _
  $region95: #{forward.7} parent=0 // pred_check_branch
    %78 = sbr.rel (0) target = $region97
  $region96: #{forward.7} parent=0 // pred_region
    _
  $region97: #{forward.7} parent=0 // pred_fallthru
    _
  // Predicated region
  $region98: #{forward.7} parent=0 // pred_check
    _
  $region99: #{forward.7} parent=0 // pred_check_branch
    %80 = sbr.rel (0) target = $region101
  $region100: #{forward.7} parent=0 // pred_region
    _
  $region101: #{forward.7} parent=0 // pred_fallthru
    _
  // Predicated region
  $region102: #{forward.7} parent=0 // pred_check
    _
  $region103: #{forward.7} parent=0 // pred_check_branch
    %82 = sbr.rel (0) target = $region105
  $region104: #{forward.7} parent=0 // pred_region
    _
  $region105: #{forward.7} parent=0 // pred_fallthru
    _
  %v84 = vld [vmem:[%s3] sm:$0xff]
  %v85 = vld [vmem:[%s3 + $0x8] sm:$0xff]
  %v86 = vld [vmem:[%s3 + $0x10] sm:$0xff]
  %v87 = vld [vmem:[%s3 + $0x18] sm:$0xff]
  %v88 = vld [vmem:[%s3 + $0x20] sm:$0xff]
  %v89 = vld [vmem:[%s3 + $0x28] sm:$0xff]
  %v90 = vld [vmem:[%s3 + $0x30] sm:$0xff]
  %v91 = vld [vmem:[%s3 + $0x38] sm:$0xff]
  %v92 = vld [vmem:[%s4] sm:$0xff]
  %v93 = vld [vmem:[%s4 + $0x8] sm:$0xff]
  %v94 = vld [vmem:[%s5] sm:$0xf]
  %v95 = vld [vmem:[%s0] sm:$0xff]
  %v96 = vld [vmem:[%s0 + $0x8] sm:$0xff]
  %v97 = vld [vmem:[%s0 + $0x10] sm:$0xff]
  %v98 = vld [vmem:[%s0 + $0x18] sm:$0xff]
  %v99 = vld [vmem:[%s0 + $0x20] sm:$0xff]
  %v100 = vld [vmem:[%s0 + $0x28] sm:$0xff]
  %v101 = vld [vmem:[%s0 + $0x30] sm:$0xff]
  %v102 = vld [vmem:[%s0 + $0x38] sm:$0xff]
  %v103 = vld [vmem:[%s7] sm:$0x1]
  %v104 = vmul.f32 %v95, %v95
  %v105 = vmul.f32 %v96, %v96
  %v106 = vmul.f32 %v97, %v97
  %v107 = vmul.f32 %v98, %v98
  %v108 = vmul.f32 %v99, %v99
  %v109 = vmul.f32 %v100, %v100
  %v110 = vmul.f32 %v101, %v101
  %v111 = vmul.f32 %v102, %v102
  %vm112 = vcmask 130048
  %v113 = vsel %vm112, %v104, 0.0
  %114 = vadd.xlane.f32.xlu0 %v113
  %v115 = vpop.xlane.xlu0 %114
  %v116 = vsel %vm112, %v105, 0.0
  %117 = vadd.xlane.f32.xlu0 %v116
  %v118 = vpop.xlane.xlu0 %117
  %v119 = vsel %vm112, %v106, 0.0
  %120 = vadd.xlane.f32.xlu0 %v119
  %v121 = vpop.xlane.xlu0 %120
  %v122 = vsel %vm112, %v107, 0.0
  %123 = vadd.xlane.f32.xlu0 %v122
  %v124 = vpop.xlane.xlu0 %123
  %v125 = vsel %vm112, %v108, 0.0
  %126 = vadd.xlane.f32.xlu0 %v125
  %v127 = vpop.xlane.xlu0 %126
  %v128 = vsel %vm112, %v109, 0.0
  %129 = vadd.xlane.f32.xlu0 %v128
  %v130 = vpop.xlane.xlu0 %129
  %v131 = vsel %vm112, %v110, 0.0
  %132 = vadd.xlane.f32.xlu0 %v131
  %v133 = vpop.xlane.xlu0 %132
  %v134 = vsel %vm112, %v111, 0.0
  %135 = vadd.xlane.f32.xlu0 %v134
  %v136 = vpop.xlane.xlu0 %135
  %v137 = vrcp.pop 16.0
  %v138 = vmul.f32 %v115, %v137
  %v139 = vmul.f32 %v118, %v137
  %v140 = vmul.f32 %v121, %v137
  %v141 = vmul.f32 %v124, %v137
  %v142 = vmul.f32 %v127, %v137
  %v143 = vmul.f32 %v130, %v137
  %v144 = vmul.f32 %v133, %v137
  %v145 = vmul.f32 %v136, %v137
  %v146 = vadd.f32 %v138, 1e-06
  %v147 = vadd.f32 %v139, 1e-06
  %v148 = vadd.f32 %v140, 1e-06
  %v149 = vadd.f32 %v141, 1e-06
  %v150 = vadd.f32 %v142, 1e-06
  %v151 = vadd.f32 %v143, 1e-06
  %v152 = vadd.f32 %v144, 1e-06
  %v153 = vadd.f32 %v145, 1e-06
  %v154 = vrsqrt.pop %v146
  %v155 = vrsqrt.pop %v147
  %v156 = vrsqrt.pop %v148
  %v157 = vrsqrt.pop %v149
  %v158 = vrsqrt.pop %v150
  %v159 = vrsqrt.pop %v151
  %v160 = vrsqrt.pop %v152
  %v161 = vrsqrt.pop %v153
  %v162 = vmul.f32 %v95, %v154
  %v163 = vmul.f32 %v96, %v155
  %v164 = vmul.f32 %v97, %v156
  %v165 = vmul.f32 %v98, %v157
  %v166 = vmul.f32 %v99, %v158
  %v167 = vmul.f32 %v100, %v159
  %v168 = vmul.f32 %v101, %v160
  %v169 = vmul.f32 %v102, %v161
  %v171 = vlaneseq
  %v172 = vshrl.u32 %v171, 7
  %v173 = vsub.s32 0, %v172
  %v174 = vrot.slane %v103, %v173
  %v176 = vmul.f32 %v162, %v174
  %v177 = vmul.f32 %v163, %v174
  %v178 = vmul.f32 %v164, %v174
  %v179 = vmul.f32 %v165, %v174
  %v180 = vmul.f32 %v166, %v174
  %v181 = vmul.f32 %v167, %v174
  %v182 = vmul.f32 %v168, %v174
  %v183 = vmul.f32 %v169, %v174
  %v184 = vld [vmem:[%s8] sm:$0xf]
  %v185 = vld [vmem:[%s8 + $0x4] sm:$0xf]
  %v186 = vpack.c.bf16 %v177, %v176
  %v187 = vpack.c.bf16 %v179, %v178
  %v188 = vpack.c.bf16 %v181, %v180
  %v189 = vpack.c.bf16 %v183, %v182
  %v190 = vld [vmem:[%s9] sm:$0x1]
  %v192 = vlaneseq
  %v193 = vshrl.u32 %v192, 7
  %v194 = vsub.s32 0, %v193
  %v195 = vrot.slane %v190, %v194
  %v199 = vunpack.c.l.b16 %v184
  %v200 = vunpack.c.l.b16 %v185
  %v201 = vpack.c.b16 %v200, %v199
  %v204 = vsel %vm112, %v186, 0
  %v207 = vsel %vm112, %v187, 0
  %v210 = vsel %vm112, %v188, 0
  %v213 = vsel %vm112, %v189, 0
  %215 = vmatprep.subr.bf16.mxu0 0
  %216 = vmatpush1.bf16.msra.mxu0 %v201
  %217 = vmatprep.subr.bf16.mxu0 0
  %218 = vmatpush1.bf16.msra.mxu0 0
  %219 = vmatprep.subr.bf16.mxu0 0
  %220 = vmatpush1.bf16.msra.mxu0 0
  %221 = vmatprep.subr.bf16.mxu0 0
  %222 = vmatpush1.bf16.msra.mxu0 0
  %223 = vmatprep.subr.bf16.mxu0 0
  %224 = vmatpush1.bf16.msra.mxu0 0
  %225 = vmatprep.subr.bf16.mxu0 0
  %226 = vmatpush1.bf16.msra.mxu0 0
  %227 = vmatprep.subr.bf16.mxu0 0
  %228 = vmatpush1.bf16.msra.mxu0 0
  %229 = vmatprep.subr.bf16.mxu0 0
  %230 = vmatpush1.bf16.msra.mxu0 0
  %231 = vmatprep.subr.bf16.mxu0 0
  %232 = vmatpush1.bf16.msra.mxu0 0
  %233 = vmatprep.subr.bf16.mxu0 0
  %234 = vmatpush1.bf16.msra.mxu0 0
  %235 = vmatprep.subr.bf16.mxu0 0
  %236 = vmatpush1.bf16.msra.mxu0 0
  %237 = vmatprep.subr.bf16.mxu0 0
  %238 = vmatpush1.bf16.msra.mxu0 0
  %239 = vmatprep.subr.bf16.mxu0 0
  %240 = vmatpush1.bf16.msra.mxu0 0
  %241 = vmatprep.subr.bf16.mxu0 0
  %242 = vmatpush1.bf16.msra.mxu0 0
  %243 = vmatprep.subr.bf16.mxu0 0
  %244 = vmatpush1.bf16.msra.mxu0 0
  %245 = vmatprep.subr.bf16.mxu0 0
  %246 = vmatpush1.bf16.msra.mxu0 0
  %247 = vmatprep.mubr.bf16.mxu0 0
  %248 = vmatmul.mubr.bf16.gmra.mrb[0].mxu0 %v204
  %v249 = vpop.f32.mrb[0].mxu0
  %v250 = vadd.f32 %v195, %v249
  %v251 = vpop.f32.mrb[0].mxu0
  %v252 = vpop.f32.mrb[0].mxu0
  %v253 = vadd.f32 %v195, %v252
  %v254 = vpop.f32.mrb[0].mxu0
  %255 = vmatprep.mubr.bf16.mxu0 0
  %256 = vmatmul.mubr.bf16.gmra.mrb[0].mxu0 %v207
  %v257 = vpop.f32.mrb[0].mxu0
  %v258 = vadd.f32 %v195, %v257
  %v259 = vpop.f32.mrb[0].mxu0
  %v260 = vpop.f32.mrb[0].mxu0
  %v261 = vadd.f32 %v195, %v260
  %v262 = vpop.f32.mrb[0].mxu0
  %263 = vmatprep.mubr.bf16.mxu0 0
  %264 = vmatmul.mubr.bf16.gmra.mrb[0].mxu0 %v210
  %v265 = vpop.f32.mrb[0].mxu0
  %v266 = vadd.f32 %v195, %v265
  %v267 = vpop.f32.mrb[0].mxu0
  %v268 = vpop.f32.mrb[0].mxu0
  %v269 = vadd.f32 %v195, %v268
  %v270 = vpop.f32.mrb[0].mxu0
  %271 = vmatprep.mubr.bf16.mxu0 0
  %272 = vmatmul.mubr.bf16.gmra.mrb[0].mxu0 %v213
  %v273 = vpop.f32.mrb[0].mxu0
  %v274 = vadd.f32 %v195, %v273
  %v275 = vpop.f32.mrb[0].mxu0
  %v276 = vpop.f32.mrb[0].mxu0
  %v277 = vadd.f32 %v195, %v276
  %v278 = vpop.f32.mrb[0].mxu0
  %279 = vdwg.mxu0
  %v280 = vld [vmem:[%s1] sm:$0xff]
  %v281 = vld [vmem:[%s1 + $0x8] sm:$0xff]
  %v282 = vld [vmem:[%s10] sm:$0x1]
  %v283 = vmul.f32 %v280, %v280
  %v284 = vmul.f32 %v281, %v281
  %vm285 = vcmask 195584
  %v286 = vsel %vm285, %v283, 0.0
  %287 = vadd.xlane.f32.xlu0 %v286
  %v288 = vpop.xlane.xlu0 %287
  %v289 = vsel %vm285, %v284, 0.0
  %290 = vadd.xlane.f32.xlu0 %v289
  %v291 = vpop.xlane.xlu0 %290
  %v292 = vrcp.pop 24.0
  %v293 = vmul.f32 %v288, %v292
  %v294 = vmul.f32 %v291, %v292
  %v295 = vadd.f32 %v293, 1e-06
  %v296 = vadd.f32 %v294, 1e-06
  %v297 = vrsqrt.pop %v295
  %v298 = vrsqrt.pop %v296
  %v299 = vmul.f32 %v280, %v297
  %v300 = vmul.f32 %v281, %v298
  %v302 = vlaneseq
  %v303 = vshrl.u32 %v302, 7
  %v304 = vsub.s32 0, %v303
  %v305 = vrot.slane %v282, %v304
  %v307 = vmul.f32 %v299, %v305
  %v308 = vmul.f32 %v300, %v305
  %v309 = vld [vmem:[%s11] sm:$0xf]
  %v310 = vld [vmem:[%s11 + $0x4] sm:$0xf]
  %v311 = vld [vmem:[%s11 + $0x8] sm:$0xf]
  %v312 = vpack.c.bf16 %v308, %v307
  %v313 = vld [vmem:[%s12] sm:$0x1]
  %v315 = vlaneseq
  %v316 = vshrl.u32 %v315, 7
  %v317 = vsub.s32 0, %v316
  %v318 = vrot.slane %v313, %v317
  %v323 = vunpack.c.l.b16 %v309
  %v324 = vunpack.c.l.b16 %v310
  %v325 = vunpack.c.l.b16 %v311
  %v326 = vpack.c.b16 %v324, %v323
  %v327 = vpack.c.b16 %v325, %v325
  %v330 = vsel %vm285, %v312, 0
  %vm332 = vcmask 1043456
  %v334 = vsel %vm332, %v327, 0
  %336 = vmatprep.subr.bf16.mxu0 0
  %337 = vmatpush1.bf16.msra.mxu0 %v326
  %338 = vmatprep.subr.bf16.mxu0 0
  %339 = vmatpush1.bf16.msra.mxu0 %v334
  %340 = vmatprep.subr.bf16.mxu0 0
  %341 = vmatpush1.bf16.msra.mxu0 0
  %342 = vmatprep.subr.bf16.mxu0 0
  %343 = vmatpush1.bf16.msra.mxu0 0
  %344 = vmatprep.subr.bf16.mxu0 0
  %345 = vmatpush1.bf16.msra.mxu0 0
  %346 = vmatprep.subr.bf16.mxu0 0
  %347 = vmatpush1.bf16.msra.mxu0 0
  %348 = vmatprep.subr.bf16.mxu0 0
  %349 = vmatpush1.bf16.msra.mxu0 0
  %350 = vmatprep.subr.bf16.mxu0 0
  %351 = vmatpush1.bf16.msra.mxu0 0
  %352 = vmatprep.subr.bf16.mxu0 0
  %353 = vmatpush1.bf16.msra.mxu0 0
  %354 = vmatprep.subr.bf16.mxu0 0
  %355 = vmatpush1.bf16.msra.mxu0 0
  %356 = vmatprep.subr.bf16.mxu0 0
  %357 = vmatpush1.bf16.msra.mxu0 0
  %358 = vmatprep.subr.bf16.mxu0 0
  %359 = vmatpush1.bf16.msra.mxu0 0
  %360 = vmatprep.subr.bf16.mxu0 0
  %361 = vmatpush1.bf16.msra.mxu0 0
  %362 = vmatprep.subr.bf16.mxu0 0
  %363 = vmatpush1.bf16.msra.mxu0 0
  %364 = vmatprep.subr.bf16.mxu0 0
  %365 = vmatpush1.bf16.msra.mxu0 0
  %366 = vmatprep.subr.bf16.mxu0 0
  %367 = vmatpush1.bf16.msra.mxu0 0
  %368 = vmatprep.mubr.bf16.mxu0 0
  %369 = vmatmul.mubr.bf16.gmra.mrb[0].mxu0 %v330
  %v370 = vpop.f32.mrb[0].mxu0
  %v371 = vadd.f32 %v318, %v370
  %v372 = vpop.f32.mrb[0].mxu0
  %v373 = vpop.f32.mrb[0].mxu0
  %v374 = vadd.f32 %v318, %v373
  %v375 = vpop.f32.mrb[0].mxu0
  %376 = vdwg.mxu0
  %v377 = vld [vmem:[%s2] sm:$0xf]
  %v378 = vld [vmem:[%s13] sm:$0x1]
  %v379 = vmul.f32 %v377, %v377
  %vm380 = vcmask 257024
  %v381 = vsel %vm380, %v379, 0.0
  %382 = vadd.xlane.f32.xlu0 %v381
  %v383 = vpop.xlane.xlu0 %382
  %v384 = vrcp.pop 32.0
  %v385 = vmul.f32 %v383, %v384
  %v386 = vadd.f32 %v385, 1e-06
  %v387 = vrsqrt.pop %v386
  %v388 = vmul.f32 %v377, %v387
  %v390 = vlaneseq
  %v391 = vshrl.u32 %v390, 7
  %v392 = vsub.s32 0, %v391
  %v393 = vrot.slane %v378, %v392
  %v395 = vmul.f32 %v388, %v393
  %v396 = vld [vmem:[%s14] sm:$0xf]
  %v397 = vld [vmem:[%s14 + $0x4] sm:$0xf]
  %v398 = vld [vmem:[%s14 + $0x8] sm:$0xf]
  %v399 = vld [vmem:[%s14 + $0xc] sm:$0xf]
  %v400 = vpack.c.bf16 %v395, %v395
  %v401 = vld [vmem:[%s15] sm:$0x1]
  %v403 = vlaneseq
  %v404 = vshrl.u32 %v403, 7
  %v405 = vsub.s32 0, %v404
  %v406 = vrot.slane %v401, %v405
  %v412 = vunpack.c.l.b16 %v396
  %v413 = vunpack.c.l.b16 %v397
  %v414 = vunpack.c.l.b16 %v398
  %v415 = vunpack.c.l.b16 %v399
  %v416 = vpack.c.b16 %v413, %v412
  %v417 = vpack.c.b16 %v415, %v414
  %vm420 = vcmask 261120
  %v422 = vsel %vm420, %v400, 0
  %424 = vmatprep.subr.bf16.mxu0 0
  %425 = vmatpush1.bf16.msra.mxu0 %v416
  %426 = vmatprep.subr.bf16.mxu0 0
  %427 = vmatpush1.bf16.msra.mxu0 %v417
  %428 = vmatprep.subr.bf16.mxu0 0
  %429 = vmatpush1.bf16.msra.mxu0 0
  %430 = vmatprep.subr.bf16.mxu0 0
  %431 = vmatpush1.bf16.msra.mxu0 0
  %432 = vmatprep.subr.bf16.mxu0 0
  %433 = vmatpush1.bf16.msra.mxu0 0
  %434 = vmatprep.subr.bf16.mxu0 0
  %435 = vmatpush1.bf16.msra.mxu0 0
  %436 = vmatprep.subr.bf16.mxu0 0
  %437 = vmatpush1.bf16.msra.mxu0 0
  %438 = vmatprep.subr.bf16.mxu0 0
  %439 = vmatpush1.bf16.msra.mxu0 0
  %440 = vmatprep.subr.bf16.mxu0 0
  %441 = vmatpush1.bf16.msra.mxu0 0
  %442 = vmatprep.subr.bf16.mxu0 0
  %443 = vmatpush1.bf16.msra.mxu0 0
  %444 = vmatprep.subr.bf16.mxu0 0
  %445 = vmatpush1.bf16.msra.mxu0 0
  %446 = vmatprep.subr.bf16.mxu0 0
  %447 = vmatpush1.bf16.msra.mxu0 0
  %448 = vmatprep.subr.bf16.mxu0 0
  %449 = vmatpush1.bf16.msra.mxu0 0
  %450 = vmatprep.subr.bf16.mxu0 0
  %451 = vmatpush1.bf16.msra.mxu0 0
  %452 = vmatprep.subr.bf16.mxu0 0
  %453 = vmatpush1.bf16.msra.mxu0 0
  %454 = vmatprep.subr.bf16.mxu0 0
  %455 = vmatpush1.bf16.msra.mxu0 0
  %456 = vmatprep.mubr.bf16.mxu0 0
  %457 = vmatmul.mubr.bf16.gmra.mrb[0].mxu0 %v422
  %v458 = vpop.f32.mrb[0].mxu0
  %v459 = vadd.f32 %v406, %v458
  %v460 = vpop.f32.mrb[0].mxu0
  %v461 = vpop.f32.mrb[0].mxu0
  %v462 = vpop.f32.mrb[0].mxu0
  %463 = vdwg.mxu0
  %s464 = scalar_lea.vmem %s0, 64
  %v465 = vld [vmem:[%s464] sm:$0xff]
  %v466 = vld [vmem:[%s464 + $0x8] sm:$0xff]
  %v467 = vld [vmem:[%s464 + $0x10] sm:$0xff]
  %v468 = vld [vmem:[%s464 + $0x18] sm:$0xff]
  %v469 = vld [vmem:[%s464 + $0x20] sm:$0xff]
  %v470 = vld [vmem:[%s464 + $0x28] sm:$0xff]
  %v471 = vld [vmem:[%s464 + $0x30] sm:$0xff]
  %v472 = vld [vmem:[%s464 + $0x38] sm:$0xff]
  %v473 = vmul.f32 %v465, %v465
  %v474 = vmul.f32 %v466, %v466
  %v475 = vmul.f32 %v467, %v467
  %v476 = vmul.f32 %v468, %v468
  %v477 = vmul.f32 %v469, %v469
  %v478 = vmul.f32 %v470, %v470
  %v479 = vmul.f32 %v471, %v471
  %v480 = vmul.f32 %v472, %v472
  %v481 = vsel %vm112, %v473, 0.0
  %482 = vadd.xlane.f32.xlu0 %v481
  %v483 = vpop.xlane.xlu0 %482
  %v484 = vsel %vm112, %v474, 0.0
  %485 = vadd.xlane.f32.xlu0 %v484
  %v486 = vpop.xlane.xlu0 %485
  %v487 = vsel %vm112, %v475, 0.0
  %488 = vadd.xlane.f32.xlu0 %v487
  %v489 = vpop.xlane.xlu0 %488
  %v490 = vsel %vm112, %v476, 0.0
  %491 = vadd.xlane.f32.xlu0 %v490
  %v492 = vpop.xlane.xlu0 %491
  %v493 = vsel %vm112, %v477, 0.0
  %494 = vadd.xlane.f32.xlu0 %v493
  %v495 = vpop.xlane.xlu0 %494
  %v496 = vsel %vm112, %v478, 0.0
  %497 = vadd.xlane.f32.xlu0 %v496
  %v498 = vpop.xlane.xlu0 %497
  %v499 = vsel %vm112, %v479, 0.0
  %500 = vadd.xlane.f32.xlu0 %v499
  %v501 = vpop.xlane.xlu0 %500
  %v502 = vsel %vm112, %v480, 0.0
  %503 = vadd.xlane.f32.xlu0 %v502
  %v504 = vpop.xlane.xlu0 %503
  %v505 = vmul.f32 %v483, %v137
  %v506 = vmul.f32 %v486, %v137
  %v507 = vmul.f32 %v489, %v137
  %v508 = vmul.f32 %v492, %v137
  %v509 = vmul.f32 %v495, %v137
  %v510 = vmul.f32 %v498, %v137
  %v511 = vmul.f32 %v501, %v137
  %v512 = vmul.f32 %v504, %v137
  %v513 = vadd.f32 %v505, 1e-06
  %v514 = vadd.f32 %v506, 1e-06
  %v515 = vadd.f32 %v507, 1e-06
  %v516 = vadd.f32 %v508, 1e-06
  %v517 = vadd.f32 %v509, 1e-06
  %v518 = vadd.f32 %v510, 1e-06
  %v519 = vadd.f32 %v511, 1e-06
  %v520 = vadd.f32 %v512, 1e-06
  %v521 = vrsqrt.pop %v513
  %v522 = vrsqrt.pop %v514
  %v523 = vrsqrt.pop %v515
  %v524 = vrsqrt.pop %v516
  %v525 = vrsqrt.pop %v517
  %v526 = vrsqrt.pop %v518
  %v527 = vrsqrt.pop %v519
  %v528 = vrsqrt.pop %v520
  %v529 = vmul.f32 %v465, %v521
  %v530 = vmul.f32 %v466, %v522
  %v531 = vmul.f32 %v467, %v523
  %v532 = vmul.f32 %v468, %v524
  %v533 = vmul.f32 %v469, %v525
  %v534 = vmul.f32 %v470, %v526
  %v535 = vmul.f32 %v471, %v527
  %v536 = vmul.f32 %v472, %v528
  %v537 = vmul.f32 %v529, %v174
  %v538 = vmul.f32 %v530, %v174
  %v539 = vmul.f32 %v531, %v174
  %v540 = vmul.f32 %v532, %v174
  %v541 = vmul.f32 %v533, %v174
  %v542 = vmul.f32 %v534, %v174
  %v543 = vmul.f32 %v535, %v174
  %v544 = vmul.f32 %v536, %v174
  %v545 = vpack.c.bf16 %v538, %v537
  %v546 = vpack.c.bf16 %v540, %v539
  %v547 = vpack.c.bf16 %v542, %v541
  %v548 = vpack.c.bf16 %v544, %v543
  %v550 = vsel %vm112, %v545, 0
  %v553 = vsel %vm112, %v546, 0
  %v556 = vsel %vm112, %v547, 0
  %v559 = vsel %vm112, %v548, 0
  %561 = vmatprep.subr.bf16.mxu0 0
  %562 = vmatpush1.bf16.msra.mxu0 %v201
  %563 = vmatprep.subr.bf16.mxu0 0
  %564 = vmatpush1.bf16.msra.mxu0 0
  %565 = vmatprep.subr.bf16.mxu0 0
  %566 = vmatpush1.bf16.msra.mxu0 0
  %567 = vmatprep.subr.bf16.mxu0 0
  %568 = vmatpush1.bf16.msra.mxu0 0
  %569 = vmatprep.subr.bf16.mxu0 0
  %570 = vmatpush1.bf16.msra.mxu0 0
  %571 = vmatprep.subr.bf16.mxu0 0
  %572 = vmatpush1.bf16.msra.mxu0 0
  %573 = vmatprep.subr.bf16.mxu0 0
  %574 = vmatpush1.bf16.msra.mxu0 0
  %575 = vmatprep.subr.bf16.mxu0 0
  %576 = vmatpush1.bf16.msra.mxu0 0
  %577 = vmatprep.subr.bf16.mxu0 0
  %578 = vmatpush1.bf16.msra.mxu0 0
  %579 = vmatprep.subr.bf16.mxu0 0
  %580 = vmatpush1.bf16.msra.mxu0 0
  %581 = vmatprep.subr.bf16.mxu0 0
  %582 = vmatpush1.bf16.msra.mxu0 0
  %583 = vmatprep.subr.bf16.mxu0 0
  %584 = vmatpush1.bf16.msra.mxu0 0
  %585 = vmatprep.subr.bf16.mxu0 0
  %586 = vmatpush1.bf16.msra.mxu0 0
  %587 = vmatprep.subr.bf16.mxu0 0
  %588 = vmatpush1.bf16.msra.mxu0 0
  %589 = vmatprep.subr.bf16.mxu0 0
  %590 = vmatpush1.bf16.msra.mxu0 0
  %591 = vmatprep.subr.bf16.mxu0 0
  %592 = vmatpush1.bf16.msra.mxu0 0
  %593 = vmatprep.mubr.bf16.mxu0 0
  %594 = vmatmul.mubr.bf16.gmra.mrb[0].mxu0 %v550
  %v595 = vpop.f32.mrb[0].mxu0
  %v596 = vadd.f32 %v195, %v595
  %v597 = vpop.f32.mrb[0].mxu0
  %v598 = vpop.f32.mrb[0].mxu0
  %v599 = vadd.f32 %v195, %v598
  %v600 = vpop.f32.mrb[0].mxu0
  %601 = vmatprep.mubr.bf16.mxu0 0
  %602 = vmatmul.mubr.bf16.gmra.mrb[0].mxu0 %v553
  %v603 = vpop.f32.mrb[0].mxu0
  %v604 = vadd.f32 %v195, %v603
  %v605 = vpop.f32.mrb[0].mxu0
  %v606 = vpop.f32.mrb[0].mxu0
  %v607 = vadd.f32 %v195, %v606
  %v608 = vpop.f32.mrb[0].mxu0
  %609 = vmatprep.mubr.bf16.mxu0 0
  %610 = vmatmul.mubr.bf16.gmra.mrb[0].mxu0 %v556
  %v611 = vpop.f32.mrb[0].mxu0
  %v612 = vadd.f32 %v195, %v611
  %v613 = vpop.f32.mrb[0].mxu0
  %v614 = vpop.f32.mrb[0].mxu0
  %v615 = vadd.f32 %v195, %v614
  %v616 = vpop.f32.mrb[0].mxu0
  %617 = vmatprep.mubr.bf16.mxu0 0
  %618 = vmatmul.mubr.bf16.gmra.mrb[0].mxu0 %v559
  %v619 = vpop.f32.mrb[0].mxu0
  %v620 = vadd.f32 %v195, %v619
  %v621 = vpop.f32.mrb[0].mxu0
  %v622 = vpop.f32.mrb[0].mxu0
  %v623 = vadd.f32 %v195, %v622
  %v624 = vpop.f32.mrb[0].mxu0
  %625 = vdwg.mxu0
  %s626 = scalar_lea.vmem %s1, 16
  %v627 = vld [vmem:[%s626] sm:$0xff]
  %v628 = vld [vmem:[%s626 + $0x8] sm:$0xff]
  %v629 = vmul.f32 %v627, %v627
  %v630 = vmul.f32 %v628, %v628
  %v631 = vsel %vm285, %v629, 0.0
  %632 = vadd.xlane.f32.xlu0 %v631
  %v633 = vpop.xlane.xlu0 %632
  %v634 = vsel %vm285, %v630, 0.0
  %635 = vadd.xlane.f32.xlu0 %v634
  %v636 = vpop.xlane.xlu0 %635
  %v637 = vmul.f32 %v633, %v292
  %v638 = vmul.f32 %v636, %v292
  %v639 = vadd.f32 %v637, 1e-06
  %v640 = vadd.f32 %v638, 1e-06
  %v641 = vrsqrt.pop %v639
  %v642 = vrsqrt.pop %v640
  %v643 = vmul.f32 %v627, %v641
  %v644 = vmul.f32 %v628, %v642
  %v645 = vmul.f32 %v643, %v305
  %v646 = vmul.f32 %v644, %v305
  %v647 = vpack.c.bf16 %v646, %v645
  %v649 = vsel %vm285, %v647, 0
  %651 = vmatprep.subr.bf16.mxu0 0
  %652 = vmatpush1.bf16.msra.mxu0 %v326
  %653 = vmatprep.subr.bf16.mxu0 0
  %654 = vmatpush1.bf16.msra.mxu0 %v334
  %655 = vmatprep.subr.bf16.mxu0 0
  %656 = vmatpush1.bf16.msra.mxu0 0
  %657 = vmatprep.subr.bf16.mxu0 0
  %658 = vmatpush1.bf16.msra.mxu0 0
  %659 = vmatprep.subr.bf16.mxu0 0
  %660 = vmatpush1.bf16.msra.mxu0 0
  %661 = vmatprep.subr.bf16.mxu0 0
  %662 = vmatpush1.bf16.msra.mxu0 0
  %663 = vmatprep.subr.bf16.mxu0 0
  %664 = vmatpush1.bf16.msra.mxu0 0
  %665 = vmatprep.subr.bf16.mxu0 0
  %666 = vmatpush1.bf16.msra.mxu0 0
  %667 = vmatprep.subr.bf16.mxu0 0
  %668 = vmatpush1.bf16.msra.mxu0 0
  %669 = vmatprep.subr.bf16.mxu0 0
  %670 = vmatpush1.bf16.msra.mxu0 0
  %671 = vmatprep.subr.bf16.mxu0 0
  %672 = vmatpush1.bf16.msra.mxu0 0
  %673 = vmatprep.subr.bf16.mxu0 0
  %674 = vmatpush1.bf16.msra.mxu0 0
  %675 = vmatprep.subr.bf16.mxu0 0
  %676 = vmatpush1.bf16.msra.mxu0 0
  %677 = vmatprep.subr.bf16.mxu0 0
  %678 = vmatpush1.bf16.msra.mxu0 0
  %679 = vmatprep.subr.bf16.mxu0 0
  %680 = vmatpush1.bf16.msra.mxu0 0
  %681 = vmatprep.subr.bf16.mxu0 0
  %682 = vmatpush1.bf16.msra.mxu0 0
  %683 = vmatprep.mubr.bf16.mxu0 0
  %684 = vmatmul.mubr.bf16.gmra.mrb[0].mxu0 %v649
  %v685 = vpop.f32.mrb[0].mxu0
  %v686 = vadd.f32 %v318, %v685
  %v687 = vpop.f32.mrb[0].mxu0
  %v688 = vpop.f32.mrb[0].mxu0
  %v689 = vadd.f32 %v318, %v688
  %v690 = vpop.f32.mrb[0].mxu0
  %691 = vdwg.mxu0
  %s692 = scalar_lea.vmem %s2, 4
  %v693 = vld [vmem:[%s692] sm:$0xf]
  %v694 = vmul.f32 %v693, %v693
  %v695 = vsel %vm380, %v694, 0.0
  %696 = vadd.xlane.f32.xlu0 %v695
  %v697 = vpop.xlane.xlu0 %696
  %v698 = vmul.f32 %v697, %v384
  %v699 = vadd.f32 %v698, 1e-06
  %v700 = vrsqrt.pop %v699
  %v701 = vmul.f32 %v693, %v700
  %v702 = vmul.f32 %v701, %v393
  %v703 = vpack.c.bf16 %v702, %v702
  %v705 = vsel %vm420, %v703, 0
  %707 = vmatprep.subr.bf16.mxu0 0
  %708 = vmatpush1.bf16.msra.mxu0 %v416
  %709 = vmatprep.subr.bf16.mxu0 0
  %710 = vmatpush1.bf16.msra.mxu0 %v417
  %711 = vmatprep.subr.bf16.mxu0 0
  %712 = vmatpush1.bf16.msra.mxu0 0
  %713 = vmatprep.subr.bf16.mxu0 0
  %714 = vmatpush1.bf16.msra.mxu0 0
  %715 = vmatprep.subr.bf16.mxu0 0
  %716 = vmatpush1.bf16.msra.mxu0 0
  %717 = vmatprep.subr.bf16.mxu0 0
  %718 = vmatpush1.bf16.msra.mxu0 0
  %719 = vmatprep.subr.bf16.mxu0 0
  %720 = vmatpush1.bf16.msra.mxu0 0
  %721 = vmatprep.subr.bf16.mxu0 0
  %722 = vmatpush1.bf16.msra.mxu0 0
  %723 = vmatprep.subr.bf16.mxu0 0
  %724 = vmatpush1.bf16.msra.mxu0 0
  %725 = vmatprep.subr.bf16.mxu0 0
  %726 = vmatpush1.bf16.msra.mxu0 0
  %727 = vmatprep.subr.bf16.mxu0 0
  %728 = vmatpush1.bf16.msra.mxu0 0
  %729 = vmatprep.subr.bf16.mxu0 0
  %730 = vmatpush1.bf16.msra.mxu0 0
  %731 = vmatprep.subr.bf16.mxu0 0
  %732 = vmatpush1.bf16.msra.mxu0 0
  %733 = vmatprep.subr.bf16.mxu0 0
  %734 = vmatpush1.bf16.msra.mxu0 0
  %735 = vmatprep.subr.bf16.mxu0 0
  %736 = vmatpush1.bf16.msra.mxu0 0
  %737 = vmatprep.subr.bf16.mxu0 0
  %738 = vmatpush1.bf16.msra.mxu0 0
  %739 = vmatprep.mubr.bf16.mxu0 0
  %740 = vmatmul.mubr.bf16.gmra.mrb[0].mxu0 %v705
  %v741 = vpop.f32.mrb[0].mxu0
  %v742 = vadd.f32 %v406, %v741
  %v743 = vpop.f32.mrb[0].mxu0
  %v744 = vpop.f32.mrb[0].mxu0
  %v745 = vpop.f32.mrb[0].mxu0
  %746 = vdwg.mxu0
  %v747 = vld [vmem:[%s6] sm:$0xff]
  %v748 = vld [vmem:[%s16] sm:$0xf]
  %v749 = vld [vmem:[%s16 + $0x4] sm:$0xf]
  %v750 = vld [vmem:[%s16 + $0x8] sm:$0xf]
  %v751 = vld [vmem:[%s16 + $0xc] sm:$0xf]
  %v752 = vld [vmem:[%s17] sm:$0xf]
  %v753 = vld [vmem:[%s17 + $0x4] sm:$0xf]
  %v754 = vld [vmem:[%s17 + $0x8] sm:$0xf]
  %v755 = vld [vmem:[%s17 + $0xc] sm:$0xf]
  %v756 = vld [vmem:[%s18] sm:$0xf]
  %v757 = vld [vmem:[%s18 + $0x4] sm:$0xf]
  %v758 = vld [vmem:[%s18 + $0x8] sm:$0xf]
  %v759 = vld [vmem:[%s18 + $0xc] sm:$0xf]
  %v760 = vld [vmem:[%s19] sm:$0xf]
  %v761 = vld [vmem:[%s19 + $0x4] sm:$0xf]
  %v762 = vld [vmem:[%s19 + $0x8] sm:$0xf]
  %v763 = vld [vmem:[%s19 + $0xc] sm:$0xf]
  %v764 = vld [vmem:[%s20] sm:$0x1]
  %v765 = vld [vmem:[%s21] sm:$0xf]
  %v766 = vld [vmem:[%s21 + $0x4] sm:$0xf]
  %v767 = vld [vmem:[%s21 + $0x8] sm:$0xf]
  %v768 = vld [vmem:[%s21 + $0xc] sm:$0xf]
  %v769 = vld [vmem:[%s21 + $0x10] sm:$0xf]
  %v770 = vld [vmem:[%s21 + $0x14] sm:$0xf]
  %v771 = vld [vmem:[%s21 + $0x18] sm:$0xf]
  %v772 = vld [vmem:[%s21 + $0x1c] sm:$0xf]
  %v773 = vld [vmem:[%s22] sm:$0x1]
  %v774 = vpack.c.bf16 %v85, %v84
  %v775 = vpack.c.bf16 %v87, %v86
  %v776 = vpack.c.bf16 %v89, %v88
  %v777 = vpack.c.bf16 %v91, %v90
  %v782 = vunpack.c.l.b16 %v752
  %v783 = vunpack.c.l.b16 %v753
  %v784 = vunpack.c.l.b16 %v754
  %v785 = vunpack.c.l.b16 %v755
  %v786 = vpack.c.b16 %v783, %v782
  %v787 = vpack.c.b16 %v785, %v784
  %v791 = vsel %vm420, %v774, 0
  %v794 = vsel %vm420, %v775, 0
  %v797 = vsel %vm420, %v776, 0
  %v800 = vsel %vm420, %v777, 0
  %802 = vmatprep.subr.bf16.mxu0 0
  %803 = vmatpush1.bf16.msra.mxu0 %v786
  %804 = vmatprep.subr.bf16.mxu0 0
  %805 = vmatpush1.bf16.msra.mxu0 %v787
  %806 = vmatprep.subr.bf16.mxu0 0
  %807 = vmatpush1.bf16.msra.mxu0 0
  %808 = vmatprep.subr.bf16.mxu0 0
  %809 = vmatpush1.bf16.msra.mxu0 0
  %810 = vmatprep.subr.bf16.mxu0 0
  %811 = vmatpush1.bf16.msra.mxu0 0
  %812 = vmatprep.subr.bf16.mxu0 0
  %813 = vmatpush1.bf16.msra.mxu0 0
  %814 = vmatprep.subr.bf16.mxu0 0
  %815 = vmatpush1.bf16.msra.mxu0 0
  %816 = vmatprep.subr.bf16.mxu0 0
  %817 = vmatpush1.bf16.msra.mxu0 0
  %818 = vmatprep.subr.bf16.mxu0 0
  %819 = vmatpush1.bf16.msra.mxu0 0
  %820 = vmatprep.subr.bf16.mxu0 0
  %821 = vmatpush1.bf16.msra.mxu0 0
  %822 = vmatprep.subr.bf16.mxu0 0
  %823 = vmatpush1.bf16.msra.mxu0 0
  %824 = vmatprep.subr.bf16.mxu0 0
  %825 = vmatpush1.bf16.msra.mxu0 0
  %826 = vmatprep.subr.bf16.mxu0 0
  %827 = vmatpush1.bf16.msra.mxu0 0
  %828 = vmatprep.subr.bf16.mxu0 0
  %829 = vmatpush1.bf16.msra.mxu0 0
  %830 = vmatprep.subr.bf16.mxu0 0
  %831 = vmatpush1.bf16.msra.mxu0 0
  %832 = vmatprep.subr.bf16.mxu0 0
  %833 = vmatpush1.bf16.msra.mxu0 0
  %834 = vmatprep.mubr.bf16.mxu0 0
  %835 = vmatmul.mubr.bf16.gmra.mrb[0].mxu0 %v791
  %v836 = vpop.f32.mrb[0].mxu0
  %v837 = vadd.f32 0.0, %v836
  %v838 = vpop.f32.mrb[0].mxu0
  %v839 = vpop.f32.mrb[0].mxu0
  %v840 = vadd.f32 0.0, %v839
  %v841 = vpop.f32.mrb[0].mxu0
  %842 = vmatprep.mubr.bf16.mxu0 0
  %843 = vmatmul.mubr.bf16.gmra.mrb[0].mxu0 %v794
  %v844 = vpop.f32.mrb[0].mxu0
  %v845 = vadd.f32 0.0, %v844
  %v846 = vpop.f32.mrb[0].mxu0
  %v847 = vpop.f32.mrb[0].mxu0
  %v848 = vadd.f32 0.0, %v847
  %v849 = vpop.f32.mrb[0].mxu0
  %850 = vmatprep.mubr.bf16.mxu0 0
  %851 = vmatmul.mubr.bf16.gmra.mrb[0].mxu0 %v797
  %v852 = vpop.f32.mrb[0].mxu0
  %v853 = vadd.f32 0.0, %v852
  %v854 = vpop.f32.mrb[0].mxu0
  %v855 = vpop.f32.mrb[0].mxu0
  %v856 = vadd.f32 0.0, %v855
  %v857 = vpop.f32.mrb[0].mxu0
  %858 = vmatprep.mubr.bf16.mxu0 0
  %859 = vmatmul.mubr.bf16.gmra.mrb[0].mxu0 %v800
  %v860 = vpop.f32.mrb[0].mxu0
  %v861 = vadd.f32 0.0, %v860
  %v862 = vpop.f32.mrb[0].mxu0
  %v863 = vpop.f32.mrb[0].mxu0
  %v864 = vadd.f32 0.0, %v863
  %v865 = vpop.f32.mrb[0].mxu0
  %866 = vdwg.mxu0
  %v867 = vpack.c.bf16 %v93, %v92
  %v869 = vsel %vm420, %v867, 0
  %871 = vmatprep.subr.bf16.mxu0 0
  %872 = vmatpush1.bf16.msra.mxu0 %v786
  %873 = vmatprep.subr.bf16.mxu0 0
  %874 = vmatpush1.bf16.msra.mxu0 %v787
  %875 = vmatprep.subr.bf16.mxu0 0
  %876 = vmatpush1.bf16.msra.mxu0 0
  %877 = vmatprep.subr.bf16.mxu0 0
  %878 = vmatpush1.bf16.msra.mxu0 0
  %879 = vmatprep.subr.bf16.mxu0 0
  %880 = vmatpush1.bf16.msra.mxu0 0
  %881 = vmatprep.subr.bf16.mxu0 0
  %882 = vmatpush1.bf16.msra.mxu0 0
  %883 = vmatprep.subr.bf16.mxu0 0
  %884 = vmatpush1.bf16.msra.mxu0 0
  %885 = vmatprep.subr.bf16.mxu0 0
  %886 = vmatpush1.bf16.msra.mxu0 0
  %887 = vmatprep.subr.bf16.mxu0 0
  %888 = vmatpush1.bf16.msra.mxu0 0
  %889 = vmatprep.subr.bf16.mxu0 0
  %890 = vmatpush1.bf16.msra.mxu0 0
  %891 = vmatprep.subr.bf16.mxu0 0
  %892 = vmatpush1.bf16.msra.mxu0 0
  %893 = vmatprep.subr.bf16.mxu0 0
  %894 = vmatpush1.bf16.msra.mxu0 0
  %895 = vmatprep.subr.bf16.mxu0 0
  %896 = vmatpush1.bf16.msra.mxu0 0
  %897 = vmatprep.subr.bf16.mxu0 0
  %898 = vmatpush1.bf16.msra.mxu0 0
  %899 = vmatprep.subr.bf16.mxu0 0
  %900 = vmatpush1.bf16.msra.mxu0 0
  %901 = vmatprep.subr.bf16.mxu0 0
  %902 = vmatpush1.bf16.msra.mxu0 0
  %903 = vmatprep.mubr.bf16.mxu0 0
  %904 = vmatmul.mubr.bf16.gmra.mrb[0].mxu0 %v869
  %v905 = vpop.f32.mrb[0].mxu0
  %v906 = vadd.f32 0.0, %v905
  %v907 = vpop.f32.mrb[0].mxu0
  %v908 = vpop.f32.mrb[0].mxu0
  %v909 = vadd.f32 0.0, %v908
  %v910 = vpop.f32.mrb[0].mxu0
  %911 = vdwg.mxu0
  %v912 = vpack.c.bf16 %v94, %v94
  %v914 = vsel %vm420, %v912, 0
  %916 = vmatprep.subr.bf16.mxu0 0
  %917 = vmatpush1.bf16.msra.mxu0 %v786
  %918 = vmatprep.subr.bf16.mxu0 0
  %919 = vmatpush1.bf16.msra.mxu0 %v787
  %920 = vmatprep.subr.bf16.mxu0 0
  %921 = vmatpush1.bf16.msra.mxu0 0
  %922 = vmatprep.subr.bf16.mxu0 0
  %923 = vmatpush1.bf16.msra.mxu0 0
  %924 = vmatprep.subr.bf16.mxu0 0
  %925 = vmatpush1.bf16.msra.mxu0 0
  %926 = vmatprep.subr.bf16.mxu0 0
  %927 = vmatpush1.bf16.msra.mxu0 0
  %928 = vmatprep.subr.bf16.mxu0 0
  %929 = vmatpush1.bf16.msra.mxu0 0
  %930 = vmatprep.subr.bf16.mxu0 0
  %931 = vmatpush1.bf16.msra.mxu0 0
  %932 = vmatprep.subr.bf16.mxu0 0
  %933 = vmatpush1.bf16.msra.mxu0 0
  %934 = vmatprep.subr.bf16.mxu0 0
  %935 = vmatpush1.bf16.msra.mxu0 0
  %936 = vmatprep.subr.bf16.mxu0 0
  %937 = vmatpush1.bf16.msra.mxu0 0
  %938 = vmatprep.subr.bf16.mxu0 0
  %939 = vmatpush1.bf16.msra.mxu0 0
  %940 = vmatprep.subr.bf16.mxu0 0
  %941 = vmatpush1.bf16.msra.mxu0 0
  %942 = vmatprep.subr.bf16.mxu0 0
  %943 = vmatpush1.bf16.msra.mxu0 0
  %944 = vmatprep.subr.bf16.mxu0 0
  %945 = vmatpush1.bf16.msra.mxu0 0
  %946 = vmatprep.subr.bf16.mxu0 0
  %947 = vmatpush1.bf16.msra.mxu0 0
  %948 = vmatprep.mubr.bf16.mxu0 0
  %949 = vmatmul.mubr.bf16.gmra.mrb[0].mxu0 %v914
  %v950 = vpop.f32.mrb[0].mxu0
  %v951 = vadd.f32 0.0, %v950
  %v952 = vpop.f32.mrb[0].mxu0
  %v953 = vpop.f32.mrb[0].mxu0
  %v954 = vpop.f32.mrb[0].mxu0
  %955 = vdwg.mxu0
  %v956 = vpack.c.bf16 %v747, %v747
  %v961 = vunpack.c.l.b16 %v748
  %v962 = vunpack.c.l.b16 %v749
  %v963 = vunpack.c.l.b16 %v750
  %v964 = vunpack.c.l.b16 %v751
  %v965 = vpack.c.b16 %v962, %v961
  %v966 = vpack.c.b16 %v964, %v963
  %v970 = vsel %vm420, %v956, 0
  %972 = vmatprep.subr.bf16.mxu0 0
  %973 = vmatpush1.bf16.msra.mxu0 %v965
  %974 = vmatprep.subr.bf16.mxu0 0
  %975 = vmatpush1.bf16.msra.mxu0 %v966
  %976 = vmatprep.subr.bf16.mxu0 0
  %977 = vmatpush1.bf16.msra.mxu0 0
  %978 = vmatprep.subr.bf16.mxu0 0
  %979 = vmatpush1.bf16.msra.mxu0 0
  %980 = vmatprep.subr.bf16.mxu0 0
  %981 = vmatpush1.bf16.msra.mxu0 0
  %982 = vmatprep.subr.bf16.mxu0 0
  %983 = vmatpush1.bf16.msra.mxu0 0
  %984 = vmatprep.subr.bf16.mxu0 0
  %985 = vmatpush1.bf16.msra.mxu0 0
  %986 = vmatprep.subr.bf16.mxu0 0
  %987 = vmatpush1.bf16.msra.mxu0 0
  %988 = vmatprep.subr.bf16.mxu0 0
  %989 = vmatpush1.bf16.msra.mxu0 0
  %990 = vmatprep.subr.bf16.mxu0 0
  %991 = vmatpush1.bf16.msra.mxu0 0
  %992 = vmatprep.subr.bf16.mxu0 0
  %993 = vmatpush1.bf16.msra.mxu0 0
  %994 = vmatprep.subr.bf16.mxu0 0
  %995 = vmatpush1.bf16.msra.mxu0 0
  %996 = vmatprep.subr.bf16.mxu0 0
  %997 = vmatpush1.bf16.msra.mxu0 0
  %998 = vmatprep.subr.bf16.mxu0 0
  %999 = vmatpush1.bf16.msra.mxu0 0
  %1000 = vmatprep.subr.bf16.mxu0 0
  %1001 = vmatpush1.bf16.msra.mxu0 0
  %1002 = vmatprep.subr.bf16.mxu0 0
  %1003 = vmatpush1.bf16.msra.mxu0 0
  %1004 = vmatprep.mubr.bf16.mxu0 0
  %1005 = vmatmul.mubr.bf16.gmra.mrb[0].mxu0 %v970
  %v1006 = vpop.f32.mrb[0].mxu0
  %v1007 = vadd.f32 0.0, %v1006
  %v1008 = vpop.f32.mrb[0].mxu0
  %v1009 = vpop.f32.mrb[0].mxu0
  %v1010 = vpop.f32.mrb[0].mxu0
  %1011 = vdwg.mxu0
  %v1012 = vpack.c.bf16 %v253, %v250
  %v1013 = vpack.c.bf16 %v261, %v258
  %v1014 = vpack.c.bf16 %v269, %v266
  %v1015 = vpack.c.bf16 %v277, %v274
  %v1017 = vsel %vm420, %v1012, 0
  %v1020 = vsel %vm420, %v1013, 0
  %v1023 = vsel %vm420, %v1014, 0
  %v1026 = vsel %vm420, %v1015, 0
  %1028 = vmatprep.subr.bf16.mxu0 0
  %1029 = vmatpush1.bf16.msra.mxu0 %v786
  %1030 = vmatprep.subr.bf16.mxu0 0
  %1031 = vmatpush1.bf16.msra.mxu0 %v787
  %1032 = vmatprep.subr.bf16.mxu0 0
  %1033 = vmatpush1.bf16.msra.mxu0 0
  %1034 = vmatprep.subr.bf16.mxu0 0
  %1035 = vmatpush1.bf16.msra.mxu0 0
  %1036 = vmatprep.subr.bf16.mxu0 0
  %1037 = vmatpush1.bf16.msra.mxu0 0
  %1038 = vmatprep.subr.bf16.mxu0 0
  %1039 = vmatpush1.bf16.msra.mxu0 0
  %1040 = vmatprep.subr.bf16.mxu0 0
  %1041 = vmatpush1.bf16.msra.mxu0 0
  %1042 = vmatprep.subr.bf16.mxu0 0
  %1043 = vmatpush1.bf16.msra.mxu0 0
  %1044 = vmatprep.subr.bf16.mxu0 0
  %1045 = vmatpush1.bf16.msra.mxu0 0
  %1046 = vmatprep.subr.bf16.mxu0 0
  %1047 = vmatpush1.bf16.msra.mxu0 0
  %1048 = vmatprep.subr.bf16.mxu0 0
  %1049 = vmatpush1.bf16.msra.mxu0 0
  %1050 = vmatprep.subr.bf16.mxu0 0
  %1051 = vmatpush1.bf16.msra.mxu0 0
  %1052 = vmatprep.subr.bf16.mxu0 0
  %1053 = vmatpush1.bf16.msra.mxu0 0
  %1054 = vmatprep.subr.bf16.mxu0 0
  %1055 = vmatpush1.bf16.msra.mxu0 0
  %1056 = vmatprep.subr.bf16.mxu0 0
  %1057 = vmatpush1.bf16.msra.mxu0 0
  %1058 = vmatprep.subr.bf16.mxu0 0
  %1059 = vmatpush1.bf16.msra.mxu0 0
  %1060 = vmatprep.mubr.bf16.mxu0 0
  %1061 = vmatmul.mubr.bf16.gmra.mrb[0].mxu0 %v1017
  %v1062 = vpop.f32.mrb[0].mxu0
  %v1063 = vadd.f32 0.0, %v1062
  %v1064 = vpop.f32.mrb[0].mxu0
  %v1065 = vpop.f32.mrb[0].mxu0
  %v1066 = vadd.f32 0.0, %v1065
  %v1067 = vpop.f32.mrb[0].mxu0
  %1068 = vmatprep.mubr.bf16.mxu0 0
  %1069 = vmatmul.mubr.bf16.gmra.mrb[0].mxu0 %v1020
  %v1070 = vpop.f32.mrb[0].mxu0
  %v1071 = vadd.f32 0.0, %v1070
  %v1072 = vpop.f32.mrb[0].mxu0
  %v1073 = vpop.f32.mrb[0].mxu0
  %v1074 = vadd.f32 0.0, %v1073
  %v1075 = vpop.f32.mrb[0].mxu0
  %1076 = vmatprep.mubr.bf16.mxu0 0
  %1077 = vmatmul.mubr.bf16.gmra.mrb[0].mxu0 %v1023
  %v1078 = vpop.f32.mrb[0].mxu0
  %v1079 = vadd.f32 0.0, %v1078
  %v1080 = vpop.f32.mrb[0].mxu0
  %v1081 = vpop.f32.mrb[0].mxu0
  %v1082 = vadd.f32 0.0, %v1081
  %v1083 = vpop.f32.mrb[0].mxu0
  %1084 = vmatprep.mubr.bf16.mxu0 0
  %1085 = vmatmul.mubr.bf16.gmra.mrb[0].mxu0 %v1026
  %v1086 = vpop.f32.mrb[0].mxu0
  %v1087 = vadd.f32 0.0, %v1086
  %v1088 = vpop.f32.mrb[0].mxu0
  %v1089 = vpop.f32.mrb[0].mxu0
  %v1090 = vadd.f32 0.0, %v1089
  %v1091 = vpop.f32.mrb[0].mxu0
  %1092 = vdwg.mxu0
  %v1093 = vadd.f32 %v1063, %v837
  %v1094 = vadd.f32 %v1066, %v840
  %v1095 = vadd.f32 %v1071, %v845
  %v1096 = vadd.f32 %v1074, %v848
  %v1097 = vadd.f32 %v1079, %v853
  %v1098 = vadd.f32 %v1082, %v856
  %v1099 = vadd.f32 %v1087, %v861
  %v1100 = vadd.f32 %v1090, %v864
  %v1102 = vsel %vm420, %v1007, 0
  %v1105 = vsel %vm420, %v1093, 0
  %v1108 = vsel %vm420, %v1094, 0
  %v1111 = vsel %vm420, %v1095, 0
  %v1114 = vsel %vm420, %v1096, 0
  %v1117 = vsel %vm420, %v1097, 0
  %v1120 = vsel %vm420, %v1098, 0
  %v1123 = vsel %vm420, %v1099, 0
  %v1126 = vsel %vm420, %v1100, 0
  %1128 = vmatprep.subr.mxu0 0.0
  %1129 = vmatpush1.xpose.msra.mxu0 %v1105
  %1130 = vmatprep.subr.mxu0 0.0
  %1131 = vmatpush1.xpose.msra.mxu0 %v1108
  %1132 = vmatprep.subr.mxu0 0.0
  %1133 = vmatpush1.xpose.msra.mxu0 %v1111
  %1134 = vmatprep.subr.mxu0 0.0
  %1135 = vmatpush1.xpose.msra.mxu0 %v1114
  %1136 = vmatprep.subr.mxu0 0.0
  %1137 = vmatpush1.xpose.msra.mxu0 %v1117
  %1138 = vmatprep.subr.mxu0 0.0
  %1139 = vmatpush1.xpose.msra.mxu0 %v1120
  %1140 = vmatprep.subr.mxu0 0.0
  %1141 = vmatpush1.xpose.msra.mxu0 %v1123
  %1142 = vmatprep.subr.mxu0 0.0
  %1143 = vmatpush1.xpose.msra.mxu0 %v1126
  %1144 = vmatprep.subr.mxu0 0.0
  %1145 = vmatpush1.xpose.msra.mxu0 0.0
  %1146 = vmatprep.subr.mxu0 0.0
  %1147 = vmatpush1.xpose.msra.mxu0 0.0
  %1148 = vmatprep.subr.mxu0 0.0
  %1149 = vmatpush1.xpose.msra.mxu0 0.0
  %1150 = vmatprep.subr.mxu0 0.0
  %1151 = vmatpush1.xpose.msra.mxu0 0.0
  %1152 = vmatprep.subr.mxu0 0.0
  %1153 = vmatpush1.xpose.msra.mxu0 0.0
  %1154 = vmatprep.subr.mxu0 0.0
  %1155 = vmatpush1.xpose.msra.mxu0 0.0
  %1156 = vmatprep.subr.mxu0 0.0
  %1157 = vmatpush1.xpose.msra.mxu0 0.0
  %1158 = vmatprep.subr.mxu0 0.0
  %1159 = vmatpush1.xpose.msra.mxu0 0.0
  %1160 = vmatprep.subr.mxu0 0.0
  %1161 = vmatpush1.xpose.msra.mxu0 0.0
  %1162 = vmatprep.subr.mxu0 0.0
  %1163 = vmatpush1.xpose.msra.mxu0 0.0
  %1164 = vmatprep.subr.mxu0 0.0
  %1165 = vmatpush1.xpose.msra.mxu0 0.0
  %1166 = vmatprep.subr.mxu0 0.0
  %1167 = vmatpush1.xpose.msra.mxu0 0.0
  %1168 = vmatprep.subr.mxu0 0.0
  %1169 = vmatpush1.xpose.msra.mxu0 0.0
  %1170 = vmatprep.subr.mxu0 0.0
  %1171 = vmatpush1.xpose.msra.mxu0 0.0
  %1172 = vmatprep.subr.mxu0 0.0
  %1173 = vmatpush1.xpose.msra.mxu0 0.0
  %1174 = vmatprep.subr.mxu0 0.0
  %1175 = vmatpush1.xpose.msra.mxu0 0.0
  %1176 = vmatprep.subr.mxu0 0.0
  %1177 = vmatpush1.xpose.msra.mxu0 0.0
  %1178 = vmatprep.subr.mxu0 0.0
  %1179 = vmatpush1.xpose.msra.mxu0 0.0
  %1180 = vmatprep.subr.mxu0 0.0
  %1181 = vmatpush1.xpose.msra.mxu0 0.0
  %1182 = vmatprep.subr.mxu0 0.0
  %1183 = vmatpush1.xpose.msra.mxu0 0.0
  %1184 = vmatprep.subr.mxu0 0.0
  %1185 = vmatpush1.xpose.msra.mxu0 0.0
  %1186 = vmatprep.subr.mxu0 0.0
  %1187 = vmatpush1.xpose.msra.mxu0 0.0
  %1188 = vmatprep.subr.mxu0 0.0
  %1189 = vmatpush1.xpose.msra.mxu0 0.0
  %1190 = vmatprep.subr.mxu0 0.0
  %1191 = vmatpush1.xpose.msra.mxu0 0.0
  %1192 = vmatprep.mubr.f32.mxu0 0.0
  %1193 = vmatmul.mubr.f32.gmra.mrb[0].mxu0 %v1102
  %v1194 = vpop.f32.mrb[0].mxu0
  %v1195 = vadd.f32 0.0, %v1194
  %v1196 = vpop.f32.mrb[0].mxu0
  %1197 = vdwg.mxu0
  %v1198 = vmul.f32 %v1195, 0.17677669
  %v1199 = vpack.c.bf16 %v374, %v371
  %v1201 = vsel %vm420, %v1199, 0
  %1203 = vmatprep.subr.bf16.mxu0 0
  %1204 = vmatpush1.bf16.msra.mxu0 %v786
  %1205 = vmatprep.subr.bf16.mxu0 0
  %1206 = vmatpush1.bf16.msra.mxu0 %v787
  %1207 = vmatprep.subr.bf16.mxu0 0
  %1208 = vmatpush1.bf16.msra.mxu0 0
  %1209 = vmatprep.subr.bf16.mxu0 0
  %1210 = vmatpush1.bf16.msra.mxu0 0
  %1211 = vmatprep.subr.bf16.mxu0 0
  %1212 = vmatpush1.bf16.msra.mxu0 0
  %1213 = vmatprep.subr.bf16.mxu0 0
  %1214 = vmatpush1.bf16.msra.mxu0 0
  %1215 = vmatprep.subr.bf16.mxu0 0
  %1216 = vmatpush1.bf16.msra.mxu0 0
  %1217 = vmatprep.subr.bf16.mxu0 0
  %1218 = vmatpush1.bf16.msra.mxu0 0
  %1219 = vmatprep.subr.bf16.mxu0 0
  %1220 = vmatpush1.bf16.msra.mxu0 0
  %1221 = vmatprep.subr.bf16.mxu0 0
  %1222 = vmatpush1.bf16.msra.mxu0 0
  %1223 = vmatprep.subr.bf16.mxu0 0
  %1224 = vmatpush1.bf16.msra.mxu0 0
  %1225 = vmatprep.subr.bf16.mxu0 0
  %1226 = vmatpush1.bf16.msra.mxu0 0
  %1227 = vmatprep.subr.bf16.mxu0 0
  %1228 = vmatpush1.bf16.msra.mxu0 0
  %1229 = vmatprep.subr.bf16.mxu0 0
  %1230 = vmatpush1.bf16.msra.mxu0 0
  %1231 = vmatprep.subr.bf16.mxu0 0
  %1232 = vmatpush1.bf16.msra.mxu0 0
  %1233 = vmatprep.subr.bf16.mxu0 0
  %1234 = vmatpush1.bf16.msra.mxu0 0
  %1235 = vmatprep.mubr.bf16.mxu0 0
  %1236 = vmatmul.mubr.bf16.gmra.mrb[0].mxu0 %v1201
  %v1237 = vpop.f32.mrb[0].mxu0
  %v1238 = vadd.f32 0.0, %v1237
  %v1239 = vpop.f32.mrb[0].mxu0
  %v1240 = vpop.f32.mrb[0].mxu0
  %v1241 = vadd.f32 0.0, %v1240
  %v1242 = vpop.f32.mrb[0].mxu0
  %1243 = vdwg.mxu0
  %v1244 = vadd.f32 %v1238, %v906
  %v1245 = vadd.f32 %v1241, %v909
  %v1247 = vsel %vm420, %v1244, 0
  %v1250 = vsel %vm420, %v1245, 0
  %1252 = vmatprep.subr.mxu0 0.0
  %1253 = vmatpush1.xpose.msra.mxu0 %v1247
  %1254 = vmatprep.subr.mxu0 0.0
  %1255 = vmatpush1.xpose.msra.mxu0 %v1250
  %1256 = vmatprep.subr.mxu0 0.0
  %1257 = vmatpush1.xpose.msra.mxu0 0.0
  %1258 = vmatprep.subr.mxu0 0.0
  %1259 = vmatpush1.xpose.msra.mxu0 0.0
  %1260 = vmatprep.subr.mxu0 0.0
  %1261 = vmatpush1.xpose.msra.mxu0 0.0
  %1262 = vmatprep.subr.mxu0 0.0
  %1263 = vmatpush1.xpose.msra.mxu0 0.0
  %1264 = vmatprep.subr.mxu0 0.0
  %1265 = vmatpush1.xpose.msra.mxu0 0.0
  %1266 = vmatprep.subr.mxu0 0.0
  %1267 = vmatpush1.xpose.msra.mxu0 0.0
  %1268 = vmatprep.subr.mxu0 0.0
  %1269 = vmatpush1.xpose.msra.mxu0 0.0
  %1270 = vmatprep.subr.mxu0 0.0
  %1271 = vmatpush1.xpose.msra.mxu0 0.0
  %1272 = vmatprep.subr.mxu0 0.0
  %1273 = vmatpush1.xpose.msra.mxu0 0.0
  %1274 = vmatprep.subr.mxu0 0.0
  %1275 = vmatpush1.xpose.msra.mxu0 0.0
  %1276 = vmatprep.subr.mxu0 0.0
  %1277 = vmatpush1.xpose.msra.mxu0 0.0
  %1278 = vmatprep.subr.mxu0 0.0
  %1279 = vmatpush1.xpose.msra.mxu0 0.0
  %1280 = vmatprep.subr.mxu0 0.0
  %1281 = vmatpush1.xpose.msra.mxu0 0.0
  %1282 = vmatprep.subr.mxu0 0.0
  %1283 = vmatpush1.xpose.msra.mxu0 0.0
  %1284 = vmatprep.subr.mxu0 0.0
  %1285 = vmatpush1.xpose.msra.mxu0 0.0
  %1286 = vmatprep.subr.mxu0 0.0
  %1287 = vmatpush1.xpose.msra.mxu0 0.0
  %1288 = vmatprep.subr.mxu0 0.0
  %1289 = vmatpush1.xpose.msra.mxu0 0.0
  %1290 = vmatprep.subr.mxu0 0.0
  %1291 = vmatpush1.xpose.msra.mxu0 0.0
  %1292 = vmatprep.subr.mxu0 0.0
  %1293 = vmatpush1.xpose.msra.mxu0 0.0
  %1294 = vmatprep.subr.mxu0 0.0
  %1295 = vmatpush1.xpose.msra.mxu0 0.0
  %1296 = vmatprep.subr.mxu0 0.0
  %1297 = vmatpush1.xpose.msra.mxu0 0.0
  %1298 = vmatprep.subr.mxu0 0.0
  %1299 = vmatpush1.xpose.msra.mxu0 0.0
  %1300 = vmatprep.subr.mxu0 0.0
  %1301 = vmatpush1.xpose.msra.mxu0 0.0
  %1302 = vmatprep.subr.mxu0 0.0
  %1303 = vmatpush1.xpose.msra.mxu0 0.0
  %1304 = vmatprep.subr.mxu0 0.0
  %1305 = vmatpush1.xpose.msra.mxu0 0.0
  %1306 = vmatprep.subr.mxu0 0.0
  %1307 = vmatpush1.xpose.msra.mxu0 0.0
  %1308 = vmatprep.subr.mxu0 0.0
  %1309 = vmatpush1.xpose.msra.mxu0 0.0
  %1310 = vmatprep.subr.mxu0 0.0
  %1311 = vmatpush1.xpose.msra.mxu0 0.0
  %1312 = vmatprep.subr.mxu0 0.0
  %1313 = vmatpush1.xpose.msra.mxu0 0.0
  %1314 = vmatprep.subr.mxu0 0.0
  %1315 = vmatpush1.xpose.msra.mxu0 0.0
  %1316 = vmatprep.mubr.f32.mxu0 0.0
  %1317 = vmatmul.mubr.f32.gmra.mrb[0].mxu0 %v1102
  %v1318 = vpop.f32.mrb[0].mxu0
  %v1319 = vadd.f32 0.0, %v1318
  %v1320 = vpop.f32.mrb[0].mxu0
  %1321 = vdwg.mxu0
  %v1322 = vmul.f32 %v1319, 0.17677669
  %v1323 = vpack.c.bf16 %v459, %v459
  %v1325 = vsel %vm420, %v1323, 0
  %1327 = vmatprep.subr.bf16.mxu0 0
  %1328 = vmatpush1.bf16.msra.mxu0 %v786
  %1329 = vmatprep.subr.bf16.mxu0 0
  %1330 = vmatpush1.bf16.msra.mxu0 %v787
  %1331 = vmatprep.subr.bf16.mxu0 0
  %1332 = vmatpush1.bf16.msra.mxu0 0
  %1333 = vmatprep.subr.bf16.mxu0 0
  %1334 = vmatpush1.bf16.msra.mxu0 0
  %1335 = vmatprep.subr.bf16.mxu0 0
  %1336 = vmatpush1.bf16.msra.mxu0 0
  %1337 = vmatprep.subr.bf16.mxu0 0
  %1338 = vmatpush1.bf16.msra.mxu0 0
  %1339 = vmatprep.subr.bf16.mxu0 0
  %1340 = vmatpush1.bf16.msra.mxu0 0
  %1341 = vmatprep.subr.bf16.mxu0 0
  %1342 = vmatpush1.bf16.msra.mxu0 0
  %1343 = vmatprep.subr.bf16.mxu0 0
  %1344 = vmatpush1.bf16.msra.mxu0 0
  %1345 = vmatprep.subr.bf16.mxu0 0
  %1346 = vmatpush1.bf16.msra.mxu0 0
  %1347 = vmatprep.subr.bf16.mxu0 0
  %1348 = vmatpush1.bf16.msra.mxu0 0
  %1349 = vmatprep.subr.bf16.mxu0 0
  %1350 = vmatpush1.bf16.msra.mxu0 0
  %1351 = vmatprep.subr.bf16.mxu0 0
  %1352 = vmatpush1.bf16.msra.mxu0 0
  %1353 = vmatprep.subr.bf16.mxu0 0
  %1354 = vmatpush1.bf16.msra.mxu0 0
  %1355 = vmatprep.subr.bf16.mxu0 0
  %1356 = vmatpush1.bf16.msra.mxu0 0
  %1357 = vmatprep.subr.bf16.mxu0 0
  %1358 = vmatpush1.bf16.msra.mxu0 0
  %1359 = vmatprep.mubr.bf16.mxu0 0
  %1360 = vmatmul.mubr.bf16.gmra.mrb[0].mxu0 %v1325
  %v1361 = vpop.f32.mrb[0].mxu0
  %v1362 = vadd.f32 0.0, %v1361
  %v1363 = vpop.f32.mrb[0].mxu0
  %v1364 = vpop.f32.mrb[0].mxu0
  %v1365 = vpop.f32.mrb[0].mxu0
  %1366 = vdwg.mxu0
  %v1367 = vadd.f32 %v1362, %v951
  %v1369 = vsel %vm420, %v1367, 0
  %1371 = vmatprep.subr.mxu0 0.0
  %1372 = vmatpush1.xpose.msra.mxu0 %v1369
  %1373 = vmatprep.subr.mxu0 0.0
  %1374 = vmatpush1.xpose.msra.mxu0 0.0
  %1375 = vmatprep.subr.mxu0 0.0
  %1376 = vmatpush1.xpose.msra.mxu0 0.0
  %1377 = vmatprep.subr.mxu0 0.0
  %1378 = vmatpush1.xpose.msra.mxu0 0.0
  %1379 = vmatprep.subr.mxu0 0.0
  %1380 = vmatpush1.xpose.msra.mxu0 0.0
  %1381 = vmatprep.subr.mxu0 0.0
  %1382 = vmatpush1.xpose.msra.mxu0 0.0
  %1383 = vmatprep.subr.mxu0 0.0
  %1384 = vmatpush1.xpose.msra.mxu0 0.0
  %1385 = vmatprep.subr.mxu0 0.0
  %1386 = vmatpush1.xpose.msra.mxu0 0.0
  %1387 = vmatprep.subr.mxu0 0.0
  %1388 = vmatpush1.xpose.msra.mxu0 0.0
  %1389 = vmatprep.subr.mxu0 0.0
  %1390 = vmatpush1.xpose.msra.mxu0 0.0
  %1391 = vmatprep.subr.mxu0 0.0
  %1392 = vmatpush1.xpose.msra.mxu0 0.0
  %1393 = vmatprep.subr.mxu0 0.0
  %1394 = vmatpush1.xpose.msra.mxu0 0.0
  %1395 = vmatprep.subr.mxu0 0.0
  %1396 = vmatpush1.xpose.msra.mxu0 0.0
  %1397 = vmatprep.subr.mxu0 0.0
  %1398 = vmatpush1.xpose.msra.mxu0 0.0
  %1399 = vmatprep.subr.mxu0 0.0
  %1400 = vmatpush1.xpose.msra.mxu0 0.0
  %1401 = vmatprep.subr.mxu0 0.0
  %1402 = vmatpush1.xpose.msra.mxu0 0.0
  %1403 = vmatprep.subr.mxu0 0.0
  %1404 = vmatpush1.xpose.msra.mxu0 0.0
  %1405 = vmatprep.subr.mxu0 0.0
  %1406 = vmatpush1.xpose.msra.mxu0 0.0
  %1407 = vmatprep.subr.mxu0 0.0
  %1408 = vmatpush1.xpose.msra.mxu0 0.0
  %1409 = vmatprep.subr.mxu0 0.0
  %1410 = vmatpush1.xpose.msra.mxu0 0.0
  %1411 = vmatprep.subr.mxu0 0.0
  %1412 = vmatpush1.xpose.msra.mxu0 0.0
  %1413 = vmatprep.subr.mxu0 0.0
  %1414 = vmatpush1.xpose.msra.mxu0 0.0
  %1415 = vmatprep.subr.mxu0 0.0
  %1416 = vmatpush1.xpose.msra.mxu0 0.0
  %1417 = vmatprep.subr.mxu0 0.0
  %1418 = vmatpush1.xpose.msra.mxu0 0.0
  %1419 = vmatprep.subr.mxu0 0.0
  %1420 = vmatpush1.xpose.msra.mxu0 0.0
  %1421 = vmatprep.subr.mxu0 0.0
  %1422 = vmatpush1.xpose.msra.mxu0 0.0
  %1423 = vmatprep.subr.mxu0 0.0
  %1424 = vmatpush1.xpose.msra.mxu0 0.0
  %1425 = vmatprep.subr.mxu0 0.0
  %1426 = vmatpush1.xpose.msra.mxu0 0.0
  %1427 = vmatprep.subr.mxu0 0.0
  %1428 = vmatpush1.xpose.msra.mxu0 0.0
  %1429 = vmatprep.subr.mxu0 0.0
  %1430 = vmatpush1.xpose.msra.mxu0 0.0
  %1431 = vmatprep.subr.mxu0 0.0
  %1432 = vmatpush1.xpose.msra.mxu0 0.0
  %1433 = vmatprep.subr.mxu0 0.0
  %1434 = vmatpush1.xpose.msra.mxu0 0.0
  %1435 = vmatprep.mubr.f32.mxu0 0.0
  %1436 = vmatmul.mubr.f32.gmra.mrb[0].mxu0 %v1102
  %v1437 = vpop.f32.mrb[0].mxu0
  %v1438 = vadd.f32 0.0, %v1437
  %v1439 = vpop.f32.mrb[0].mxu0
  %1440 = vdwg.mxu0
  %v1441 = vmul.f32 %v1438, 0.17677669
  %vm1442 = vcmask 523264
  %v1443 = vsel %vm1442, %v1198, -inf
  %1444 = vmax.xlane.f32.xlu0 %v1443
  %v1445 = vpop.xlane.xlu0 %1444
  %v1446 = vsel %vm112, %v1322, -inf
  %1447 = vmax.xlane.f32.xlu0 %v1446
  %v1448 = vpop.xlane.xlu0 %1447
  %v1449 = vmax.f32 %v1445, %v1448
  %vm1450 = vcmask 31744
  %v1451 = vsel %vm1450, %v1441, -inf
  %1452 = vmax.xlane.f32.xlu0 %v1451
  %v1453 = vpop.xlane.xlu0 %1452
  %v1454 = vmax.f32 %v1449, %v1453
  %v1455 = vsub.f32 %v1198, %v1454
  %v1456 = vmul.f32 %v1455, 1.442695
  %v1457 = vpow.pop %v1456
  %v1458 = vsel %vm1442, %v1457, 0.0
  %1459 = vadd.xlane.f32.xlu0 %v1458
  %v1460 = vpop.xlane.xlu0 %1459
  %v1461 = vpack.c.bf16 %v1457, %v1457
  %v1462 = vpack.c.bf16 %v1066, %v1063
  %v1463 = vpack.c.bf16 %v1074, %v1071
  %v1464 = vpack.c.bf16 %v1082, %v1079
  %v1465 = vpack.c.bf16 %v1090, %v1087
  %v1466 = vsub.f32 %v1322, %v1454
  %v1467 = vmul.f32 %v1466, 1.442695
  %v1468 = vpow.pop %v1467
  %v1469 = vsel %vm112, %v1468, 0.0
  %1470 = vadd.xlane.f32.xlu0 %v1469
  %v1471 = vpop.xlane.xlu0 %1470
  %v1472 = vpack.c.bf16 %v1468, %v1468
  %v1473 = vpack.c.bf16 %v1241, %v1238
  %1475 = vrot.lane.b32.xlu0 %v1473, 96
  %v1476 = vpop.permute.xlu0 %1475
  %v1479 = vsel %vm112, %v1472, 0
  %1481 = vmatprep.subr.bf16.mxu0 0
  %1482 = vmatpush1.bf16.msra.mxu0 %v1476
  %1483 = vmatprep.subr.bf16.mxu0 0
  %1484 = vmatpush1.bf16.msra.mxu0 0
  %1485 = vmatprep.subr.bf16.mxu0 0
  %1486 = vmatpush1.bf16.msra.mxu0 0
  %1487 = vmatprep.subr.bf16.mxu0 0
  %1488 = vmatpush1.bf16.msra.mxu0 0
  %1489 = vmatprep.subr.bf16.mxu0 0
  %1490 = vmatpush1.bf16.msra.mxu0 0
  %1491 = vmatprep.subr.bf16.mxu0 0
  %1492 = vmatpush1.bf16.msra.mxu0 0
  %1493 = vmatprep.subr.bf16.mxu0 0
  %1494 = vmatpush1.bf16.msra.mxu0 0
  %1495 = vmatprep.subr.bf16.mxu0 0
  %1496 = vmatpush1.bf16.msra.mxu0 0
  %1497 = vmatprep.subr.bf16.mxu0 0
  %1498 = vmatpush1.bf16.msra.mxu0 0
  %1499 = vmatprep.subr.bf16.mxu0 0
  %1500 = vmatpush1.bf16.msra.mxu0 0
  %1501 = vmatprep.subr.bf16.mxu0 0
  %1502 = vmatpush1.bf16.msra.mxu0 0
  %1503 = vmatprep.subr.bf16.mxu0 0
  %1504 = vmatpush1.bf16.msra.mxu0 0
  %1505 = vmatprep.subr.bf16.mxu0 0
  %1506 = vmatpush1.bf16.msra.mxu0 0
  %1507 = vmatprep.subr.bf16.mxu0 0
  %1508 = vmatpush1.bf16.msra.mxu0 0
  %1509 = vmatprep.subr.bf16.mxu0 0
  %1510 = vmatpush1.bf16.msra.mxu0 0
  %1511 = vmatprep.subr.bf16.mxu0 0
  %1512 = vmatpush1.bf16.msra.mxu0 0
  %1513 = vmatprep.mubr.bf16.mxu0 0
  %1514 = vmatmul.mubr.bf16.gmra.mrb[0].mxu0 %v1479
  %v1515 = vpop.f32.mrb[0].mxu0
  %v1516 = vadd.f32 0.0, %v1515
  %v1517 = vpop.f32.mrb[0].mxu0
  %v1518 = vpop.f32.mrb[0].mxu0
  %v1519 = vpop.f32.mrb[0].mxu0
  %1520 = vdwg.mxu0
  %v1521 = vadd.f32 %v1460, %v1471
  %1526 = vrot.lane.b32.xlu0 %v1462, 96
  %v1527 = vpop.permute.xlu0 %1526
  %1528 = vrot.lane.b32.xlu0 %v1463, 96
  %v1529 = vpop.permute.xlu0 %1528
  %1530 = vrot.lane.b32.xlu0 %v1464, 96
  %v1531 = vpop.permute.xlu0 %1530
  %1532 = vrot.lane.b32.xlu0 %v1465, 96
  %v1533 = vpop.permute.xlu0 %1532
  %v1539 = vsel %vm1442, %v1461, 0
  %1541 = vmatprep.subr.bf16.mxu0 0
  %1542 = vmatpush1.bf16.msra.mxu0 %v1527
  %1543 = vmatprep.subr.bf16.mxu0 0
  %1544 = vmatpush1.bf16.msra.mxu0 %v1529
  %1545 = vmatprep.subr.bf16.mxu0 0
  %1546 = vmatpush1.bf16.msra.mxu0 %v1531
  %1547 = vmatprep.subr.bf16.mxu0 0
  %1548 = vmatpush1.bf16.msra.mxu0 %v1533
  %1549 = vmatprep.subr.bf16.mxu0 0
  %1550 = vmatpush1.bf16.msra.mxu0 0
  %1551 = vmatprep.subr.bf16.mxu0 0
  %1552 = vmatpush1.bf16.msra.mxu0 0
  %1553 = vmatprep.subr.bf16.mxu0 0
  %1554 = vmatpush1.bf16.msra.mxu0 0
  %1555 = vmatprep.subr.bf16.mxu0 0
  %1556 = vmatpush1.bf16.msra.mxu0 0
  %1557 = vmatprep.subr.bf16.mxu0 0
  %1558 = vmatpush1.bf16.msra.mxu0 0
  %1559 = vmatprep.subr.bf16.mxu0 0
  %1560 = vmatpush1.bf16.msra.mxu0 0
  %1561 = vmatprep.subr.bf16.mxu0 0
  %1562 = vmatpush1.bf16.msra.mxu0 0
  %1563 = vmatprep.subr.bf16.mxu0 0
  %1564 = vmatpush1.bf16.msra.mxu0 0
  %1565 = vmatprep.subr.bf16.mxu0 0
  %1566 = vmatpush1.bf16.msra.mxu0 0
  %1567 = vmatprep.subr.bf16.mxu0 0
  %1568 = vmatpush1.bf16.msra.mxu0 0
  %1569 = vmatprep.subr.bf16.mxu0 0
  %1570 = vmatpush1.bf16.msra.mxu0 0
  %1571 = vmatprep.subr.bf16.mxu0 0
  %1572 = vmatpush1.bf16.msra.mxu0 0
  %1573 = vmatprep.mubr.bf16.mxu0 0
  %1574 = vmatmul.mubr.bf16.gmra.mrb[0].mxu0 %v1539
  %v1575 = vpop.f32.mrb[0].mxu0
  %v1576 = vadd.f32 %v1516, %v1575
  %v1577 = vpop.f32.mrb[0].mxu0
  %v1578 = vpop.f32.mrb[0].mxu0
  %v1579 = vpop.f32.mrb[0].mxu0
  %1580 = vdwg.mxu0
  %v1581 = vsub.f32 %v1441, %v1454
  %v1582 = vmul.f32 %v1581, 1.442695
  %v1583 = vpow.pop %v1582
  %v1584 = vsel %vm1450, %v1583, 0.0
  %1585 = vadd.xlane.f32.xlu0 %v1584
  %v1586 = vpop.xlane.xlu0 %1585
  %v1587 = vpack.c.bf16 %v1583, %v1583
  %v1588 = vpack.c.bf16 %v1362, %v1362
  %1590 = vrot.lane.b32.xlu0 %v1588, 96
  %v1591 = vpop.permute.xlu0 %1590
  %v1593 = vsel %vm1450, %v1587, 0
  %vm1595 = vcmask 1041408
  %v1597 = vsel %vm1595, %v1591, 0
  %1599 = vmatprep.subr.bf16.mxu0 0
  %1600 = vmatpush1.bf16.msra.mxu0 %v1597
  %1601 = vmatprep.subr.bf16.mxu0 0
  %1602 = vmatpush1.bf16.msra.mxu0 0
  %1603 = vmatprep.subr.bf16.mxu0 0
  %1604 = vmatpush1.bf16.msra.mxu0 0
  %1605 = vmatprep.subr.bf16.mxu0 0
  %1606 = vmatpush1.bf16.msra.mxu0 0
  %1607 = vmatprep.subr.bf16.mxu0 0
  %1608 = vmatpush1.bf16.msra.mxu0 0
  %1609 = vmatprep.subr.bf16.mxu0 0
  %1610 = vmatpush1.bf16.msra.mxu0 0
  %1611 = vmatprep.subr.bf16.mxu0 0
  %1612 = vmatpush1.bf16.msra.mxu0 0
  %1613 = vmatprep.subr.bf16.mxu0 0
  %1614 = vmatpush1.bf16.msra.mxu0 0
  %1615 = vmatprep.subr.bf16.mxu0 0
  %1616 = vmatpush1.bf16.msra.mxu0 0
  %1617 = vmatprep.subr.bf16.mxu0 0
  %1618 = vmatpush1.bf16.msra.mxu0 0
  %1619 = vmatprep.subr.bf16.mxu0 0
  %1620 = vmatpush1.bf16.msra.mxu0 0
  %1621 = vmatprep.subr.bf16.mxu0 0
  %1622 = vmatpush1.bf16.msra.mxu0 0
  %1623 = vmatprep.subr.bf16.mxu0 0
  %1624 = vmatpush1.bf16.msra.mxu0 0
  %1625 = vmatprep.subr.bf16.mxu0 0
  %1626 = vmatpush1.bf16.msra.mxu0 0
  %1627 = vmatprep.subr.bf16.mxu0 0
  %1628 = vmatpush1.bf16.msra.mxu0 0
  %1629 = vmatprep.subr.bf16.mxu0 0
  %1630 = vmatpush1.bf16.msra.mxu0 0
  %1631 = vmatprep.mubr.bf16.mxu0 0
  %1632 = vmatmul.mubr.bf16.gmra.mrb[0].mxu0 %v1593
  %v1633 = vpop.f32.mrb[0].mxu0
  %v1634 = vadd.f32 0.0, %v1633
  %v1635 = vpop.f32.mrb[0].mxu0
  %v1636 = vpop.f32.mrb[0].mxu0
  %v1637 = vpop.f32.mrb[0].mxu0
  %1638 = vdwg.mxu0
  %v1639 = vadd.f32 %v1521, %v1586
  %v1640 = vadd.f32 %v1576, %v1634
  %v1641 = vrcp.pop %v1639
  %v1642 = vmul.f32 %v1640, %v1641
  %v1643 = vpack.c.bf16 %v1642, %v1642
  %v1648 = vunpack.c.l.b16 %v756
  %v1649 = vunpack.c.l.b16 %v757
  %v1650 = vunpack.c.l.b16 %v758
  %v1651 = vunpack.c.l.b16 %v759
  %v1652 = vpack.c.b16 %v1649, %v1648
  %v1653 = vpack.c.b16 %v1651, %v1650
  %v1657 = vsel %vm420, %v1643, 0
  %1659 = vmatprep.subr.bf16.mxu0 0
  %1660 = vmatpush1.bf16.msra.mxu0 %v1652
  %1661 = vmatprep.subr.bf16.mxu0 0
  %1662 = vmatpush1.bf16.msra.mxu0 %v1653
  %1663 = vmatprep.subr.bf16.mxu0 0
  %1664 = vmatpush1.bf16.msra.mxu0 0
  %1665 = vmatprep.subr.bf16.mxu0 0
  %1666 = vmatpush1.bf16.msra.mxu0 0
  %1667 = vmatprep.subr.bf16.mxu0 0
  %1668 = vmatpush1.bf16.msra.mxu0 0
  %1669 = vmatprep.subr.bf16.mxu0 0
  %1670 = vmatpush1.bf16.msra.mxu0 0
  %1671 = vmatprep.subr.bf16.mxu0 0
  %1672 = vmatpush1.bf16.msra.mxu0 0
  %1673 = vmatprep.subr.bf16.mxu0 0
  %1674 = vmatpush1.bf16.msra.mxu0 0
  %1675 = vmatprep.subr.bf16.mxu0 0
  %1676 = vmatpush1.bf16.msra.mxu0 0
  %1677 = vmatprep.subr.bf16.mxu0 0
  %1678 = vmatpush1.bf16.msra.mxu0 0
  %1679 = vmatprep.subr.bf16.mxu0 0
  %1680 = vmatpush1.bf16.msra.mxu0 0
  %1681 = vmatprep.subr.bf16.mxu0 0
  %1682 = vmatpush1.bf16.msra.mxu0 0
  %1683 = vmatprep.subr.bf16.mxu0 0
  %1684 = vmatpush1.bf16.msra.mxu0 0
  %1685 = vmatprep.subr.bf16.mxu0 0
  %1686 = vmatpush1.bf16.msra.mxu0 0
  %1687 = vmatprep.subr.bf16.mxu0 0
  %1688 = vmatpush1.bf16.msra.mxu0 0
  %1689 = vmatprep.subr.bf16.mxu0 0
  %1690 = vmatpush1.bf16.msra.mxu0 0
  %1691 = vmatprep.mubr.bf16.mxu0 0
  %1692 = vmatmul.mubr.bf16.gmra.mrb[0].mxu0 %v1657
  %v1693 = vpop.f32.mrb[0].mxu0
  %v1694 = vadd.f32 0.0, %v1693
  %v1695 = vpop.f32.mrb[0].mxu0
  %v1696 = vpop.f32.mrb[0].mxu0
  %v1697 = vpop.f32.mrb[0].mxu0
  %1698 = vdwg.mxu0
  %v1699 = vadd.f32 %v747, %v1694
  %v1700 = vpack.c.bf16 %v1699, %v1699
  %v1702 = vlaneseq
  %v1703 = vshrl.u32 %v1702, 7
  %v1704 = vsub.s32 0, %v1703
  %v1705 = vrot.slane %v764, %v1704
  %v1711 = vunpack.c.l.b16 %v760
  %v1712 = vunpack.c.l.b16 %v761
  %v1713 = vunpack.c.l.b16 %v762
  %v1714 = vunpack.c.l.b16 %v763
  %v1715 = vpack.c.b16 %v1712, %v1711
  %v1716 = vpack.c.b16 %v1714, %v1713
  %v1720 = vsel %vm420, %v1700, 0
  %1722 = vmatprep.subr.bf16.mxu0 0
  %1723 = vmatpush1.bf16.msra.mxu0 %v1715
  %1724 = vmatprep.subr.bf16.mxu0 0
  %1725 = vmatpush1.bf16.msra.mxu0 %v1716
  %1726 = vmatprep.subr.bf16.mxu0 0
  %1727 = vmatpush1.bf16.msra.mxu0 0
  %1728 = vmatprep.subr.bf16.mxu0 0
  %1729 = vmatpush1.bf16.msra.mxu0 0
  %1730 = vmatprep.subr.bf16.mxu0 0
  %1731 = vmatpush1.bf16.msra.mxu0 0
  %1732 = vmatprep.subr.bf16.mxu0 0
  %1733 = vmatpush1.bf16.msra.mxu0 0
  %1734 = vmatprep.subr.bf16.mxu0 0
  %1735 = vmatpush1.bf16.msra.mxu0 0
  %1736 = vmatprep.subr.bf16.mxu0 0
  %1737 = vmatpush1.bf16.msra.mxu0 0
  %1738 = vmatprep.subr.bf16.mxu0 0
  %1739 = vmatpush1.bf16.msra.mxu0 0
  %1740 = vmatprep.subr.bf16.mxu0 0
  %1741 = vmatpush1.bf16.msra.mxu0 0
  %1742 = vmatprep.subr.bf16.mxu0 0
  %1743 = vmatpush1.bf16.msra.mxu0 0
  %1744 = vmatprep.subr.bf16.mxu0 0
  %1745 = vmatpush1.bf16.msra.mxu0 0
  %1746 = vmatprep.subr.bf16.mxu0 0
  %1747 = vmatpush1.bf16.msra.mxu0 0
  %1748 = vmatprep.subr.bf16.mxu0 0
  %1749 = vmatpush1.bf16.msra.mxu0 0
  %1750 = vmatprep.subr.bf16.mxu0 0
  %1751 = vmatpush1.bf16.msra.mxu0 0
  %1752 = vmatprep.subr.bf16.mxu0 0
  %1753 = vmatpush1.bf16.msra.mxu0 0
  %1754 = vmatprep.mubr.bf16.mxu0 0
  %1755 = vmatmul.mubr.bf16.gmra.mrb[0].mxu0 %v1720
  %v1756 = vpop.f32.mrb[0].mxu0
  %v1757 = vadd.f32 %v1705, %v1756
  %v1758 = vpop.f32.mrb[0].mxu0
  %v1759 = vpop.f32.mrb[0].mxu0
  %v1760 = vpop.f32.mrb[0].mxu0
  %1761 = vdwg.mxu0
  %v1762 = vmax.f32 %v1757, 0.0
  %v1763 = vpack.c.bf16 %v1762, %v1762
  %v1772 = vunpack.c.l.b16 %v765
  %v1773 = vunpack.c.l.b16 %v766
  %v1774 = vunpack.c.l.b16 %v767
  %v1775 = vunpack.c.l.b16 %v768
  %v1776 = vunpack.c.l.b16 %v769
  %v1777 = vunpack.c.l.b16 %v770
  %v1778 = vunpack.c.l.b16 %v771
  %v1779 = vunpack.c.l.b16 %v772
  %v1780 = vpack.c.b16 %v1773, %v1772
  %v1781 = vpack.c.b16 %v1775, %v1774
  %v1782 = vpack.c.b16 %v1777, %v1776
  %v1783 = vpack.c.b16 %v1779, %v1778
  %v1789 = vsel %vm1442, %v1763, 0
  %1791 = vmatprep.subr.bf16.mxu0 0
  %1792 = vmatpush1.bf16.msra.mxu0 %v1780
  %1793 = vmatprep.subr.bf16.mxu0 0
  %1794 = vmatpush1.bf16.msra.mxu0 %v1781
  %1795 = vmatprep.subr.bf16.mxu0 0
  %1796 = vmatpush1.bf16.msra.mxu0 %v1782
  %1797 = vmatprep.subr.bf16.mxu0 0
  %1798 = vmatpush1.bf16.msra.mxu0 %v1783
  %1799 = vmatprep.subr.bf16.mxu0 0
  %1800 = vmatpush1.bf16.msra.mxu0 0
  %1801 = vmatprep.subr.bf16.mxu0 0
  %1802 = vmatpush1.bf16.msra.mxu0 0
  %1803 = vmatprep.subr.bf16.mxu0 0
  %1804 = vmatpush1.bf16.msra.mxu0 0
  %1805 = vmatprep.subr.bf16.mxu0 0
  %1806 = vmatpush1.bf16.msra.mxu0 0
  %1807 = vmatprep.subr.bf16.mxu0 0
  %1808 = vmatpush1.bf16.msra.mxu0 0
  %1809 = vmatprep.subr.bf16.mxu0 0
  %1810 = vmatpush1.bf16.msra.mxu0 0
  %1811 = vmatprep.subr.bf16.mxu0 0
  %1812 = vmatpush1.bf16.msra.mxu0 0
  %1813 = vmatprep.subr.bf16.mxu0 0
  %1814 = vmatpush1.bf16.msra.mxu0 0
  %1815 = vmatprep.subr.bf16.mxu0 0
  %1816 = vmatpush1.bf16.msra.mxu0 0
  %1817 = vmatprep.subr.bf16.mxu0 0
  %1818 = vmatpush1.bf16.msra.mxu0 0
  %1819 = vmatprep.subr.bf16.mxu0 0
  %1820 = vmatpush1.bf16.msra.mxu0 0
  %1821 = vmatprep.subr.bf16.mxu0 0
  %1822 = vmatpush1.bf16.msra.mxu0 0
  %1823 = vmatprep.mubr.bf16.mxu0 0
  %1824 = vmatmul.mubr.bf16.gmra.mrb[0].mxu0 %v1789
  %v1825 = vpop.f32.mrb[0].mxu0
  %v1826 = vadd.f32 0.0, %v1825
  %v1827 = vpop.f32.mrb[0].mxu0
  %v1828 = vpop.f32.mrb[0].mxu0
  %v1829 = vpop.f32.mrb[0].mxu0
  %1830 = vdwg.mxu0
  %v1831 = vadd.f32 %v1699, %v1826
  %v1833 = vlaneseq
  %v1834 = vshrl.u32 %v1833, 7
  %v1835 = vsub.s32 0, %v1834
  %v1836 = vrot.slane %v773, %v1835
  %v1838 = vadd.f32 %v1831, %v1836
  %v1839 = vpack.c.bf16 %v599, %v596
  %v1840 = vpack.c.bf16 %v607, %v604
  %v1841 = vpack.c.bf16 %v615, %v612
  %v1842 = vpack.c.bf16 %v623, %v620
  %v1844 = vsel %vm420, %v1839, 0
  %v1847 = vsel %vm420, %v1840, 0
  %v1850 = vsel %vm420, %v1841, 0
  %v1853 = vsel %vm420, %v1842, 0
  %1855 = vmatprep.subr.bf16.mxu0 0
  %1856 = vmatpush1.bf16.msra.mxu0 %v786
  %1857 = vmatprep.subr.bf16.mxu0 0
  %1858 = vmatpush1.bf16.msra.mxu0 %v787
  %1859 = vmatprep.subr.bf16.mxu0 0
  %1860 = vmatpush1.bf16.msra.mxu0 0
  %1861 = vmatprep.subr.bf16.mxu0 0
  %1862 = vmatpush1.bf16.msra.mxu0 0
  %1863 = vmatprep.subr.bf16.mxu0 0
  %1864 = vmatpush1.bf16.msra.mxu0 0
  %1865 = vmatprep.subr.bf16.mxu0 0
  %1866 = vmatpush1.bf16.msra.mxu0 0
  %1867 = vmatprep.subr.bf16.mxu0 0
  %1868 = vmatpush1.bf16.msra.mxu0 0
  %1869 = vmatprep.subr.bf16.mxu0 0
  %1870 = vmatpush1.bf16.msra.mxu0 0
  %1871 = vmatprep.subr.bf16.mxu0 0
  %1872 = vmatpush1.bf16.msra.mxu0 0
  %1873 = vmatprep.subr.bf16.mxu0 0
  %1874 = vmatpush1.bf16.msra.mxu0 0
  %1875 = vmatprep.subr.bf16.mxu0 0
  %1876 = vmatpush1.bf16.msra.mxu0 0
  %1877 = vmatprep.subr.bf16.mxu0 0
  %1878 = vmatpush1.bf16.msra.mxu0 0
  %1879 = vmatprep.subr.bf16.mxu0 0
  %1880 = vmatpush1.bf16.msra.mxu0 0
  %1881 = vmatprep.subr.bf16.mxu0 0
  %1882 = vmatpush1.bf16.msra.mxu0 0
  %1883 = vmatprep.subr.bf16.mxu0 0
  %1884 = vmatpush1.bf16.msra.mxu0 0
  %1885 = vmatprep.subr.bf16.mxu0 0
  %1886 = vmatpush1.bf16.msra.mxu0 0
  %1887 = vmatprep.mubr.bf16.mxu0 0
  %1888 = vmatmul.mubr.bf16.gmra.mrb[0].mxu0 %v1844
  %v1889 = vpop.f32.mrb[0].mxu0
  %v1890 = vadd.f32 0.0, %v1889
  %v1891 = vpop.f32.mrb[0].mxu0
  %v1892 = vpop.f32.mrb[0].mxu0
  %v1893 = vadd.f32 0.0, %v1892
  %v1894 = vpop.f32.mrb[0].mxu0
  %1895 = vmatprep.mubr.bf16.mxu0 0
  %1896 = vmatmul.mubr.bf16.gmra.mrb[0].mxu0 %v1847
  %v1897 = vpop.f32.mrb[0].mxu0
  %v1898 = vadd.f32 0.0, %v1897
  %v1899 = vpop.f32.mrb[0].mxu0
  %v1900 = vpop.f32.mrb[0].mxu0
  %v1901 = vadd.f32 0.0, %v1900
  %v1902 = vpop.f32.mrb[0].mxu0
  %1903 = vmatprep.mubr.bf16.mxu0 0
  %1904 = vmatmul.mubr.bf16.gmra.mrb[0].mxu0 %v1850
  %v1905 = vpop.f32.mrb[0].mxu0
  %v1906 = vadd.f32 0.0, %v1905
  %v1907 = vpop.f32.mrb[0].mxu0
  %v1908 = vpop.f32.mrb[0].mxu0
  %v1909 = vadd.f32 0.0, %v1908
  %v1910 = vpop.f32.mrb[0].mxu0
  %1911 = vmatprep.mubr.bf16.mxu0 0
  %1912 = vmatmul.mubr.bf16.gmra.mrb[0].mxu0 %v1853
  %v1913 = vpop.f32.mrb[0].mxu0
  %v1914 = vadd.f32 0.0, %v1913
  %v1915 = vpop.f32.mrb[0].mxu0
  %v1916 = vpop.f32.mrb[0].mxu0
  %v1917 = vadd.f32 0.0, %v1916
  %v1918 = vpop.f32.mrb[0].mxu0
  %1919 = vdwg.mxu0
  %v1920 = vadd.f32 %v1890, %v837
  %v1921 = vadd.f32 %v1893, %v840
  %v1922 = vadd.f32 %v1898, %v845
  %v1923 = vadd.f32 %v1901, %v848
  %v1924 = vadd.f32 %v1906, %v853
  %v1925 = vadd.f32 %v1909, %v856
  %v1926 = vadd.f32 %v1914, %v861
  %v1927 = vadd.f32 %v1917, %v864
  %v1929 = vsel %vm420, %v1920, 0
  %v1932 = vsel %vm420, %v1921, 0
  %v1935 = vsel %vm420, %v1922, 0
  %v1938 = vsel %vm420, %v1923, 0
  %v1941 = vsel %vm420, %v1924, 0
  %v1944 = vsel %vm420, %v1925, 0
  %v1947 = vsel %vm420, %v1926, 0
  %v1950 = vsel %vm420, %v1927, 0
  %1952 = vmatprep.subr.mxu0 0.0
  %1953 = vmatpush1.xpose.msra.mxu0 %v1929
  %1954 = vmatprep.subr.mxu0 0.0
  %1955 = vmatpush1.xpose.msra.mxu0 %v1932
  %1956 = vmatprep.subr.mxu0 0.0
  %1957 = vmatpush1.xpose.msra.mxu0 %v1935
  %1958 = vmatprep.subr.mxu0 0.0
  %1959 = vmatpush1.xpose.msra.mxu0 %v1938
  %1960 = vmatprep.subr.mxu0 0.0
  %1961 = vmatpush1.xpose.msra.mxu0 %v1941
  %1962 = vmatprep.subr.mxu0 0.0
  %1963 = vmatpush1.xpose.msra.mxu0 %v1944
  %1964 = vmatprep.subr.mxu0 0.0
  %1965 = vmatpush1.xpose.msra.mxu0 %v1947
  %1966 = vmatprep.subr.mxu0 0.0
  %1967 = vmatpush1.xpose.msra.mxu0 %v1950
  %1968 = vmatprep.subr.mxu0 0.0
  %1969 = vmatpush1.xpose.msra.mxu0 0.0
  %1970 = vmatprep.subr.mxu0 0.0
  %1971 = vmatpush1.xpose.msra.mxu0 0.0
  %1972 = vmatprep.subr.mxu0 0.0
  %1973 = vmatpush1.xpose.msra.mxu0 0.0
  %1974 = vmatprep.subr.mxu0 0.0
  %1975 = vmatpush1.xpose.msra.mxu0 0.0
  %1976 = vmatprep.subr.mxu0 0.0
  %1977 = vmatpush1.xpose.msra.mxu0 0.0
  %1978 = vmatprep.subr.mxu0 0.0
  %1979 = vmatpush1.xpose.msra.mxu0 0.0
  %1980 = vmatprep.subr.mxu0 0.0
  %1981 = vmatpush1.xpose.msra.mxu0 0.0
  %1982 = vmatprep.subr.mxu0 0.0
  %1983 = vmatpush1.xpose.msra.mxu0 0.0
  %1984 = vmatprep.subr.mxu0 0.0
  %1985 = vmatpush1.xpose.msra.mxu0 0.0
  %1986 = vmatprep.subr.mxu0 0.0
  %1987 = vmatpush1.xpose.msra.mxu0 0.0
  %1988 = vmatprep.subr.mxu0 0.0
  %1989 = vmatpush1.xpose.msra.mxu0 0.0
  %1990 = vmatprep.subr.mxu0 0.0
  %1991 = vmatpush1.xpose.msra.mxu0 0.0
  %1992 = vmatprep.subr.mxu0 0.0
  %1993 = vmatpush1.xpose.msra.mxu0 0.0
  %1994 = vmatprep.subr.mxu0 0.0
  %1995 = vmatpush1.xpose.msra.mxu0 0.0
  %1996 = vmatprep.subr.mxu0 0.0
  %1997 = vmatpush1.xpose.msra.mxu0 0.0
  %1998 = vmatprep.subr.mxu0 0.0
  %1999 = vmatpush1.xpose.msra.mxu0 0.0
  %2000 = vmatprep.subr.mxu0 0.0
  %2001 = vmatpush1.xpose.msra.mxu0 0.0
  %2002 = vmatprep.subr.mxu0 0.0
  %2003 = vmatpush1.xpose.msra.mxu0 0.0
  %2004 = vmatprep.subr.mxu0 0.0
  %2005 = vmatpush1.xpose.msra.mxu0 0.0
  %2006 = vmatprep.subr.mxu0 0.0
  %2007 = vmatpush1.xpose.msra.mxu0 0.0
  %2008 = vmatprep.subr.mxu0 0.0
  %2009 = vmatpush1.xpose.msra.mxu0 0.0
  %2010 = vmatprep.subr.mxu0 0.0
  %2011 = vmatpush1.xpose.msra.mxu0 0.0
  %2012 = vmatprep.subr.mxu0 0.0
  %2013 = vmatpush1.xpose.msra.mxu0 0.0
  %2014 = vmatprep.subr.mxu0 0.0
  %2015 = vmatpush1.xpose.msra.mxu0 0.0
  %2016 = vmatprep.mubr.f32.mxu0 0.0
  %2017 = vmatmul.mubr.f32.gmra.mrb[0].mxu0 %v1102
  %v2018 = vpop.f32.mrb[0].mxu0
  %v2019 = vadd.f32 0.0, %v2018
  %v2020 = vpop.f32.mrb[0].mxu0
  %2021 = vdwg.mxu0
  %v2022 = vmul.f32 %v2019, 0.17677669
  %v2023 = vpack.c.bf16 %v689, %v686
  %v2025 = vsel %vm420, %v2023, 0
  %2027 = vmatprep.subr.bf16.mxu0 0
  %2028 = vmatpush1.bf16.msra.mxu0 %v786
  %2029 = vmatprep.subr.bf16.mxu0 0
  %2030 = vmatpush1.bf16.msra.mxu0 %v787
  %2031 = vmatprep.subr.bf16.mxu0 0
  %2032 = vmatpush1.bf16.msra.mxu0 0
  %2033 = vmatprep.subr.bf16.mxu0 0
  %2034 = vmatpush1.bf16.msra.mxu0 0
  %2035 = vmatprep.subr.bf16.mxu0 0
  %2036 = vmatpush1.bf16.msra.mxu0 0
  %2037 = vmatprep.subr.bf16.mxu0 0
  %2038 = vmatpush1.bf16.msra.mxu0 0
  %2039 = vmatprep.subr.bf16.mxu0 0
  %2040 = vmatpush1.bf16.msra.mxu0 0
  %2041 = vmatprep.subr.bf16.mxu0 0
  %2042 = vmatpush1.bf16.msra.mxu0 0
  %2043 = vmatprep.subr.bf16.mxu0 0
  %2044 = vmatpush1.bf16.msra.mxu0 0
  %2045 = vmatprep.subr.bf16.mxu0 0
  %2046 = vmatpush1.bf16.msra.mxu0 0
  %2047 = vmatprep.subr.bf16.mxu0 0
  %2048 = vmatpush1.bf16.msra.mxu0 0
  %2049 = vmatprep.subr.bf16.mxu0 0
  %2050 = vmatpush1.bf16.msra.mxu0 0
  %2051 = vmatprep.subr.bf16.mxu0 0
  %2052 = vmatpush1.bf16.msra.mxu0 0
  %2053 = vmatprep.subr.bf16.mxu0 0
  %2054 = vmatpush1.bf16.msra.mxu0 0
  %2055 = vmatprep.subr.bf16.mxu0 0
  %2056 = vmatpush1.bf16.msra.mxu0 0
  %2057 = vmatprep.subr.bf16.mxu0 0
  %2058 = vmatpush1.bf16.msra.mxu0 0
  %2059 = vmatprep.mubr.bf16.mxu0 0
  %2060 = vmatmul.mubr.bf16.gmra.mrb[0].mxu0 %v2025
  %v2061 = vpop.f32.mrb[0].mxu0
  %v2062 = vadd.f32 0.0, %v2061
  %v2063 = vpop.f32.mrb[0].mxu0
  %v2064 = vpop.f32.mrb[0].mxu0
  %v2065 = vadd.f32 0.0, %v2064
  %v2066 = vpop.f32.mrb[0].mxu0
  %2067 = vdwg.mxu0
  %v2068 = vadd.f32 %v2062, %v906
  %v2069 = vadd.f32 %v2065, %v909
  %v2071 = vsel %vm420, %v2068, 0
  %v2074 = vsel %vm420, %v2069, 0
  %2076 = vmatprep.subr.mxu0 0.0
  %2077 = vmatpush1.xpose.msra.mxu0 %v2071
  %2078 = vmatprep.subr.mxu0 0.0
  %2079 = vmatpush1.xpose.msra.mxu0 %v2074
  %2080 = vmatprep.subr.mxu0 0.0
  %2081 = vmatpush1.xpose.msra.mxu0 0.0
  %2082 = vmatprep.subr.mxu0 0.0
  %2083 = vmatpush1.xpose.msra.mxu0 0.0
  %2084 = vmatprep.subr.mxu0 0.0
  %2085 = vmatpush1.xpose.msra.mxu0 0.0
  %2086 = vmatprep.subr.mxu0 0.0
  %2087 = vmatpush1.xpose.msra.mxu0 0.0
  %2088 = vmatprep.subr.mxu0 0.0
  %2089 = vmatpush1.xpose.msra.mxu0 0.0
  %2090 = vmatprep.subr.mxu0 0.0
  %2091 = vmatpush1.xpose.msra.mxu0 0.0
  %2092 = vmatprep.subr.mxu0 0.0
  %2093 = vmatpush1.xpose.msra.mxu0 0.0
  %2094 = vmatprep.subr.mxu0 0.0
  %2095 = vmatpush1.xpose.msra.mxu0 0.0
  %2096 = vmatprep.subr.mxu0 0.0
  %2097 = vmatpush1.xpose.msra.mxu0 0.0
  %2098 = vmatprep.subr.mxu0 0.0
  %2099 = vmatpush1.xpose.msra.mxu0 0.0
  %2100 = vmatprep.subr.mxu0 0.0
  %2101 = vmatpush1.xpose.msra.mxu0 0.0
  %2102 = vmatprep.subr.mxu0 0.0
  %2103 = vmatpush1.xpose.msra.mxu0 0.0
  %2104 = vmatprep.subr.mxu0 0.0
  %2105 = vmatpush1.xpose.msra.mxu0 0.0
  %2106 = vmatprep.subr.mxu0 0.0
  %2107 = vmatpush1.xpose.msra.mxu0 0.0
  %2108 = vmatprep.subr.mxu0 0.0
  %2109 = vmatpush1.xpose.msra.mxu0 0.0
  %2110 = vmatprep.subr.mxu0 0.0
  %2111 = vmatpush1.xpose.msra.mxu0 0.0
  %2112 = vmatprep.subr.mxu0 0.0
  %2113 = vmatpush1.xpose.msra.mxu0 0.0
  %2114 = vmatprep.subr.mxu0 0.0
  %2115 = vmatpush1.xpose.msra.mxu0 0.0
  %2116 = vmatprep.subr.mxu0 0.0
  %2117 = vmatpush1.xpose.msra.mxu0 0.0
  %2118 = vmatprep.subr.mxu0 0.0
  %2119 = vmatpush1.xpose.msra.mxu0 0.0
  %2120 = vmatprep.subr.mxu0 0.0
  %2121 = vmatpush1.xpose.msra.mxu0 0.0
  %2122 = vmatprep.subr.mxu0 0.0
  %2123 = vmatpush1.xpose.msra.mxu0 0.0
  %2124 = vmatprep.subr.mxu0 0.0
  %2125 = vmatpush1.xpose.msra.mxu0 0.0
  %2126 = vmatprep.subr.mxu0 0.0
  %2127 = vmatpush1.xpose.msra.mxu0 0.0
  %2128 = vmatprep.subr.mxu0 0.0
  %2129 = vmatpush1.xpose.msra.mxu0 0.0
  %2130 = vmatprep.subr.mxu0 0.0
  %2131 = vmatpush1.xpose.msra.mxu0 0.0
  %2132 = vmatprep.subr.mxu0 0.0
  %2133 = vmatpush1.xpose.msra.mxu0 0.0
  %2134 = vmatprep.subr.mxu0 0.0
  %2135 = vmatpush1.xpose.msra.mxu0 0.0
  %2136 = vmatprep.subr.mxu0 0.0
  %2137 = vmatpush1.xpose.msra.mxu0 0.0
  %2138 = vmatprep.subr.mxu0 0.0
  %2139 = vmatpush1.xpose.msra.mxu0 0.0
  %2140 = vmatprep.mubr.f32.mxu0 0.0
  %2141 = vmatmul.mubr.f32.gmra.mrb[0].mxu0 %v1102
  %v2142 = vpop.f32.mrb[0].mxu0
  %v2143 = vadd.f32 0.0, %v2142
  %v2144 = vpop.f32.mrb[0].mxu0
  %2145 = vdwg.mxu0
  %v2146 = vmul.f32 %v2143, 0.17677669
  %v2147 = vpack.c.bf16 %v742, %v742
  %v2149 = vsel %vm420, %v2147, 0
  %2151 = vmatprep.subr.bf16.mxu0 0
  %2152 = vmatpush1.bf16.msra.mxu0 %v786
  %2153 = vmatprep.subr.bf16.mxu0 0
  %2154 = vmatpush1.bf16.msra.mxu0 %v787
  %2155 = vmatprep.subr.bf16.mxu0 0
  %2156 = vmatpush1.bf16.msra.mxu0 0
  %2157 = vmatprep.subr.bf16.mxu0 0
  %2158 = vmatpush1.bf16.msra.mxu0 0
  %2159 = vmatprep.subr.bf16.mxu0 0
  %2160 = vmatpush1.bf16.msra.mxu0 0
  %2161 = vmatprep.subr.bf16.mxu0 0
  %2162 = vmatpush1.bf16.msra.mxu0 0
  %2163 = vmatprep.subr.bf16.mxu0 0
  %2164 = vmatpush1.bf16.msra.mxu0 0
  %2165 = vmatprep.subr.bf16.mxu0 0
  %2166 = vmatpush1.bf16.msra.mxu0 0
  %2167 = vmatprep.subr.bf16.mxu0 0
  %2168 = vmatpush1.bf16.msra.mxu0 0
  %2169 = vmatprep.subr.bf16.mxu0 0
  %2170 = vmatpush1.bf16.msra.mxu0 0
  %2171 = vmatprep.subr.bf16.mxu0 0
  %2172 = vmatpush1.bf16.msra.mxu0 0
  %2173 = vmatprep.subr.bf16.mxu0 0
  %2174 = vmatpush1.bf16.msra.mxu0 0
  %2175 = vmatprep.subr.bf16.mxu0 0
  %2176 = vmatpush1.bf16.msra.mxu0 0
  %2177 = vmatprep.subr.bf16.mxu0 0
  %2178 = vmatpush1.bf16.msra.mxu0 0
  %2179 = vmatprep.subr.bf16.mxu0 0
  %2180 = vmatpush1.bf16.msra.mxu0 0
  %2181 = vmatprep.subr.bf16.mxu0 0
  %2182 = vmatpush1.bf16.msra.mxu0 0
  %2183 = vmatprep.mubr.bf16.mxu0 0
  %2184 = vmatmul.mubr.bf16.gmra.mrb[0].mxu0 %v2149
  %v2185 = vpop.f32.mrb[0].mxu0
  %v2186 = vadd.f32 0.0, %v2185
  %v2187 = vpop.f32.mrb[0].mxu0
  %v2188 = vpop.f32.mrb[0].mxu0
  %v2189 = vpop.f32.mrb[0].mxu0
  %2190 = vdwg.mxu0
  %v2191 = vadd.f32 %v2186, %v951
  %v2193 = vsel %vm420, %v2191, 0
  %2195 = vmatprep.subr.mxu0 0.0
  %2196 = vmatpush1.xpose.msra.mxu0 %v2193
  %2197 = vmatprep.subr.mxu0 0.0
  %2198 = vmatpush1.xpose.msra.mxu0 0.0
  %2199 = vmatprep.subr.mxu0 0.0
  %2200 = vmatpush1.xpose.msra.mxu0 0.0
  %2201 = vmatprep.subr.mxu0 0.0
  %2202 = vmatpush1.xpose.msra.mxu0 0.0
  %2203 = vmatprep.subr.mxu0 0.0
  %2204 = vmatpush1.xpose.msra.mxu0 0.0
  %2205 = vmatprep.subr.mxu0 0.0
  %2206 = vmatpush1.xpose.msra.mxu0 0.0
  %2207 = vmatprep.subr.mxu0 0.0
  %2208 = vmatpush1.xpose.msra.mxu0 0.0
  %2209 = vmatprep.subr.mxu0 0.0
  %2210 = vmatpush1.xpose.msra.mxu0 0.0
  %2211 = vmatprep.subr.mxu0 0.0
  %2212 = vmatpush1.xpose.msra.mxu0 0.0
  %2213 = vmatprep.subr.mxu0 0.0
  %2214 = vmatpush1.xpose.msra.mxu0 0.0
  %2215 = vmatprep.subr.mxu0 0.0
  %2216 = vmatpush1.xpose.msra.mxu0 0.0
  %2217 = vmatprep.subr.mxu0 0.0
  %2218 = vmatpush1.xpose.msra.mxu0 0.0
  %2219 = vmatprep.subr.mxu0 0.0
  %2220 = vmatpush1.xpose.msra.mxu0 0.0
  %2221 = vmatprep.subr.mxu0 0.0
  %2222 = vmatpush1.xpose.msra.mxu0 0.0
  %2223 = vmatprep.subr.mxu0 0.0
  %2224 = vmatpush1.xpose.msra.mxu0 0.0
  %2225 = vmatprep.subr.mxu0 0.0
  %2226 = vmatpush1.xpose.msra.mxu0 0.0
  %2227 = vmatprep.subr.mxu0 0.0
  %2228 = vmatpush1.xpose.msra.mxu0 0.0
  %2229 = vmatprep.subr.mxu0 0.0
  %2230 = vmatpush1.xpose.msra.mxu0 0.0
  %2231 = vmatprep.subr.mxu0 0.0
  %2232 = vmatpush1.xpose.msra.mxu0 0.0
  %2233 = vmatprep.subr.mxu0 0.0
  %2234 = vmatpush1.xpose.msra.mxu0 0.0
  %2235 = vmatprep.subr.mxu0 0.0
  %2236 = vmatpush1.xpose.msra.mxu0 0.0
  %2237 = vmatprep.subr.mxu0 0.0
  %2238 = vmatpush1.xpose.msra.mxu0 0.0
  %2239 = vmatprep.subr.mxu0 0.0
  %2240 = vmatpush1.xpose.msra.mxu0 0.0
  %2241 = vmatprep.subr.mxu0 0.0
  %2242 = vmatpush1.xpose.msra.mxu0 0.0
  %2243 = vmatprep.subr.mxu0 0.0
  %2244 = vmatpush1.xpose.msra.mxu0 0.0
  %2245 = vmatprep.subr.mxu0 0.0
  %2246 = vmatpush1.xpose.msra.mxu0 0.0
  %2247 = vmatprep.subr.mxu0 0.0
  %2248 = vmatpush1.xpose.msra.mxu0 0.0
  %2249 = vmatprep.subr.mxu0 0.0
  %2250 = vmatpush1.xpose.msra.mxu0 0.0
  %2251 = vmatprep.subr.mxu0 0.0
  %2252 = vmatpush1.xpose.msra.mxu0 0.0
  %2253 = vmatprep.subr.mxu0 0.0
  %2254 = vmatpush1.xpose.msra.mxu0 0.0
  %2255 = vmatprep.subr.mxu0 0.0
  %2256 = vmatpush1.xpose.msra.mxu0 0.0
  %2257 = vmatprep.subr.mxu0 0.0
  %2258 = vmatpush1.xpose.msra.mxu0 0.0
  %2259 = vmatprep.mubr.f32.mxu0 0.0
  %2260 = vmatmul.mubr.f32.gmra.mrb[0].mxu0 %v1102
  %v2261 = vpop.f32.mrb[0].mxu0
  %v2262 = vadd.f32 0.0, %v2261
  %v2263 = vpop.f32.mrb[0].mxu0
  %2264 = vdwg.mxu0
  %v2265 = vmul.f32 %v2262, 0.17677669
  %v2266 = vsel %vm1442, %v2022, -inf
  %2267 = vmax.xlane.f32.xlu0 %v2266
  %v2268 = vpop.xlane.xlu0 %2267
  %v2269 = vsel %vm112, %v2146, -inf
  %2270 = vmax.xlane.f32.xlu0 %v2269
  %v2271 = vpop.xlane.xlu0 %2270
  %v2272 = vmax.f32 %v2268, %v2271
  %v2273 = vsel %vm1450, %v2265, -inf
  %2274 = vmax.xlane.f32.xlu0 %v2273
  %v2275 = vpop.xlane.xlu0 %2274
  %v2276 = vmax.f32 %v2272, %v2275
  %v2277 = vsub.f32 %v2022, %v2276
  %v2278 = vmul.f32 %v2277, 1.442695
  %v2279 = vpow.pop %v2278
  %v2280 = vsel %vm1442, %v2279, 0.0
  %2281 = vadd.xlane.f32.xlu0 %v2280
  %v2282 = vpop.xlane.xlu0 %2281
  %v2283 = vpack.c.bf16 %v2279, %v2279
  %v2284 = vpack.c.bf16 %v1893, %v1890
  %v2285 = vpack.c.bf16 %v1901, %v1898
  %v2286 = vpack.c.bf16 %v1909, %v1906
  %v2287 = vpack.c.bf16 %v1917, %v1914
  %v2288 = vsub.f32 %v2146, %v2276
  %v2289 = vmul.f32 %v2288, 1.442695
  %v2290 = vpow.pop %v2289
  %v2291 = vsel %vm112, %v2290, 0.0
  %2292 = vadd.xlane.f32.xlu0 %v2291
  %v2293 = vpop.xlane.xlu0 %2292
  %v2294 = vpack.c.bf16 %v2290, %v2290
  %v2295 = vpack.c.bf16 %v2065, %v2062
  %2297 = vrot.lane.b32.xlu0 %v2295, 96
  %v2298 = vpop.permute.xlu0 %2297
  %v2301 = vsel %vm112, %v2294, 0
  %2303 = vmatprep.subr.bf16.mxu0 0
  %2304 = vmatpush1.bf16.msra.mxu0 %v2298
  %2305 = vmatprep.subr.bf16.mxu0 0
  %2306 = vmatpush1.bf16.msra.mxu0 0
  %2307 = vmatprep.subr.bf16.mxu0 0
  %2308 = vmatpush1.bf16.msra.mxu0 0
  %2309 = vmatprep.subr.bf16.mxu0 0
  %2310 = vmatpush1.bf16.msra.mxu0 0
  %2311 = vmatprep.subr.bf16.mxu0 0
  %2312 = vmatpush1.bf16.msra.mxu0 0
  %2313 = vmatprep.subr.bf16.mxu0 0
  %2314 = vmatpush1.bf16.msra.mxu0 0
  %2315 = vmatprep.subr.bf16.mxu0 0
  %2316 = vmatpush1.bf16.msra.mxu0 0
  %2317 = vmatprep.subr.bf16.mxu0 0
  %2318 = vmatpush1.bf16.msra.mxu0 0
  %2319 = vmatprep.subr.bf16.mxu0 0
  %2320 = vmatpush1.bf16.msra.mxu0 0
  %2321 = vmatprep.subr.bf16.mxu0 0
  %2322 = vmatpush1.bf16.msra.mxu0 0
  %2323 = vmatprep.subr.bf16.mxu0 0
  %2324 = vmatpush1.bf16.msra.mxu0 0
  %2325 = vmatprep.subr.bf16.mxu0 0
  %2326 = vmatpush1.bf16.msra.mxu0 0
  %2327 = vmatprep.subr.bf16.mxu0 0
  %2328 = vmatpush1.bf16.msra.mxu0 0
  %2329 = vmatprep.subr.bf16.mxu0 0
  %2330 = vmatpush1.bf16.msra.mxu0 0
  %2331 = vmatprep.subr.bf16.mxu0 0
  %2332 = vmatpush1.bf16.msra.mxu0 0
  %2333 = vmatprep.subr.bf16.mxu0 0
  %2334 = vmatpush1.bf16.msra.mxu0 0
  %2335 = vmatprep.mubr.bf16.mxu0 0
  %2336 = vmatmul.mubr.bf16.gmra.mrb[0].mxu0 %v2301
  %v2337 = vpop.f32.mrb[0].mxu0
  %v2338 = vadd.f32 0.0, %v2337
  %v2339 = vpop.f32.mrb[0].mxu0
  %v2340 = vpop.f32.mrb[0].mxu0
  %v2341 = vpop.f32.mrb[0].mxu0
  %2342 = vdwg.mxu0
  %v2343 = vadd.f32 %v2282, %v2293
  %2348 = vrot.lane.b32.xlu0 %v2284, 96
  %v2349 = vpop.permute.xlu0 %2348
  %2350 = vrot.lane.b32.xlu0 %v2285, 96
  %v2351 = vpop.permute.xlu0 %2350
  %2352 = vrot.lane.b32.xlu0 %v2286, 96
  %v2353 = vpop.permute.xlu0 %2352
  %2354 = vrot.lane.b32.xlu0 %v2287, 96
  %v2355 = vpop.permute.xlu0 %2354
  %v2361 = vsel %vm1442, %v2283, 0
  %2363 = vmatprep.subr.bf16.mxu0 0
  %2364 = vmatpush1.bf16.msra.mxu0 %v2349
  %2365 = vmatprep.subr.bf16.mxu0 0
  %2366 = vmatpush1.bf16.msra.mxu0 %v2351
  %2367 = vmatprep.subr.bf16.mxu0 0
  %2368 = vmatpush1.bf16.msra.mxu0 %v2353
  %2369 = vmatprep.subr.bf16.mxu0 0
  %2370 = vmatpush1.bf16.msra.mxu0 %v2355
  %2371 = vmatprep.subr.bf16.mxu0 0
  %2372 = vmatpush1.bf16.msra.mxu0 0
  %2373 = vmatprep.subr.bf16.mxu0 0
  %2374 = vmatpush1.bf16.msra.mxu0 0
  %2375 = vmatprep.subr.bf16.mxu0 0
  %2376 = vmatpush1.bf16.msra.mxu0 0
  %2377 = vmatprep.subr.bf16.mxu0 0
  %2378 = vmatpush1.bf16.msra.mxu0 0
  %2379 = vmatprep.subr.bf16.mxu0 0
  %2380 = vmatpush1.bf16.msra.mxu0 0
  %2381 = vmatprep.subr.bf16.mxu0 0
  %2382 = vmatpush1.bf16.msra.mxu0 0
  %2383 = vmatprep.subr.bf16.mxu0 0
  %2384 = vmatpush1.bf16.msra.mxu0 0
  %2385 = vmatprep.subr.bf16.mxu0 0
  %2386 = vmatpush1.bf16.msra.mxu0 0
  %2387 = vmatprep.subr.bf16.mxu0 0
  %2388 = vmatpush1.bf16.msra.mxu0 0
  %2389 = vmatprep.subr.bf16.mxu0 0
  %2390 = vmatpush1.bf16.msra.mxu0 0
  %2391 = vmatprep.subr.bf16.mxu0 0
  %2392 = vmatpush1.bf16.msra.mxu0 0
  %2393 = vmatprep.subr.bf16.mxu0 0
  %2394 = vmatpush1.bf16.msra.mxu0 0
  %2395 = vmatprep.mubr.bf16.mxu0 0
  %2396 = vmatmul.mubr.bf16.gmra.mrb[0].mxu0 %v2361
  %v2397 = vpop.f32.mrb[0].mxu0
  %v2398 = vadd.f32 %v2338, %v2397
  %v2399 = vpop.f32.mrb[0].mxu0
  %v2400 = vpop.f32.mrb[0].mxu0
  %v2401 = vpop.f32.mrb[0].mxu0
  %2402 = vdwg.mxu0
  %v2403 = vsub.f32 %v2265, %v2276
  %v2404 = vmul.f32 %v2403, 1.442695
  %v2405 = vpow.pop %v2404
  %v2406 = vsel %vm1450, %v2405, 0.0
  %2407 = vadd.xlane.f32.xlu0 %v2406
  %v2408 = vpop.xlane.xlu0 %2407
  %v2409 = vpack.c.bf16 %v2405, %v2405
  %v2410 = vpack.c.bf16 %v2186, %v2186
  %2412 = vrot.lane.b32.xlu0 %v2410, 96
  %v2413 = vpop.permute.xlu0 %2412
  %v2415 = vsel %vm1450, %v2409, 0
  %v2418 = vsel %vm1595, %v2413, 0
  %2420 = vmatprep.subr.bf16.mxu0 0
  %2421 = vmatpush1.bf16.msra.mxu0 %v2418
  %2422 = vmatprep.subr.bf16.mxu0 0
  %2423 = vmatpush1.bf16.msra.mxu0 0
  %2424 = vmatprep.subr.bf16.mxu0 0
  %2425 = vmatpush1.bf16.msra.mxu0 0
  %2426 = vmatprep.subr.bf16.mxu0 0
  %2427 = vmatpush1.bf16.msra.mxu0 0
  %2428 = vmatprep.subr.bf16.mxu0 0
  %2429 = vmatpush1.bf16.msra.mxu0 0
  %2430 = vmatprep.subr.bf16.mxu0 0
  %2431 = vmatpush1.bf16.msra.mxu0 0
  %2432 = vmatprep.subr.bf16.mxu0 0
  %2433 = vmatpush1.bf16.msra.mxu0 0
  %2434 = vmatprep.subr.bf16.mxu0 0
  %2435 = vmatpush1.bf16.msra.mxu0 0
  %2436 = vmatprep.subr.bf16.mxu0 0
  %2437 = vmatpush1.bf16.msra.mxu0 0
  %2438 = vmatprep.subr.bf16.mxu0 0
  %2439 = vmatpush1.bf16.msra.mxu0 0
  %2440 = vmatprep.subr.bf16.mxu0 0
  %2441 = vmatpush1.bf16.msra.mxu0 0
  %2442 = vmatprep.subr.bf16.mxu0 0
  %2443 = vmatpush1.bf16.msra.mxu0 0
  %2444 = vmatprep.subr.bf16.mxu0 0
  %2445 = vmatpush1.bf16.msra.mxu0 0
  %2446 = vmatprep.subr.bf16.mxu0 0
  %2447 = vmatpush1.bf16.msra.mxu0 0
  %2448 = vmatprep.subr.bf16.mxu0 0
  %2449 = vmatpush1.bf16.msra.mxu0 0
  %2450 = vmatprep.subr.bf16.mxu0 0
  %2451 = vmatpush1.bf16.msra.mxu0 0
  %2452 = vmatprep.mubr.bf16.mxu0 0
  %2453 = vmatmul.mubr.bf16.gmra.mrb[0].mxu0 %v2415
  %v2454 = vpop.f32.mrb[0].mxu0
  %v2455 = vadd.f32 0.0, %v2454
  %v2456 = vpop.f32.mrb[0].mxu0
  %v2457 = vpop.f32.mrb[0].mxu0
  %v2458 = vpop.f32.mrb[0].mxu0
  %2459 = vdwg.mxu0
  %v2460 = vadd.f32 %v2343, %v2408
  %v2461 = vadd.f32 %v2398, %v2455
  %v2462 = vrcp.pop %v2460
  %v2463 = vmul.f32 %v2461, %v2462
  %v2464 = vpack.c.bf16 %v2463, %v2463
  %v2466 = vsel %vm420, %v2464, 0
  %2468 = vmatprep.subr.bf16.mxu0 0
  %2469 = vmatpush1.bf16.msra.mxu0 %v1652
  %2470 = vmatprep.subr.bf16.mxu0 0
  %2471 = vmatpush1.bf16.msra.mxu0 %v1653
  %2472 = vmatprep.subr.bf16.mxu0 0
  %2473 = vmatpush1.bf16.msra.mxu0 0
  %2474 = vmatprep.subr.bf16.mxu0 0
  %2475 = vmatpush1.bf16.msra.mxu0 0
  %2476 = vmatprep.subr.bf16.mxu0 0
  %2477 = vmatpush1.bf16.msra.mxu0 0
  %2478 = vmatprep.subr.bf16.mxu0 0
  %2479 = vmatpush1.bf16.msra.mxu0 0
  %2480 = vmatprep.subr.bf16.mxu0 0
  %2481 = vmatpush1.bf16.msra.mxu0 0
  %2482 = vmatprep.subr.bf16.mxu0 0
  %2483 = vmatpush1.bf16.msra.mxu0 0
  %2484 = vmatprep.subr.bf16.mxu0 0
  %2485 = vmatpush1.bf16.msra.mxu0 0
  %2486 = vmatprep.subr.bf16.mxu0 0
  %2487 = vmatpush1.bf16.msra.mxu0 0
  %2488 = vmatprep.subr.bf16.mxu0 0
  %2489 = vmatpush1.bf16.msra.mxu0 0
  %2490 = vmatprep.subr.bf16.mxu0 0
  %2491 = vmatpush1.bf16.msra.mxu0 0
  %2492 = vmatprep.subr.bf16.mxu0 0
  %2493 = vmatpush1.bf16.msra.mxu0 0
  %2494 = vmatprep.subr.bf16.mxu0 0
  %2495 = vmatpush1.bf16.msra.mxu0 0
  %2496 = vmatprep.subr.bf16.mxu0 0
  %2497 = vmatpush1.bf16.msra.mxu0 0
  %2498 = vmatprep.subr.bf16.mxu0 0
  %2499 = vmatpush1.bf16.msra.mxu0 0
  %2500 = vmatprep.mubr.bf16.mxu0 0
  %2501 = vmatmul.mubr.bf16.gmra.mrb[0].mxu0 %v2466
  %v2502 = vpop.f32.mrb[0].mxu0
  %v2503 = vadd.f32 0.0, %v2502
  %v2504 = vpop.f32.mrb[0].mxu0
  %v2505 = vpop.f32.mrb[0].mxu0
  %v2506 = vpop.f32.mrb[0].mxu0
  %2507 = vdwg.mxu0
  %v2508 = vadd.f32 %v747, %v2503
  %v2509 = vpack.c.bf16 %v2508, %v2508
  %v2511 = vsel %vm420, %v2509, 0
  %2513 = vmatprep.subr.bf16.mxu0 0
  %2514 = vmatpush1.bf16.msra.mxu0 %v1715
  %2515 = vmatprep.subr.bf16.mxu0 0
  %2516 = vmatpush1.bf16.msra.mxu0 %v1716
  %2517 = vmatprep.subr.bf16.mxu0 0
  %2518 = vmatpush1.bf16.msra.mxu0 0
  %2519 = vmatprep.subr.bf16.mxu0 0
  %2520 = vmatpush1.bf16.msra.mxu0 0
  %2521 = vmatprep.subr.bf16.mxu0 0
  %2522 = vmatpush1.bf16.msra.mxu0 0
  %2523 = vmatprep.subr.bf16.mxu0 0
  %2524 = vmatpush1.bf16.msra.mxu0 0
  %2525 = vmatprep.subr.bf16.mxu0 0
  %2526 = vmatpush1.bf16.msra.mxu0 0
  %2527 = vmatprep.subr.bf16.mxu0 0
  %2528 = vmatpush1.bf16.msra.mxu0 0
  %2529 = vmatprep.subr.bf16.mxu0 0
  %2530 = vmatpush1.bf16.msra.mxu0 0
  %2531 = vmatprep.subr.bf16.mxu0 0
  %2532 = vmatpush1.bf16.msra.mxu0 0
  %2533 = vmatprep.subr.bf16.mxu0 0
  %2534 = vmatpush1.bf16.msra.mxu0 0
  %2535 = vmatprep.subr.bf16.mxu0 0
  %2536 = vmatpush1.bf16.msra.mxu0 0
  %2537 = vmatprep.subr.bf16.mxu0 0
  %2538 = vmatpush1.bf16.msra.mxu0 0
  %2539 = vmatprep.subr.bf16.mxu0 0
  %2540 = vmatpush1.bf16.msra.mxu0 0
  %2541 = vmatprep.subr.bf16.mxu0 0
  %2542 = vmatpush1.bf16.msra.mxu0 0
  %2543 = vmatprep.subr.bf16.mxu0 0
  %2544 = vmatpush1.bf16.msra.mxu0 0
  %2545 = vmatprep.mubr.bf16.mxu0 0
  %2546 = vmatmul.mubr.bf16.gmra.mrb[0].mxu0 %v2511
  %v2547 = vpop.f32.mrb[0].mxu0
  %v2548 = vadd.f32 %v1705, %v2547
  %v2549 = vpop.f32.mrb[0].mxu0
  %v2550 = vpop.f32.mrb[0].mxu0
  %v2551 = vpop.f32.mrb[0].mxu0
  %2552 = vdwg.mxu0
  %v2553 = vmax.f32 %v2548, 0.0
  %v2554 = vpack.c.bf16 %v2553, %v2553
  %v2556 = vsel %vm1442, %v2554, 0
  %2558 = vmatprep.subr.bf16.mxu0 0
  %2559 = vmatpush1.bf16.msra.mxu0 %v1780
  %2560 = vmatprep.subr.bf16.mxu0 0
  %2561 = vmatpush1.bf16.msra.mxu0 %v1781
  %2562 = vmatprep.subr.bf16.mxu0 0
  %2563 = vmatpush1.bf16.msra.mxu0 %v1782
  %2564 = vmatprep.subr.bf16.mxu0 0
  %2565 = vmatpush1.bf16.msra.mxu0 %v1783
  %2566 = vmatprep.subr.bf16.mxu0 0
  %2567 = vmatpush1.bf16.msra.mxu0 0
  %2568 = vmatprep.subr.bf16.mxu0 0
  %2569 = vmatpush1.bf16.msra.mxu0 0
  %2570 = vmatprep.subr.bf16.mxu0 0
  %2571 = vmatpush1.bf16.msra.mxu0 0
  %2572 = vmatprep.subr.bf16.mxu0 0
  %2573 = vmatpush1.bf16.msra.mxu0 0
  %2574 = vmatprep.subr.bf16.mxu0 0
  %2575 = vmatpush1.bf16.msra.mxu0 0
  %2576 = vmatprep.subr.bf16.mxu0 0
  %2577 = vmatpush1.bf16.msra.mxu0 0
  %2578 = vmatprep.subr.bf16.mxu0 0
  %2579 = vmatpush1.bf16.msra.mxu0 0
  %2580 = vmatprep.subr.bf16.mxu0 0
  %2581 = vmatpush1.bf16.msra.mxu0 0
  %2582 = vmatprep.subr.bf16.mxu0 0
  %2583 = vmatpush1.bf16.msra.mxu0 0
  %2584 = vmatprep.subr.bf16.mxu0 0
  %2585 = vmatpush1.bf16.msra.mxu0 0
  %2586 = vmatprep.subr.bf16.mxu0 0
  %2587 = vmatpush1.bf16.msra.mxu0 0
  %2588 = vmatprep.subr.bf16.mxu0 0
  %2589 = vmatpush1.bf16.msra.mxu0 0
  %2590 = vmatprep.mubr.bf16.mxu0 0
  %2591 = vmatmul.mubr.bf16.gmra.mrb[0].mxu0 %v2556
  %v2592 = vpop.f32.mrb[0].mxu0
  %v2593 = vadd.f32 0.0, %v2592
  %v2594 = vpop.f32.mrb[0].mxu0
  %v2595 = vpop.f32.mrb[0].mxu0
  %v2596 = vpop.f32.mrb[0].mxu0
  %2597 = vdwg.mxu0
  %v2598 = vadd.f32 %v2508, %v2593
  %v2599 = vadd.f32 %v2598, %v1836
  %s2600 = scalar_lea.vmem %s16, 16
  %v2601 = vld [vmem:[%s2600] sm:$0xf]
  %v2602 = vld [vmem:[%s2600 + $0x4] sm:$0xf]
  %v2603 = vld [vmem:[%s2600 + $0x8] sm:$0xf]
  %v2604 = vld [vmem:[%s2600 + $0xc] sm:$0xf]
  %s2605 = scalar_lea.vmem %s17, 16
  %v2606 = vld [vmem:[%s2605] sm:$0xf]
  %v2607 = vld [vmem:[%s2605 + $0x4] sm:$0xf]
  %v2608 = vld [vmem:[%s2605 + $0x8] sm:$0xf]
  %v2609 = vld [vmem:[%s2605 + $0xc] sm:$0xf]
  %s2610 = scalar_lea.vmem %s18, 16
  %v2611 = vld [vmem:[%s2610] sm:$0xf]
  %v2612 = vld [vmem:[%s2610 + $0x4] sm:$0xf]
  %v2613 = vld [vmem:[%s2610 + $0x8] sm:$0xf]
  %v2614 = vld [vmem:[%s2610 + $0xc] sm:$0xf]
  %s2615 = scalar_lea.vmem %s19, 16
  %v2616 = vld [vmem:[%s2615] sm:$0xf]
  %v2617 = vld [vmem:[%s2615 + $0x4] sm:$0xf]
  %v2618 = vld [vmem:[%s2615 + $0x8] sm:$0xf]
  %v2619 = vld [vmem:[%s2615 + $0xc] sm:$0xf]
  %s2620 = scalar_lea.vmem %s20, 1
  %v2621 = vld [vmem:[%s2620] sm:$0x1]
  %s2622 = scalar_lea.vmem %s21, 32
  %v2623 = vld [vmem:[%s2622] sm:$0xf]
  %v2624 = vld [vmem:[%s2622 + $0x4] sm:$0xf]
  %v2625 = vld [vmem:[%s2622 + $0x8] sm:$0xf]
  %v2626 = vld [vmem:[%s2622 + $0xc] sm:$0xf]
  %v2627 = vld [vmem:[%s2622 + $0x10] sm:$0xf]
  %v2628 = vld [vmem:[%s2622 + $0x14] sm:$0xf]
  %v2629 = vld [vmem:[%s2622 + $0x18] sm:$0xf]
  %v2630 = vld [vmem:[%s2622 + $0x1c] sm:$0xf]
  %s2631 = scalar_lea.vmem %s22, 1
  %v2632 = vld [vmem:[%s2631] sm:$0x1]
  %v2637 = vunpack.c.l.b16 %v2606
  %v2638 = vunpack.c.l.b16 %v2607
  %v2639 = vunpack.c.l.b16 %v2608
  %v2640 = vunpack.c.l.b16 %v2609
  %v2641 = vpack.c.b16 %v2638, %v2637
  %v2642 = vpack.c.b16 %v2640, %v2639
  %2645 = vmatprep.subr.bf16.mxu0 0
  %2646 = vmatpush1.bf16.msra.mxu0 %v2641
  %2647 = vmatprep.subr.bf16.mxu0 0
  %2648 = vmatpush1.bf16.msra.mxu0 %v2642
  %2649 = vmatprep.subr.bf16.mxu0 0
  %2650 = vmatpush1.bf16.msra.mxu0 0
  %2651 = vmatprep.subr.bf16.mxu0 0
  %2652 = vmatpush1.bf16.msra.mxu0 0
  %2653 = vmatprep.subr.bf16.mxu0 0
  %2654 = vmatpush1.bf16.msra.mxu0 0
  %2655 = vmatprep.subr.bf16.mxu0 0
  %2656 = vmatpush1.bf16.msra.mxu0 0
  %2657 = vmatprep.subr.bf16.mxu0 0
  %2658 = vmatpush1.bf16.msra.mxu0 0
  %2659 = vmatprep.subr.bf16.mxu0 0
  %2660 = vmatpush1.bf16.msra.mxu0 0
  %2661 = vmatprep.subr.bf16.mxu0 0
  %2662 = vmatpush1.bf16.msra.mxu0 0
  %2663 = vmatprep.subr.bf16.mxu0 0
  %2664 = vmatpush1.bf16.msra.mxu0 0
  %2665 = vmatprep.subr.bf16.mxu0 0
  %2666 = vmatpush1.bf16.msra.mxu0 0
  %2667 = vmatprep.subr.bf16.mxu0 0
  %2668 = vmatpush1.bf16.msra.mxu0 0
  %2669 = vmatprep.subr.bf16.mxu0 0
  %2670 = vmatpush1.bf16.msra.mxu0 0
  %2671 = vmatprep.subr.bf16.mxu0 0
  %2672 = vmatpush1.bf16.msra.mxu0 0
  %2673 = vmatprep.subr.bf16.mxu0 0
  %2674 = vmatpush1.bf16.msra.mxu0 0
  %2675 = vmatprep.subr.bf16.mxu0 0
  %2676 = vmatpush1.bf16.msra.mxu0 0
  %2677 = vmatprep.mubr.bf16.mxu0 0
  %2678 = vmatmul.mubr.bf16.gmra.mrb[0].mxu0 %v791
  %v2679 = vpop.f32.mrb[0].mxu0
  %v2680 = vadd.f32 0.0, %v2679
  %v2681 = vpop.f32.mrb[0].mxu0
  %v2682 = vpop.f32.mrb[0].mxu0
  %v2683 = vadd.f32 0.0, %v2682
  %v2684 = vpop.f32.mrb[0].mxu0
  %2685 = vmatprep.mubr.bf16.mxu0 0
  %2686 = vmatmul.mubr.bf16.gmra.mrb[0].mxu0 %v794
  %v2687 = vpop.f32.mrb[0].mxu0
  %v2688 = vadd.f32 0.0, %v2687
  %v2689 = vpop.f32.mrb[0].mxu0
  %v2690 = vpop.f32.mrb[0].mxu0
  %v2691 = vadd.f32 0.0, %v2690
  %v2692 = vpop.f32.mrb[0].mxu0
  %2693 = vmatprep.mubr.bf16.mxu0 0
  %2694 = vmatmul.mubr.bf16.gmra.mrb[0].mxu0 %v797
  %v2695 = vpop.f32.mrb[0].mxu0
  %v2696 = vadd.f32 0.0, %v2695
  %v2697 = vpop.f32.mrb[0].mxu0
  %v2698 = vpop.f32.mrb[0].mxu0
  %v2699 = vadd.f32 0.0, %v2698
  %v2700 = vpop.f32.mrb[0].mxu0
  %2701 = vmatprep.mubr.bf16.mxu0 0
  %2702 = vmatmul.mubr.bf16.gmra.mrb[0].mxu0 %v800
  %v2703 = vpop.f32.mrb[0].mxu0
  %v2704 = vadd.f32 0.0, %v2703
  %v2705 = vpop.f32.mrb[0].mxu0
  %v2706 = vpop.f32.mrb[0].mxu0
  %v2707 = vadd.f32 0.0, %v2706
  %v2708 = vpop.f32.mrb[0].mxu0
  %2709 = vdwg.mxu0
  %2710 = vmatprep.subr.bf16.mxu0 0
  %2711 = vmatpush1.bf16.msra.mxu0 %v2641
  %2712 = vmatprep.subr.bf16.mxu0 0
  %2713 = vmatpush1.bf16.msra.mxu0 %v2642
  %2714 = vmatprep.subr.bf16.mxu0 0
  %2715 = vmatpush1.bf16.msra.mxu0 0
  %2716 = vmatprep.subr.bf16.mxu0 0
  %2717 = vmatpush1.bf16.msra.mxu0 0
  %2718 = vmatprep.subr.bf16.mxu0 0
  %2719 = vmatpush1.bf16.msra.mxu0 0
  %2720 = vmatprep.subr.bf16.mxu0 0
  %2721 = vmatpush1.bf16.msra.mxu0 0
  %2722 = vmatprep.subr.bf16.mxu0 0
  %2723 = vmatpush1.bf16.msra.mxu0 0
  %2724 = vmatprep.subr.bf16.mxu0 0
  %2725 = vmatpush1.bf16.msra.mxu0 0
  %2726 = vmatprep.subr.bf16.mxu0 0
  %2727 = vmatpush1.bf16.msra.mxu0 0
  %2728 = vmatprep.subr.bf16.mxu0 0
  %2729 = vmatpush1.bf16.msra.mxu0 0
  %2730 = vmatprep.subr.bf16.mxu0 0
  %2731 = vmatpush1.bf16.msra.mxu0 0
  %2732 = vmatprep.subr.bf16.mxu0 0
  %2733 = vmatpush1.bf16.msra.mxu0 0
  %2734 = vmatprep.subr.bf16.mxu0 0
  %2735 = vmatpush1.bf16.msra.mxu0 0
  %2736 = vmatprep.subr.bf16.mxu0 0
  %2737 = vmatpush1.bf16.msra.mxu0 0
  %2738 = vmatprep.subr.bf16.mxu0 0
  %2739 = vmatpush1.bf16.msra.mxu0 0
  %2740 = vmatprep.subr.bf16.mxu0 0
  %2741 = vmatpush1.bf16.msra.mxu0 0
  %2742 = vmatprep.mubr.bf16.mxu0 0
  %2743 = vmatmul.mubr.bf16.gmra.mrb[0].mxu0 %v869
  %v2744 = vpop.f32.mrb[0].mxu0
  %v2745 = vadd.f32 0.0, %v2744
  %v2746 = vpop.f32.mrb[0].mxu0
  %v2747 = vpop.f32.mrb[0].mxu0
  %v2748 = vadd.f32 0.0, %v2747
  %v2749 = vpop.f32.mrb[0].mxu0
  %2750 = vdwg.mxu0
  %2751 = vmatprep.subr.bf16.mxu0 0
  %2752 = vmatpush1.bf16.msra.mxu0 %v2641
  %2753 = vmatprep.subr.bf16.mxu0 0
  %2754 = vmatpush1.bf16.msra.mxu0 %v2642
  %2755 = vmatprep.subr.bf16.mxu0 0
  %2756 = vmatpush1.bf16.msra.mxu0 0
  %2757 = vmatprep.subr.bf16.mxu0 0
  %2758 = vmatpush1.bf16.msra.mxu0 0
  %2759 = vmatprep.subr.bf16.mxu0 0
  %2760 = vmatpush1.bf16.msra.mxu0 0
  %2761 = vmatprep.subr.bf16.mxu0 0
  %2762 = vmatpush1.bf16.msra.mxu0 0
  %2763 = vmatprep.subr.bf16.mxu0 0
  %2764 = vmatpush1.bf16.msra.mxu0 0
  %2765 = vmatprep.subr.bf16.mxu0 0
  %2766 = vmatpush1.bf16.msra.mxu0 0
  %2767 = vmatprep.subr.bf16.mxu0 0
  %2768 = vmatpush1.bf16.msra.mxu0 0
  %2769 = vmatprep.subr.bf16.mxu0 0
  %2770 = vmatpush1.bf16.msra.mxu0 0
  %2771 = vmatprep.subr.bf16.mxu0 0
  %2772 = vmatpush1.bf16.msra.mxu0 0
  %2773 = vmatprep.subr.bf16.mxu0 0
  %2774 = vmatpush1.bf16.msra.mxu0 0
  %2775 = vmatprep.subr.bf16.mxu0 0
  %2776 = vmatpush1.bf16.msra.mxu0 0
  %2777 = vmatprep.subr.bf16.mxu0 0
  %2778 = vmatpush1.bf16.msra.mxu0 0
  %2779 = vmatprep.subr.bf16.mxu0 0
  %2780 = vmatpush1.bf16.msra.mxu0 0
  %2781 = vmatprep.subr.bf16.mxu0 0
  %2782 = vmatpush1.bf16.msra.mxu0 0
  %2783 = vmatprep.mubr.bf16.mxu0 0
  %2784 = vmatmul.mubr.bf16.gmra.mrb[0].mxu0 %v914
  %v2785 = vpop.f32.mrb[0].mxu0
  %v2786 = vadd.f32 0.0, %v2785
  %v2787 = vpop.f32.mrb[0].mxu0
  %v2788 = vpop.f32.mrb[0].mxu0
  %v2789 = vpop.f32.mrb[0].mxu0
  %2790 = vdwg.mxu0
  %v2791 = vpack.c.bf16 %v1838, %v1838
  %v2796 = vunpack.c.l.b16 %v2601
  %v2797 = vunpack.c.l.b16 %v2602
  %v2798 = vunpack.c.l.b16 %v2603
  %v2799 = vunpack.c.l.b16 %v2604
  %v2800 = vpack.c.b16 %v2797, %v2796
  %v2801 = vpack.c.b16 %v2799, %v2798
  %v2805 = vsel %vm420, %v2791, 0
  %2807 = vmatprep.subr.bf16.mxu0 0
  %2808 = vmatpush1.bf16.msra.mxu0 %v2800
  %2809 = vmatprep.subr.bf16.mxu0 0
  %2810 = vmatpush1.bf16.msra.mxu0 %v2801
  %2811 = vmatprep.subr.bf16.mxu0 0
  %2812 = vmatpush1.bf16.msra.mxu0 0
  %2813 = vmatprep.subr.bf16.mxu0 0
  %2814 = vmatpush1.bf16.msra.mxu0 0
  %2815 = vmatprep.subr.bf16.mxu0 0
  %2816 = vmatpush1.bf16.msra.mxu0 0
  %2817 = vmatprep.subr.bf16.mxu0 0
  %2818 = vmatpush1.bf16.msra.mxu0 0
  %2819 = vmatprep.subr.bf16.mxu0 0
  %2820 = vmatpush1.bf16.msra.mxu0 0
  %2821 = vmatprep.subr.bf16.mxu0 0
  %2822 = vmatpush1.bf16.msra.mxu0 0
  %2823 = vmatprep.subr.bf16.mxu0 0
  %2824 = vmatpush1.bf16.msra.mxu0 0
  %2825 = vmatprep.subr.bf16.mxu0 0
  %2826 = vmatpush1.bf16.msra.mxu0 0
  %2827 = vmatprep.subr.bf16.mxu0 0
  %2828 = vmatpush1.bf16.msra.mxu0 0
  %2829 = vmatprep.subr.bf16.mxu0 0
  %2830 = vmatpush1.bf16.msra.mxu0 0
  %2831 = vmatprep.subr.bf16.mxu0 0
  %2832 = vmatpush1.bf16.msra.mxu0 0
  %2833 = vmatprep.subr.bf16.mxu0 0
  %2834 = vmatpush1.bf16.msra.mxu0 0
  %2835 = vmatprep.subr.bf16.mxu0 0
  %2836 = vmatpush1.bf16.msra.mxu0 0
  %2837 = vmatprep.subr.bf16.mxu0 0
  %2838 = vmatpush1.bf16.msra.mxu0 0
  %2839 = vmatprep.mubr.bf16.mxu0 0
  %2840 = vmatmul.mubr.bf16.gmra.mrb[0].mxu0 %v2805
  %v2841 = vpop.f32.mrb[0].mxu0
  %v2842 = vadd.f32 0.0, %v2841
  %v2843 = vpop.f32.mrb[0].mxu0
  %v2844 = vpop.f32.mrb[0].mxu0
  %v2845 = vpop.f32.mrb[0].mxu0
  %2846 = vdwg.mxu0
  %2847 = vmatprep.subr.bf16.mxu0 0
  %2848 = vmatpush1.bf16.msra.mxu0 %v2641
  %2849 = vmatprep.subr.bf16.mxu0 0
  %2850 = vmatpush1.bf16.msra.mxu0 %v2642
  %2851 = vmatprep.subr.bf16.mxu0 0
  %2852 = vmatpush1.bf16.msra.mxu0 0
  %2853 = vmatprep.subr.bf16.mxu0 0
  %2854 = vmatpush1.bf16.msra.mxu0 0
  %2855 = vmatprep.subr.bf16.mxu0 0
  %2856 = vmatpush1.bf16.msra.mxu0 0
  %2857 = vmatprep.subr.bf16.mxu0 0
  %2858 = vmatpush1.bf16.msra.mxu0 0
  %2859 = vmatprep.subr.bf16.mxu0 0
  %2860 = vmatpush1.bf16.msra.mxu0 0
  %2861 = vmatprep.subr.bf16.mxu0 0
  %2862 = vmatpush1.bf16.msra.mxu0 0
  %2863 = vmatprep.subr.bf16.mxu0 0
  %2864 = vmatpush1.bf16.msra.mxu0 0
  %2865 = vmatprep.subr.bf16.mxu0 0
  %2866 = vmatpush1.bf16.msra.mxu0 0
  %2867 = vmatprep.subr.bf16.mxu0 0
  %2868 = vmatpush1.bf16.msra.mxu0 0
  %2869 = vmatprep.subr.bf16.mxu0 0
  %2870 = vmatpush1.bf16.msra.mxu0 0
  %2871 = vmatprep.subr.bf16.mxu0 0
  %2872 = vmatpush1.bf16.msra.mxu0 0
  %2873 = vmatprep.subr.bf16.mxu0 0
  %2874 = vmatpush1.bf16.msra.mxu0 0
  %2875 = vmatprep.subr.bf16.mxu0 0
  %2876 = vmatpush1.bf16.msra.mxu0 0
  %2877 = vmatprep.subr.bf16.mxu0 0
  %2878 = vmatpush1.bf16.msra.mxu0 0
  %2879 = vmatprep.mubr.bf16.mxu0 0
  %2880 = vmatmul.mubr.bf16.gmra.mrb[0].mxu0 %v1017
  %v2881 = vpop.f32.mrb[0].mxu0
  %v2882 = vadd.f32 0.0, %v2881
  %v2883 = vpop.f32.mrb[0].mxu0
  %v2884 = vpop.f32.mrb[0].mxu0
  %v2885 = vadd.f32 0.0, %v2884
  %v2886 = vpop.f32.mrb[0].mxu0
  %2887 = vmatprep.mubr.bf16.mxu0 0
  %2888 = vmatmul.mubr.bf16.gmra.mrb[0].mxu0 %v1020
  %v2889 = vpop.f32.mrb[0].mxu0
  %v2890 = vadd.f32 0.0, %v2889
  %v2891 = vpop.f32.mrb[0].mxu0
  %v2892 = vpop.f32.mrb[0].mxu0
  %v2893 = vadd.f32 0.0, %v2892
  %v2894 = vpop.f32.mrb[0].mxu0
  %2895 = vmatprep.mubr.bf16.mxu0 0
  %2896 = vmatmul.mubr.bf16.gmra.mrb[0].mxu0 %v1023
  %v2897 = vpop.f32.mrb[0].mxu0
  %v2898 = vadd.f32 0.0, %v2897
  %v2899 = vpop.f32.mrb[0].mxu0
  %v2900 = vpop.f32.mrb[0].mxu0
  %v2901 = vadd.f32 0.0, %v2900
  %v2902 = vpop.f32.mrb[0].mxu0
  %2903 = vmatprep.mubr.bf16.mxu0 0
  %2904 = vmatmul.mubr.bf16.gmra.mrb[0].mxu0 %v1026
  %v2905 = vpop.f32.mrb[0].mxu0
  %v2906 = vadd.f32 0.0, %v2905
  %v2907 = vpop.f32.mrb[0].mxu0
  %v2908 = vpop.f32.mrb[0].mxu0
  %v2909 = vadd.f32 0.0, %v2908
  %v2910 = vpop.f32.mrb[0].mxu0
  %2911 = vdwg.mxu0
  %v2912 = vadd.f32 %v2882, %v2680
  %v2913 = vadd.f32 %v2885, %v2683
  %v2914 = vadd.f32 %v2890, %v2688
  %v2915 = vadd.f32 %v2893, %v2691
  %v2916 = vadd.f32 %v2898, %v2696
  %v2917 = vadd.f32 %v2901, %v2699
  %v2918 = vadd.f32 %v2906, %v2704
  %v2919 = vadd.f32 %v2909, %v2707
  %v2921 = vsel %vm420, %v2842, 0
  %v2924 = vsel %vm420, %v2912, 0
  %v2927 = vsel %vm420, %v2913, 0
  %v2930 = vsel %vm420, %v2914, 0
  %v2933 = vsel %vm420, %v2915, 0
  %v2936 = vsel %vm420, %v2916, 0
  %v2939 = vsel %vm420, %v2917, 0
  %v2942 = vsel %vm420, %v2918, 0
  %v2945 = vsel %vm420, %v2919, 0
  %2947 = vmatprep.subr.mxu0 0.0
  %2948 = vmatpush1.xpose.msra.mxu0 %v2924
  %2949 = vmatprep.subr.mxu0 0.0
  %2950 = vmatpush1.xpose.msra.mxu0 %v2927
  %2951 = vmatprep.subr.mxu0 0.0
  %2952 = vmatpush1.xpose.msra.mxu0 %v2930
  %2953 = vmatprep.subr.mxu0 0.0
  %2954 = vmatpush1.xpose.msra.mxu0 %v2933
  %2955 = vmatprep.subr.mxu0 0.0
  %2956 = vmatpush1.xpose.msra.mxu0 %v2936
  %2957 = vmatprep.subr.mxu0 0.0
  %2958 = vmatpush1.xpose.msra.mxu0 %v2939
  %2959 = vmatprep.subr.mxu0 0.0
  %2960 = vmatpush1.xpose.msra.mxu0 %v2942
  %2961 = vmatprep.subr.mxu0 0.0
  %2962 = vmatpush1.xpose.msra.mxu0 %v2945
  %2963 = vmatprep.subr.mxu0 0.0
  %2964 = vmatpush1.xpose.msra.mxu0 0.0
  %2965 = vmatprep.subr.mxu0 0.0
  %2966 = vmatpush1.xpose.msra.mxu0 0.0
  %2967 = vmatprep.subr.mxu0 0.0
  %2968 = vmatpush1.xpose.msra.mxu0 0.0
  %2969 = vmatprep.subr.mxu0 0.0
  %2970 = vmatpush1.xpose.msra.mxu0 0.0
  %2971 = vmatprep.subr.mxu0 0.0
  %2972 = vmatpush1.xpose.msra.mxu0 0.0
  %2973 = vmatprep.subr.mxu0 0.0
  %2974 = vmatpush1.xpose.msra.mxu0 0.0
  %2975 = vmatprep.subr.mxu0 0.0
  %2976 = vmatpush1.xpose.msra.mxu0 0.0
  %2977 = vmatprep.subr.mxu0 0.0
  %2978 = vmatpush1.xpose.msra.mxu0 0.0
  %2979 = vmatprep.subr.mxu0 0.0
  %2980 = vmatpush1.xpose.msra.mxu0 0.0
  %2981 = vmatprep.subr.mxu0 0.0
  %2982 = vmatpush1.xpose.msra.mxu0 0.0
  %2983 = vmatprep.subr.mxu0 0.0
  %2984 = vmatpush1.xpose.msra.mxu0 0.0
  %2985 = vmatprep.subr.mxu0 0.0
  %2986 = vmatpush1.xpose.msra.mxu0 0.0
  %2987 = vmatprep.subr.mxu0 0.0
  %2988 = vmatpush1.xpose.msra.mxu0 0.0
  %2989 = vmatprep.subr.mxu0 0.0
  %2990 = vmatpush1.xpose.msra.mxu0 0.0
  %2991 = vmatprep.subr.mxu0 0.0
  %2992 = vmatpush1.xpose.msra.mxu0 0.0
  %2993 = vmatprep.subr.mxu0 0.0
  %2994 = vmatpush1.xpose.msra.mxu0 0.0
  %2995 = vmatprep.subr.mxu0 0.0
  %2996 = vmatpush1.xpose.msra.mxu0 0.0
  %2997 = vmatprep.subr.mxu0 0.0
  %2998 = vmatpush1.xpose.msra.mxu0 0.0
  %2999 = vmatprep.subr.mxu0 0.0
  %3000 = vmatpush1.xpose.msra.mxu0 0.0
  %3001 = vmatprep.subr.mxu0 0.0
  %3002 = vmatpush1.xpose.msra.mxu0 0.0
  %3003 = vmatprep.subr.mxu0 0.0
  %3004 = vmatpush1.xpose.msra.mxu0 0.0
  %3005 = vmatprep.subr.mxu0 0.0
  %3006 = vmatpush1.xpose.msra.mxu0 0.0
  %3007 = vmatprep.subr.mxu0 0.0
  %3008 = vmatpush1.xpose.msra.mxu0 0.0
  %3009 = vmatprep.subr.mxu0 0.0
  %3010 = vmatpush1.xpose.msra.mxu0 0.0
  %3011 = vmatprep.mubr.f32.mxu0 0.0
  %3012 = vmatmul.mubr.f32.gmra.mrb[0].mxu0 %v2921
  %v3013 = vpop.f32.mrb[0].mxu0
  %v3014 = vadd.f32 0.0, %v3013
  %v3015 = vpop.f32.mrb[0].mxu0
  %3016 = vdwg.mxu0
  %v3017 = vmul.f32 %v3014, 0.17677669
  %3018 = vmatprep.subr.bf16.mxu0 0
  %3019 = vmatpush1.bf16.msra.mxu0 %v2641
  %3020 = vmatprep.subr.bf16.mxu0 0
  %3021 = vmatpush1.bf16.msra.mxu0 %v2642
  %3022 = vmatprep.subr.bf16.mxu0 0
  %3023 = vmatpush1.bf16.msra.mxu0 0
  %3024 = vmatprep.subr.bf16.mxu0 0
  %3025 = vmatpush1.bf16.msra.mxu0 0
  %3026 = vmatprep.subr.bf16.mxu0 0
  %3027 = vmatpush1.bf16.msra.mxu0 0
  %3028 = vmatprep.subr.bf16.mxu0 0
  %3029 = vmatpush1.bf16.msra.mxu0 0
  %3030 = vmatprep.subr.bf16.mxu0 0
  %3031 = vmatpush1.bf16.msra.mxu0 0
  %3032 = vmatprep.subr.bf16.mxu0 0
  %3033 = vmatpush1.bf16.msra.mxu0 0
  %3034 = vmatprep.subr.bf16.mxu0 0
  %3035 = vmatpush1.bf16.msra.mxu0 0
  %3036 = vmatprep.subr.bf16.mxu0 0
  %3037 = vmatpush1.bf16.msra.mxu0 0
  %3038 = vmatprep.subr.bf16.mxu0 0
  %3039 = vmatpush1.bf16.msra.mxu0 0
  %3040 = vmatprep.subr.bf16.mxu0 0
  %3041 = vmatpush1.bf16.msra.mxu0 0
  %3042 = vmatprep.subr.bf16.mxu0 0
  %3043 = vmatpush1.bf16.msra.mxu0 0
  %3044 = vmatprep.subr.bf16.mxu0 0
  %3045 = vmatpush1.bf16.msra.mxu0 0
  %3046 = vmatprep.subr.bf16.mxu0 0
  %3047 = vmatpush1.bf16.msra.mxu0 0
  %3048 = vmatprep.subr.bf16.mxu0 0
  %3049 = vmatpush1.bf16.msra.mxu0 0
  %3050 = vmatprep.mubr.bf16.mxu0 0
  %3051 = vmatmul.mubr.bf16.gmra.mrb[0].mxu0 %v1201
  %v3052 = vpop.f32.mrb[0].mxu0
  %v3053 = vadd.f32 0.0, %v3052
  %v3054 = vpop.f32.mrb[0].mxu0
  %v3055 = vpop.f32.mrb[0].mxu0
  %v3056 = vadd.f32 0.0, %v3055
  %v3057 = vpop.f32.mrb[0].mxu0
  %3058 = vdwg.mxu0
  %v3059 = vadd.f32 %v3053, %v2745
  %v3060 = vadd.f32 %v3056, %v2748
  %v3062 = vsel %vm420, %v3059, 0
  %v3065 = vsel %vm420, %v3060, 0
  %3067 = vmatprep.subr.mxu0 0.0
  %3068 = vmatpush1.xpose.msra.mxu0 %v3062
  %3069 = vmatprep.subr.mxu0 0.0
  %3070 = vmatpush1.xpose.msra.mxu0 %v3065
  %3071 = vmatprep.subr.mxu0 0.0
  %3072 = vmatpush1.xpose.msra.mxu0 0.0
  %3073 = vmatprep.subr.mxu0 0.0
  %3074 = vmatpush1.xpose.msra.mxu0 0.0
  %3075 = vmatprep.subr.mxu0 0.0
  %3076 = vmatpush1.xpose.msra.mxu0 0.0
  %3077 = vmatprep.subr.mxu0 0.0
  %3078 = vmatpush1.xpose.msra.mxu0 0.0
  %3079 = vmatprep.subr.mxu0 0.0
  %3080 = vmatpush1.xpose.msra.mxu0 0.0
  %3081 = vmatprep.subr.mxu0 0.0
  %3082 = vmatpush1.xpose.msra.mxu0 0.0
  %3083 = vmatprep.subr.mxu0 0.0
  %3084 = vmatpush1.xpose.msra.mxu0 0.0
  %3085 = vmatprep.subr.mxu0 0.0
  %3086 = vmatpush1.xpose.msra.mxu0 0.0
  %3087 = vmatprep.subr.mxu0 0.0
  %3088 = vmatpush1.xpose.msra.mxu0 0.0
  %3089 = vmatprep.subr.mxu0 0.0
  %3090 = vmatpush1.xpose.msra.mxu0 0.0
  %3091 = vmatprep.subr.mxu0 0.0
  %3092 = vmatpush1.xpose.msra.mxu0 0.0
  %3093 = vmatprep.subr.mxu0 0.0
  %3094 = vmatpush1.xpose.msra.mxu0 0.0
  %3095 = vmatprep.subr.mxu0 0.0
  %3096 = vmatpush1.xpose.msra.mxu0 0.0
  %3097 = vmatprep.subr.mxu0 0.0
  %3098 = vmatpush1.xpose.msra.mxu0 0.0
  %3099 = vmatprep.subr.mxu0 0.0
  %3100 = vmatpush1.xpose.msra.mxu0 0.0
  %3101 = vmatprep.subr.mxu0 0.0
  %3102 = vmatpush1.xpose.msra.mxu0 0.0
  %3103 = vmatprep.subr.mxu0 0.0
  %3104 = vmatpush1.xpose.msra.mxu0 0.0
  %3105 = vmatprep.subr.mxu0 0.0
  %3106 = vmatpush1.xpose.msra.mxu0 0.0
  %3107 = vmatprep.subr.mxu0 0.0
  %3108 = vmatpush1.xpose.msra.mxu0 0.0
  %3109 = vmatprep.subr.mxu0 0.0
  %3110 = vmatpush1.xpose.msra.mxu0 0.0
  %3111 = vmatprep.subr.mxu0 0.0
  %3112 = vmatpush1.xpose.msra.mxu0 0.0
  %3113 = vmatprep.subr.mxu0 0.0
  %3114 = vmatpush1.xpose.msra.mxu0 0.0
  %3115 = vmatprep.subr.mxu0 0.0
  %3116 = vmatpush1.xpose.msra.mxu0 0.0
  %3117 = vmatprep.subr.mxu0 0.0
  %3118 = vmatpush1.xpose.msra.mxu0 0.0
  %3119 = vmatprep.subr.mxu0 0.0
  %3120 = vmatpush1.xpose.msra.mxu0 0.0
  %3121 = vmatprep.subr.mxu0 0.0
  %3122 = vmatpush1.xpose.msra.mxu0 0.0
  %3123 = vmatprep.subr.mxu0 0.0
  %3124 = vmatpush1.xpose.msra.mxu0 0.0
  %3125 = vmatprep.subr.mxu0 0.0
  %3126 = vmatpush1.xpose.msra.mxu0 0.0
  %3127 = vmatprep.subr.mxu0 0.0
  %3128 = vmatpush1.xpose.msra.mxu0 0.0
  %3129 = vmatprep.subr.mxu0 0.0
  %3130 = vmatpush1.xpose.msra.mxu0 0.0
  %3131 = vmatprep.mubr.f32.mxu0 0.0
  %3132 = vmatmul.mubr.f32.gmra.mrb[0].mxu0 %v2921
  %v3133 = vpop.f32.mrb[0].mxu0
  %v3134 = vadd.f32 0.0, %v3133
  %v3135 = vpop.f32.mrb[0].mxu0
  %3136 = vdwg.mxu0
  %v3137 = vmul.f32 %v3134, 0.17677669
  %3138 = vmatprep.subr.bf16.mxu0 0
  %3139 = vmatpush1.bf16.msra.mxu0 %v2641
  %3140 = vmatprep.subr.bf16.mxu0 0
  %3141 = vmatpush1.bf16.msra.mxu0 %v2642
  %3142 = vmatprep.subr.bf16.mxu0 0
  %3143 = vmatpush1.bf16.msra.mxu0 0
  %3144 = vmatprep.subr.bf16.mxu0 0
  %3145 = vmatpush1.bf16.msra.mxu0 0
  %3146 = vmatprep.subr.bf16.mxu0 0
  %3147 = vmatpush1.bf16.msra.mxu0 0
  %3148 = vmatprep.subr.bf16.mxu0 0
  %3149 = vmatpush1.bf16.msra.mxu0 0
  %3150 = vmatprep.subr.bf16.mxu0 0
  %3151 = vmatpush1.bf16.msra.mxu0 0
  %3152 = vmatprep.subr.bf16.mxu0 0
  %3153 = vmatpush1.bf16.msra.mxu0 0
  %3154 = vmatprep.subr.bf16.mxu0 0
  %3155 = vmatpush1.bf16.msra.mxu0 0
  %3156 = vmatprep.subr.bf16.mxu0 0
  %3157 = vmatpush1.bf16.msra.mxu0 0
  %3158 = vmatprep.subr.bf16.mxu0 0
  %3159 = vmatpush1.bf16.msra.mxu0 0
  %3160 = vmatprep.subr.bf16.mxu0 0
  %3161 = vmatpush1.bf16.msra.mxu0 0
  %3162 = vmatprep.subr.bf16.mxu0 0
  %3163 = vmatpush1.bf16.msra.mxu0 0
  %3164 = vmatprep.subr.bf16.mxu0 0
  %3165 = vmatpush1.bf16.msra.mxu0 0
  %3166 = vmatprep.subr.bf16.mxu0 0
  %3167 = vmatpush1.bf16.msra.mxu0 0
  %3168 = vmatprep.subr.bf16.mxu0 0
  %3169 = vmatpush1.bf16.msra.mxu0 0
  %3170 = vmatprep.mubr.bf16.mxu0 0
  %3171 = vmatmul.mubr.bf16.gmra.mrb[0].mxu0 %v1325
  %v3172 = vpop.f32.mrb[0].mxu0
  %v3173 = vadd.f32 0.0, %v3172
  %v3174 = vpop.f32.mrb[0].mxu0
  %v3175 = vpop.f32.mrb[0].mxu0
  %v3176 = vpop.f32.mrb[0].mxu0
  %3177 = vdwg.mxu0
  %v3178 = vadd.f32 %v3173, %v2786
  %v3180 = vsel %vm420, %v3178, 0
  %3182 = vmatprep.subr.mxu0 0.0
  %3183 = vmatpush1.xpose.msra.mxu0 %v3180
  %3184 = vmatprep.subr.mxu0 0.0
  %3185 = vmatpush1.xpose.msra.mxu0 0.0
  %3186 = vmatprep.subr.mxu0 0.0
  %3187 = vmatpush1.xpose.msra.mxu0 0.0
  %3188 = vmatprep.subr.mxu0 0.0
  %3189 = vmatpush1.xpose.msra.mxu0 0.0
  %3190 = vmatprep.subr.mxu0 0.0
  %3191 = vmatpush1.xpose.msra.mxu0 0.0
  %3192 = vmatprep.subr.mxu0 0.0
  %3193 = vmatpush1.xpose.msra.mxu0 0.0
  %3194 = vmatprep.subr.mxu0 0.0
  %3195 = vmatpush1.xpose.msra.mxu0 0.0
  %3196 = vmatprep.subr.mxu0 0.0
  %3197 = vmatpush1.xpose.msra.mxu0 0.0
  %3198 = vmatprep.subr.mxu0 0.0
  %3199 = vmatpush1.xpose.msra.mxu0 0.0
  %3200 = vmatprep.subr.mxu0 0.0
  %3201 = vmatpush1.xpose.msra.mxu0 0.0
  %3202 = vmatprep.subr.mxu0 0.0
  %3203 = vmatpush1.xpose.msra.mxu0 0.0
  %3204 = vmatprep.subr.mxu0 0.0
  %3205 = vmatpush1.xpose.msra.mxu0 0.0
  %3206 = vmatprep.subr.mxu0 0.0
  %3207 = vmatpush1.xpose.msra.mxu0 0.0
  %3208 = vmatprep.subr.mxu0 0.0
  %3209 = vmatpush1.xpose.msra.mxu0 0.0
  %3210 = vmatprep.subr.mxu0 0.0
  %3211 = vmatpush1.xpose.msra.mxu0 0.0
  %3212 = vmatprep.subr.mxu0 0.0
  %3213 = vmatpush1.xpose.msra.mxu0 0.0
  %3214 = vmatprep.subr.mxu0 0.0
  %3215 = vmatpush1.xpose.msra.mxu0 0.0
  %3216 = vmatprep.subr.mxu0 0.0
  %3217 = vmatpush1.xpose.msra.mxu0 0.0
  %3218 = vmatprep.subr.mxu0 0.0
  %3219 = vmatpush1.xpose.msra.mxu0 0.0
  %3220 = vmatprep.subr.mxu0 0.0
  %3221 = vmatpush1.xpose.msra.mxu0 0.0
  %3222 = vmatprep.subr.mxu0 0.0
  %3223 = vmatpush1.xpose.msra.mxu0 0.0
  %3224 = vmatprep.subr.mxu0 0.0
  %3225 = vmatpush1.xpose.msra.mxu0 0.0
  %3226 = vmatprep.subr.mxu0 0.0
  %3227 = vmatpush1.xpose.msra.mxu0 0.0
  %3228 = vmatprep.subr.mxu0 0.0
  %3229 = vmatpush1.xpose.msra.mxu0 0.0
  %3230 = vmatprep.subr.mxu0 0.0
  %3231 = vmatpush1.xpose.msra.mxu0 0.0
  %3232 = vmatprep.subr.mxu0 0.0
  %3233 = vmatpush1.xpose.msra.mxu0 0.0
  %3234 = vmatprep.subr.mxu0 0.0
  %3235 = vmatpush1.xpose.msra.mxu0 0.0
  %3236 = vmatprep.subr.mxu0 0.0
  %3237 = vmatpush1.xpose.msra.mxu0 0.0
  %3238 = vmatprep.subr.mxu0 0.0
  %3239 = vmatpush1.xpose.msra.mxu0 0.0
  %3240 = vmatprep.subr.mxu0 0.0
  %3241 = vmatpush1.xpose.msra.mxu0 0.0
  %3242 = vmatprep.subr.mxu0 0.0
  %3243 = vmatpush1.xpose.msra.mxu0 0.0
  %3244 = vmatprep.subr.mxu0 0.0
  %3245 = vmatpush1.xpose.msra.mxu0 0.0
  %3246 = vmatprep.mubr.f32.mxu0 0.0
  %3247 = vmatmul.mubr.f32.gmra.mrb[0].mxu0 %v2921
  %v3248 = vpop.f32.mrb[0].mxu0
  %v3249 = vadd.f32 0.0, %v3248
  %v3250 = vpop.f32.mrb[0].mxu0
  %3251 = vdwg.mxu0
  %v3252 = vmul.f32 %v3249, 0.17677669
  %v3253 = vsel %vm1442, %v3017, -inf
  %3254 = vmax.xlane.f32.xlu0 %v3253
  %v3255 = vpop.xlane.xlu0 %3254
  %v3256 = vsel %vm112, %v3137, -inf
  %3257 = vmax.xlane.f32.xlu0 %v3256
  %v3258 = vpop.xlane.xlu0 %3257
  %v3259 = vmax.f32 %v3255, %v3258
  %v3260 = vsel %vm1450, %v3252, -inf
  %3261 = vmax.xlane.f32.xlu0 %v3260
  %v3262 = vpop.xlane.xlu0 %3261
  %v3263 = vmax.f32 %v3259, %v3262
  %v3264 = vsub.f32 %v3017, %v3263
  %v3265 = vmul.f32 %v3264, 1.442695
  %v3266 = vpow.pop %v3265
  %v3267 = vsel %vm1442, %v3266, 0.0
  %3268 = vadd.xlane.f32.xlu0 %v3267
  %v3269 = vpop.xlane.xlu0 %3268
  %v3270 = vpack.c.bf16 %v3266, %v3266
  %v3271 = vpack.c.bf16 %v2885, %v2882
  %v3272 = vpack.c.bf16 %v2893, %v2890
  %v3273 = vpack.c.bf16 %v2901, %v2898
  %v3274 = vpack.c.bf16 %v2909, %v2906
  %v3275 = vsub.f32 %v3137, %v3263
  %v3276 = vmul.f32 %v3275, 1.442695
  %v3277 = vpow.pop %v3276
  %v3278 = vsel %vm112, %v3277, 0.0
  %3279 = vadd.xlane.f32.xlu0 %v3278
  %v3280 = vpop.xlane.xlu0 %3279
  %v3281 = vpack.c.bf16 %v3277, %v3277
  %v3282 = vpack.c.bf16 %v3056, %v3053
  %3284 = vrot.lane.b32.xlu0 %v3282, 96
  %v3285 = vpop.permute.xlu0 %3284
  %v3288 = vsel %vm112, %v3281, 0
  %3290 = vmatprep.subr.bf16.mxu0 0
  %3291 = vmatpush1.bf16.msra.mxu0 %v3285
  %3292 = vmatprep.subr.bf16.mxu0 0
  %3293 = vmatpush1.bf16.msra.mxu0 0
  %3294 = vmatprep.subr.bf16.mxu0 0
  %3295 = vmatpush1.bf16.msra.mxu0 0
  %3296 = vmatprep.subr.bf16.mxu0 0
  %3297 = vmatpush1.bf16.msra.mxu0 0
  %3298 = vmatprep.subr.bf16.mxu0 0
  %3299 = vmatpush1.bf16.msra.mxu0 0
  %3300 = vmatprep.subr.bf16.mxu0 0
  %3301 = vmatpush1.bf16.msra.mxu0 0
  %3302 = vmatprep.subr.bf16.mxu0 0
  %3303 = vmatpush1.bf16.msra.mxu0 0
  %3304 = vmatprep.subr.bf16.mxu0 0
  %3305 = vmatpush1.bf16.msra.mxu0 0
  %3306 = vmatprep.subr.bf16.mxu0 0
  %3307 = vmatpush1.bf16.msra.mxu0 0
  %3308 = vmatprep.subr.bf16.mxu0 0
  %3309 = vmatpush1.bf16.msra.mxu0 0
  %3310 = vmatprep.subr.bf16.mxu0 0
  %3311 = vmatpush1.bf16.msra.mxu0 0
  %3312 = vmatprep.subr.bf16.mxu0 0
  %3313 = vmatpush1.bf16.msra.mxu0 0
  %3314 = vmatprep.subr.bf16.mxu0 0
  %3315 = vmatpush1.bf16.msra.mxu0 0
  %3316 = vmatprep.subr.bf16.mxu0 0
  %3317 = vmatpush1.bf16.msra.mxu0 0
  %3318 = vmatprep.subr.bf16.mxu0 0
  %3319 = vmatpush1.bf16.msra.mxu0 0
  %3320 = vmatprep.subr.bf16.mxu0 0
  %3321 = vmatpush1.bf16.msra.mxu0 0
  %3322 = vmatprep.mubr.bf16.mxu0 0
  %3323 = vmatmul.mubr.bf16.gmra.mrb[0].mxu0 %v3288
  %v3324 = vpop.f32.mrb[0].mxu0
  %v3325 = vadd.f32 0.0, %v3324
  %v3326 = vpop.f32.mrb[0].mxu0
  %v3327 = vpop.f32.mrb[0].mxu0
  %v3328 = vpop.f32.mrb[0].mxu0
  %3329 = vdwg.mxu0
  %v3330 = vadd.f32 %v3269, %v3280
  %3335 = vrot.lane.b32.xlu0 %v3271, 96
  %v3336 = vpop.permute.xlu0 %3335
  %3337 = vrot.lane.b32.xlu0 %v3272, 96
  %v3338 = vpop.permute.xlu0 %3337
  %3339 = vrot.lane.b32.xlu0 %v3273, 96
  %v3340 = vpop.permute.xlu0 %3339
  %3341 = vrot.lane.b32.xlu0 %v3274, 96
  %v3342 = vpop.permute.xlu0 %3341
  %v3348 = vsel %vm1442, %v3270, 0
  %3350 = vmatprep.subr.bf16.mxu0 0
  %3351 = vmatpush1.bf16.msra.mxu0 %v3336
  %3352 = vmatprep.subr.bf16.mxu0 0
  %3353 = vmatpush1.bf16.msra.mxu0 %v3338
  %3354 = vmatprep.subr.bf16.mxu0 0
  %3355 = vmatpush1.bf16.msra.mxu0 %v3340
  %3356 = vmatprep.subr.bf16.mxu0 0
  %3357 = vmatpush1.bf16.msra.mxu0 %v3342
  %3358 = vmatprep.subr.bf16.mxu0 0
  %3359 = vmatpush1.bf16.msra.mxu0 0
  %3360 = vmatprep.subr.bf16.mxu0 0
  %3361 = vmatpush1.bf16.msra.mxu0 0
  %3362 = vmatprep.subr.bf16.mxu0 0
  %3363 = vmatpush1.bf16.msra.mxu0 0
  %3364 = vmatprep.subr.bf16.mxu0 0
  %3365 = vmatpush1.bf16.msra.mxu0 0
  %3366 = vmatprep.subr.bf16.mxu0 0
  %3367 = vmatpush1.bf16.msra.mxu0 0
  %3368 = vmatprep.subr.bf16.mxu0 0
  %3369 = vmatpush1.bf16.msra.mxu0 0
  %3370 = vmatprep.subr.bf16.mxu0 0
  %3371 = vmatpush1.bf16.msra.mxu0 0
  %3372 = vmatprep.subr.bf16.mxu0 0
  %3373 = vmatpush1.bf16.msra.mxu0 0
  %3374 = vmatprep.subr.bf16.mxu0 0
  %3375 = vmatpush1.bf16.msra.mxu0 0
  %3376 = vmatprep.subr.bf16.mxu0 0
  %3377 = vmatpush1.bf16.msra.mxu0 0
  %3378 = vmatprep.subr.bf16.mxu0 0
  %3379 = vmatpush1.bf16.msra.mxu0 0
  %3380 = vmatprep.subr.bf16.mxu0 0
  %3381 = vmatpush1.bf16.msra.mxu0 0
  %3382 = vmatprep.mubr.bf16.mxu0 0
  %3383 = vmatmul.mubr.bf16.gmra.mrb[0].mxu0 %v3348
  %v3384 = vpop.f32.mrb[0].mxu0
  %v3385 = vadd.f32 %v3325, %v3384
  %v3386 = vpop.f32.mrb[0].mxu0
  %v3387 = vpop.f32.mrb[0].mxu0
  %v3388 = vpop.f32.mrb[0].mxu0
  %3389 = vdwg.mxu0
  %v3390 = vsub.f32 %v3252, %v3263
  %v3391 = vmul.f32 %v3390, 1.442695
  %v3392 = vpow.pop %v3391
  %v3393 = vsel %vm1450, %v3392, 0.0
  %3394 = vadd.xlane.f32.xlu0 %v3393
  %v3395 = vpop.xlane.xlu0 %3394
  %v3396 = vpack.c.bf16 %v3392, %v3392
  %v3397 = vpack.c.bf16 %v3173, %v3173
  %3399 = vrot.lane.b32.xlu0 %v3397, 96
  %v3400 = vpop.permute.xlu0 %3399
  %v3402 = vsel %vm1450, %v3396, 0
  %v3405 = vsel %vm1595, %v3400, 0
  %3407 = vmatprep.subr.bf16.mxu0 0
  %3408 = vmatpush1.bf16.msra.mxu0 %v3405
  %3409 = vmatprep.subr.bf16.mxu0 0
  %3410 = vmatpush1.bf16.msra.mxu0 0
  %3411 = vmatprep.subr.bf16.mxu0 0
  %3412 = vmatpush1.bf16.msra.mxu0 0
  %3413 = vmatprep.subr.bf16.mxu0 0
  %3414 = vmatpush1.bf16.msra.mxu0 0
  %3415 = vmatprep.subr.bf16.mxu0 0
  %3416 = vmatpush1.bf16.msra.mxu0 0
  %3417 = vmatprep.subr.bf16.mxu0 0
  %3418 = vmatpush1.bf16.msra.mxu0 0
  %3419 = vmatprep.subr.bf16.mxu0 0
  %3420 = vmatpush1.bf16.msra.mxu0 0
  %3421 = vmatprep.subr.bf16.mxu0 0
  %3422 = vmatpush1.bf16.msra.mxu0 0
  %3423 = vmatprep.subr.bf16.mxu0 0
  %3424 = vmatpush1.bf16.msra.mxu0 0
  %3425 = vmatprep.subr.bf16.mxu0 0
  %3426 = vmatpush1.bf16.msra.mxu0 0
  %3427 = vmatprep.subr.bf16.mxu0 0
  %3428 = vmatpush1.bf16.msra.mxu0 0
  %3429 = vmatprep.subr.bf16.mxu0 0
  %3430 = vmatpush1.bf16.msra.mxu0 0
  %3431 = vmatprep.subr.bf16.mxu0 0
  %3432 = vmatpush1.bf16.msra.mxu0 0
  %3433 = vmatprep.subr.bf16.mxu0 0
  %3434 = vmatpush1.bf16.msra.mxu0 0
  %3435 = vmatprep.subr.bf16.mxu0 0
  %3436 = vmatpush1.bf16.msra.mxu0 0
  %3437 = vmatprep.subr.bf16.mxu0 0
  %3438 = vmatpush1.bf16.msra.mxu0 0
  %3439 = vmatprep.mubr.bf16.mxu0 0
  %3440 = vmatmul.mubr.bf16.gmra.mrb[0].mxu0 %v3402
  %v3441 = vpop.f32.mrb[0].mxu0
  %v3442 = vadd.f32 0.0, %v3441
  %v3443 = vpop.f32.mrb[0].mxu0
  %v3444 = vpop.f32.mrb[0].mxu0
  %v3445 = vpop.f32.mrb[0].mxu0
  %3446 = vdwg.mxu0
  %v3447 = vadd.f32 %v3330, %v3395
  %v3448 = vadd.f32 %v3385, %v3442
  %v3449 = vrcp.pop %v3447
  %v3450 = vmul.f32 %v3448, %v3449
  %v3451 = vpack.c.bf16 %v3450, %v3450
  %v3456 = vunpack.c.l.b16 %v2611
  %v3457 = vunpack.c.l.b16 %v2612
  %v3458 = vunpack.c.l.b16 %v2613
  %v3459 = vunpack.c.l.b16 %v2614
  %v3460 = vpack.c.b16 %v3457, %v3456
  %v3461 = vpack.c.b16 %v3459, %v3458
  %v3465 = vsel %vm420, %v3451, 0
  %3467 = vmatprep.subr.bf16.mxu0 0
  %3468 = vmatpush1.bf16.msra.mxu0 %v3460
  %3469 = vmatprep.subr.bf16.mxu0 0
  %3470 = vmatpush1.bf16.msra.mxu0 %v3461
  %3471 = vmatprep.subr.bf16.mxu0 0
  %3472 = vmatpush1.bf16.msra.mxu0 0
  %3473 = vmatprep.subr.bf16.mxu0 0
  %3474 = vmatpush1.bf16.msra.mxu0 0
  %3475 = vmatprep.subr.bf16.mxu0 0
  %3476 = vmatpush1.bf16.msra.mxu0 0
  %3477 = vmatprep.subr.bf16.mxu0 0
  %3478 = vmatpush1.bf16.msra.mxu0 0
  %3479 = vmatprep.subr.bf16.mxu0 0
  %3480 = vmatpush1.bf16.msra.mxu0 0
  %3481 = vmatprep.subr.bf16.mxu0 0
  %3482 = vmatpush1.bf16.msra.mxu0 0
  %3483 = vmatprep.subr.bf16.mxu0 0
  %3484 = vmatpush1.bf16.msra.mxu0 0
  %3485 = vmatprep.subr.bf16.mxu0 0
  %3486 = vmatpush1.bf16.msra.mxu0 0
  %3487 = vmatprep.subr.bf16.mxu0 0
  %3488 = vmatpush1.bf16.msra.mxu0 0
  %3489 = vmatprep.subr.bf16.mxu0 0
  %3490 = vmatpush1.bf16.msra.mxu0 0
  %3491 = vmatprep.subr.bf16.mxu0 0
  %3492 = vmatpush1.bf16.msra.mxu0 0
  %3493 = vmatprep.subr.bf16.mxu0 0
  %3494 = vmatpush1.bf16.msra.mxu0 0
  %3495 = vmatprep.subr.bf16.mxu0 0
  %3496 = vmatpush1.bf16.msra.mxu0 0
  %3497 = vmatprep.subr.bf16.mxu0 0
  %3498 = vmatpush1.bf16.msra.mxu0 0
  %3499 = vmatprep.mubr.bf16.mxu0 0
  %3500 = vmatmul.mubr.bf16.gmra.mrb[0].mxu0 %v3465
  %v3501 = vpop.f32.mrb[0].mxu0
  %v3502 = vadd.f32 0.0, %v3501
  %v3503 = vpop.f32.mrb[0].mxu0
  %v3504 = vpop.f32.mrb[0].mxu0
  %v3505 = vpop.f32.mrb[0].mxu0
  %3506 = vdwg.mxu0
  %v3507 = vadd.f32 %v1838, %v3502
  %v3508 = vpack.c.bf16 %v3507, %v3507
  %v3510 = vlaneseq
  %v3511 = vshrl.u32 %v3510, 7
  %v3512 = vsub.s32 0, %v3511
  %v3513 = vrot.slane %v2621, %v3512
  %v3519 = vunpack.c.l.b16 %v2616
  %v3520 = vunpack.c.l.b16 %v2617
  %v3521 = vunpack.c.l.b16 %v2618
  %v3522 = vunpack.c.l.b16 %v2619
  %v3523 = vpack.c.b16 %v3520, %v3519
  %v3524 = vpack.c.b16 %v3522, %v3521
  %v3528 = vsel %vm420, %v3508, 0
  %3530 = vmatprep.subr.bf16.mxu0 0
  %3531 = vmatpush1.bf16.msra.mxu0 %v3523
  %3532 = vmatprep.subr.bf16.mxu0 0
  %3533 = vmatpush1.bf16.msra.mxu0 %v3524
  %3534 = vmatprep.subr.bf16.mxu0 0
  %3535 = vmatpush1.bf16.msra.mxu0 0
  %3536 = vmatprep.subr.bf16.mxu0 0
  %3537 = vmatpush1.bf16.msra.mxu0 0
  %3538 = vmatprep.subr.bf16.mxu0 0
  %3539 = vmatpush1.bf16.msra.mxu0 0
  %3540 = vmatprep.subr.bf16.mxu0 0
  %3541 = vmatpush1.bf16.msra.mxu0 0
  %3542 = vmatprep.subr.bf16.mxu0 0
  %3543 = vmatpush1.bf16.msra.mxu0 0
  %3544 = vmatprep.subr.bf16.mxu0 0
  %3545 = vmatpush1.bf16.msra.mxu0 0
  %3546 = vmatprep.subr.bf16.mxu0 0
  %3547 = vmatpush1.bf16.msra.mxu0 0
  %3548 = vmatprep.subr.bf16.mxu0 0
  %3549 = vmatpush1.bf16.msra.mxu0 0
  %3550 = vmatprep.subr.bf16.mxu0 0
  %3551 = vmatpush1.bf16.msra.mxu0 0
  %3552 = vmatprep.subr.bf16.mxu0 0
  %3553 = vmatpush1.bf16.msra.mxu0 0
  %3554 = vmatprep.subr.bf16.mxu0 0
  %3555 = vmatpush1.bf16.msra.mxu0 0
  %3556 = vmatprep.subr.bf16.mxu0 0
  %3557 = vmatpush1.bf16.msra.mxu0 0
  %3558 = vmatprep.subr.bf16.mxu0 0
  %3559 = vmatpush1.bf16.msra.mxu0 0
  %3560 = vmatprep.subr.bf16.mxu0 0
  %3561 = vmatpush1.bf16.msra.mxu0 0
  %3562 = vmatprep.mubr.bf16.mxu0 0
  %3563 = vmatmul.mubr.bf16.gmra.mrb[0].mxu0 %v3528
  %v3564 = vpop.f32.mrb[0].mxu0
  %v3565 = vadd.f32 %v3513, %v3564
  %v3566 = vpop.f32.mrb[0].mxu0
  %v3567 = vpop.f32.mrb[0].mxu0
  %v3568 = vpop.f32.mrb[0].mxu0
  %3569 = vdwg.mxu0
  %v3570 = vmax.f32 %v3565, 0.0
  %v3571 = vpack.c.bf16 %v3570, %v3570
  %v3580 = vunpack.c.l.b16 %v2623
  %v3581 = vunpack.c.l.b16 %v2624
  %v3582 = vunpack.c.l.b16 %v2625
  %v3583 = vunpack.c.l.b16 %v2626
  %v3584 = vunpack.c.l.b16 %v2627
  %v3585 = vunpack.c.l.b16 %v2628
  %v3586 = vunpack.c.l.b16 %v2629
  %v3587 = vunpack.c.l.b16 %v2630
  %v3588 = vpack.c.b16 %v3581, %v3580
  %v3589 = vpack.c.b16 %v3583, %v3582
  %v3590 = vpack.c.b16 %v3585, %v3584
  %v3591 = vpack.c.b16 %v3587, %v3586
  %v3597 = vsel %vm1442, %v3571, 0
  %3599 = vmatprep.subr.bf16.mxu0 0
  %3600 = vmatpush1.bf16.msra.mxu0 %v3588
  %3601 = vmatprep.subr.bf16.mxu0 0
  %3602 = vmatpush1.bf16.msra.mxu0 %v3589
  %3603 = vmatprep.subr.bf16.mxu0 0
  %3604 = vmatpush1.bf16.msra.mxu0 %v3590
  %3605 = vmatprep.subr.bf16.mxu0 0
  %3606 = vmatpush1.bf16.msra.mxu0 %v3591
  %3607 = vmatprep.subr.bf16.mxu0 0
  %3608 = vmatpush1.bf16.msra.mxu0 0
  %3609 = vmatprep.subr.bf16.mxu0 0
  %3610 = vmatpush1.bf16.msra.mxu0 0
  %3611 = vmatprep.subr.bf16.mxu0 0
  %3612 = vmatpush1.bf16.msra.mxu0 0
  %3613 = vmatprep.subr.bf16.mxu0 0
  %3614 = vmatpush1.bf16.msra.mxu0 0
  %3615 = vmatprep.subr.bf16.mxu0 0
  %3616 = vmatpush1.bf16.msra.mxu0 0
  %3617 = vmatprep.subr.bf16.mxu0 0
  %3618 = vmatpush1.bf16.msra.mxu0 0
  %3619 = vmatprep.subr.bf16.mxu0 0
  %3620 = vmatpush1.bf16.msra.mxu0 0
  %3621 = vmatprep.subr.bf16.mxu0 0
  %3622 = vmatpush1.bf16.msra.mxu0 0
  %3623 = vmatprep.subr.bf16.mxu0 0
  %3624 = vmatpush1.bf16.msra.mxu0 0
  %3625 = vmatprep.subr.bf16.mxu0 0
  %3626 = vmatpush1.bf16.msra.mxu0 0
  %3627 = vmatprep.subr.bf16.mxu0 0
  %3628 = vmatpush1.bf16.msra.mxu0 0
  %3629 = vmatprep.subr.bf16.mxu0 0
  %3630 = vmatpush1.bf16.msra.mxu0 0
  %3631 = vmatprep.mubr.bf16.mxu0 0
  %3632 = vmatmul.mubr.bf16.gmra.mrb[0].mxu0 %v3597
  %v3633 = vpop.f32.mrb[0].mxu0
  %v3634 = vadd.f32 0.0, %v3633
  %v3635 = vpop.f32.mrb[0].mxu0
  %v3636 = vpop.f32.mrb[0].mxu0
  %v3637 = vpop.f32.mrb[0].mxu0
  %3638 = vdwg.mxu0
  %v3639 = vadd.f32 %v3507, %v3634
  %v3641 = vlaneseq
  %v3642 = vshrl.u32 %v3641, 7
  %v3643 = vsub.s32 0, %v3642
  %v3644 = vrot.slane %v2632, %v3643
  %v3646 = vadd.f32 %v3639, %v3644
  %v3647 = vpack.c.bf16 %v2599, %v2599
  %v3649 = vsel %vm420, %v3647, 0
  %3651 = vmatprep.subr.bf16.mxu0 0
  %3652 = vmatpush1.bf16.msra.mxu0 %v2800
  %3653 = vmatprep.subr.bf16.mxu0 0
  %3654 = vmatpush1.bf16.msra.mxu0 %v2801
  %3655 = vmatprep.subr.bf16.mxu0 0
  %3656 = vmatpush1.bf16.msra.mxu0 0
  %3657 = vmatprep.subr.bf16.mxu0 0
  %3658 = vmatpush1.bf16.msra.mxu0 0
  %3659 = vmatprep.subr.bf16.mxu0 0
  %3660 = vmatpush1.bf16.msra.mxu0 0
  %3661 = vmatprep.subr.bf16.mxu0 0
  %3662 = vmatpush1.bf16.msra.mxu0 0
  %3663 = vmatprep.subr.bf16.mxu0 0
  %3664 = vmatpush1.bf16.msra.mxu0 0
  %3665 = vmatprep.subr.bf16.mxu0 0
  %3666 = vmatpush1.bf16.msra.mxu0 0
  %3667 = vmatprep.subr.bf16.mxu0 0
  %3668 = vmatpush1.bf16.msra.mxu0 0
  %3669 = vmatprep.subr.bf16.mxu0 0
  %3670 = vmatpush1.bf16.msra.mxu0 0
  %3671 = vmatprep.subr.bf16.mxu0 0
  %3672 = vmatpush1.bf16.msra.mxu0 0
  %3673 = vmatprep.subr.bf16.mxu0 0
  %3674 = vmatpush1.bf16.msra.mxu0 0
  %3675 = vmatprep.subr.bf16.mxu0 0
  %3676 = vmatpush1.bf16.msra.mxu0 0
  %3677 = vmatprep.subr.bf16.mxu0 0
  %3678 = vmatpush1.bf16.msra.mxu0 0
  %3679 = vmatprep.subr.bf16.mxu0 0
  %3680 = vmatpush1.bf16.msra.mxu0 0
  %3681 = vmatprep.subr.bf16.mxu0 0
  %3682 = vmatpush1.bf16.msra.mxu0 0
  %3683 = vmatprep.mubr.bf16.mxu0 0
  %3684 = vmatmul.mubr.bf16.gmra.mrb[0].mxu0 %v3649
  %v3685 = vpop.f32.mrb[0].mxu0
  %v3686 = vadd.f32 0.0, %v3685
  %v3687 = vpop.f32.mrb[0].mxu0
  %v3688 = vpop.f32.mrb[0].mxu0
  %v3689 = vpop.f32.mrb[0].mxu0
  %3690 = vdwg.mxu0
  %3691 = vmatprep.subr.bf16.mxu0 0
  %3692 = vmatpush1.bf16.msra.mxu0 %v2641
  %3693 = vmatprep.subr.bf16.mxu0 0
  %3694 = vmatpush1.bf16.msra.mxu0 %v2642
  %3695 = vmatprep.subr.bf16.mxu0 0
  %3696 = vmatpush1.bf16.msra.mxu0 0
  %3697 = vmatprep.subr.bf16.mxu0 0
  %3698 = vmatpush1.bf16.msra.mxu0 0
  %3699 = vmatprep.subr.bf16.mxu0 0
  %3700 = vmatpush1.bf16.msra.mxu0 0
  %3701 = vmatprep.subr.bf16.mxu0 0
  %3702 = vmatpush1.bf16.msra.mxu0 0
  %3703 = vmatprep.subr.bf16.mxu0 0
  %3704 = vmatpush1.bf16.msra.mxu0 0
  %3705 = vmatprep.subr.bf16.mxu0 0
  %3706 = vmatpush1.bf16.msra.mxu0 0
  %3707 = vmatprep.subr.bf16.mxu0 0
  %3708 = vmatpush1.bf16.msra.mxu0 0
  %3709 = vmatprep.subr.bf16.mxu0 0
  %3710 = vmatpush1.bf16.msra.mxu0 0
  %3711 = vmatprep.subr.bf16.mxu0 0
  %3712 = vmatpush1.bf16.msra.mxu0 0
  %3713 = vmatprep.subr.bf16.mxu0 0
  %3714 = vmatpush1.bf16.msra.mxu0 0
  %3715 = vmatprep.subr.bf16.mxu0 0
  %3716 = vmatpush1.bf16.msra.mxu0 0
  %3717 = vmatprep.subr.bf16.mxu0 0
  %3718 = vmatpush1.bf16.msra.mxu0 0
  %3719 = vmatprep.subr.bf16.mxu0 0
  %3720 = vmatpush1.bf16.msra.mxu0 0
  %3721 = vmatprep.subr.bf16.mxu0 0
  %3722 = vmatpush1.bf16.msra.mxu0 0
  %3723 = vmatprep.mubr.bf16.mxu0 0
  %3724 = vmatmul.mubr.bf16.gmra.mrb[0].mxu0 %v1844
  %v3725 = vpop.f32.mrb[0].mxu0
  %v3726 = vadd.f32 0.0, %v3725
  %v3727 = vpop.f32.mrb[0].mxu0
  %v3728 = vpop.f32.mrb[0].mxu0
  %v3729 = vadd.f32 0.0, %v3728
  %v3730 = vpop.f32.mrb[0].mxu0
  %3731 = vmatprep.mubr.bf16.mxu0 0
  %3732 = vmatmul.mubr.bf16.gmra.mrb[0].mxu0 %v1847
  %v3733 = vpop.f32.mrb[0].mxu0
  %v3734 = vadd.f32 0.0, %v3733
  %v3735 = vpop.f32.mrb[0].mxu0
  %v3736 = vpop.f32.mrb[0].mxu0
  %v3737 = vadd.f32 0.0, %v3736
  %v3738 = vpop.f32.mrb[0].mxu0
  %3739 = vmatprep.mubr.bf16.mxu0 0
  %3740 = vmatmul.mubr.bf16.gmra.mrb[0].mxu0 %v1850
  %v3741 = vpop.f32.mrb[0].mxu0
  %v3742 = vadd.f32 0.0, %v3741
  %v3743 = vpop.f32.mrb[0].mxu0
  %v3744 = vpop.f32.mrb[0].mxu0
  %v3745 = vadd.f32 0.0, %v3744
  %v3746 = vpop.f32.mrb[0].mxu0
  %3747 = vmatprep.mubr.bf16.mxu0 0
  %3748 = vmatmul.mubr.bf16.gmra.mrb[0].mxu0 %v1853
  %v3749 = vpop.f32.mrb[0].mxu0
  %v3750 = vadd.f32 0.0, %v3749
  %v3751 = vpop.f32.mrb[0].mxu0
  %v3752 = vpop.f32.mrb[0].mxu0
  %v3753 = vadd.f32 0.0, %v3752
  %v3754 = vpop.f32.mrb[0].mxu0
  %3755 = vdwg.mxu0
  %v3756 = vadd.f32 %v3726, %v2680
  %v3757 = vadd.f32 %v3729, %v2683
  %v3758 = vadd.f32 %v3734, %v2688
  %v3759 = vadd.f32 %v3737, %v2691
  %v3760 = vadd.f32 %v3742, %v2696
  %v3761 = vadd.f32 %v3745, %v2699
  %v3762 = vadd.f32 %v3750, %v2704
  %v3763 = vadd.f32 %v3753, %v2707
  %v3765 = vsel %vm420, %v3686, 0
  %v3768 = vsel %vm420, %v3756, 0
  %v3771 = vsel %vm420, %v3757, 0
  %v3774 = vsel %vm420, %v3758, 0
  %v3777 = vsel %vm420, %v3759, 0
  %v3780 = vsel %vm420, %v3760, 0
  %v3783 = vsel %vm420, %v3761, 0
  %v3786 = vsel %vm420, %v3762, 0
  %v3789 = vsel %vm420, %v3763, 0
  %3791 = vmatprep.subr.mxu0 0.0
  %3792 = vmatpush1.xpose.msra.mxu0 %v3768
  %3793 = vmatprep.subr.mxu0 0.0
  %3794 = vmatpush1.xpose.msra.mxu0 %v3771
  %3795 = vmatprep.subr.mxu0 0.0
  %3796 = vmatpush1.xpose.msra.mxu0 %v3774
  %3797 = vmatprep.subr.mxu0 0.0
  %3798 = vmatpush1.xpose.msra.mxu0 %v3777
  %3799 = vmatprep.subr.mxu0 0.0
  %3800 = vmatpush1.xpose.msra.mxu0 %v3780
  %3801 = vmatprep.subr.mxu0 0.0
  %3802 = vmatpush1.xpose.msra.mxu0 %v3783
  %3803 = vmatprep.subr.mxu0 0.0
  %3804 = vmatpush1.xpose.msra.mxu0 %v3786
  %3805 = vmatprep.subr.mxu0 0.0
  %3806 = vmatpush1.xpose.msra.mxu0 %v3789
  %3807 = vmatprep.subr.mxu0 0.0
  %3808 = vmatpush1.xpose.msra.mxu0 0.0
  %3809 = vmatprep.subr.mxu0 0.0
  %3810 = vmatpush1.xpose.msra.mxu0 0.0
  %3811 = vmatprep.subr.mxu0 0.0
  %3812 = vmatpush1.xpose.msra.mxu0 0.0
  %3813 = vmatprep.subr.mxu0 0.0
  %3814 = vmatpush1.xpose.msra.mxu0 0.0
  %3815 = vmatprep.subr.mxu0 0.0
  %3816 = vmatpush1.xpose.msra.mxu0 0.0
  %3817 = vmatprep.subr.mxu0 0.0
  %3818 = vmatpush1.xpose.msra.mxu0 0.0
  %3819 = vmatprep.subr.mxu0 0.0
  %3820 = vmatpush1.xpose.msra.mxu0 0.0
  %3821 = vmatprep.subr.mxu0 0.0
  %3822 = vmatpush1.xpose.msra.mxu0 0.0
  %3823 = vmatprep.subr.mxu0 0.0
  %3824 = vmatpush1.xpose.msra.mxu0 0.0
  %3825 = vmatprep.subr.mxu0 0.0
  %3826 = vmatpush1.xpose.msra.mxu0 0.0
  %3827 = vmatprep.subr.mxu0 0.0
  %3828 = vmatpush1.xpose.msra.mxu0 0.0
  %3829 = vmatprep.subr.mxu0 0.0
  %3830 = vmatpush1.xpose.msra.mxu0 0.0
  %3831 = vmatprep.subr.mxu0 0.0
  %3832 = vmatpush1.xpose.msra.mxu0 0.0
  %3833 = vmatprep.subr.mxu0 0.0
  %3834 = vmatpush1.xpose.msra.mxu0 0.0
  %3835 = vmatprep.subr.mxu0 0.0
  %3836 = vmatpush1.xpose.msra.mxu0 0.0
  %3837 = vmatprep.subr.mxu0 0.0
  %3838 = vmatpush1.xpose.msra.mxu0 0.0
  %3839 = vmatprep.subr.mxu0 0.0
  %3840 = vmatpush1.xpose.msra.mxu0 0.0
  %3841 = vmatprep.subr.mxu0 0.0
  %3842 = vmatpush1.xpose.msra.mxu0 0.0
  %3843 = vmatprep.subr.mxu0 0.0
  %3844 = vmatpush1.xpose.msra.mxu0 0.0
  %3845 = vmatprep.subr.mxu0 0.0
  %3846 = vmatpush1.xpose.msra.mxu0 0.0
  %3847 = vmatprep.subr.mxu0 0.0
  %3848 = vmatpush1.xpose.msra.mxu0 0.0
  %3849 = vmatprep.subr.mxu0 0.0
  %3850 = vmatpush1.xpose.msra.mxu0 0.0
  %3851 = vmatprep.subr.mxu0 0.0
  %3852 = vmatpush1.xpose.msra.mxu0 0.0
  %3853 = vmatprep.subr.mxu0 0.0
  %3854 = vmatpush1.xpose.msra.mxu0 0.0
  %3855 = vmatprep.mubr.f32.mxu0 0.0
  %3856 = vmatmul.mubr.f32.gmra.mrb[0].mxu0 %v3765
  %v3857 = vpop.f32.mrb[0].mxu0
  %v3858 = vadd.f32 0.0, %v3857
  %v3859 = vpop.f32.mrb[0].mxu0
  %3860 = vdwg.mxu0
  %v3861 = vmul.f32 %v3858, 0.17677669
  %3862 = vmatprep.subr.bf16.mxu0 0
  %3863 = vmatpush1.bf16.msra.mxu0 %v2641
  %3864 = vmatprep.subr.bf16.mxu0 0
  %3865 = vmatpush1.bf16.msra.mxu0 %v2642
  %3866 = vmatprep.subr.bf16.mxu0 0
  %3867 = vmatpush1.bf16.msra.mxu0 0
  %3868 = vmatprep.subr.bf16.mxu0 0
  %3869 = vmatpush1.bf16.msra.mxu0 0
  %3870 = vmatprep.subr.bf16.mxu0 0
  %3871 = vmatpush1.bf16.msra.mxu0 0
  %3872 = vmatprep.subr.bf16.mxu0 0
  %3873 = vmatpush1.bf16.msra.mxu0 0
  %3874 = vmatprep.subr.bf16.mxu0 0
  %3875 = vmatpush1.bf16.msra.mxu0 0
  %3876 = vmatprep.subr.bf16.mxu0 0
  %3877 = vmatpush1.bf16.msra.mxu0 0
  %3878 = vmatprep.subr.bf16.mxu0 0
  %3879 = vmatpush1.bf16.msra.mxu0 0
  %3880 = vmatprep.subr.bf16.mxu0 0
  %3881 = vmatpush1.bf16.msra.mxu0 0
  %3882 = vmatprep.subr.bf16.mxu0 0
  %3883 = vmatpush1.bf16.msra.mxu0 0
  %3884 = vmatprep.subr.bf16.mxu0 0
  %3885 = vmatpush1.bf16.msra.mxu0 0
  %3886 = vmatprep.subr.bf16.mxu0 0
  %3887 = vmatpush1.bf16.msra.mxu0 0
  %3888 = vmatprep.subr.bf16.mxu0 0
  %3889 = vmatpush1.bf16.msra.mxu0 0
  %3890 = vmatprep.subr.bf16.mxu0 0
  %3891 = vmatpush1.bf16.msra.mxu0 0
  %3892 = vmatprep.subr.bf16.mxu0 0
  %3893 = vmatpush1.bf16.msra.mxu0 0
  %3894 = vmatprep.mubr.bf16.mxu0 0
  %3895 = vmatmul.mubr.bf16.gmra.mrb[0].mxu0 %v2025
  %v3896 = vpop.f32.mrb[0].mxu0
  %v3897 = vadd.f32 0.0, %v3896
  %v3898 = vpop.f32.mrb[0].mxu0
  %v3899 = vpop.f32.mrb[0].mxu0
  %v3900 = vadd.f32 0.0, %v3899
  %v3901 = vpop.f32.mrb[0].mxu0
  %3902 = vdwg.mxu0
  %v3903 = vadd.f32 %v3897, %v2745
  %v3904 = vadd.f32 %v3900, %v2748
  %v3906 = vsel %vm420, %v3903, 0
  %v3909 = vsel %vm420, %v3904, 0
  %3911 = vmatprep.subr.mxu0 0.0
  %3912 = vmatpush1.xpose.msra.mxu0 %v3906
  %3913 = vmatprep.subr.mxu0 0.0
  %3914 = vmatpush1.xpose.msra.mxu0 %v3909
  %3915 = vmatprep.subr.mxu0 0.0
  %3916 = vmatpush1.xpose.msra.mxu0 0.0
  %3917 = vmatprep.subr.mxu0 0.0
  %3918 = vmatpush1.xpose.msra.mxu0 0.0
  %3919 = vmatprep.subr.mxu0 0.0
  %3920 = vmatpush1.xpose.msra.mxu0 0.0
  %3921 = vmatprep.subr.mxu0 0.0
  %3922 = vmatpush1.xpose.msra.mxu0 0.0
  %3923 = vmatprep.subr.mxu0 0.0
  %3924 = vmatpush1.xpose.msra.mxu0 0.0
  %3925 = vmatprep.subr.mxu0 0.0
  %3926 = vmatpush1.xpose.msra.mxu0 0.0
  %3927 = vmatprep.subr.mxu0 0.0
  %3928 = vmatpush1.xpose.msra.mxu0 0.0
  %3929 = vmatprep.subr.mxu0 0.0
  %3930 = vmatpush1.xpose.msra.mxu0 0.0
  %3931 = vmatprep.subr.mxu0 0.0
  %3932 = vmatpush1.xpose.msra.mxu0 0.0
  %3933 = vmatprep.subr.mxu0 0.0
  %3934 = vmatpush1.xpose.msra.mxu0 0.0
  %3935 = vmatprep.subr.mxu0 0.0
  %3936 = vmatpush1.xpose.msra.mxu0 0.0
  %3937 = vmatprep.subr.mxu0 0.0
  %3938 = vmatpush1.xpose.msra.mxu0 0.0
  %3939 = vmatprep.subr.mxu0 0.0
  %3940 = vmatpush1.xpose.msra.mxu0 0.0
  %3941 = vmatprep.subr.mxu0 0.0
  %3942 = vmatpush1.xpose.msra.mxu0 0.0
  %3943 = vmatprep.subr.mxu0 0.0
  %3944 = vmatpush1.xpose.msra.mxu0 0.0
  %3945 = vmatprep.subr.mxu0 0.0
  %3946 = vmatpush1.xpose.msra.mxu0 0.0
  %3947 = vmatprep.subr.mxu0 0.0
  %3948 = vmatpush1.xpose.msra.mxu0 0.0
  %3949 = vmatprep.subr.mxu0 0.0
  %3950 = vmatpush1.xpose.msra.mxu0 0.0
  %3951 = vmatprep.subr.mxu0 0.0
  %3952 = vmatpush1.xpose.msra.mxu0 0.0
  %3953 = vmatprep.subr.mxu0 0.0
  %3954 = vmatpush1.xpose.msra.mxu0 0.0
  %3955 = vmatprep.subr.mxu0 0.0
  %3956 = vmatpush1.xpose.msra.mxu0 0.0
  %3957 = vmatprep.subr.mxu0 0.0
  %3958 = vmatpush1.xpose.msra.mxu0 0.0
  %3959 = vmatprep.subr.mxu0 0.0
  %3960 = vmatpush1.xpose.msra.mxu0 0.0
  %3961 = vmatprep.subr.mxu0 0.0
  %3962 = vmatpush1.xpose.msra.mxu0 0.0
  %3963 = vmatprep.subr.mxu0 0.0
  %3964 = vmatpush1.xpose.msra.mxu0 0.0
  %3965 = vmatprep.subr.mxu0 0.0
  %3966 = vmatpush1.xpose.msra.mxu0 0.0
  %3967 = vmatprep.subr.mxu0 0.0
  %3968 = vmatpush1.xpose.msra.mxu0 0.0
  %3969 = vmatprep.subr.mxu0 0.0
  %3970 = vmatpush1.xpose.msra.mxu0 0.0
  %3971 = vmatprep.subr.mxu0 0.0
  %3972 = vmatpush1.xpose.msra.mxu0 0.0
  %3973 = vmatprep.subr.mxu0 0.0
  %3974 = vmatpush1.xpose.msra.mxu0 0.0
  %3975 = vmatprep.mubr.f32.mxu0 0.0
  %3976 = vmatmul.mubr.f32.gmra.mrb[0].mxu0 %v3765
  %v3977 = vpop.f32.mrb[0].mxu0
  %v3978 = vadd.f32 0.0, %v3977
  %v3979 = vpop.f32.mrb[0].mxu0
  %3980 = vdwg.mxu0
  %v3981 = vmul.f32 %v3978, 0.17677669
  %3982 = vmatprep.subr.bf16.mxu0 0
  %3983 = vmatpush1.bf16.msra.mxu0 %v2641
  %3984 = vmatprep.subr.bf16.mxu0 0
  %3985 = vmatpush1.bf16.msra.mxu0 %v2642
  %3986 = vmatprep.subr.bf16.mxu0 0
  %3987 = vmatpush1.bf16.msra.mxu0 0
  %3988 = vmatprep.subr.bf16.mxu0 0
  %3989 = vmatpush1.bf16.msra.mxu0 0
  %3990 = vmatprep.subr.bf16.mxu0 0
  %3991 = vmatpush1.bf16.msra.mxu0 0
  %3992 = vmatprep.subr.bf16.mxu0 0
  %3993 = vmatpush1.bf16.msra.mxu0 0
  %3994 = vmatprep.subr.bf16.mxu0 0
  %3995 = vmatpush1.bf16.msra.mxu0 0
  %3996 = vmatprep.subr.bf16.mxu0 0
  %3997 = vmatpush1.bf16.msra.mxu0 0
  %3998 = vmatprep.subr.bf16.mxu0 0
  %3999 = vmatpush1.bf16.msra.mxu0 0
  %4000 = vmatprep.subr.bf16.mxu0 0
  %4001 = vmatpush1.bf16.msra.mxu0 0
  %4002 = vmatprep.subr.bf16.mxu0 0
  %4003 = vmatpush1.bf16.msra.mxu0 0
  %4004 = vmatprep.subr.bf16.mxu0 0
  %4005 = vmatpush1.bf16.msra.mxu0 0
  %4006 = vmatprep.subr.bf16.mxu0 0
  %4007 = vmatpush1.bf16.msra.mxu0 0
  %4008 = vmatprep.subr.bf16.mxu0 0
  %4009 = vmatpush1.bf16.msra.mxu0 0
  %4010 = vmatprep.subr.bf16.mxu0 0
  %4011 = vmatpush1.bf16.msra.mxu0 0
  %4012 = vmatprep.subr.bf16.mxu0 0
  %4013 = vmatpush1.bf16.msra.mxu0 0
  %4014 = vmatprep.mubr.bf16.mxu0 0
  %4015 = vmatmul.mubr.bf16.gmra.mrb[0].mxu0 %v2149
  %v4016 = vpop.f32.mrb[0].mxu0
  %v4017 = vadd.f32 0.0, %v4016
  %v4018 = vpop.f32.mrb[0].mxu0
  %v4019 = vpop.f32.mrb[0].mxu0
  %v4020 = vpop.f32.mrb[0].mxu0
  %4021 = vdwg.mxu0
  %v4022 = vadd.f32 %v4017, %v2786
  %v4024 = vsel %vm420, %v4022, 0
  %4026 = vmatprep.subr.mxu0 0.0
  %4027 = vmatpush1.xpose.msra.mxu0 %v4024
  %4028 = vmatprep.subr.mxu0 0.0
  %4029 = vmatpush1.xpose.msra.mxu0 0.0
  %4030 = vmatprep.subr.mxu0 0.0
  %4031 = vmatpush1.xpose.msra.mxu0 0.0
  %4032 = vmatprep.subr.mxu0 0.0
  %4033 = vmatpush1.xpose.msra.mxu0 0.0
  %4034 = vmatprep.subr.mxu0 0.0
  %4035 = vmatpush1.xpose.msra.mxu0 0.0
  %4036 = vmatprep.subr.mxu0 0.0
  %4037 = vmatpush1.xpose.msra.mxu0 0.0
  %4038 = vmatprep.subr.mxu0 0.0
  %4039 = vmatpush1.xpose.msra.mxu0 0.0
  %4040 = vmatprep.subr.mxu0 0.0
  %4041 = vmatpush1.xpose.msra.mxu0 0.0
  %4042 = vmatprep.subr.mxu0 0.0
  %4043 = vmatpush1.xpose.msra.mxu0 0.0
  %4044 = vmatprep.subr.mxu0 0.0
  %4045 = vmatpush1.xpose.msra.mxu0 0.0
  %4046 = vmatprep.subr.mxu0 0.0
  %4047 = vmatpush1.xpose.msra.mxu0 0.0
  %4048 = vmatprep.subr.mxu0 0.0
  %4049 = vmatpush1.xpose.msra.mxu0 0.0
  %4050 = vmatprep.subr.mxu0 0.0
  %4051 = vmatpush1.xpose.msra.mxu0 0.0
  %4052 = vmatprep.subr.mxu0 0.0
  %4053 = vmatpush1.xpose.msra.mxu0 0.0
  %4054 = vmatprep.subr.mxu0 0.0
  %4055 = vmatpush1.xpose.msra.mxu0 0.0
  %4056 = vmatprep.subr.mxu0 0.0
  %4057 = vmatpush1.xpose.msra.mxu0 0.0
  %4058 = vmatprep.subr.mxu0 0.0
  %4059 = vmatpush1.xpose.msra.mxu0 0.0
  %4060 = vmatprep.subr.mxu0 0.0
  %4061 = vmatpush1.xpose.msra.mxu0 0.0
  %4062 = vmatprep.subr.mxu0 0.0
  %4063 = vmatpush1.xpose.msra.mxu0 0.0
  %4064 = vmatprep.subr.mxu0 0.0
  %4065 = vmatpush1.xpose.msra.mxu0 0.0
  %4066 = vmatprep.subr.mxu0 0.0
  %4067 = vmatpush1.xpose.msra.mxu0 0.0
  %4068 = vmatprep.subr.mxu0 0.0
  %4069 = vmatpush1.xpose.msra.mxu0 0.0
  %4070 = vmatprep.subr.mxu0 0.0
  %4071 = vmatpush1.xpose.msra.mxu0 0.0
  %4072 = vmatprep.subr.mxu0 0.0
  %4073 = vmatpush1.xpose.msra.mxu0 0.0
  %4074 = vmatprep.subr.mxu0 0.0
  %4075 = vmatpush1.xpose.msra.mxu0 0.0
  %4076 = vmatprep.subr.mxu0 0.0
  %4077 = vmatpush1.xpose.msra.mxu0 0.0
  %4078 = vmatprep.subr.mxu0 0.0
  %4079 = vmatpush1.xpose.msra.mxu0 0.0
  %4080 = vmatprep.subr.mxu0 0.0
  %4081 = vmatpush1.xpose.msra.mxu0 0.0
  %4082 = vmatprep.subr.mxu0 0.0
  %4083 = vmatpush1.xpose.msra.mxu0 0.0
  %4084 = vmatprep.subr.mxu0 0.0
  %4085 = vmatpush1.xpose.msra.mxu0 0.0
  %4086 = vmatprep.subr.mxu0 0.0
  %4087 = vmatpush1.xpose.msra.mxu0 0.0
  %4088 = vmatprep.subr.mxu0 0.0
  %4089 = vmatpush1.xpose.msra.mxu0 0.0
  %4090 = vmatprep.mubr.f32.mxu0 0.0
  %4091 = vmatmul.mubr.f32.gmra.mrb[0].mxu0 %v3765
  %v4092 = vpop.f32.mrb[0].mxu0
  %v4093 = vadd.f32 0.0, %v4092
  %v4094 = vpop.f32.mrb[0].mxu0
  %4095 = vdwg.mxu0
  %v4096 = vmul.f32 %v4093, 0.17677669
  %v4097 = vsel %vm1442, %v3861, -inf
  %4098 = vmax.xlane.f32.xlu0 %v4097
  %v4099 = vpop.xlane.xlu0 %4098
  %v4100 = vsel %vm112, %v3981, -inf
  %4101 = vmax.xlane.f32.xlu0 %v4100
  %v4102 = vpop.xlane.xlu0 %4101
  %v4103 = vmax.f32 %v4099, %v4102
  %v4104 = vsel %vm1450, %v4096, -inf
  %4105 = vmax.xlane.f32.xlu0 %v4104
  %v4106 = vpop.xlane.xlu0 %4105
  %v4107 = vmax.f32 %v4103, %v4106
  %v4108 = vsub.f32 %v3861, %v4107
  %v4109 = vmul.f32 %v4108, 1.442695
  %v4110 = vpow.pop %v4109
  %v4111 = vsel %vm1442, %v4110, 0.0
  %4112 = vadd.xlane.f32.xlu0 %v4111
  %v4113 = vpop.xlane.xlu0 %4112
  %v4114 = vpack.c.bf16 %v4110, %v4110
  %v4115 = vpack.c.bf16 %v3729, %v3726
  %v4116 = vpack.c.bf16 %v3737, %v3734
  %v4117 = vpack.c.bf16 %v3745, %v3742
  %v4118 = vpack.c.bf16 %v3753, %v3750
  %v4119 = vsub.f32 %v3981, %v4107
  %v4120 = vmul.f32 %v4119, 1.442695
  %v4121 = vpow.pop %v4120
  %v4122 = vsel %vm112, %v4121, 0.0
  %4123 = vadd.xlane.f32.xlu0 %v4122
  %v4124 = vpop.xlane.xlu0 %4123
  %v4125 = vpack.c.bf16 %v4121, %v4121
  %v4126 = vpack.c.bf16 %v3900, %v3897
  %4128 = vrot.lane.b32.xlu0 %v4126, 96
  %v4129 = vpop.permute.xlu0 %4128
  %v4132 = vsel %vm112, %v4125, 0
  %4134 = vmatprep.subr.bf16.mxu0 0
  %4135 = vmatpush1.bf16.msra.mxu0 %v4129
  %4136 = vmatprep.subr.bf16.mxu0 0
  %4137 = vmatpush1.bf16.msra.mxu0 0
  %4138 = vmatprep.subr.bf16.mxu0 0
  %4139 = vmatpush1.bf16.msra.mxu0 0
  %4140 = vmatprep.subr.bf16.mxu0 0
  %4141 = vmatpush1.bf16.msra.mxu0 0
  %4142 = vmatprep.subr.bf16.mxu0 0
  %4143 = vmatpush1.bf16.msra.mxu0 0
  %4144 = vmatprep.subr.bf16.mxu0 0
  %4145 = vmatpush1.bf16.msra.mxu0 0
  %4146 = vmatprep.subr.bf16.mxu0 0
  %4147 = vmatpush1.bf16.msra.mxu0 0
  %4148 = vmatprep.subr.bf16.mxu0 0
  %4149 = vmatpush1.bf16.msra.mxu0 0
  %4150 = vmatprep.subr.bf16.mxu0 0
  %4151 = vmatpush1.bf16.msra.mxu0 0
  %4152 = vmatprep.subr.bf16.mxu0 0
  %4153 = vmatpush1.bf16.msra.mxu0 0
  %4154 = vmatprep.subr.bf16.mxu0 0
  %4155 = vmatpush1.bf16.msra.mxu0 0
  %4156 = vmatprep.subr.bf16.mxu0 0
  %4157 = vmatpush1.bf16.msra.mxu0 0
  %4158 = vmatprep.subr.bf16.mxu0 0
  %4159 = vmatpush1.bf16.msra.mxu0 0
  %4160 = vmatprep.subr.bf16.mxu0 0
  %4161 = vmatpush1.bf16.msra.mxu0 0
  %4162 = vmatprep.subr.bf16.mxu0 0
  %4163 = vmatpush1.bf16.msra.mxu0 0
  %4164 = vmatprep.subr.bf16.mxu0 0
  %4165 = vmatpush1.bf16.msra.mxu0 0
  %4166 = vmatprep.mubr.bf16.mxu0 0
  %4167 = vmatmul.mubr.bf16.gmra.mrb[0].mxu0 %v4132
  %v4168 = vpop.f32.mrb[0].mxu0
  %v4169 = vadd.f32 0.0, %v4168
  %v4170 = vpop.f32.mrb[0].mxu0
  %v4171 = vpop.f32.mrb[0].mxu0
  %v4172 = vpop.f32.mrb[0].mxu0
  %4173 = vdwg.mxu0
  %v4174 = vadd.f32 %v4113, %v4124
  %4179 = vrot.lane.b32.xlu0 %v4115, 96
  %v4180 = vpop.permute.xlu0 %4179
  %4181 = vrot.lane.b32.xlu0 %v4116, 96
  %v4182 = vpop.permute.xlu0 %4181
  %4183 = vrot.lane.b32.xlu0 %v4117, 96
  %v4184 = vpop.permute.xlu0 %4183
  %4185 = vrot.lane.b32.xlu0 %v4118, 96
  %v4186 = vpop.permute.xlu0 %4185
  %v4192 = vsel %vm1442, %v4114, 0
  %4194 = vmatprep.subr.bf16.mxu0 0
  %4195 = vmatpush1.bf16.msra.mxu0 %v4180
  %4196 = vmatprep.subr.bf16.mxu0 0
  %4197 = vmatpush1.bf16.msra.mxu0 %v4182
  %4198 = vmatprep.subr.bf16.mxu0 0
  %4199 = vmatpush1.bf16.msra.mxu0 %v4184
  %4200 = vmatprep.subr.bf16.mxu0 0
  %4201 = vmatpush1.bf16.msra.mxu0 %v4186
  %4202 = vmatprep.subr.bf16.mxu0 0
  %4203 = vmatpush1.bf16.msra.mxu0 0
  %4204 = vmatprep.subr.bf16.mxu0 0
  %4205 = vmatpush1.bf16.msra.mxu0 0
  %4206 = vmatprep.subr.bf16.mxu0 0
  %4207 = vmatpush1.bf16.msra.mxu0 0
  %4208 = vmatprep.subr.bf16.mxu0 0
  %4209 = vmatpush1.bf16.msra.mxu0 0
  %4210 = vmatprep.subr.bf16.mxu0 0
  %4211 = vmatpush1.bf16.msra.mxu0 0
  %4212 = vmatprep.subr.bf16.mxu0 0
  %4213 = vmatpush1.bf16.msra.mxu0 0
  %4214 = vmatprep.subr.bf16.mxu0 0
  %4215 = vmatpush1.bf16.msra.mxu0 0
  %4216 = vmatprep.subr.bf16.mxu0 0
  %4217 = vmatpush1.bf16.msra.mxu0 0
  %4218 = vmatprep.subr.bf16.mxu0 0
  %4219 = vmatpush1.bf16.msra.mxu0 0
  %4220 = vmatprep.subr.bf16.mxu0 0
  %4221 = vmatpush1.bf16.msra.mxu0 0
  %4222 = vmatprep.subr.bf16.mxu0 0
  %4223 = vmatpush1.bf16.msra.mxu0 0
  %4224 = vmatprep.subr.bf16.mxu0 0
  %4225 = vmatpush1.bf16.msra.mxu0 0
  %4226 = vmatprep.mubr.bf16.mxu0 0
  %4227 = vmatmul.mubr.bf16.gmra.mrb[0].mxu0 %v4192
  %v4228 = vpop.f32.mrb[0].mxu0
  %v4229 = vadd.f32 %v4169, %v4228
  %v4230 = vpop.f32.mrb[0].mxu0
  %v4231 = vpop.f32.mrb[0].mxu0
  %v4232 = vpop.f32.mrb[0].mxu0
  %4233 = vdwg.mxu0
  %v4234 = vsub.f32 %v4096, %v4107
  %v4235 = vmul.f32 %v4234, 1.442695
  %v4236 = vpow.pop %v4235
  %v4237 = vsel %vm1450, %v4236, 0.0
  %4238 = vadd.xlane.f32.xlu0 %v4237
  %v4239 = vpop.xlane.xlu0 %4238
  %v4240 = vpack.c.bf16 %v4236, %v4236
  %v4241 = vpack.c.bf16 %v4017, %v4017
  %4243 = vrot.lane.b32.xlu0 %v4241, 96
  %v4244 = vpop.permute.xlu0 %4243
  %v4246 = vsel %vm1450, %v4240, 0
  %v4249 = vsel %vm1595, %v4244, 0
  %4251 = vmatprep.subr.bf16.mxu0 0
  %4252 = vmatpush1.bf16.msra.mxu0 %v4249
  %4253 = vmatprep.subr.bf16.mxu0 0
  %4254 = vmatpush1.bf16.msra.mxu0 0
  %4255 = vmatprep.subr.bf16.mxu0 0
  %4256 = vmatpush1.bf16.msra.mxu0 0
  %4257 = vmatprep.subr.bf16.mxu0 0
  %4258 = vmatpush1.bf16.msra.mxu0 0
  %4259 = vmatprep.subr.bf16.mxu0 0
  %4260 = vmatpush1.bf16.msra.mxu0 0
  %4261 = vmatprep.subr.bf16.mxu0 0
  %4262 = vmatpush1.bf16.msra.mxu0 0
  %4263 = vmatprep.subr.bf16.mxu0 0
  %4264 = vmatpush1.bf16.msra.mxu0 0
  %4265 = vmatprep.subr.bf16.mxu0 0
  %4266 = vmatpush1.bf16.msra.mxu0 0
  %4267 = vmatprep.subr.bf16.mxu0 0
  %4268 = vmatpush1.bf16.msra.mxu0 0
  %4269 = vmatprep.subr.bf16.mxu0 0
  %4270 = vmatpush1.bf16.msra.mxu0 0
  %4271 = vmatprep.subr.bf16.mxu0 0
  %4272 = vmatpush1.bf16.msra.mxu0 0
  %4273 = vmatprep.subr.bf16.mxu0 0
  %4274 = vmatpush1.bf16.msra.mxu0 0
  %4275 = vmatprep.subr.bf16.mxu0 0
  %4276 = vmatpush1.bf16.msra.mxu0 0
  %4277 = vmatprep.subr.bf16.mxu0 0
  %4278 = vmatpush1.bf16.msra.mxu0 0
  %4279 = vmatprep.subr.bf16.mxu0 0
  %4280 = vmatpush1.bf16.msra.mxu0 0
  %4281 = vmatprep.subr.bf16.mxu0 0
  %4282 = vmatpush1.bf16.msra.mxu0 0
  %4283 = vmatprep.mubr.bf16.mxu0 0
  %4284 = vmatmul.mubr.bf16.gmra.mrb[0].mxu0 %v4246
  %v4285 = vpop.f32.mrb[0].mxu0
  %v4286 = vadd.f32 0.0, %v4285
  %v4287 = vpop.f32.mrb[0].mxu0
  %v4288 = vpop.f32.mrb[0].mxu0
  %v4289 = vpop.f32.mrb[0].mxu0
  %4290 = vdwg.mxu0
  %v4291 = vadd.f32 %v4174, %v4239
  %v4292 = vadd.f32 %v4229, %v4286
  %v4293 = vrcp.pop %v4291
  %v4294 = vmul.f32 %v4292, %v4293
  %v4295 = vpack.c.bf16 %v4294, %v4294
  %v4297 = vsel %vm420, %v4295, 0
  %4299 = vmatprep.subr.bf16.mxu0 0
  %4300 = vmatpush1.bf16.msra.mxu0 %v3460
  %4301 = vmatprep.subr.bf16.mxu0 0
  %4302 = vmatpush1.bf16.msra.mxu0 %v3461
  %4303 = vmatprep.subr.bf16.mxu0 0
  %4304 = vmatpush1.bf16.msra.mxu0 0
  %4305 = vmatprep.subr.bf16.mxu0 0
  %4306 = vmatpush1.bf16.msra.mxu0 0
  %4307 = vmatprep.subr.bf16.mxu0 0
  %4308 = vmatpush1.bf16.msra.mxu0 0
  %4309 = vmatprep.subr.bf16.mxu0 0
  %4310 = vmatpush1.bf16.msra.mxu0 0
  %4311 = vmatprep.subr.bf16.mxu0 0
  %4312 = vmatpush1.bf16.msra.mxu0 0
  %4313 = vmatprep.subr.bf16.mxu0 0
  %4314 = vmatpush1.bf16.msra.mxu0 0
  %4315 = vmatprep.subr.bf16.mxu0 0
  %4316 = vmatpush1.bf16.msra.mxu0 0
  %4317 = vmatprep.subr.bf16.mxu0 0
  %4318 = vmatpush1.bf16.msra.mxu0 0
  %4319 = vmatprep.subr.bf16.mxu0 0
  %4320 = vmatpush1.bf16.msra.mxu0 0
  %4321 = vmatprep.subr.bf16.mxu0 0
  %4322 = vmatpush1.bf16.msra.mxu0 0
  %4323 = vmatprep.subr.bf16.mxu0 0
  %4324 = vmatpush1.bf16.msra.mxu0 0
  %4325 = vmatprep.subr.bf16.mxu0 0
  %4326 = vmatpush1.bf16.msra.mxu0 0
  %4327 = vmatprep.subr.bf16.mxu0 0
  %4328 = vmatpush1.bf16.msra.mxu0 0
  %4329 = vmatprep.subr.bf16.mxu0 0
  %4330 = vmatpush1.bf16.msra.mxu0 0
  %4331 = vmatprep.mubr.bf16.mxu0 0
  %4332 = vmatmul.mubr.bf16.gmra.mrb[0].mxu0 %v4297
  %v4333 = vpop.f32.mrb[0].mxu0
  %v4334 = vadd.f32 0.0, %v4333
  %v4335 = vpop.f32.mrb[0].mxu0
  %v4336 = vpop.f32.mrb[0].mxu0
  %v4337 = vpop.f32.mrb[0].mxu0
  %4338 = vdwg.mxu0
  %v4339 = vadd.f32 %v2599, %v4334
  %v4340 = vpack.c.bf16 %v4339, %v4339
  %v4342 = vsel %vm420, %v4340, 0
  %4344 = vmatprep.subr.bf16.mxu0 0
  %4345 = vmatpush1.bf16.msra.mxu0 %v3523
  %4346 = vmatprep.subr.bf16.mxu0 0
  %4347 = vmatpush1.bf16.msra.mxu0 %v3524
  %4348 = vmatprep.subr.bf16.mxu0 0
  %4349 = vmatpush1.bf16.msra.mxu0 0
  %4350 = vmatprep.subr.bf16.mxu0 0
  %4351 = vmatpush1.bf16.msra.mxu0 0
  %4352 = vmatprep.subr.bf16.mxu0 0
  %4353 = vmatpush1.bf16.msra.mxu0 0
  %4354 = vmatprep.subr.bf16.mxu0 0
  %4355 = vmatpush1.bf16.msra.mxu0 0
  %4356 = vmatprep.subr.bf16.mxu0 0
  %4357 = vmatpush1.bf16.msra.mxu0 0
  %4358 = vmatprep.subr.bf16.mxu0 0
  %4359 = vmatpush1.bf16.msra.mxu0 0
  %4360 = vmatprep.subr.bf16.mxu0 0
  %4361 = vmatpush1.bf16.msra.mxu0 0
  %4362 = vmatprep.subr.bf16.mxu0 0
  %4363 = vmatpush1.bf16.msra.mxu0 0
  %4364 = vmatprep.subr.bf16.mxu0 0
  %4365 = vmatpush1.bf16.msra.mxu0 0
  %4366 = vmatprep.subr.bf16.mxu0 0
  %4367 = vmatpush1.bf16.msra.mxu0 0
  %4368 = vmatprep.subr.bf16.mxu0 0
  %4369 = vmatpush1.bf16.msra.mxu0 0
  %4370 = vmatprep.subr.bf16.mxu0 0
  %4371 = vmatpush1.bf16.msra.mxu0 0
  %4372 = vmatprep.subr.bf16.mxu0 0
  %4373 = vmatpush1.bf16.msra.mxu0 0
  %4374 = vmatprep.subr.bf16.mxu0 0
  %4375 = vmatpush1.bf16.msra.mxu0 0
  %4376 = vmatprep.mubr.bf16.mxu0 0
  %4377 = vmatmul.mubr.bf16.gmra.mrb[0].mxu0 %v4342
  %v4378 = vpop.f32.mrb[0].mxu0
  %v4379 = vadd.f32 %v3513, %v4378
  %v4380 = vpop.f32.mrb[0].mxu0
  %v4381 = vpop.f32.mrb[0].mxu0
  %v4382 = vpop.f32.mrb[0].mxu0
  %4383 = vdwg.mxu0
  %v4384 = vmax.f32 %v4379, 0.0
  %v4385 = vpack.c.bf16 %v4384, %v4384
  %v4387 = vsel %vm1442, %v4385, 0
  %4389 = vmatprep.subr.bf16.mxu0 0
  %4390 = vmatpush1.bf16.msra.mxu0 %v3588
  %4391 = vmatprep.subr.bf16.mxu0 0
  %4392 = vmatpush1.bf16.msra.mxu0 %v3589
  %4393 = vmatprep.subr.bf16.mxu0 0
  %4394 = vmatpush1.bf16.msra.mxu0 %v3590
  %4395 = vmatprep.subr.bf16.mxu0 0
  %4396 = vmatpush1.bf16.msra.mxu0 %v3591
  %4397 = vmatprep.subr.bf16.mxu0 0
  %4398 = vmatpush1.bf16.msra.mxu0 0
  %4399 = vmatprep.subr.bf16.mxu0 0
  %4400 = vmatpush1.bf16.msra.mxu0 0
  %4401 = vmatprep.subr.bf16.mxu0 0
  %4402 = vmatpush1.bf16.msra.mxu0 0
  %4403 = vmatprep.subr.bf16.mxu0 0
  %4404 = vmatpush1.bf16.msra.mxu0 0
  %4405 = vmatprep.subr.bf16.mxu0 0
  %4406 = vmatpush1.bf16.msra.mxu0 0
  %4407 = vmatprep.subr.bf16.mxu0 0
  %4408 = vmatpush1.bf16.msra.mxu0 0
  %4409 = vmatprep.subr.bf16.mxu0 0
  %4410 = vmatpush1.bf16.msra.mxu0 0
  %4411 = vmatprep.subr.bf16.mxu0 0
  %4412 = vmatpush1.bf16.msra.mxu0 0
  %4413 = vmatprep.subr.bf16.mxu0 0
  %4414 = vmatpush1.bf16.msra.mxu0 0
  %4415 = vmatprep.subr.bf16.mxu0 0
  %4416 = vmatpush1.bf16.msra.mxu0 0
  %4417 = vmatprep.subr.bf16.mxu0 0
  %4418 = vmatpush1.bf16.msra.mxu0 0
  %4419 = vmatprep.subr.bf16.mxu0 0
  %4420 = vmatpush1.bf16.msra.mxu0 0
  %4421 = vmatprep.mubr.bf16.mxu0 0
  %4422 = vmatmul.mubr.bf16.gmra.mrb[0].mxu0 %v4387
  %v4423 = vpop.f32.mrb[0].mxu0
  %v4424 = vadd.f32 0.0, %v4423
  %v4425 = vpop.f32.mrb[0].mxu0
  %v4426 = vpop.f32.mrb[0].mxu0
  %v4427 = vpop.f32.mrb[0].mxu0
  %4428 = vdwg.mxu0
  %v4429 = vadd.f32 %v4339, %v4424
  %v4430 = vadd.f32 %v4429, %v3644
  %v4431 = vld [vmem:[%s23] sm:$0x1]
  %v4432 = vlaneseq
  %v4433 = vshrl.u32 %v4432, 7
  %v4434 = vmul.f32 %v1838, %v1838
  %v4435 = vsel %vm420, %v4434, 0.0
  %4436 = vadd.xlane.f32.xlu0 %v4435
  %v4437 = vpop.xlane.xlu0 %4436
  %v4438 = vmul.f32 %v4437, %v384
  %v4439 = vadd.f32 %v4438, 1e-06
  %v4440 = vrsqrt.pop %v4439
  %v4441 = vmul.f32 %v1838, %v4440
  %v4443 = vlaneseq
  %v4444 = vshrl.u32 %v4443, 7
  %v4445 = vsub.s32 0, %v4444
  %v4446 = vrot.slane %v4431, %v4445
  %v4448 = vmul.f32 %v4441, %v4446
  %v4449 = vmul.f32 %v3646, %v3646
  %v4450 = vsel %vm420, %v4449, 0.0
  %4451 = vadd.xlane.f32.xlu0 %v4450
  %v4452 = vpop.xlane.xlu0 %4451
  %v4453 = vmul.f32 %v4452, %v384
  %v4454 = vadd.f32 %v4453, 1e-06
  %v4455 = vrsqrt.pop %v4454
  %v4456 = vmul.f32 %v3646, %v4455
  %v4457 = vmul.f32 %v4456, %v4446
  %v4458 = vmul.f32 %v4448, 4.0
  %v4459 = vmul.f32 %v4457, 4.0
  %v4460 = vmax.f32 %v4458, %v4459
  %v4461 = vsub.f32 %v4458, %v4460
  %v4462 = vmul.f32 %v4461, 1.442695
  %v4463 = vpow.pop %v4462
  %v4464 = vmul.f32 %v4448, %v4463
  %v4465 = vsub.f32 %v4459, %v4460
  %v4466 = vmul.f32 %v4465, 1.442695
  %v4467 = vpow.pop %v4466
  %v4468 = vadd.f32 %v4463, %v4467
  %v4469 = vmul.f32 %v4457, %v4467
  %v4470 = vadd.f32 %v4464, %v4469
  %v4471 = vrcp.pop %v4468
  %v4472 = vmul.f32 %v4470, %v4471
  %v4473 = vld [vmem:[%s25] sm:$0xff]
  %v4474 = vld [vmem:[%s24] sm:$0xf]
  %v4475 = vld [vmem:[%s24 + $0x4] sm:$0xf]
  %v4476 = vld [vmem:[%s24 + $0x8] sm:$0xf]
  %v4477 = vld [vmem:[%s24 + $0xc] sm:$0xf]
  %v4478 = vpack.c.bf16 %v4472, %v4472
  %v4483 = vunpack.c.l.b16 %v4474
  %v4484 = vunpack.c.l.b16 %v4475
  %v4485 = vunpack.c.l.b16 %v4476
  %v4486 = vunpack.c.l.b16 %v4477
  %v4487 = vpack.c.b16 %v4484, %v4483
  %v4488 = vpack.c.b16 %v4486, %v4485
  %v4492 = vsel %vm420, %v4478, 0
  %4494 = vmatprep.subr.bf16.mxu0 0
  %4495 = vmatpush1.bf16.msra.mxu0 %v4487
  %4496 = vmatprep.subr.bf16.mxu0 0
  %4497 = vmatpush1.bf16.msra.mxu0 %v4488
  %4498 = vmatprep.subr.bf16.mxu0 0
  %4499 = vmatpush1.bf16.msra.mxu0 0
  %4500 = vmatprep.subr.bf16.mxu0 0
  %4501 = vmatpush1.bf16.msra.mxu0 0
  %4502 = vmatprep.subr.bf16.mxu0 0
  %4503 = vmatpush1.bf16.msra.mxu0 0
  %4504 = vmatprep.subr.bf16.mxu0 0
  %4505 = vmatpush1.bf16.msra.mxu0 0
  %4506 = vmatprep.subr.bf16.mxu0 0
  %4507 = vmatpush1.bf16.msra.mxu0 0
  %4508 = vmatprep.subr.bf16.mxu0 0
  %4509 = vmatpush1.bf16.msra.mxu0 0
  %4510 = vmatprep.subr.bf16.mxu0 0
  %4511 = vmatpush1.bf16.msra.mxu0 0
  %4512 = vmatprep.subr.bf16.mxu0 0
  %4513 = vmatpush1.bf16.msra.mxu0 0
  %4514 = vmatprep.subr.bf16.mxu0 0
  %4515 = vmatpush1.bf16.msra.mxu0 0
  %4516 = vmatprep.subr.bf16.mxu0 0
  %4517 = vmatpush1.bf16.msra.mxu0 0
  %4518 = vmatprep.subr.bf16.mxu0 0
  %4519 = vmatpush1.bf16.msra.mxu0 0
  %4520 = vmatprep.subr.bf16.mxu0 0
  %4521 = vmatpush1.bf16.msra.mxu0 0
  %4522 = vmatprep.subr.bf16.mxu0 0
  %4523 = vmatpush1.bf16.msra.mxu0 0
  %4524 = vmatprep.subr.bf16.mxu0 0
  %4525 = vmatpush1.bf16.msra.mxu0 0
  %4526 = vmatprep.mubr.bf16.mxu0 0
  %4527 = vmatmul.mubr.bf16.gmra.mrb[0].mxu0 %v4492
  %v4528 = vpop.f32.mrb[0].mxu0
  %v4529 = vadd.f32 0.0, %v4528
  %v4530 = vpop.f32.mrb[0].mxu0
  %v4531 = vpop.f32.mrb[0].mxu0
  %v4532 = vpop.f32.mrb[0].mxu0
  %4533 = vdwg.mxu0
  %vm4534 = vcmp.eq.s32.totalorder %v4433, 0
  %v4535 = vsel %vm4534, %v4529, 0.0
  %v4536 = vadd.f32 %v4473, %v4535
  %s4537 = scalar_lea.vmem %s24, 16
  %v4538 = vld [vmem:[%s4537] sm:$0xf]
  %v4539 = vld [vmem:[%s4537 + $0x4] sm:$0xf]
  %v4540 = vld [vmem:[%s4537 + $0x8] sm:$0xf]
  %v4541 = vld [vmem:[%s4537 + $0xc] sm:$0xf]
  %v4546 = vunpack.c.l.b16 %v4538
  %v4547 = vunpack.c.l.b16 %v4539
  %v4548 = vunpack.c.l.b16 %v4540
  %v4549 = vunpack.c.l.b16 %v4541
  %v4550 = vpack.c.b16 %v4547, %v4546
  %v4551 = vpack.c.b16 %v4549, %v4548
  %4554 = vmatprep.subr.bf16.mxu0 0
  %4555 = vmatpush1.bf16.msra.mxu0 %v4550
  %4556 = vmatprep.subr.bf16.mxu0 0
  %4557 = vmatpush1.bf16.msra.mxu0 %v4551
  %4558 = vmatprep.subr.bf16.mxu0 0
  %4559 = vmatpush1.bf16.msra.mxu0 0
  %4560 = vmatprep.subr.bf16.mxu0 0
  %4561 = vmatpush1.bf16.msra.mxu0 0
  %4562 = vmatprep.subr.bf16.mxu0 0
  %4563 = vmatpush1.bf16.msra.mxu0 0
  %4564 = vmatprep.subr.bf16.mxu0 0
  %4565 = vmatpush1.bf16.msra.mxu0 0
  %4566 = vmatprep.subr.bf16.mxu0 0
  %4567 = vmatpush1.bf16.msra.mxu0 0
  %4568 = vmatprep.subr.bf16.mxu0 0
  %4569 = vmatpush1.bf16.msra.mxu0 0
  %4570 = vmatprep.subr.bf16.mxu0 0
  %4571 = vmatpush1.bf16.msra.mxu0 0
  %4572 = vmatprep.subr.bf16.mxu0 0
  %4573 = vmatpush1.bf16.msra.mxu0 0
  %4574 = vmatprep.subr.bf16.mxu0 0
  %4575 = vmatpush1.bf16.msra.mxu0 0
  %4576 = vmatprep.subr.bf16.mxu0 0
  %4577 = vmatpush1.bf16.msra.mxu0 0
  %4578 = vmatprep.subr.bf16.mxu0 0
  %4579 = vmatpush1.bf16.msra.mxu0 0
  %4580 = vmatprep.subr.bf16.mxu0 0
  %4581 = vmatpush1.bf16.msra.mxu0 0
  %4582 = vmatprep.subr.bf16.mxu0 0
  %4583 = vmatpush1.bf16.msra.mxu0 0
  %4584 = vmatprep.subr.bf16.mxu0 0
  %4585 = vmatpush1.bf16.msra.mxu0 0
  %4586 = vmatprep.mubr.bf16.mxu0 0
  %4587 = vmatmul.mubr.bf16.gmra.mrb[0].mxu0 %v4492
  %v4588 = vpop.f32.mrb[0].mxu0
  %v4589 = vadd.f32 0.0, %v4588
  %v4590 = vpop.f32.mrb[0].mxu0
  %v4591 = vpop.f32.mrb[0].mxu0
  %v4592 = vpop.f32.mrb[0].mxu0
  %4593 = vdwg.mxu0
  %vm4594 = vcmp.eq.s32.totalorder %v4433, 1
  %v4595 = vsel %vm4594, %v4589, 0.0
  %v4596 = vadd.f32 %v4536, %v4595
  %s4597 = scalar_lea.vmem %s24, 32
  %v4598 = vld [vmem:[%s4597] sm:$0xf]
  %v4599 = vld [vmem:[%s4597 + $0x4] sm:$0xf]
  %v4600 = vld [vmem:[%s4597 + $0x8] sm:$0xf]
  %v4601 = vld [vmem:[%s4597 + $0xc] sm:$0xf]
  %v4606 = vunpack.c.l.b16 %v4598
  %v4607 = vunpack.c.l.b16 %v4599
  %v4608 = vunpack.c.l.b16 %v4600
  %v4609 = vunpack.c.l.b16 %v4601
  %v4610 = vpack.c.b16 %v4607, %v4606
  %v4611 = vpack.c.b16 %v4609, %v4608
  %4614 = vmatprep.subr.bf16.mxu0 0
  %4615 = vmatpush1.bf16.msra.mxu0 %v4610
  %4616 = vmatprep.subr.bf16.mxu0 0
  %4617 = vmatpush1.bf16.msra.mxu0 %v4611
  %4618 = vmatprep.subr.bf16.mxu0 0
  %4619 = vmatpush1.bf16.msra.mxu0 0
  %4620 = vmatprep.subr.bf16.mxu0 0
  %4621 = vmatpush1.bf16.msra.mxu0 0
  %4622 = vmatprep.subr.bf16.mxu0 0
  %4623 = vmatpush1.bf16.msra.mxu0 0
  %4624 = vmatprep.subr.bf16.mxu0 0
  %4625 = vmatpush1.bf16.msra.mxu0 0
  %4626 = vmatprep.subr.bf16.mxu0 0
  %4627 = vmatpush1.bf16.msra.mxu0 0
  %4628 = vmatprep.subr.bf16.mxu0 0
  %4629 = vmatpush1.bf16.msra.mxu0 0
  %4630 = vmatprep.subr.bf16.mxu0 0
  %4631 = vmatpush1.bf16.msra.mxu0 0
  %4632 = vmatprep.subr.bf16.mxu0 0
  %4633 = vmatpush1.bf16.msra.mxu0 0
  %4634 = vmatprep.subr.bf16.mxu0 0
  %4635 = vmatpush1.bf16.msra.mxu0 0
  %4636 = vmatprep.subr.bf16.mxu0 0
  %4637 = vmatpush1.bf16.msra.mxu0 0
  %4638 = vmatprep.subr.bf16.mxu0 0
  %4639 = vmatpush1.bf16.msra.mxu0 0
  %4640 = vmatprep.subr.bf16.mxu0 0
  %4641 = vmatpush1.bf16.msra.mxu0 0
  %4642 = vmatprep.subr.bf16.mxu0 0
  %4643 = vmatpush1.bf16.msra.mxu0 0
  %4644 = vmatprep.subr.bf16.mxu0 0
  %4645 = vmatpush1.bf16.msra.mxu0 0
  %4646 = vmatprep.mubr.bf16.mxu0 0
  %4647 = vmatmul.mubr.bf16.gmra.mrb[0].mxu0 %v4492
  %v4648 = vpop.f32.mrb[0].mxu0
  %v4649 = vadd.f32 0.0, %v4648
  %v4650 = vpop.f32.mrb[0].mxu0
  %v4651 = vpop.f32.mrb[0].mxu0
  %v4652 = vpop.f32.mrb[0].mxu0
  %4653 = vdwg.mxu0
  %vm4654 = vcmp.eq.s32.totalorder %v4433, 2
  %v4655 = vsel %vm4654, %v4649, 0.0
  %v4656 = vadd.f32 %v4596, %v4655
  %s4657 = scalar_lea.vmem %s24, 48
  %v4658 = vld [vmem:[%s4657] sm:$0xf]
  %v4659 = vld [vmem:[%s4657 + $0x4] sm:$0xf]
  %v4660 = vld [vmem:[%s4657 + $0x8] sm:$0xf]
  %v4661 = vld [vmem:[%s4657 + $0xc] sm:$0xf]
  %v4666 = vunpack.c.l.b16 %v4658
  %v4667 = vunpack.c.l.b16 %v4659
  %v4668 = vunpack.c.l.b16 %v4660
  %v4669 = vunpack.c.l.b16 %v4661
  %v4670 = vpack.c.b16 %v4667, %v4666
  %v4671 = vpack.c.b16 %v4669, %v4668
  %4674 = vmatprep.subr.bf16.mxu0 0
  %4675 = vmatpush1.bf16.msra.mxu0 %v4670
  %4676 = vmatprep.subr.bf16.mxu0 0
  %4677 = vmatpush1.bf16.msra.mxu0 %v4671
  %4678 = vmatprep.subr.bf16.mxu0 0
  %4679 = vmatpush1.bf16.msra.mxu0 0
  %4680 = vmatprep.subr.bf16.mxu0 0
  %4681 = vmatpush1.bf16.msra.mxu0 0
  %4682 = vmatprep.subr.bf16.mxu0 0
  %4683 = vmatpush1.bf16.msra.mxu0 0
  %4684 = vmatprep.subr.bf16.mxu0 0
  %4685 = vmatpush1.bf16.msra.mxu0 0
  %4686 = vmatprep.subr.bf16.mxu0 0
  %4687 = vmatpush1.bf16.msra.mxu0 0
  %4688 = vmatprep.subr.bf16.mxu0 0
  %4689 = vmatpush1.bf16.msra.mxu0 0
  %4690 = vmatprep.subr.bf16.mxu0 0
  %4691 = vmatpush1.bf16.msra.mxu0 0
  %4692 = vmatprep.subr.bf16.mxu0 0
  %4693 = vmatpush1.bf16.msra.mxu0 0
  %4694 = vmatprep.subr.bf16.mxu0 0
  %4695 = vmatpush1.bf16.msra.mxu0 0
  %4696 = vmatprep.subr.bf16.mxu0 0
  %4697 = vmatpush1.bf16.msra.mxu0 0
  %4698 = vmatprep.subr.bf16.mxu0 0
  %4699 = vmatpush1.bf16.msra.mxu0 0
  %4700 = vmatprep.subr.bf16.mxu0 0
  %4701 = vmatpush1.bf16.msra.mxu0 0
  %4702 = vmatprep.subr.bf16.mxu0 0
  %4703 = vmatpush1.bf16.msra.mxu0 0
  %4704 = vmatprep.subr.bf16.mxu0 0
  %4705 = vmatpush1.bf16.msra.mxu0 0
  %4706 = vmatprep.mubr.bf16.mxu0 0
  %4707 = vmatmul.mubr.bf16.gmra.mrb[0].mxu0 %v4492
  %v4708 = vpop.f32.mrb[0].mxu0
  %v4709 = vadd.f32 0.0, %v4708
  %v4710 = vpop.f32.mrb[0].mxu0
  %v4711 = vpop.f32.mrb[0].mxu0
  %v4712 = vpop.f32.mrb[0].mxu0
  %4713 = vdwg.mxu0
  %vm4714 = vcmp.eq.s32.totalorder %v4433, 3
  %v4715 = vsel %vm4714, %v4709, 0.0
  %v4716 = vadd.f32 %v4656, %v4715
  %s4717 = scalar_lea.vmem %s24, 64
  %v4718 = vld [vmem:[%s4717] sm:$0xf]
  %v4719 = vld [vmem:[%s4717 + $0x4] sm:$0xf]
  %v4720 = vld [vmem:[%s4717 + $0x8] sm:$0xf]
  %v4721 = vld [vmem:[%s4717 + $0xc] sm:$0xf]
  %v4726 = vunpack.c.l.b16 %v4718
  %v4727 = vunpack.c.l.b16 %v4719
  %v4728 = vunpack.c.l.b16 %v4720
  %v4729 = vunpack.c.l.b16 %v4721
  %v4730 = vpack.c.b16 %v4727, %v4726
  %v4731 = vpack.c.b16 %v4729, %v4728
  %4734 = vmatprep.subr.bf16.mxu0 0
  %4735 = vmatpush1.bf16.msra.mxu0 %v4730
  %4736 = vmatprep.subr.bf16.mxu0 0
  %4737 = vmatpush1.bf16.msra.mxu0 %v4731
  %4738 = vmatprep.subr.bf16.mxu0 0
  %4739 = vmatpush1.bf16.msra.mxu0 0
  %4740 = vmatprep.subr.bf16.mxu0 0
  %4741 = vmatpush1.bf16.msra.mxu0 0
  %4742 = vmatprep.subr.bf16.mxu0 0
  %4743 = vmatpush1.bf16.msra.mxu0 0
  %4744 = vmatprep.subr.bf16.mxu0 0
  %4745 = vmatpush1.bf16.msra.mxu0 0
  %4746 = vmatprep.subr.bf16.mxu0 0
  %4747 = vmatpush1.bf16.msra.mxu0 0
  %4748 = vmatprep.subr.bf16.mxu0 0
  %4749 = vmatpush1.bf16.msra.mxu0 0
  %4750 = vmatprep.subr.bf16.mxu0 0
  %4751 = vmatpush1.bf16.msra.mxu0 0
  %4752 = vmatprep.subr.bf16.mxu0 0
  %4753 = vmatpush1.bf16.msra.mxu0 0
  %4754 = vmatprep.subr.bf16.mxu0 0
  %4755 = vmatpush1.bf16.msra.mxu0 0
  %4756 = vmatprep.subr.bf16.mxu0 0
  %4757 = vmatpush1.bf16.msra.mxu0 0
  %4758 = vmatprep.subr.bf16.mxu0 0
  %4759 = vmatpush1.bf16.msra.mxu0 0
  %4760 = vmatprep.subr.bf16.mxu0 0
  %4761 = vmatpush1.bf16.msra.mxu0 0
  %4762 = vmatprep.subr.bf16.mxu0 0
  %4763 = vmatpush1.bf16.msra.mxu0 0
  %4764 = vmatprep.subr.bf16.mxu0 0
  %4765 = vmatpush1.bf16.msra.mxu0 0
  %4766 = vmatprep.mubr.bf16.mxu0 0
  %4767 = vmatmul.mubr.bf16.gmra.mrb[0].mxu0 %v4492
  %v4768 = vpop.f32.mrb[0].mxu0
  %v4769 = vadd.f32 0.0, %v4768
  %v4770 = vpop.f32.mrb[0].mxu0
  %v4771 = vpop.f32.mrb[0].mxu0
  %v4772 = vpop.f32.mrb[0].mxu0
  %4773 = vdwg.mxu0
  %vm4774 = vcmp.eq.s32.totalorder %v4433, 4
  %v4775 = vsel %vm4774, %v4769, 0.0
  %v4776 = vadd.f32 %v4716, %v4775
  %s4777 = scalar_lea.vmem %s24, 80
  %v4778 = vld [vmem:[%s4777] sm:$0xf]
  %v4779 = vld [vmem:[%s4777 + $0x4] sm:$0xf]
  %v4780 = vld [vmem:[%s4777 + $0x8] sm:$0xf]
  %v4781 = vld [vmem:[%s4777 + $0xc] sm:$0xf]
  %v4786 = vunpack.c.l.b16 %v4778
  %v4787 = vunpack.c.l.b16 %v4779
  %v4788 = vunpack.c.l.b16 %v4780
  %v4789 = vunpack.c.l.b16 %v4781
  %v4790 = vpack.c.b16 %v4787, %v4786
  %v4791 = vpack.c.b16 %v4789, %v4788
  %4794 = vmatprep.subr.bf16.mxu0 0
  %4795 = vmatpush1.bf16.msra.mxu0 %v4790
  %4796 = vmatprep.subr.bf16.mxu0 0
  %4797 = vmatpush1.bf16.msra.mxu0 %v4791
  %4798 = vmatprep.subr.bf16.mxu0 0
  %4799 = vmatpush1.bf16.msra.mxu0 0
  %4800 = vmatprep.subr.bf16.mxu0 0
  %4801 = vmatpush1.bf16.msra.mxu0 0
  %4802 = vmatprep.subr.bf16.mxu0 0
  %4803 = vmatpush1.bf16.msra.mxu0 0
  %4804 = vmatprep.subr.bf16.mxu0 0
  %4805 = vmatpush1.bf16.msra.mxu0 0
  %4806 = vmatprep.subr.bf16.mxu0 0
  %4807 = vmatpush1.bf16.msra.mxu0 0
  %4808 = vmatprep.subr.bf16.mxu0 0
  %4809 = vmatpush1.bf16.msra.mxu0 0
  %4810 = vmatprep.subr.bf16.mxu0 0
  %4811 = vmatpush1.bf16.msra.mxu0 0
  %4812 = vmatprep.subr.bf16.mxu0 0
  %4813 = vmatpush1.bf16.msra.mxu0 0
  %4814 = vmatprep.subr.bf16.mxu0 0
  %4815 = vmatpush1.bf16.msra.mxu0 0
  %4816 = vmatprep.subr.bf16.mxu0 0
  %4817 = vmatpush1.bf16.msra.mxu0 0
  %4818 = vmatprep.subr.bf16.mxu0 0
  %4819 = vmatpush1.bf16.msra.mxu0 0
  %4820 = vmatprep.subr.bf16.mxu0 0
  %4821 = vmatpush1.bf16.msra.mxu0 0
  %4822 = vmatprep.subr.bf16.mxu0 0
  %4823 = vmatpush1.bf16.msra.mxu0 0
  %4824 = vmatprep.subr.bf16.mxu0 0
  %4825 = vmatpush1.bf16.msra.mxu0 0
  %4826 = vmatprep.mubr.bf16.mxu0 0
  %4827 = vmatmul.mubr.bf16.gmra.mrb[0].mxu0 %v4492
  %v4828 = vpop.f32.mrb[0].mxu0
  %v4829 = vadd.f32 0.0, %v4828
  %v4830 = vpop.f32.mrb[0].mxu0
  %v4831 = vpop.f32.mrb[0].mxu0
  %v4832 = vpop.f32.mrb[0].mxu0
  %4833 = vdwg.mxu0
  %vm4834 = vcmp.eq.s32.totalorder %v4433, 5
  %v4835 = vsel %vm4834, %v4829, 0.0
  %v4836 = vadd.f32 %v4776, %v4835
  %s4837 = scalar_lea.vmem %s24, 96
  %v4838 = vld [vmem:[%s4837] sm:$0xf]
  %v4839 = vld [vmem:[%s4837 + $0x4] sm:$0xf]
  %v4840 = vld [vmem:[%s4837 + $0x8] sm:$0xf]
  %v4841 = vld [vmem:[%s4837 + $0xc] sm:$0xf]
  %v4846 = vunpack.c.l.b16 %v4838
  %v4847 = vunpack.c.l.b16 %v4839
  %v4848 = vunpack.c.l.b16 %v4840
  %v4849 = vunpack.c.l.b16 %v4841
  %v4850 = vpack.c.b16 %v4847, %v4846
  %v4851 = vpack.c.b16 %v4849, %v4848
  %4854 = vmatprep.subr.bf16.mxu0 0
  %4855 = vmatpush1.bf16.msra.mxu0 %v4850
  %4856 = vmatprep.subr.bf16.mxu0 0
  %4857 = vmatpush1.bf16.msra.mxu0 %v4851
  %4858 = vmatprep.subr.bf16.mxu0 0
  %4859 = vmatpush1.bf16.msra.mxu0 0
  %4860 = vmatprep.subr.bf16.mxu0 0
  %4861 = vmatpush1.bf16.msra.mxu0 0
  %4862 = vmatprep.subr.bf16.mxu0 0
  %4863 = vmatpush1.bf16.msra.mxu0 0
  %4864 = vmatprep.subr.bf16.mxu0 0
  %4865 = vmatpush1.bf16.msra.mxu0 0
  %4866 = vmatprep.subr.bf16.mxu0 0
  %4867 = vmatpush1.bf16.msra.mxu0 0
  %4868 = vmatprep.subr.bf16.mxu0 0
  %4869 = vmatpush1.bf16.msra.mxu0 0
  %4870 = vmatprep.subr.bf16.mxu0 0
  %4871 = vmatpush1.bf16.msra.mxu0 0
  %4872 = vmatprep.subr.bf16.mxu0 0
  %4873 = vmatpush1.bf16.msra.mxu0 0
  %4874 = vmatprep.subr.bf16.mxu0 0
  %4875 = vmatpush1.bf16.msra.mxu0 0
  %4876 = vmatprep.subr.bf16.mxu0 0
  %4877 = vmatpush1.bf16.msra.mxu0 0
  %4878 = vmatprep.subr.bf16.mxu0 0
  %4879 = vmatpush1.bf16.msra.mxu0 0
  %4880 = vmatprep.subr.bf16.mxu0 0
  %4881 = vmatpush1.bf16.msra.mxu0 0
  %4882 = vmatprep.subr.bf16.mxu0 0
  %4883 = vmatpush1.bf16.msra.mxu0 0
  %4884 = vmatprep.subr.bf16.mxu0 0
  %4885 = vmatpush1.bf16.msra.mxu0 0
  %4886 = vmatprep.mubr.bf16.mxu0 0
  %4887 = vmatmul.mubr.bf16.gmra.mrb[0].mxu0 %v4492
  %v4888 = vpop.f32.mrb[0].mxu0
  %v4889 = vadd.f32 0.0, %v4888
  %v4890 = vpop.f32.mrb[0].mxu0
  %v4891 = vpop.f32.mrb[0].mxu0
  %v4892 = vpop.f32.mrb[0].mxu0
  %4893 = vdwg.mxu0
  %vm4894 = vcmp.eq.s32.totalorder %v4433, 6
  %v4895 = vsel %vm4894, %v4889, 0.0
  %v4896 = vadd.f32 %v4836, %v4895
  %s4897 = scalar_lea.vmem %s24, 112
  %v4898 = vld [vmem:[%s4897] sm:$0xf]
  %v4899 = vld [vmem:[%s4897 + $0x4] sm:$0xf]
  %v4900 = vld [vmem:[%s4897 + $0x8] sm:$0xf]
  %v4901 = vld [vmem:[%s4897 + $0xc] sm:$0xf]
  %v4906 = vunpack.c.l.b16 %v4898
  %v4907 = vunpack.c.l.b16 %v4899
  %v4908 = vunpack.c.l.b16 %v4900
  %v4909 = vunpack.c.l.b16 %v4901
  %v4910 = vpack.c.b16 %v4907, %v4906
  %v4911 = vpack.c.b16 %v4909, %v4908
  %4914 = vmatprep.subr.bf16.mxu0 0
  %4915 = vmatpush1.bf16.msra.mxu0 %v4910
  %4916 = vmatprep.subr.bf16.mxu0 0
  %4917 = vmatpush1.bf16.msra.mxu0 %v4911
  %4918 = vmatprep.subr.bf16.mxu0 0
  %4919 = vmatpush1.bf16.msra.mxu0 0
  %4920 = vmatprep.subr.bf16.mxu0 0
  %4921 = vmatpush1.bf16.msra.mxu0 0
  %4922 = vmatprep.subr.bf16.mxu0 0
  %4923 = vmatpush1.bf16.msra.mxu0 0
  %4924 = vmatprep.subr.bf16.mxu0 0
  %4925 = vmatpush1.bf16.msra.mxu0 0
  %4926 = vmatprep.subr.bf16.mxu0 0
  %4927 = vmatpush1.bf16.msra.mxu0 0
  %4928 = vmatprep.subr.bf16.mxu0 0
  %4929 = vmatpush1.bf16.msra.mxu0 0
  %4930 = vmatprep.subr.bf16.mxu0 0
  %4931 = vmatpush1.bf16.msra.mxu0 0
  %4932 = vmatprep.subr.bf16.mxu0 0
  %4933 = vmatpush1.bf16.msra.mxu0 0
  %4934 = vmatprep.subr.bf16.mxu0 0
  %4935 = vmatpush1.bf16.msra.mxu0 0
  %4936 = vmatprep.subr.bf16.mxu0 0
  %4937 = vmatpush1.bf16.msra.mxu0 0
  %4938 = vmatprep.subr.bf16.mxu0 0
  %4939 = vmatpush1.bf16.msra.mxu0 0
  %4940 = vmatprep.subr.bf16.mxu0 0
  %4941 = vmatpush1.bf16.msra.mxu0 0
  %4942 = vmatprep.subr.bf16.mxu0 0
  %4943 = vmatpush1.bf16.msra.mxu0 0
  %4944 = vmatprep.subr.bf16.mxu0 0
  %4945 = vmatpush1.bf16.msra.mxu0 0
  %4946 = vmatprep.mubr.bf16.mxu0 0
  %4947 = vmatmul.mubr.bf16.gmra.mrb[0].mxu0 %v4492
  %v4948 = vpop.f32.mrb[0].mxu0
  %v4949 = vadd.f32 0.0, %v4948
  %v4950 = vpop.f32.mrb[0].mxu0
  %v4951 = vpop.f32.mrb[0].mxu0
  %v4952 = vpop.f32.mrb[0].mxu0
  %4953 = vdwg.mxu0
  %vm4954 = vcmp.eq.s32.totalorder %v4433, 7
  %v4955 = vsel %vm4954, %v4949, 0.0
  %v4956 = vadd.f32 %v4896, %v4955
  %v4957 = vxor.u32 %v4956, 2147483648
  %v4958 = vmul.f32 %v4957, 1.442695
  %v4959 = vpow.pop %v4958
  %v4960 = vadd.f32 %v4959, 1.0
  %v4961 = vrcp.pop %v4960
  %v4962 = vmul.f32 1.0, %v4961
  %vm4963 = vcmask 39936
  %4964 = vst.msk [vmem:[%s26] sm:$0xff] %vm4963, %v4962
  %v4965 = vmul.f32 %v2599, %v2599
  %v4966 = vsel %vm420, %v4965, 0.0
  %4967 = vadd.xlane.f32.xlu0 %v4966
  %v4968 = vpop.xlane.xlu0 %4967
  %v4969 = vmul.f32 %v4968, %v384
  %v4970 = vadd.f32 %v4969, 1e-06
  %v4971 = vrsqrt.pop %v4970
  %v4972 = vmul.f32 %v2599, %v4971
  %v4973 = vmul.f32 %v4972, %v4446
  %v4974 = vmul.f32 %v4430, %v4430
  %v4975 = vsel %vm420, %v4974, 0.0
  %4976 = vadd.xlane.f32.xlu0 %v4975
  %v4977 = vpop.xlane.xlu0 %4976
  %v4978 = vmul.f32 %v4977, %v384
  %v4979 = vadd.f32 %v4978, 1e-06
  %v4980 = vrsqrt.pop %v4979
  %v4981 = vmul.f32 %v4430, %v4980
  %v4982 = vmul.f32 %v4981, %v4446
  %v4983 = vmul.f32 %v4973, 4.0
  %v4984 = vmul.f32 %v4982, 4.0
  %v4985 = vmax.f32 %v4983, %v4984
  %v4986 = vsub.f32 %v4983, %v4985
  %v4987 = vmul.f32 %v4986, 1.442695
  %v4988 = vpow.pop %v4987
  %v4989 = vmul.f32 %v4973, %v4988
  %v4990 = vsub.f32 %v4984, %v4985
  %v4991 = vmul.f32 %v4990, 1.442695
  %v4992 = vpow.pop %v4991
  %v4993 = vadd.f32 %v4988, %v4992
  %v4994 = vmul.f32 %v4982, %v4992
  %v4995 = vadd.f32 %v4989, %v4994
  %v4996 = vrcp.pop %v4993
  %v4997 = vmul.f32 %v4995, %v4996
  %v4998 = vld [vmem:[%s25] sm:$0xff]
  %v4999 = vld [vmem:[%s24] sm:$0xf]
  %v5000 = vld [vmem:[%s24 + $0x4] sm:$0xf]
  %v5001 = vld [vmem:[%s24 + $0x8] sm:$0xf]
  %v5002 = vld [vmem:[%s24 + $0xc] sm:$0xf]
  %v5003 = vpack.c.bf16 %v4997, %v4997
  %v5008 = vunpack.c.l.b16 %v4999
  %v5009 = vunpack.c.l.b16 %v5000
  %v5010 = vunpack.c.l.b16 %v5001
  %v5011 = vunpack.c.l.b16 %v5002
  %v5012 = vpack.c.b16 %v5009, %v5008
  %v5013 = vpack.c.b16 %v5011, %v5010
  %v5017 = vsel %vm420, %v5003, 0
  %5019 = vmatprep.subr.bf16.mxu0 0
  %5020 = vmatpush1.bf16.msra.mxu0 %v5012
  %5021 = vmatprep.subr.bf16.mxu0 0
  %5022 = vmatpush1.bf16.msra.mxu0 %v5013
  %5023 = vmatprep.subr.bf16.mxu0 0
  %5024 = vmatpush1.bf16.msra.mxu0 0
  %5025 = vmatprep.subr.bf16.mxu0 0
  %5026 = vmatpush1.bf16.msra.mxu0 0
  %5027 = vmatprep.subr.bf16.mxu0 0
  %5028 = vmatpush1.bf16.msra.mxu0 0
  %5029 = vmatprep.subr.bf16.mxu0 0
  %5030 = vmatpush1.bf16.msra.mxu0 0
  %5031 = vmatprep.subr.bf16.mxu0 0
  %5032 = vmatpush1.bf16.msra.mxu0 0
  %5033 = vmatprep.subr.bf16.mxu0 0
  %5034 = vmatpush1.bf16.msra.mxu0 0
  %5035 = vmatprep.subr.bf16.mxu0 0
  %5036 = vmatpush1.bf16.msra.mxu0 0
  %5037 = vmatprep.subr.bf16.mxu0 0
  %5038 = vmatpush1.bf16.msra.mxu0 0
  %5039 = vmatprep.subr.bf16.mxu0 0
  %5040 = vmatpush1.bf16.msra.mxu0 0
  %5041 = vmatprep.subr.bf16.mxu0 0
  %5042 = vmatpush1.bf16.msra.mxu0 0
  %5043 = vmatprep.subr.bf16.mxu0 0
  %5044 = vmatpush1.bf16.msra.mxu0 0
  %5045 = vmatprep.subr.bf16.mxu0 0
  %5046 = vmatpush1.bf16.msra.mxu0 0
  %5047 = vmatprep.subr.bf16.mxu0 0
  %5048 = vmatpush1.bf16.msra.mxu0 0
  %5049 = vmatprep.subr.bf16.mxu0 0
  %5050 = vmatpush1.bf16.msra.mxu0 0
  %5051 = vmatprep.mubr.bf16.mxu0 0
  %5052 = vmatmul.mubr.bf16.gmra.mrb[0].mxu0 %v5017
  %v5053 = vpop.f32.mrb[0].mxu0
  %v5054 = vadd.f32 0.0, %v5053
  %v5055 = vpop.f32.mrb[0].mxu0
  %v5056 = vpop.f32.mrb[0].mxu0
  %v5057 = vpop.f32.mrb[0].mxu0
  %5058 = vdwg.mxu0
  %v5059 = vsel %vm4534, %v5054, 0.0
  %v5060 = vadd.f32 %v4998, %v5059
  %v5061 = vld [vmem:[%s4537] sm:$0xf]
  %v5062 = vld [vmem:[%s4537 + $0x4] sm:$0xf]
  %v5063 = vld [vmem:[%s4537 + $0x8] sm:$0xf]
  %v5064 = vld [vmem:[%s4537 + $0xc] sm:$0xf]
  %v5069 = vunpack.c.l.b16 %v5061
  %v5070 = vunpack.c.l.b16 %v5062
  %v5071 = vunpack.c.l.b16 %v5063
  %v5072 = vunpack.c.l.b16 %v5064
  %v5073 = vpack.c.b16 %v5070, %v5069
  %v5074 = vpack.c.b16 %v5072, %v5071
  %5077 = vmatprep.subr.bf16.mxu0 0
  %5078 = vmatpush1.bf16.msra.mxu0 %v5073
  %5079 = vmatprep.subr.bf16.mxu0 0
  %5080 = vmatpush1.bf16.msra.mxu0 %v5074
  %5081 = vmatprep.subr.bf16.mxu0 0
  %5082 = vmatpush1.bf16.msra.mxu0 0
  %5083 = vmatprep.subr.bf16.mxu0 0
  %5084 = vmatpush1.bf16.msra.mxu0 0
  %5085 = vmatprep.subr.bf16.mxu0 0
  %5086 = vmatpush1.bf16.msra.mxu0 0
  %5087 = vmatprep.subr.bf16.mxu0 0
  %5088 = vmatpush1.bf16.msra.mxu0 0
  %5089 = vmatprep.subr.bf16.mxu0 0
  %5090 = vmatpush1.bf16.msra.mxu0 0
  %5091 = vmatprep.subr.bf16.mxu0 0
  %5092 = vmatpush1.bf16.msra.mxu0 0
  %5093 = vmatprep.subr.bf16.mxu0 0
  %5094 = vmatpush1.bf16.msra.mxu0 0
  %5095 = vmatprep.subr.bf16.mxu0 0
  %5096 = vmatpush1.bf16.msra.mxu0 0
  %5097 = vmatprep.subr.bf16.mxu0 0
  %5098 = vmatpush1.bf16.msra.mxu0 0
  %5099 = vmatprep.subr.bf16.mxu0 0
  %5100 = vmatpush1.bf16.msra.mxu0 0
  %5101 = vmatprep.subr.bf16.mxu0 0
  %5102 = vmatpush1.bf16.msra.mxu0 0
  %5103 = vmatprep.subr.bf16.mxu0 0
  %5104 = vmatpush1.bf16.msra.mxu0 0
  %5105 = vmatprep.subr.bf16.mxu0 0
  %5106 = vmatpush1.bf16.msra.mxu0 0
  %5107 = vmatprep.subr.bf16.mxu0 0
  %5108 = vmatpush1.bf16.msra.mxu0 0
  %5109 = vmatprep.mubr.bf16.mxu0 0
  %5110 = vmatmul.mubr.bf16.gmra.mrb[0].mxu0 %v5017
  %v5111 = vpop.f32.mrb[0].mxu0
  %v5112 = vadd.f32 0.0, %v5111
  %v5113 = vpop.f32.mrb[0].mxu0
  %v5114 = vpop.f32.mrb[0].mxu0
  %v5115 = vpop.f32.mrb[0].mxu0
  %5116 = vdwg.mxu0
  %v5117 = vsel %vm4594, %v5112, 0.0
  %v5118 = vadd.f32 %v5060, %v5117
  %v5119 = vld [vmem:[%s4597] sm:$0xf]
  %v5120 = vld [vmem:[%s4597 + $0x4] sm:$0xf]
  %v5121 = vld [vmem:[%s4597 + $0x8] sm:$0xf]
  %v5122 = vld [vmem:[%s4597 + $0xc] sm:$0xf]
  %v5127 = vunpack.c.l.b16 %v5119
  %v5128 = vunpack.c.l.b16 %v5120
  %v5129 = vunpack.c.l.b16 %v5121
  %v5130 = vunpack.c.l.b16 %v5122
  %v5131 = vpack.c.b16 %v5128, %v5127
  %v5132 = vpack.c.b16 %v5130, %v5129
  %5135 = vmatprep.subr.bf16.mxu0 0
  %5136 = vmatpush1.bf16.msra.mxu0 %v5131
  %5137 = vmatprep.subr.bf16.mxu0 0
  %5138 = vmatpush1.bf16.msra.mxu0 %v5132
  %5139 = vmatprep.subr.bf16.mxu0 0
  %5140 = vmatpush1.bf16.msra.mxu0 0
  %5141 = vmatprep.subr.bf16.mxu0 0
  %5142 = vmatpush1.bf16.msra.mxu0 0
  %5143 = vmatprep.subr.bf16.mxu0 0
  %5144 = vmatpush1.bf16.msra.mxu0 0
  %5145 = vmatprep.subr.bf16.mxu0 0
  %5146 = vmatpush1.bf16.msra.mxu0 0
  %5147 = vmatprep.subr.bf16.mxu0 0
  %5148 = vmatpush1.bf16.msra.mxu0 0
  %5149 = vmatprep.subr.bf16.mxu0 0
  %5150 = vmatpush1.bf16.msra.mxu0 0
  %5151 = vmatprep.subr.bf16.mxu0 0
  %5152 = vmatpush1.bf16.msra.mxu0 0
  %5153 = vmatprep.subr.bf16.mxu0 0
  %5154 = vmatpush1.bf16.msra.mxu0 0
  %5155 = vmatprep.subr.bf16.mxu0 0
  %5156 = vmatpush1.bf16.msra.mxu0 0
  %5157 = vmatprep.subr.bf16.mxu0 0
  %5158 = vmatpush1.bf16.msra.mxu0 0
  %5159 = vmatprep.subr.bf16.mxu0 0
  %5160 = vmatpush1.bf16.msra.mxu0 0
  %5161 = vmatprep.subr.bf16.mxu0 0
  %5162 = vmatpush1.bf16.msra.mxu0 0
  %5163 = vmatprep.subr.bf16.mxu0 0
  %5164 = vmatpush1.bf16.msra.mxu0 0
  %5165 = vmatprep.subr.bf16.mxu0 0
  %5166 = vmatpush1.bf16.msra.mxu0 0
  %5167 = vmatprep.mubr.bf16.mxu0 0
  %5168 = vmatmul.mubr.bf16.gmra.mrb[0].mxu0 %v5017
  %v5169 = vpop.f32.mrb[0].mxu0
  %v5170 = vadd.f32 0.0, %v5169
  %v5171 = vpop.f32.mrb[0].mxu0
  %v5172 = vpop.f32.mrb[0].mxu0
  %v5173 = vpop.f32.mrb[0].mxu0
  %5174 = vdwg.mxu0
  %v5175 = vsel %vm4654, %v5170, 0.0
  %v5176 = vadd.f32 %v5118, %v5175
  %v5177 = vld [vmem:[%s4657] sm:$0xf]
  %v5178 = vld [vmem:[%s4657 + $0x4] sm:$0xf]
  %v5179 = vld [vmem:[%s4657 + $0x8] sm:$0xf]
  %v5180 = vld [vmem:[%s4657 + $0xc] sm:$0xf]
  %v5185 = vunpack.c.l.b16 %v5177
  %v5186 = vunpack.c.l.b16 %v5178
  %v5187 = vunpack.c.l.b16 %v5179
  %v5188 = vunpack.c.l.b16 %v5180
  %v5189 = vpack.c.b16 %v5186, %v5185
  %v5190 = vpack.c.b16 %v5188, %v5187
  %5193 = vmatprep.subr.bf16.mxu0 0
  %5194 = vmatpush1.bf16.msra.mxu0 %v5189
  %5195 = vmatprep.subr.bf16.mxu0 0
  %5196 = vmatpush1.bf16.msra.mxu0 %v5190
  %5197 = vmatprep.subr.bf16.mxu0 0
  %5198 = vmatpush1.bf16.msra.mxu0 0
  %5199 = vmatprep.subr.bf16.mxu0 0
  %5200 = vmatpush1.bf16.msra.mxu0 0
  %5201 = vmatprep.subr.bf16.mxu0 0
  %5202 = vmatpush1.bf16.msra.mxu0 0
  %5203 = vmatprep.subr.bf16.mxu0 0
  %5204 = vmatpush1.bf16.msra.mxu0 0
  %5205 = vmatprep.subr.bf16.mxu0 0
  %5206 = vmatpush1.bf16.msra.mxu0 0
  %5207 = vmatprep.subr.bf16.mxu0 0
  %5208 = vmatpush1.bf16.msra.mxu0 0
  %5209 = vmatprep.subr.bf16.mxu0 0
  %5210 = vmatpush1.bf16.msra.mxu0 0
  %5211 = vmatprep.subr.bf16.mxu0 0
  %5212 = vmatpush1.bf16.msra.mxu0 0
  %5213 = vmatprep.subr.bf16.mxu0 0
  %5214 = vmatpush1.bf16.msra.mxu0 0
  %5215 = vmatprep.subr.bf16.mxu0 0
  %5216 = vmatpush1.bf16.msra.mxu0 0
  %5217 = vmatprep.subr.bf16.mxu0 0
  %5218 = vmatpush1.bf16.msra.mxu0 0
  %5219 = vmatprep.subr.bf16.mxu0 0
  %5220 = vmatpush1.bf16.msra.mxu0 0
  %5221 = vmatprep.subr.bf16.mxu0 0
  %5222 = vmatpush1.bf16.msra.mxu0 0
  %5223 = vmatprep.subr.bf16.mxu0 0
  %5224 = vmatpush1.bf16.msra.mxu0 0
  %5225 = vmatprep.mubr.bf16.mxu0 0
  %5226 = vmatmul.mubr.bf16.gmra.mrb[0].mxu0 %v5017
  %v5227 = vpop.f32.mrb[0].mxu0
  %v5228 = vadd.f32 0.0, %v5227
  %v5229 = vpop.f32.mrb[0].mxu0
  %v5230 = vpop.f32.mrb[0].mxu0
  %v5231 = vpop.f32.mrb[0].mxu0
  %5232 = vdwg.mxu0
  %v5233 = vsel %vm4714, %v5228, 0.0
  %v5234 = vadd.f32 %v5176, %v5233
  %v5235 = vld [vmem:[%s4717] sm:$0xf]
  %v5236 = vld [vmem:[%s4717 + $0x4] sm:$0xf]
  %v5237 = vld [vmem:[%s4717 + $0x8] sm:$0xf]
  %v5238 = vld [vmem:[%s4717 + $0xc] sm:$0xf]
  %v5243 = vunpack.c.l.b16 %v5235
  %v5244 = vunpack.c.l.b16 %v5236
  %v5245 = vunpack.c.l.b16 %v5237
  %v5246 = vunpack.c.l.b16 %v5238
  %v5247 = vpack.c.b16 %v5244, %v5243
  %v5248 = vpack.c.b16 %v5246, %v5245
  %5251 = vmatprep.subr.bf16.mxu0 0
  %5252 = vmatpush1.bf16.msra.mxu0 %v5247
  %5253 = vmatprep.subr.bf16.mxu0 0
  %5254 = vmatpush1.bf16.msra.mxu0 %v5248
  %5255 = vmatprep.subr.bf16.mxu0 0
  %5256 = vmatpush1.bf16.msra.mxu0 0
  %5257 = vmatprep.subr.bf16.mxu0 0
  %5258 = vmatpush1.bf16.msra.mxu0 0
  %5259 = vmatprep.subr.bf16.mxu0 0
  %5260 = vmatpush1.bf16.msra.mxu0 0
  %5261 = vmatprep.subr.bf16.mxu0 0
  %5262 = vmatpush1.bf16.msra.mxu0 0
  %5263 = vmatprep.subr.bf16.mxu0 0
  %5264 = vmatpush1.bf16.msra.mxu0 0
  %5265 = vmatprep.subr.bf16.mxu0 0
  %5266 = vmatpush1.bf16.msra.mxu0 0
  %5267 = vmatprep.subr.bf16.mxu0 0
  %5268 = vmatpush1.bf16.msra.mxu0 0
  %5269 = vmatprep.subr.bf16.mxu0 0
  %5270 = vmatpush1.bf16.msra.mxu0 0
  %5271 = vmatprep.subr.bf16.mxu0 0
  %5272 = vmatpush1.bf16.msra.mxu0 0
  %5273 = vmatprep.subr.bf16.mxu0 0
  %5274 = vmatpush1.bf16.msra.mxu0 0
  %5275 = vmatprep.subr.bf16.mxu0 0
  %5276 = vmatpush1.bf16.msra.mxu0 0
  %5277 = vmatprep.subr.bf16.mxu0 0
  %5278 = vmatpush1.bf16.msra.mxu0 0
  %5279 = vmatprep.subr.bf16.mxu0 0
  %5280 = vmatpush1.bf16.msra.mxu0 0
  %5281 = vmatprep.subr.bf16.mxu0 0
  %5282 = vmatpush1.bf16.msra.mxu0 0
  %5283 = vmatprep.mubr.bf16.mxu0 0
  %5284 = vmatmul.mubr.bf16.gmra.mrb[0].mxu0 %v5017
  %v5285 = vpop.f32.mrb[0].mxu0
  %v5286 = vadd.f32 0.0, %v5285
  %v5287 = vpop.f32.mrb[0].mxu0
  %v5288 = vpop.f32.mrb[0].mxu0
  %v5289 = vpop.f32.mrb[0].mxu0
  %5290 = vdwg.mxu0
  %v5291 = vsel %vm4774, %v5286, 0.0
  %v5292 = vadd.f32 %v5234, %v5291
  %v5293 = vld [vmem:[%s4777] sm:$0xf]
  %v5294 = vld [vmem:[%s4777 + $0x4] sm:$0xf]
  %v5295 = vld [vmem:[%s4777 + $0x8] sm:$0xf]
  %v5296 = vld [vmem:[%s4777 + $0xc] sm:$0xf]
  %v5301 = vunpack.c.l.b16 %v5293
  %v5302 = vunpack.c.l.b16 %v5294
  %v5303 = vunpack.c.l.b16 %v5295
  %v5304 = vunpack.c.l.b16 %v5296
  %v5305 = vpack.c.b16 %v5302, %v5301
  %v5306 = vpack.c.b16 %v5304, %v5303
  %5309 = vmatprep.subr.bf16.mxu0 0
  %5310 = vmatpush1.bf16.msra.mxu0 %v5305
  %5311 = vmatprep.subr.bf16.mxu0 0
  %5312 = vmatpush1.bf16.msra.mxu0 %v5306
  %5313 = vmatprep.subr.bf16.mxu0 0
  %5314 = vmatpush1.bf16.msra.mxu0 0
  %5315 = vmatprep.subr.bf16.mxu0 0
  %5316 = vmatpush1.bf16.msra.mxu0 0
  %5317 = vmatprep.subr.bf16.mxu0 0
  %5318 = vmatpush1.bf16.msra.mxu0 0
  %5319 = vmatprep.subr.bf16.mxu0 0
  %5320 = vmatpush1.bf16.msra.mxu0 0
  %5321 = vmatprep.subr.bf16.mxu0 0
  %5322 = vmatpush1.bf16.msra.mxu0 0
  %5323 = vmatprep.subr.bf16.mxu0 0
  %5324 = vmatpush1.bf16.msra.mxu0 0
  %5325 = vmatprep.subr.bf16.mxu0 0
  %5326 = vmatpush1.bf16.msra.mxu0 0
  %5327 = vmatprep.subr.bf16.mxu0 0
  %5328 = vmatpush1.bf16.msra.mxu0 0
  %5329 = vmatprep.subr.bf16.mxu0 0
  %5330 = vmatpush1.bf16.msra.mxu0 0
  %5331 = vmatprep.subr.bf16.mxu0 0
  %5332 = vmatpush1.bf16.msra.mxu0 0
  %5333 = vmatprep.subr.bf16.mxu0 0
  %5334 = vmatpush1.bf16.msra.mxu0 0
  %5335 = vmatprep.subr.bf16.mxu0 0
  %5336 = vmatpush1.bf16.msra.mxu0 0
  %5337 = vmatprep.subr.bf16.mxu0 0
  %5338 = vmatpush1.bf16.msra.mxu0 0
  %5339 = vmatprep.subr.bf16.mxu0 0
  %5340 = vmatpush1.bf16.msra.mxu0 0
  %5341 = vmatprep.mubr.bf16.mxu0 0
  %5342 = vmatmul.mubr.bf16.gmra.mrb[0].mxu0 %v5017
  %v5343 = vpop.f32.mrb[0].mxu0
  %v5344 = vadd.f32 0.0, %v5343
  %v5345 = vpop.f32.mrb[0].mxu0
  %v5346 = vpop.f32.mrb[0].mxu0
  %v5347 = vpop.f32.mrb[0].mxu0
  %5348 = vdwg.mxu0
  %v5349 = vsel %vm4834, %v5344, 0.0
  %v5350 = vadd.f32 %v5292, %v5349
  %v5351 = vld [vmem:[%s4837] sm:$0xf]
  %v5352 = vld [vmem:[%s4837 + $0x4] sm:$0xf]
  %v5353 = vld [vmem:[%s4837 + $0x8] sm:$0xf]
  %v5354 = vld [vmem:[%s4837 + $0xc] sm:$0xf]
  %v5359 = vunpack.c.l.b16 %v5351
  %v5360 = vunpack.c.l.b16 %v5352
  %v5361 = vunpack.c.l.b16 %v5353
  %v5362 = vunpack.c.l.b16 %v5354
  %v5363 = vpack.c.b16 %v5360, %v5359
  %v5364 = vpack.c.b16 %v5362, %v5361
  %5367 = vmatprep.subr.bf16.mxu0 0
  %5368 = vmatpush1.bf16.msra.mxu0 %v5363
  %5369 = vmatprep.subr.bf16.mxu0 0
  %5370 = vmatpush1.bf16.msra.mxu0 %v5364
  %5371 = vmatprep.subr.bf16.mxu0 0
  %5372 = vmatpush1.bf16.msra.mxu0 0
  %5373 = vmatprep.subr.bf16.mxu0 0
  %5374 = vmatpush1.bf16.msra.mxu0 0
  %5375 = vmatprep.subr.bf16.mxu0 0
  %5376 = vmatpush1.bf16.msra.mxu0 0
  %5377 = vmatprep.subr.bf16.mxu0 0
  %5378 = vmatpush1.bf16.msra.mxu0 0
  %5379 = vmatprep.subr.bf16.mxu0 0
  %5380 = vmatpush1.bf16.msra.mxu0 0
  %5381 = vmatprep.subr.bf16.mxu0 0
  %5382 = vmatpush1.bf16.msra.mxu0 0
  %5383 = vmatprep.subr.bf16.mxu0 0
  %5384 = vmatpush1.bf16.msra.mxu0 0
  %5385 = vmatprep.subr.bf16.mxu0 0
  %5386 = vmatpush1.bf16.msra.mxu0 0
  %5387 = vmatprep.subr.bf16.mxu0 0
  %5388 = vmatpush1.bf16.msra.mxu0 0
  %5389 = vmatprep.subr.bf16.mxu0 0
  %5390 = vmatpush1.bf16.msra.mxu0 0
  %5391 = vmatprep.subr.bf16.mxu0 0
  %5392 = vmatpush1.bf16.msra.mxu0 0
  %5393 = vmatprep.subr.bf16.mxu0 0
  %5394 = vmatpush1.bf16.msra.mxu0 0
  %5395 = vmatprep.subr.bf16.mxu0 0
  %5396 = vmatpush1.bf16.msra.mxu0 0
  %5397 = vmatprep.subr.bf16.mxu0 0
  %5398 = vmatpush1.bf16.msra.mxu0 0
  %5399 = vmatprep.mubr.bf16.mxu0 0
  %5400 = vmatmul.mubr.bf16.gmra.mrb[0].mxu0 %v5017
  %v5401 = vpop.f32.mrb[0].mxu0
  %v5402 = vadd.f32 0.0, %v5401
  %v5403 = vpop.f32.mrb[0].mxu0
  %v5404 = vpop.f32.mrb[0].mxu0
  %v5405 = vpop.f32.mrb[0].mxu0
  %5406 = vdwg.mxu0
  %v5407 = vsel %vm4894, %v5402, 0.0
  %v5408 = vadd.f32 %v5350, %v5407
  %v5409 = vld [vmem:[%s4897] sm:$0xf]
  %v5410 = vld [vmem:[%s4897 + $0x4] sm:$0xf]
  %v5411 = vld [vmem:[%s4897 + $0x8] sm:$0xf]
  %v5412 = vld [vmem:[%s4897 + $0xc] sm:$0xf]
  %v5417 = vunpack.c.l.b16 %v5409
  %v5418 = vunpack.c.l.b16 %v5410
  %v5419 = vunpack.c.l.b16 %v5411
  %v5420 = vunpack.c.l.b16 %v5412
  %v5421 = vpack.c.b16 %v5418, %v5417
  %v5422 = vpack.c.b16 %v5420, %v5419
  %5425 = vmatprep.subr.bf16.mxu0 0
  %5426 = vmatpush1.bf16.msra.mxu0 %v5421
  %5427 = vmatprep.subr.bf16.mxu0 0
  %5428 = vmatpush1.bf16.msra.mxu0 %v5422
  %5429 = vmatprep.subr.bf16.mxu0 0
  %5430 = vmatpush1.bf16.msra.mxu0 0
  %5431 = vmatprep.subr.bf16.mxu0 0
  %5432 = vmatpush1.bf16.msra.mxu0 0
  %5433 = vmatprep.subr.bf16.mxu0 0
  %5434 = vmatpush1.bf16.msra.mxu0 0
  %5435 = vmatprep.subr.bf16.mxu0 0
  %5436 = vmatpush1.bf16.msra.mxu0 0
  %5437 = vmatprep.subr.bf16.mxu0 0
  %5438 = vmatpush1.bf16.msra.mxu0 0
  %5439 = vmatprep.subr.bf16.mxu0 0
  %5440 = vmatpush1.bf16.msra.mxu0 0
  %5441 = vmatprep.subr.bf16.mxu0 0
  %5442 = vmatpush1.bf16.msra.mxu0 0
  %5443 = vmatprep.subr.bf16.mxu0 0
  %5444 = vmatpush1.bf16.msra.mxu0 0
  %5445 = vmatprep.subr.bf16.mxu0 0
  %5446 = vmatpush1.bf16.msra.mxu0 0
  %5447 = vmatprep.subr.bf16.mxu0 0
  %5448 = vmatpush1.bf16.msra.mxu0 0
  %5449 = vmatprep.subr.bf16.mxu0 0
  %5450 = vmatpush1.bf16.msra.mxu0 0
  %5451 = vmatprep.subr.bf16.mxu0 0
  %5452 = vmatpush1.bf16.msra.mxu0 0
  %5453 = vmatprep.subr.bf16.mxu0 0
  %5454 = vmatpush1.bf16.msra.mxu0 0
  %5455 = vmatprep.subr.bf16.mxu0 0
  %5456 = vmatpush1.bf16.msra.mxu0 0
  %5457 = vmatprep.mubr.bf16.mxu0 0
  %5458 = vmatmul.mubr.bf16.gmra.mrb[0].mxu0 %v5017
  %v5459 = vpop.f32.mrb[0].mxu0
  %v5460 = vadd.f32 0.0, %v5459
  %v5461 = vpop.f32.mrb[0].mxu0
  %v5462 = vpop.f32.mrb[0].mxu0
  %v5463 = vpop.f32.mrb[0].mxu0
  %5464 = vdwg.mxu0
  %v5465 = vsel %vm4954, %v5460, 0.0
  %v5466 = vadd.f32 %v5408, %v5465
  %v5467 = vxor.u32 %v5466, 2147483648
  %v5468 = vmul.f32 %v5467, 1.442695
  %v5469 = vpow.pop %v5468
  %v5470 = vadd.f32 %v5469, 1.0
  %v5471 = vrcp.pop %v5470
  %v5472 = vmul.f32 1.0, %v5471
  %s5473 = scalar_lea.vmem %s26, 8
  %5474 = vst.msk [vmem:[%s5473] sm:$0xff] %vm4963, %v5472
  // Predicated region
  $region106: #{forward.7} parent=0 // pred_check
    _
  $region107: #{forward.7} parent=0 // pred_check_branch
    %5476 = sbr.rel (0) target = $region109
  $region108: #{forward.7} parent=0 // pred_region
    _
  $region109: #{forward.7} parent=0 // pred_fallthru
    _
  // Predicated region
  $region110: #{forward.7} parent=0 // pred_check
    _
  $region111: #{forward.7} parent=0 // pred_check_branch
    %5478 = sbr.rel (0) target = $region113
  $region112: #{forward.7} parent=0 // pred_region
    _
  $region113: #{forward.7} parent=0 // pred_fallthru
    _

</llo_original>
